<compile_context>
chip_gen: v6e
topology: v6e:2x2x1
jax: 0.10.0
libtpu: 0.0.40
codegen_flags: <defaults>
</compile_context>

<pallas_src>
import numpy as np
import jax
import jax.numpy as jnp
from jax.experimental import pallas as pl
from jax.experimental.pallas import tpu as pltpu

INPUT_CHANNELS = 4
HIDDEN_CHANNELS = 32     # must be even (collapse pairs consecutive hidden dims)
LIN_SIZE = 32
SEQ_LEN = 8
BATCH = 16               # review #2: grow the MXU M dimension (2 -> 16 is near-free)


def _nqde_kernel(coeffs_ref, w_init_ref, b_init_ref, w1_ref, b1_ref,
                 w2f_ref, b2f_ref, expand_ref, pair_ref, out_ref):
    C = w_init_ref.shape[0]
    H = w_init_ref.shape[1]
    CH = C * H
    L = coeffs_ref.shape[1] // C          # lane-concatenated: (TB, L*C)

    # ---- preamble: load weights / biases once (hoisted out of the serial RK4 chain;
    # broadcast_in_dim is not CSE'd across iterations). -------------------------------
    w_init = w_init_ref[...]              # (C, H)
    b_init = b_init_ref[...]              # (1, H)
    w1 = w1_ref[...]                      # (H, LIN)
    b1 = b1_ref[...]                      # (1, LIN)
    w2f = w2f_ref[...]                    # (LIN, C*H)  channel-blocked
    b2f = b2f_ref[...]                    # (1, C*H)

    coeffs = coeffs_ref[...]              # (TB, L*C)  lane-concatenated path samples

    # X0 = X.evaluate(X.interval[0]) -> first path sample; z0 = initial(X0)
    x0 = coeffs[:, 0:C]                                                   # (TB, C)
    z = jnp.dot(x0, w_init, preferred_element_type=jnp.float32) + b_init  # (TB, H)

    # ---- review #1: hoist ALL dX/dt expansions out of the z-chain. ------------------
    # piecewise-linear path, unit knot spacing: delta[:, i*C + c] = X[i+1, c] - X[i, c]
    deltas = coeffs[:, C:] - coeffs[:, :(L - 1) * C]                      # (TB,(L-1)*C)
    # ONE matmul against a block-diagonal 0/1 expansion matrix gives every step's
    # lane-dense broadcast slab: dx_all[:, i*CH + c*H + h] == delta[:, i*C + c].
    expand = expand_ref[...]                                  # ((L-1)*C, (L-1)*C*H)
    dx_all = jnp.dot(deltas, expand,
                     preferred_element_type=jnp.float32)      # (TB, (L-1)*C*H)

    def vector_field(z_in, dx_wide):
        # QDEFunc(z) contracted with dX/dt, fused over channels:
        #   h = relu(z @ w1 + b1)                         (TB, LIN)
        #   f = tanh(h @ w2f + b2f)                       (TB, C*H) lane-dense slab
        #   dz = sum_c f[:, c*H:(c+1)*H] * dXdt[:, c]     via precomputed dx_wide
        h = jnp.dot(z_in, w1, preferred_element_type=jnp.float32) + b1
        h = jnp.maximum(h, 0.0)
        f = jnp.tanh(jnp.dot(h, w2f, preferred_element_type=jnp.float32) + b2f)
        prod = f * dx_wide                                                # (TB, C*H)
        dz = prod[:, 0:H]
        for c in range(1, C):              # intra-tile lane selects (XLU), review #5
            dz = dz + prod[:, c * H:(c + 1) * H]
        return dz

    # ---- fixed-step RK4 over the L-1 unit-spaced knots, fully unrolled (L static). ---
    for i in range(L - 1):
        dx_wide = dx_all[:, i * CH:(i + 1) * CH]    # 128-lane-aligned slice, no matmul
        k1 = vector_field(z, dx_wide)
        k2 = vector_field(z + 0.5 * k1, dx_wide)
        k3 = vector_field(z + 0.5 * k2, dx_wide)
        k4 = vector_field(z + k3, dx_wide)
        z = z + (k1 + 2.0 * k2 + 2.0 * k3 + k4) * (1.0 / 6.0)

    # ---- collapse: sum of squares over consecutive hidden pairs, then softmax. -------
    pair = pair_ref[...]                  # (H, H//2) -- loaded late (review #7: vregs)
    zsq = z * z
    s = jnp.dot(zsq, pair, preferred_element_type=jnp.float32)            # (TB, H//2)
    s = s - jnp.max(s, axis=1, keepdims=True)
    e = jnp.exp(s)
    out_ref[...] = e / jnp.sum(e, axis=1, keepdims=True)


def neural_qde_forward(coeffs, params, batch_block=None):
    """coeffs: (B, L, C) float32 path samples (linear-interpolation knots).

    batch_block: optional batch tile TB (multiple of 8).  Default = whole batch in one
    block (best on single-TC v5e/v6e at small B).  Set TB = B // 2 (or smaller) on v7x
    once B > 8 so the ("parallel",) batch grid spreads blocks across both TensorCores.
    """
    B, L, C = coeffs.shape
    H = params["w_init"].shape[1]
    LIN = params["w1"].shape[1]

    TB = B if batch_block is None else int(batch_block)
    assert B % TB == 0, "batch must divide evenly into batch blocks"
    assert TB == B or TB % 8 == 0, "batch block must be a multiple of 8 (f32 sublanes)"
    grid = (B // TB,)

    # Layout plumbing only (no wrapper compute): lane-concatenate the L samples of each
    # sequence so every batch block is a contiguous (TB, L*C) slab.
    coeffs_flat = coeffs.reshape(B, L * C)

    # Block-diagonal 0/1 expansion matrix: row i*C + c broadcasts step i's channel-c
    # delta across lanes [i*C*H + c*H, i*C*H + (c+1)*H).
    expand_one = np.repeat(np.eye(C, dtype=np.float32), H, axis=1)        # (C, C*H)
    expand = jnp.asarray(np.kron(np.eye(L - 1, dtype=np.float32), expand_one))

    in_specs = [
        pl.BlockSpec((TB, L * C), lambda g: (g, 0)),                      # path block
        pl.BlockSpec((C, H), lambda g: (0, 0)),                           # w_init
        pl.BlockSpec((1, H), lambda g: (0, 0)),                           # b_init
        pl.BlockSpec((H, LIN), lambda g: (0, 0)),                         # w1
        pl.BlockSpec((1, LIN), lambda g: (0, 0)),                         # b1
        pl.BlockSpec((LIN, C * H), lambda g: (0, 0)),                     # w2f
        pl.BlockSpec((1, C * H), lambda g: (0, 0)),                       # b2f
        pl.BlockSpec(((L - 1) * C, (L - 1) * C * H), lambda g: (0, 0)),   # expand
        pl.BlockSpec((H, H // 2), lambda g: (0, 0)),                      # pair
    ]
    out_spec = pl.BlockSpec((TB, H // 2), lambda g: (g, 0))

    return pl.pallas_call(
        _nqde_kernel,
        out_shape=jax.ShapeDtypeStruct((B, H // 2), jnp.float32),
        grid=grid,
        in_specs=in_specs,
        out_specs=out_spec,
        compiler_params=pltpu.CompilerParams(
            dimension_semantics=("parallel",)),   # review #3: v7x megacore batch split
    )(coeffs_flat, params["w_init"], params["b_init"], params["w1"], params["b1"],
      params["w2f"], params["b2f"], expand, params["pair"])


def init_params(key, input_channels=INPUT_CHANNELS, hidden=HIDDEN_CHANNELS,
                lin_size=LIN_SIZE):
    """Deterministic PyTorch-style (uniform +-1/sqrt(fan_in)) Linear init."""
    def linear_init(k, fan_in, fan_out):
        kw, kb = jax.random.split(k)
        bound = 1.0 / np.sqrt(fan_in)
        w = jax.random.uniform(kw, (fan_in, fan_out), jnp.float32, -bound, bound)
        b = jax.random.uniform(kb, (1, fan_out), jnp.float32, -bound, bound)
        return w, b

    k0, k1, k2 = jax.random.split(key, 3)
    w_init, b_init = linear_init(k0, input_channels, hidden)          # initial: C -> H
    w1, b1 = linear_init(k1, hidden, lin_size)                        # func.linear1
    w2, b2 = linear_init(k2, lin_size, hidden * input_channels)       # func.linear2

    # PyTorch .view(B, H, C) on the flat linear2 output means flat index = h*C + c.
    # Repack the flat weight into a CHANNEL-BLOCKED fused matrix for the kernel:
    #   w2f[:, c*H + h] = w2[:, h*C + c]   (one 128-lane-wide matmul per vf eval).
    w2f = jnp.transpose(w2.reshape(lin_size, hidden, input_channels),
                        (0, 2, 1)).reshape(lin_size, input_channels * hidden)
    b2f = jnp.transpose(b2.reshape(1, hidden, input_channels),
                        (0, 2, 1)).reshape(1, input_channels * hidden)

    # pairing matrix: hidden dims 2j and 2j+1 both map to output column j.
    pair = jnp.repeat(jnp.eye(hidden // 2, dtype=jnp.float32), 2, axis=0)  # (H, H//2)

    return {"w_init": w_init, "b_init": b_init, "w1": w1, "b1": b1,
            "w2_raw": w2, "b2_raw": b2,            # flat layout (reference only)
            "w2f": w2f, "b2f": b2f, "pair": pair}


def reference_forward(coeffs, p):
    """Pure-JAX reference of the same forward, using the ORIGINAL flat (h*C + c)
    linear2 layout and exact per-step broadcasts -- independently validates both the
    fused channel-blocked repacking and the hoisted block-diagonal expansion."""
    B, L, C = coeffs.shape
    H = p["w_init"].shape[1]
    z = coeffs[:, 0] @ p["w_init"] + p["b_init"]

    def vf(z, dXdt):
        h = jnp.maximum(z @ p["w1"] + p["b1"], 0.0)
        f = jnp.tanh(h @ p["w2_raw"] + p["b2_raw"]).reshape(B, H, C)   # flat = h*C + c
        dz = jnp.zeros_like(z)
        for c in range(C):
            dz = dz + f[:, :, c] * dXdt[:, c:c + 1]
        return dz

    for i in range(L - 1):
        dXdt = coeffs[:, i + 1] - coeffs[:, i]
        k1 = vf(z, dXdt)
        k2 = vf(z + 0.5 * k1, dXdt)
        k3 = vf(z + 0.5 * k2, dXdt)
        k4 = vf(z + k3, dXdt)
        z = z + (k1 + 2 * k2 + 2 * k3 + k4) / 6.0

    s = (z * z) @ p["pair"]
    return jax.nn.softmax(s, axis=1)


if __name__ == "__main__":
    key = jax.random.PRNGKey(0)
    k_params, k_data = jax.random.split(key)

    params = init_params(k_params)
    coeffs = jax.random.normal(k_data, (BATCH, SEQ_LEN, INPUT_CHANNELS), jnp.float32)

    # Single-block invocation (optimal on the single-TC v5e/v6e at this size).
    out = jax.block_until_ready(neural_qde_forward(coeffs, params))
    # Batch-gridded invocation (review #3: v7x megacore path), TB=8 -> grid=(2,).
    out_gridded = jax.block_until_ready(
        neural_qde_forward(coeffs, params, batch_block=8))

    ref = jax.block_until_ready(reference_forward(coeffs, params))

    assert out.shape == (BATCH, HIDDEN_CHANNELS // 2)
    np.testing.assert_allclose(np.asarray(out), np.asarray(ref), rtol=1e-5, atol=1e-6)
    np.testing.assert_allclose(np.asarray(out_gridded), np.asarray(ref),
                               rtol=1e-5, atol=1e-6)
    np.testing.assert_allclose(np.asarray(out).sum(axis=1), 1.0, rtol=1e-5)

    print("KERNEL_OK")
</pallas_src>

<mosaic_0001>
module attributes {stable_mosaic.version = 11 : i64} {
  func.func @_nqde_kernel(%arg0: i32, %arg1: memref<16x32xf32, #tpu.memory_space<vmem>>, %arg2: memref<4x32xf32, #tpu.memory_space<vmem>>, %arg3: memref<1x32xf32, #tpu.memory_space<vmem>>, %arg4: memref<32x32xf32, #tpu.memory_space<vmem>>, %arg5: memref<1x32xf32, #tpu.memory_space<vmem>>, %arg6: memref<32x128xf32, #tpu.memory_space<vmem>>, %arg7: memref<1x128xf32, #tpu.memory_space<vmem>>, %arg8: memref<28x896xf32, #tpu.memory_space<vmem>>, %arg9: memref<32x16xf32, #tpu.memory_space<vmem>>, %arg10: memref<16x16xf32, #tpu.memory_space<vmem>>) attributes {dimension_semantics = [#tpu.dimension_semantics<parallel>], iteration_bounds = array<i64: 1>, scalar_prefetch = 0 : i64, scratch_operands = 0 : i64, tpu.core_type = #tpu.core_type<tc>, window_params = [{transform_indices = @transform_0, window_bounds = array<i64: 16, 32>}, {pipeline_mode = #tpu.pipeline_mode<synchronous>, transform_indices = @transform_1, window_bounds = array<i64: 4, 32>}, {pipeline_mode = #tpu.pipeline_mode<synchronous>, transform_indices = @transform_2, window_bounds = array<i64: 1, 32>}, {pipeline_mode = #tpu.pipeline_mode<synchronous>, transform_indices = @transform_3, window_bounds = array<i64: 32, 32>}, {pipeline_mode = #tpu.pipeline_mode<synchronous>, transform_indices = @transform_4, window_bounds = array<i64: 1, 32>}, {pipeline_mode = #tpu.pipeline_mode<synchronous>, transform_indices = @transform_5, window_bounds = array<i64: 32, 128>}, {pipeline_mode = #tpu.pipeline_mode<synchronous>, transform_indices = @transform_6, window_bounds = array<i64: 1, 128>}, {pipeline_mode = #tpu.pipeline_mode<synchronous>, transform_indices = @transform_7, window_bounds = array<i64: 28, 896>}, {pipeline_mode = #tpu.pipeline_mode<synchronous>, transform_indices = @transform_8, window_bounds = array<i64: 32, 16>}, {transform_indices = @transform_9, window_bounds = array<i64: 16, 16>}]} {
    %c0 = arith.constant 0 : index
    %c0_0 = arith.constant 0 : index
    %0 = vector.load %arg2[%c0, %c0_0] : memref<4x32xf32, #tpu.memory_space<vmem>>, vector<4x32xf32>
    %c0_1 = arith.constant 0 : index
    %c0_2 = arith.constant 0 : index
    %1 = vector.load %arg3[%c0_1, %c0_2] : memref<1x32xf32, #tpu.memory_space<vmem>>, vector<1x32xf32>
    %c0_3 = arith.constant 0 : index
    %c0_4 = arith.constant 0 : index
    %2 = vector.load %arg4[%c0_3, %c0_4] : memref<32x32xf32, #tpu.memory_space<vmem>>, vector<32x32xf32>
    %c0_5 = arith.constant 0 : index
    %c0_6 = arith.constant 0 : index
    %3 = vector.load %arg5[%c0_5, %c0_6] : memref<1x32xf32, #tpu.memory_space<vmem>>, vector<1x32xf32>
    %c0_7 = arith.constant 0 : index
    %c0_8 = arith.constant 0 : index
    %4 = vector.load %arg6[%c0_7, %c0_8] : memref<32x128xf32, #tpu.memory_space<vmem>>, vector<32x128xf32>
    %c0_9 = arith.constant 0 : index
    %c0_10 = arith.constant 0 : index
    %5 = vector.load %arg7[%c0_9, %c0_10] : memref<1x128xf32, #tpu.memory_space<vmem>>, vector<1x128xf32>
    %c0_11 = arith.constant 0 : index
    %c0_12 = arith.constant 0 : index
    %6 = vector.load %arg1[%c0_11, %c0_12] : memref<16x32xf32, #tpu.memory_space<vmem>>, vector<16x32xf32>
    %7 = vector.extract_strided_slice %6 {offsets = [0, 0], sizes = [16, 4], strides = [1, 1]} : vector<16x32xf32> to vector<16x4xf32>
    %cst = arith.constant dense<0.000000e+00> : vector<16x32xf32>
    %8 = tpu.matmul %7, %0, %cst {dimension_numbers = #tpu.dot_dimension_numbers<[1], [0], [0], [1], [0, 0, 1, 1], [], []>} : vector<16x4xf32>, vector<4x32xf32>, vector<16x32xf32> -> vector<16x32xf32>
    %9 = vector.broadcast %1 : vector<1x32xf32> to vector<16x32xf32>
    %10 = arith.addf %8, %9 : vector<16x32xf32>
    %11 = vector.extract_strided_slice %6 {offsets = [0, 4], sizes = [16, 28], strides = [1, 1]} : vector<16x32xf32> to vector<16x28xf32>
    %12 = vector.extract_strided_slice %6 {offsets = [0, 0], sizes = [16, 28], strides = [1, 1]} : vector<16x32xf32> to vector<16x28xf32>
    %13 = arith.subf %11, %12 : vector<16x28xf32>
    %c0_13 = arith.constant 0 : index
    %c0_14 = arith.constant 0 : index
    %14 = vector.load %arg8[%c0_13, %c0_14] : memref<28x896xf32, #tpu.memory_space<vmem>>, vector<28x896xf32>
    %cst_15 = arith.constant dense<0.000000e+00> : vector<16x896xf32>
    %15 = tpu.matmul %13, %14, %cst_15 {dimension_numbers = #tpu.dot_dimension_numbers<[1], [0], [0], [1], [0, 0, 1, 1], [], []>} : vector<16x28xf32>, vector<28x896xf32>, vector<16x896xf32> -> vector<16x896xf32>
    %16 = vector.extract_strided_slice %15 {offsets = [0, 0], sizes = [16, 128], strides = [1, 1]} : vector<16x896xf32> to vector<16x128xf32>
    %cst_16 = arith.constant dense<0.000000e+00> : vector<16x32xf32>
    %17 = tpu.matmul %10, %2, %cst_16 {dimension_numbers = #tpu.dot_dimension_numbers<[1], [0], [0], [1], [0, 0, 1, 1], [], []>} : vector<16x32xf32>, vector<32x32xf32>, vector<16x32xf32> -> vector<16x32xf32>
    %18 = vector.broadcast %3 : vector<1x32xf32> to vector<16x32xf32>
    %19 = arith.addf %17, %18 : vector<16x32xf32>
    %cst_17 = arith.constant 0.000000e+00 : f32
    %20 = vector.broadcast %cst_17 : f32 to vector<16x32xf32>
    %21 = arith.maximumf %19, %20 : vector<16x32xf32>
    %cst_18 = arith.constant dense<0.000000e+00> : vector<16x128xf32>
    %22 = tpu.matmul %21, %4, %cst_18 {dimension_numbers = #tpu.dot_dimension_numbers<[1], [0], [0], [1], [0, 0, 1, 1], [], []>} : vector<16x32xf32>, vector<32x128xf32>, vector<16x128xf32> -> vector<16x128xf32>
    %23 = vector.broadcast %5 : vector<1x128xf32> to vector<16x128xf32>
    %24 = arith.addf %22, %23 : vector<16x128xf32>
    %25 = math.tanh %24 : vector<16x128xf32>
    %26 = arith.mulf %25, %16 : vector<16x128xf32>
    %27 = vector.extract_strided_slice %26 {offsets = [0, 0], sizes = [16, 32], strides = [1, 1]} : vector<16x128xf32> to vector<16x32xf32>
    %28 = vector.extract_strided_slice %26 {offsets = [0, 32], sizes = [16, 32], strides = [1, 1]} : vector<16x128xf32> to vector<16x32xf32>
    %29 = arith.addf %27, %28 : vector<16x32xf32>
    %30 = vector.extract_strided_slice %26 {offsets = [0, 64], sizes = [16, 32], strides = [1, 1]} : vector<16x128xf32> to vector<16x32xf32>
    %31 = arith.addf %29, %30 : vector<16x32xf32>
    %32 = vector.extract_strided_slice %26 {offsets = [0, 96], sizes = [16, 32], strides = [1, 1]} : vector<16x128xf32> to vector<16x32xf32>
    %33 = arith.addf %31, %32 : vector<16x32xf32>
    %cst_19 = arith.constant 5.000000e-01 : f32
    %34 = vector.broadcast %cst_19 : f32 to vector<16x32xf32>
    %35 = arith.mulf %34, %33 : vector<16x32xf32>
    %36 = arith.addf %10, %35 : vector<16x32xf32>
    %cst_20 = arith.constant dense<0.000000e+00> : vector<16x32xf32>
    %37 = tpu.matmul %36, %2, %cst_20 {dimension_numbers = #tpu.dot_dimension_numbers<[1], [0], [0], [1], [0, 0, 1, 1], [], []>} : vector<16x32xf32>, vector<32x32xf32>, vector<16x32xf32> -> vector<16x32xf32>
    %38 = vector.broadcast %3 : vector<1x32xf32> to vector<16x32xf32>
    %39 = arith.addf %37, %38 : vector<16x32xf32>
    %cst_21 = arith.constant 0.000000e+00 : f32
    %40 = vector.broadcast %cst_21 : f32 to vector<16x32xf32>
    %41 = arith.maximumf %39, %40 : vector<16x32xf32>
    %cst_22 = arith.constant dense<0.000000e+00> : vector<16x128xf32>
    %42 = tpu.matmul %41, %4, %cst_22 {dimension_numbers = #tpu.dot_dimension_numbers<[1], [0], [0], [1], [0, 0, 1, 1], [], []>} : vector<16x32xf32>, vector<32x128xf32>, vector<16x128xf32> -> vector<16x128xf32>
    %43 = vector.broadcast %5 : vector<1x128xf32> to vector<16x128xf32>
    %44 = arith.addf %42, %43 : vector<16x128xf32>
    %45 = math.tanh %44 : vector<16x128xf32>
    %46 = arith.mulf %45, %16 : vector<16x128xf32>
    %47 = vector.extract_strided_slice %46 {offsets = [0, 0], sizes = [16, 32], strides = [1, 1]} : vector<16x128xf32> to vector<16x32xf32>
    %48 = vector.extract_strided_slice %46 {offsets = [0, 32], sizes = [16, 32], strides = [1, 1]} : vector<16x128xf32> to vector<16x32xf32>
    %49 = arith.addf %47, %48 : vector<16x32xf32>
    %50 = vector.extract_strided_slice %46 {offsets = [0, 64], sizes = [16, 32], strides = [1, 1]} : vector<16x128xf32> to vector<16x32xf32>
    %51 = arith.addf %49, %50 : vector<16x32xf32>
    %52 = vector.extract_strided_slice %46 {offsets = [0, 96], sizes = [16, 32], strides = [1, 1]} : vector<16x128xf32> to vector<16x32xf32>
    %53 = arith.addf %51, %52 : vector<16x32xf32>
    %cst_23 = arith.constant 5.000000e-01 : f32
    %54 = vector.broadcast %cst_23 : f32 to vector<16x32xf32>
    %55 = arith.mulf %54, %53 : vector<16x32xf32>
    %56 = arith.addf %10, %55 : vector<16x32xf32>
    %cst_24 = arith.constant dense<0.000000e+00> : vector<16x32xf32>
    %57 = tpu.matmul %56, %2, %cst_24 {dimension_numbers = #tpu.dot_dimension_numbers<[1], [0], [0], [1], [0, 0, 1, 1], [], []>} : vector<16x32xf32>, vector<32x32xf32>, vector<16x32xf32> -> vector<16x32xf32>
    %58 = vector.broadcast %3 : vector<1x32xf32> to vector<16x32xf32>
    %59 = arith.addf %57, %58 : vector<16x32xf32>
    %cst_25 = arith.constant 0.000000e+00 : f32
    %60 = vector.broadcast %cst_25 : f32 to vector<16x32xf32>
    %61 = arith.maximumf %59, %60 : vector<16x32xf32>
    %cst_26 = arith.constant dense<0.000000e+00> : vector<16x128xf32>
    %62 = tpu.matmul %61, %4, %cst_26 {dimension_numbers = #tpu.dot_dimension_numbers<[1], [0], [0], [1], [0, 0, 1, 1], [], []>} : vector<16x32xf32>, vector<32x128xf32>, vector<16x128xf32> -> vector<16x128xf32>
    %63 = vector.broadcast %5 : vector<1x128xf32> to vector<16x128xf32>
    %64 = arith.addf %62, %63 : vector<16x128xf32>
    %65 = math.tanh %64 : vector<16x128xf32>
    %66 = arith.mulf %65, %16 : vector<16x128xf32>
    %67 = vector.extract_strided_slice %66 {offsets = [0, 0], sizes = [16, 32], strides = [1, 1]} : vector<16x128xf32> to vector<16x32xf32>
    %68 = vector.extract_strided_slice %66 {offsets = [0, 32], sizes = [16, 32], strides = [1, 1]} : vector<16x128xf32> to vector<16x32xf32>
    %69 = arith.addf %67, %68 : vector<16x32xf32>
    %70 = vector.extract_strided_slice %66 {offsets = [0, 64], sizes = [16, 32], strides = [1, 1]} : vector<16x128xf32> to vector<16x32xf32>
    %71 = arith.addf %69, %70 : vector<16x32xf32>
    %72 = vector.extract_strided_slice %66 {offsets = [0, 96], sizes = [16, 32], strides = [1, 1]} : vector<16x128xf32> to vector<16x32xf32>
    %73 = arith.addf %71, %72 : vector<16x32xf32>
    %74 = arith.addf %10, %73 : vector<16x32xf32>
    %cst_27 = arith.constant dense<0.000000e+00> : vector<16x32xf32>
    %75 = tpu.matmul %74, %2, %cst_27 {dimension_numbers = #tpu.dot_dimension_numbers<[1], [0], [0], [1], [0, 0, 1, 1], [], []>} : vector<16x32xf32>, vector<32x32xf32>, vector<16x32xf32> -> vector<16x32xf32>
    %76 = vector.broadcast %3 : vector<1x32xf32> to vector<16x32xf32>
    %77 = arith.addf %75, %76 : vector<16x32xf32>
    %cst_28 = arith.constant 0.000000e+00 : f32
    %78 = vector.broadcast %cst_28 : f32 to vector<16x32xf32>
    %79 = arith.maximumf %77, %78 : vector<16x32xf32>
    %cst_29 = arith.constant dense<0.000000e+00> : vector<16x128xf32>
    %80 = tpu.matmul %79, %4, %cst_29 {dimension_numbers = #tpu.dot_dimension_numbers<[1], [0], [0], [1], [0, 0, 1, 1], [], []>} : vector<16x32xf32>, vector<32x128xf32>, vector<16x128xf32> -> vector<16x128xf32>
    %81 = vector.broadcast %5 : vector<1x128xf32> to vector<16x128xf32>
    %82 = arith.addf %80, %81 : vector<16x128xf32>
    %83 = math.tanh %82 : vector<16x128xf32>
    %84 = arith.mulf %83, %16 : vector<16x128xf32>
    %85 = vector.extract_strided_slice %84 {offsets = [0, 0], sizes = [16, 32], strides = [1, 1]} : vector<16x128xf32> to vector<16x32xf32>
    %86 = vector.extract_strided_slice %84 {offsets = [0, 32], sizes = [16, 32], strides = [1, 1]} : vector<16x128xf32> to vector<16x32xf32>
    %87 = arith.addf %85, %86 : vector<16x32xf32>
    %88 = vector.extract_strided_slice %84 {offsets = [0, 64], sizes = [16, 32], strides = [1, 1]} : vector<16x128xf32> to vector<16x32xf32>
    %89 = arith.addf %87, %88 : vector<16x32xf32>
    %90 = vector.extract_strided_slice %84 {offsets = [0, 96], sizes = [16, 32], strides = [1, 1]} : vector<16x128xf32> to vector<16x32xf32>
    %91 = arith.addf %89, %90 : vector<16x32xf32>
    %cst_30 = arith.constant 2.000000e+00 : f32
    %92 = vector.broadcast %cst_30 : f32 to vector<16x32xf32>
    %93 = arith.mulf %92, %53 : vector<16x32xf32>
    %94 = arith.addf %33, %93 : vector<16x32xf32>
    %cst_31 = arith.constant 2.000000e+00 : f32
    %95 = vector.broadcast %cst_31 : f32 to vector<16x32xf32>
    %96 = arith.mulf %95, %73 : vector<16x32xf32>
    %97 = arith.addf %94, %96 : vector<16x32xf32>
    %98 = arith.addf %97, %91 : vector<16x32xf32>
    %cst_32 = arith.constant 0.166666672 : f32
    %99 = vector.broadcast %cst_32 : f32 to vector<16x32xf32>
    %100 = arith.mulf %98, %99 : vector<16x32xf32>
    %101 = arith.addf %10, %100 : vector<16x32xf32>
    %102 = vector.extract_strided_slice %15 {offsets = [0, 128], sizes = [16, 128], strides = [1, 1]} : vector<16x896xf32> to vector<16x128xf32>
    %cst_33 = arith.constant dense<0.000000e+00> : vector<16x32xf32>
    %103 = tpu.matmul %101, %2, %cst_33 {dimension_numbers = #tpu.dot_dimension_numbers<[1], [0], [0], [1], [0, 0, 1, 1], [], []>} : vector<16x32xf32>, vector<32x32xf32>, vector<16x32xf32> -> vector<16x32xf32>
    %104 = vector.broadcast %3 : vector<1x32xf32> to vector<16x32xf32>
    %105 = arith.addf %103, %104 : vector<16x32xf32>
    %cst_34 = arith.constant 0.000000e+00 : f32
    %106 = vector.broadcast %cst_34 : f32 to vector<16x32xf32>
    %107 = arith.maximumf %105, %106 : vector<16x32xf32>
    %cst_35 = arith.constant dense<0.000000e+00> : vector<16x128xf32>
    %108 = tpu.matmul %107, %4, %cst_35 {dimension_numbers = #tpu.dot_dimension_numbers<[1], [0], [0], [1], [0, 0, 1, 1], [], []>} : vector<16x32xf32>, vector<32x128xf32>, vector<16x128xf32> -> vector<16x128xf32>
    %109 = vector.broadcast %5 : vector<1x128xf32> to vector<16x128xf32>
    %110 = arith.addf %108, %109 : vector<16x128xf32>
    %111 = math.tanh %110 : vector<16x128xf32>
    %112 = arith.mulf %111, %102 : vector<16x128xf32>
    %113 = vector.extract_strided_slice %112 {offsets = [0, 0], sizes = [16, 32], strides = [1, 1]} : vector<16x128xf32> to vector<16x32xf32>
    %114 = vector.extract_strided_slice %112 {offsets = [0, 32], sizes = [16, 32], strides = [1, 1]} : vector<16x128xf32> to vector<16x32xf32>
    %115 = arith.addf %113, %114 : vector<16x32xf32>
    %116 = vector.extract_strided_slice %112 {offsets = [0, 64], sizes = [16, 32], strides = [1, 1]} : vector<16x128xf32> to vector<16x32xf32>
    %117 = arith.addf %115, %116 : vector<16x32xf32>
    %118 = vector.extract_strided_slice %112 {offsets = [0, 96], sizes = [16, 32], strides = [1, 1]} : vector<16x128xf32> to vector<16x32xf32>
    %119 = arith.addf %117, %118 : vector<16x32xf32>
    %cst_36 = arith.constant 5.000000e-01 : f32
    %120 = vector.broadcast %cst_36 : f32 to vector<16x32xf32>
    %121 = arith.mulf %120, %119 : vector<16x32xf32>
    %122 = arith.addf %101, %121 : vector<16x32xf32>
    %cst_37 = arith.constant dense<0.000000e+00> : vector<16x32xf32>
    %123 = tpu.matmul %122, %2, %cst_37 {dimension_numbers = #tpu.dot_dimension_numbers<[1], [0], [0], [1], [0, 0, 1, 1], [], []>} : vector<16x32xf32>, vector<32x32xf32>, vector<16x32xf32> -> vector<16x32xf32>
    %124 = vector.broadcast %3 : vector<1x32xf32> to vector<16x32xf32>
    %125 = arith.addf %123, %124 : vector<16x32xf32>
    %cst_38 = arith.constant 0.000000e+00 : f32
    %126 = vector.broadcast %cst_38 : f32 to vector<16x32xf32>
    %127 = arith.maximumf %125, %126 : vector<16x32xf32>
    %cst_39 = arith.constant dense<0.000000e+00> : vector<16x128xf32>
    %128 = tpu.matmul %127, %4, %cst_39 {dimension_numbers = #tpu.dot_dimension_numbers<[1], [0], [0], [1], [0, 0, 1, 1], [], []>} : vector<16x32xf32>, vector<32x128xf32>, vector<16x128xf32> -> vector<16x128xf32>
    %129 = vector.broadcast %5 : vector<1x128xf32> to vector<16x128xf32>
    %130 = arith.addf %128, %129 : vector<16x128xf32>
    %131 = math.tanh %130 : vector<16x128xf32>
    %132 = arith.mulf %131, %102 : vector<16x128xf32>
    %133 = vector.extract_strided_slice %132 {offsets = [0, 0], sizes = [16, 32], strides = [1, 1]} : vector<16x128xf32> to vector<16x32xf32>
    %134 = vector.extract_strided_slice %132 {offsets = [0, 32], sizes = [16, 32], strides = [1, 1]} : vector<16x128xf32> to vector<16x32xf32>
    %135 = arith.addf %133, %134 : vector<16x32xf32>
    %136 = vector.extract_strided_slice %132 {offsets = [0, 64], sizes = [16, 32], strides = [1, 1]} : vector<16x128xf32> to vector<16x32xf32>
    %137 = arith.addf %135, %136 : vector<16x32xf32>
    %138 = vector.extract_strided_slice %132 {offsets = [0, 96], sizes = [16, 32], strides = [1, 1]} : vector<16x128xf32> to vector<16x32xf32>
    %139 = arith.addf %137, %138 : vector<16x32xf32>
    %cst_40 = arith.constant 5.000000e-01 : f32
    %140 = vector.broadcast %cst_40 : f32 to vector<16x32xf32>
    %141 = arith.mulf %140, %139 : vector<16x32xf32>
    %142 = arith.addf %101, %141 : vector<16x32xf32>
    %cst_41 = arith.constant dense<0.000000e+00> : vector<16x32xf32>
    %143 = tpu.matmul %142, %2, %cst_41 {dimension_numbers = #tpu.dot_dimension_numbers<[1], [0], [0], [1], [0, 0, 1, 1], [], []>} : vector<16x32xf32>, vector<32x32xf32>, vector<16x32xf32> -> vector<16x32xf32>
    %144 = vector.broadcast %3 : vector<1x32xf32> to vector<16x32xf32>
    %145 = arith.addf %143, %144 : vector<16x32xf32>
    %cst_42 = arith.constant 0.000000e+00 : f32
    %146 = vector.broadcast %cst_42 : f32 to vector<16x32xf32>
    %147 = arith.maximumf %145, %146 : vector<16x32xf32>
    %cst_43 = arith.constant dense<0.000000e+00> : vector<16x128xf32>
    %148 = tpu.matmul %147, %4, %cst_43 {dimension_numbers = #tpu.dot_dimension_numbers<[1], [0], [0], [1], [0, 0, 1, 1], [], []>} : vector<16x32xf32>, vector<32x128xf32>, vector<16x128xf32> -> vector<16x128xf32>
    %149 = vector.broadcast %5 : vector<1x128xf32> to vector<16x128xf32>
    %150 = arith.addf %148, %149 : vector<16x128xf32>
    %151 = math.tanh %150 : vector<16x128xf32>
    %152 = arith.mulf %151, %102 : vector<16x128xf32>
    %153 = vector.extract_strided_slice %152 {offsets = [0, 0], sizes = [16, 32], strides = [1, 1]} : vector<16x128xf32> to vector<16x32xf32>
    %154 = vector.extract_strided_slice %152 {offsets = [0, 32], sizes = [16, 32], strides = [1, 1]} : vector<16x128xf32> to vector<16x32xf32>
    %155 = arith.addf %153, %154 : vector<16x32xf32>
    %156 = vector.extract_strided_slice %152 {offsets = [0, 64], sizes = [16, 32], strides = [1, 1]} : vector<16x128xf32> to vector<16x32xf32>
    %157 = arith.addf %155, %156 : vector<16x32xf32>
    %158 = vector.extract_strided_slice %152 {offsets = [0, 96], sizes = [16, 32], strides = [1, 1]} : vector<16x128xf32> to vector<16x32xf32>
    %159 = arith.addf %157, %158 : vector<16x32xf32>
    %160 = arith.addf %101, %159 : vector<16x32xf32>
    %cst_44 = arith.constant dense<0.000000e+00> : vector<16x32xf32>
    %161 = tpu.matmul %160, %2, %cst_44 {dimension_numbers = #tpu.dot_dimension_numbers<[1], [0], [0], [1], [0, 0, 1, 1], [], []>} : vector<16x32xf32>, vector<32x32xf32>, vector<16x32xf32> -> vector<16x32xf32>
    %162 = vector.broadcast %3 : vector<1x32xf32> to vector<16x32xf32>
    %163 = arith.addf %161, %162 : vector<16x32xf32>
    %cst_45 = arith.constant 0.000000e+00 : f32
    %164 = vector.broadcast %cst_45 : f32 to vector<16x32xf32>
    %165 = arith.maximumf %163, %164 : vector<16x32xf32>
    %cst_46 = arith.constant dense<0.000000e+00> : vector<16x128xf32>
    %166 = tpu.matmul %165, %4, %cst_46 {dimension_numbers = #tpu.dot_dimension_numbers<[1], [0], [0], [1], [0, 0, 1, 1], [], []>} : vector<16x32xf32>, vector<32x128xf32>, vector<16x128xf32> -> vector<16x128xf32>
    %167 = vector.broadcast %5 : vector<1x128xf32> to vector<16x128xf32>
    %168 = arith.addf %166, %167 : vector<16x128xf32>
    %169 = math.tanh %168 : vector<16x128xf32>
    %170 = arith.mulf %169, %102 : vector<16x128xf32>
    %171 = vector.extract_strided_slice %170 {offsets = [0, 0], sizes = [16, 32], strides = [1, 1]} : vector<16x128xf32> to vector<16x32xf32>
    %172 = vector.extract_strided_slice %170 {offsets = [0, 32], sizes = [16, 32], strides = [1, 1]} : vector<16x128xf32> to vector<16x32xf32>
    %173 = arith.addf %171, %172 : vector<16x32xf32>
    %174 = vector.extract_strided_slice %170 {offsets = [0, 64], sizes = [16, 32], strides = [1, 1]} : vector<16x128xf32> to vector<16x32xf32>
    %175 = arith.addf %173, %174 : vector<16x32xf32>
    %176 = vector.extract_strided_slice %170 {offsets = [0, 96], sizes = [16, 32], strides = [1, 1]} : vector<16x128xf32> to vector<16x32xf32>
    %177 = arith.addf %175, %176 : vector<16x32xf32>
    %cst_47 = arith.constant 2.000000e+00 : f32
    %178 = vector.broadcast %cst_47 : f32 to vector<16x32xf32>
    %179 = arith.mulf %178, %139 : vector<16x32xf32>
    %180 = arith.addf %119, %179 : vector<16x32xf32>
    %cst_48 = arith.constant 2.000000e+00 : f32
    %181 = vector.broadcast %cst_48 : f32 to vector<16x32xf32>
    %182 = arith.mulf %181, %159 : vector<16x32xf32>
    %183 = arith.addf %180, %182 : vector<16x32xf32>
    %184 = arith.addf %183, %177 : vector<16x32xf32>
    %cst_49 = arith.constant 0.166666672 : f32
    %185 = vector.broadcast %cst_49 : f32 to vector<16x32xf32>
    %186 = arith.mulf %184, %185 : vector<16x32xf32>
    %187 = arith.addf %101, %186 : vector<16x32xf32>
    %188 = vector.extract_strided_slice %15 {offsets = [0, 256], sizes = [16, 128], strides = [1, 1]} : vector<16x896xf32> to vector<16x128xf32>
    %cst_50 = arith.constant dense<0.000000e+00> : vector<16x32xf32>
    %189 = tpu.matmul %187, %2, %cst_50 {dimension_numbers = #tpu.dot_dimension_numbers<[1], [0], [0], [1], [0, 0, 1, 1], [], []>} : vector<16x32xf32>, vector<32x32xf32>, vector<16x32xf32> -> vector<16x32xf32>
    %190 = vector.broadcast %3 : vector<1x32xf32> to vector<16x32xf32>
    %191 = arith.addf %189, %190 : vector<16x32xf32>
    %cst_51 = arith.constant 0.000000e+00 : f32
    %192 = vector.broadcast %cst_51 : f32 to vector<16x32xf32>
    %193 = arith.maximumf %191, %192 : vector<16x32xf32>
    %cst_52 = arith.constant dense<0.000000e+00> : vector<16x128xf32>
    %194 = tpu.matmul %193, %4, %cst_52 {dimension_numbers = #tpu.dot_dimension_numbers<[1], [0], [0], [1], [0, 0, 1, 1], [], []>} : vector<16x32xf32>, vector<32x128xf32>, vector<16x128xf32> -> vector<16x128xf32>
    %195 = vector.broadcast %5 : vector<1x128xf32> to vector<16x128xf32>
    %196 = arith.addf %194, %195 : vector<16x128xf32>
    %197 = math.tanh %196 : vector<16x128xf32>
    %198 = arith.mulf %197, %188 : vector<16x128xf32>
    %199 = vector.extract_strided_slice %198 {offsets = [0, 0], sizes = [16, 32], strides = [1, 1]} : vector<16x128xf32> to vector<16x32xf32>
    %200 = vector.extract_strided_slice %198 {offsets = [0, 32], sizes = [16, 32], strides = [1, 1]} : vector<16x128xf32> to vector<16x32xf32>
    %201 = arith.addf %199, %200 : vector<16x32xf32>
    %202 = vector.extract_strided_slice %198 {offsets = [0, 64], sizes = [16, 32], strides = [1, 1]} : vector<16x128xf32> to vector<16x32xf32>
    %203 = arith.addf %201, %202 : vector<16x32xf32>
    %204 = vector.extract_strided_slice %198 {offsets = [0, 96], sizes = [16, 32], strides = [1, 1]} : vector<16x128xf32> to vector<16x32xf32>
    %205 = arith.addf %203, %204 : vector<16x32xf32>
    %cst_53 = arith.constant 5.000000e-01 : f32
    %206 = vector.broadcast %cst_53 : f32 to vector<16x32xf32>
    %207 = arith.mulf %206, %205 : vector<16x32xf32>
    %208 = arith.addf %187, %207 : vector<16x32xf32>
    %cst_54 = arith.constant dense<0.000000e+00> : vector<16x32xf32>
    %209 = tpu.matmul %208, %2, %cst_54 {dimension_numbers = #tpu.dot_dimension_numbers<[1], [0], [0], [1], [0, 0, 1, 1], [], []>} : vector<16x32xf32>, vector<32x32xf32>, vector<16x32xf32> -> vector<16x32xf32>
    %210 = vector.broadcast %3 : vector<1x32xf32> to vector<16x32xf32>
    %211 = arith.addf %209, %210 : vector<16x32xf32>
    %cst_55 = arith.constant 0.000000e+00 : f32
    %212 = vector.broadcast %cst_55 : f32 to vector<16x32xf32>
    %213 = arith.maximumf %211, %212 : vector<16x32xf32>
    %cst_56 = arith.constant dense<0.000000e+00> : vector<16x128xf32>
    %214 = tpu.matmul %213, %4, %cst_56 {dimension_numbers = #tpu.dot_dimension_numbers<[1], [0], [0], [1], [0, 0, 1, 1], [], []>} : vector<16x32xf32>, vector<32x128xf32>, vector<16x128xf32> -> vector<16x128xf32>
    %215 = vector.broadcast %5 : vector<1x128xf32> to vector<16x128xf32>
    %216 = arith.addf %214, %215 : vector<16x128xf32>
    %217 = math.tanh %216 : vector<16x128xf32>
    %218 = arith.mulf %217, %188 : vector<16x128xf32>
    %219 = vector.extract_strided_slice %218 {offsets = [0, 0], sizes = [16, 32], strides = [1, 1]} : vector<16x128xf32> to vector<16x32xf32>
    %220 = vector.extract_strided_slice %218 {offsets = [0, 32], sizes = [16, 32], strides = [1, 1]} : vector<16x128xf32> to vector<16x32xf32>
    %221 = arith.addf %219, %220 : vector<16x32xf32>
    %222 = vector.extract_strided_slice %218 {offsets = [0, 64], sizes = [16, 32], strides = [1, 1]} : vector<16x128xf32> to vector<16x32xf32>
    %223 = arith.addf %221, %222 : vector<16x32xf32>
    %224 = vector.extract_strided_slice %218 {offsets = [0, 96], sizes = [16, 32], strides = [1, 1]} : vector<16x128xf32> to vector<16x32xf32>
    %225 = arith.addf %223, %224 : vector<16x32xf32>
    %cst_57 = arith.constant 5.000000e-01 : f32
    %226 = vector.broadcast %cst_57 : f32 to vector<16x32xf32>
    %227 = arith.mulf %226, %225 : vector<16x32xf32>
    %228 = arith.addf %187, %227 : vector<16x32xf32>
    %cst_58 = arith.constant dense<0.000000e+00> : vector<16x32xf32>
    %229 = tpu.matmul %228, %2, %cst_58 {dimension_numbers = #tpu.dot_dimension_numbers<[1], [0], [0], [1], [0, 0, 1, 1], [], []>} : vector<16x32xf32>, vector<32x32xf32>, vector<16x32xf32> -> vector<16x32xf32>
    %230 = vector.broadcast %3 : vector<1x32xf32> to vector<16x32xf32>
    %231 = arith.addf %229, %230 : vector<16x32xf32>
    %cst_59 = arith.constant 0.000000e+00 : f32
    %232 = vector.broadcast %cst_59 : f32 to vector<16x32xf32>
    %233 = arith.maximumf %231, %232 : vector<16x32xf32>
    %cst_60 = arith.constant dense<0.000000e+00> : vector<16x128xf32>
    %234 = tpu.matmul %233, %4, %cst_60 {dimension_numbers = #tpu.dot_dimension_numbers<[1], [0], [0], [1], [0, 0, 1, 1], [], []>} : vector<16x32xf32>, vector<32x128xf32>, vector<16x128xf32> -> vector<16x128xf32>
    %235 = vector.broadcast %5 : vector<1x128xf32> to vector<16x128xf32>
    %236 = arith.addf %234, %235 : vector<16x128xf32>
    %237 = math.tanh %236 : vector<16x128xf32>
    %238 = arith.mulf %237, %188 : vector<16x128xf32>
    %239 = vector.extract_strided_slice %238 {offsets = [0, 0], sizes = [16, 32], strides = [1, 1]} : vector<16x128xf32> to vector<16x32xf32>
    %240 = vector.extract_strided_slice %238 {offsets = [0, 32], sizes = [16, 32], strides = [1, 1]} : vector<16x128xf32> to vector<16x32xf32>
    %241 = arith.addf %239, %240 : vector<16x32xf32>
    %242 = vector.extract_strided_slice %238 {offsets = [0, 64], sizes = [16, 32], strides = [1, 1]} : vector<16x128xf32> to vector<16x32xf32>
    %243 = arith.addf %241, %242 : vector<16x32xf32>
    %244 = vector.extract_strided_slice %238 {offsets = [0, 96], sizes = [16, 32], strides = [1, 1]} : vector<16x128xf32> to vector<16x32xf32>
    %245 = arith.addf %243, %244 : vector<16x32xf32>
    %246 = arith.addf %187, %245 : vector<16x32xf32>
    %cst_61 = arith.constant dense<0.000000e+00> : vector<16x32xf32>
    %247 = tpu.matmul %246, %2, %cst_61 {dimension_numbers = #tpu.dot_dimension_numbers<[1], [0], [0], [1], [0, 0, 1, 1], [], []>} : vector<16x32xf32>, vector<32x32xf32>, vector<16x32xf32> -> vector<16x32xf32>
    %248 = vector.broadcast %3 : vector<1x32xf32> to vector<16x32xf32>
    %249 = arith.addf %247, %248 : vector<16x32xf32>
    %cst_62 = arith.constant 0.000000e+00 : f32
    %250 = vector.broadcast %cst_62 : f32 to vector<16x32xf32>
    %251 = arith.maximumf %249, %250 : vector<16x32xf32>
    %cst_63 = arith.constant dense<0.000000e+00> : vector<16x128xf32>
    %252 = tpu.matmul %251, %4, %cst_63 {dimension_numbers = #tpu.dot_dimension_numbers<[1], [0], [0], [1], [0, 0, 1, 1], [], []>} : vector<16x32xf32>, vector<32x128xf32>, vector<16x128xf32> -> vector<16x128xf32>
    %253 = vector.broadcast %5 : vector<1x128xf32> to vector<16x128xf32>
    %254 = arith.addf %252, %253 : vector<16x128xf32>
    %255 = math.tanh %254 : vector<16x128xf32>
    %256 = arith.mulf %255, %188 : vector<16x128xf32>
    %257 = vector.extract_strided_slice %256 {offsets = [0, 0], sizes = [16, 32], strides = [1, 1]} : vector<16x128xf32> to vector<16x32xf32>
    %258 = vector.extract_strided_slice %256 {offsets = [0, 32], sizes = [16, 32], strides = [1, 1]} : vector<16x128xf32> to vector<16x32xf32>
    %259 = arith.addf %257, %258 : vector<16x32xf32>
    %260 = vector.extract_strided_slice %256 {offsets = [0, 64], sizes = [16, 32], strides = [1, 1]} : vector<16x128xf32> to vector<16x32xf32>
    %261 = arith.addf %259, %260 : vector<16x32xf32>
    %262 = vector.extract_strided_slice %256 {offsets = [0, 96], sizes = [16, 32], strides = [1, 1]} : vector<16x128xf32> to vector<16x32xf32>
    %263 = arith.addf %261, %262 : vector<16x32xf32>
    %cst_64 = arith.constant 2.000000e+00 : f32
    %264 = vector.broadcast %cst_64 : f32 to vector<16x32xf32>
    %265 = arith.mulf %264, %225 : vector<16x32xf32>
    %266 = arith.addf %205, %265 : vector<16x32xf32>
    %cst_65 = arith.constant 2.000000e+00 : f32
    %267 = vector.broadcast %cst_65 : f32 to vector<16x32xf32>
    %268 = arith.mulf %267, %245 : vector<16x32xf32>
    %269 = arith.addf %266, %268 : vector<16x32xf32>
    %270 = arith.addf %269, %263 : vector<16x32xf32>
    %cst_66 = arith.constant 0.166666672 : f32
    %271 = vector.broadcast %cst_66 : f32 to vector<16x32xf32>
    %272 = arith.mulf %270, %271 : vector<16x32xf32>
    %273 = arith.addf %187, %272 : vector<16x32xf32>
    %274 = vector.extract_strided_slice %15 {offsets = [0, 384], sizes = [16, 128], strides = [1, 1]} : vector<16x896xf32> to vector<16x128xf32>
    %cst_67 = arith.constant dense<0.000000e+00> : vector<16x32xf32>
    %275 = tpu.matmul %273, %2, %cst_67 {dimension_numbers = #tpu.dot_dimension_numbers<[1], [0], [0], [1], [0, 0, 1, 1], [], []>} : vector<16x32xf32>, vector<32x32xf32>, vector<16x32xf32> -> vector<16x32xf32>
    %276 = vector.broadcast %3 : vector<1x32xf32> to vector<16x32xf32>
    %277 = arith.addf %275, %276 : vector<16x32xf32>
    %cst_68 = arith.constant 0.000000e+00 : f32
    %278 = vector.broadcast %cst_68 : f32 to vector<16x32xf32>
    %279 = arith.maximumf %277, %278 : vector<16x32xf32>
    %cst_69 = arith.constant dense<0.000000e+00> : vector<16x128xf32>
    %280 = tpu.matmul %279, %4, %cst_69 {dimension_numbers = #tpu.dot_dimension_numbers<[1], [0], [0], [1], [0, 0, 1, 1], [], []>} : vector<16x32xf32>, vector<32x128xf32>, vector<16x128xf32> -> vector<16x128xf32>
    %281 = vector.broadcast %5 : vector<1x128xf32> to vector<16x128xf32>
    %282 = arith.addf %280, %281 : vector<16x128xf32>
    %283 = math.tanh %282 : vector<16x128xf32>
    %284 = arith.mulf %283, %274 : vector<16x128xf32>
    %285 = vector.extract_strided_slice %284 {offsets = [0, 0], sizes = [16, 32], strides = [1, 1]} : vector<16x128xf32> to vector<16x32xf32>
    %286 = vector.extract_strided_slice %284 {offsets = [0, 32], sizes = [16, 32], strides = [1, 1]} : vector<16x128xf32> to vector<16x32xf32>
    %287 = arith.addf %285, %286 : vector<16x32xf32>
    %288 = vector.extract_strided_slice %284 {offsets = [0, 64], sizes = [16, 32], strides = [1, 1]} : vector<16x128xf32> to vector<16x32xf32>
    %289 = arith.addf %287, %288 : vector<16x32xf32>
    %290 = vector.extract_strided_slice %284 {offsets = [0, 96], sizes = [16, 32], strides = [1, 1]} : vector<16x128xf32> to vector<16x32xf32>
    %291 = arith.addf %289, %290 : vector<16x32xf32>
    %cst_70 = arith.constant 5.000000e-01 : f32
    %292 = vector.broadcast %cst_70 : f32 to vector<16x32xf32>
    %293 = arith.mulf %292, %291 : vector<16x32xf32>
    %294 = arith.addf %273, %293 : vector<16x32xf32>
    %cst_71 = arith.constant dense<0.000000e+00> : vector<16x32xf32>
    %295 = tpu.matmul %294, %2, %cst_71 {dimension_numbers = #tpu.dot_dimension_numbers<[1], [0], [0], [1], [0, 0, 1, 1], [], []>} : vector<16x32xf32>, vector<32x32xf32>, vector<16x32xf32> -> vector<16x32xf32>
    %296 = vector.broadcast %3 : vector<1x32xf32> to vector<16x32xf32>
    %297 = arith.addf %295, %296 : vector<16x32xf32>
    %cst_72 = arith.constant 0.000000e+00 : f32
    %298 = vector.broadcast %cst_72 : f32 to vector<16x32xf32>
    %299 = arith.maximumf %297, %298 : vector<16x32xf32>
    %cst_73 = arith.constant dense<0.000000e+00> : vector<16x128xf32>
    %300 = tpu.matmul %299, %4, %cst_73 {dimension_numbers = #tpu.dot_dimension_numbers<[1], [0], [0], [1], [0, 0, 1, 1], [], []>} : vector<16x32xf32>, vector<32x128xf32>, vector<16x128xf32> -> vector<16x128xf32>
    %301 = vector.broadcast %5 : vector<1x128xf32> to vector<16x128xf32>
    %302 = arith.addf %300, %301 : vector<16x128xf32>
    %303 = math.tanh %302 : vector<16x128xf32>
    %304 = arith.mulf %303, %274 : vector<16x128xf32>
    %305 = vector.extract_strided_slice %304 {offsets = [0, 0], sizes = [16, 32], strides = [1, 1]} : vector<16x128xf32> to vector<16x32xf32>
    %306 = vector.extract_strided_slice %304 {offsets = [0, 32], sizes = [16, 32], strides = [1, 1]} : vector<16x128xf32> to vector<16x32xf32>
    %307 = arith.addf %305, %306 : vector<16x32xf32>
    %308 = vector.extract_strided_slice %304 {offsets = [0, 64], sizes = [16, 32], strides = [1, 1]} : vector<16x128xf32> to vector<16x32xf32>
    %309 = arith.addf %307, %308 : vector<16x32xf32>
    %310 = vector.extract_strided_slice %304 {offsets = [0, 96], sizes = [16, 32], strides = [1, 1]} : vector<16x128xf32> to vector<16x32xf32>
    %311 = arith.addf %309, %310 : vector<16x32xf32>
    %cst_74 = arith.constant 5.000000e-01 : f32
    %312 = vector.broadcast %cst_74 : f32 to vector<16x32xf32>
    %313 = arith.mulf %312, %311 : vector<16x32xf32>
    %314 = arith.addf %273, %313 : vector<16x32xf32>
    %cst_75 = arith.constant dense<0.000000e+00> : vector<16x32xf32>
    %315 = tpu.matmul %314, %2, %cst_75 {dimension_numbers = #tpu.dot_dimension_numbers<[1], [0], [0], [1], [0, 0, 1, 1], [], []>} : vector<16x32xf32>, vector<32x32xf32>, vector<16x32xf32> -> vector<16x32xf32>
    %316 = vector.broadcast %3 : vector<1x32xf32> to vector<16x32xf32>
    %317 = arith.addf %315, %316 : vector<16x32xf32>
    %cst_76 = arith.constant 0.000000e+00 : f32
    %318 = vector.broadcast %cst_76 : f32 to vector<16x32xf32>
    %319 = arith.maximumf %317, %318 : vector<16x32xf32>
    %cst_77 = arith.constant dense<0.000000e+00> : vector<16x128xf32>
    %320 = tpu.matmul %319, %4, %cst_77 {dimension_numbers = #tpu.dot_dimension_numbers<[1], [0], [0], [1], [0, 0, 1, 1], [], []>} : vector<16x32xf32>, vector<32x128xf32>, vector<16x128xf32> -> vector<16x128xf32>
    %321 = vector.broadcast %5 : vector<1x128xf32> to vector<16x128xf32>
    %322 = arith.addf %320, %321 : vector<16x128xf32>
    %323 = math.tanh %322 : vector<16x128xf32>
    %324 = arith.mulf %323, %274 : vector<16x128xf32>
    %325 = vector.extract_strided_slice %324 {offsets = [0, 0], sizes = [16, 32], strides = [1, 1]} : vector<16x128xf32> to vector<16x32xf32>
    %326 = vector.extract_strided_slice %324 {offsets = [0, 32], sizes = [16, 32], strides = [1, 1]} : vector<16x128xf32> to vector<16x32xf32>
    %327 = arith.addf %325, %326 : vector<16x32xf32>
    %328 = vector.extract_strided_slice %324 {offsets = [0, 64], sizes = [16, 32], strides = [1, 1]} : vector<16x128xf32> to vector<16x32xf32>
    %329 = arith.addf %327, %328 : vector<16x32xf32>
    %330 = vector.extract_strided_slice %324 {offsets = [0, 96], sizes = [16, 32], strides = [1, 1]} : vector<16x128xf32> to vector<16x32xf32>
    %331 = arith.addf %329, %330 : vector<16x32xf32>
    %332 = arith.addf %273, %331 : vector<16x32xf32>
    %cst_78 = arith.constant dense<0.000000e+00> : vector<16x32xf32>
    %333 = tpu.matmul %332, %2, %cst_78 {dimension_numbers = #tpu.dot_dimension_numbers<[1], [0], [0], [1], [0, 0, 1, 1], [], []>} : vector<16x32xf32>, vector<32x32xf32>, vector<16x32xf32> -> vector<16x32xf32>
    %334 = vector.broadcast %3 : vector<1x32xf32> to vector<16x32xf32>
    %335 = arith.addf %333, %334 : vector<16x32xf32>
    %cst_79 = arith.constant 0.000000e+00 : f32
    %336 = vector.broadcast %cst_79 : f32 to vector<16x32xf32>
    %337 = arith.maximumf %335, %336 : vector<16x32xf32>
    %cst_80 = arith.constant dense<0.000000e+00> : vector<16x128xf32>
    %338 = tpu.matmul %337, %4, %cst_80 {dimension_numbers = #tpu.dot_dimension_numbers<[1], [0], [0], [1], [0, 0, 1, 1], [], []>} : vector<16x32xf32>, vector<32x128xf32>, vector<16x128xf32> -> vector<16x128xf32>
    %339 = vector.broadcast %5 : vector<1x128xf32> to vector<16x128xf32>
    %340 = arith.addf %338, %339 : vector<16x128xf32>
    %341 = math.tanh %340 : vector<16x128xf32>
    %342 = arith.mulf %341, %274 : vector<16x128xf32>
    %343 = vector.extract_strided_slice %342 {offsets = [0, 0], sizes = [16, 32], strides = [1, 1]} : vector<16x128xf32> to vector<16x32xf32>
    %344 = vector.extract_strided_slice %342 {offsets = [0, 32], sizes = [16, 32], strides = [1, 1]} : vector<16x128xf32> to vector<16x32xf32>
    %345 = arith.addf %343, %344 : vector<16x32xf32>
    %346 = vector.extract_strided_slice %342 {offsets = [0, 64], sizes = [16, 32], strides = [1, 1]} : vector<16x128xf32> to vector<16x32xf32>
    %347 = arith.addf %345, %346 : vector<16x32xf32>
    %348 = vector.extract_strided_slice %342 {offsets = [0, 96], sizes = [16, 32], strides = [1, 1]} : vector<16x128xf32> to vector<16x32xf32>
    %349 = arith.addf %347, %348 : vector<16x32xf32>
    %cst_81 = arith.constant 2.000000e+00 : f32
    %350 = vector.broadcast %cst_81 : f32 to vector<16x32xf32>
    %351 = arith.mulf %350, %311 : vector<16x32xf32>
    %352 = arith.addf %291, %351 : vector<16x32xf32>
    %cst_82 = arith.constant 2.000000e+00 : f32
    %353 = vector.broadcast %cst_82 : f32 to vector<16x32xf32>
    %354 = arith.mulf %353, %331 : vector<16x32xf32>
    %355 = arith.addf %352, %354 : vector<16x32xf32>
    %356 = arith.addf %355, %349 : vector<16x32xf32>
    %cst_83 = arith.constant 0.166666672 : f32
    %357 = vector.broadcast %cst_83 : f32 to vector<16x32xf32>
    %358 = arith.mulf %356, %357 : vector<16x32xf32>
    %359 = arith.addf %273, %358 : vector<16x32xf32>
    %360 = vector.extract_strided_slice %15 {offsets = [0, 512], sizes = [16, 128], strides = [1, 1]} : vector<16x896xf32> to vector<16x128xf32>
    %cst_84 = arith.constant dense<0.000000e+00> : vector<16x32xf32>
    %361 = tpu.matmul %359, %2, %cst_84 {dimension_numbers = #tpu.dot_dimension_numbers<[1], [0], [0], [1], [0, 0, 1, 1], [], []>} : vector<16x32xf32>, vector<32x32xf32>, vector<16x32xf32> -> vector<16x32xf32>
    %362 = vector.broadcast %3 : vector<1x32xf32> to vector<16x32xf32>
    %363 = arith.addf %361, %362 : vector<16x32xf32>
    %cst_85 = arith.constant 0.000000e+00 : f32
    %364 = vector.broadcast %cst_85 : f32 to vector<16x32xf32>
    %365 = arith.maximumf %363, %364 : vector<16x32xf32>
    %cst_86 = arith.constant dense<0.000000e+00> : vector<16x128xf32>
    %366 = tpu.matmul %365, %4, %cst_86 {dimension_numbers = #tpu.dot_dimension_numbers<[1], [0], [0], [1], [0, 0, 1, 1], [], []>} : vector<16x32xf32>, vector<32x128xf32>, vector<16x128xf32> -> vector<16x128xf32>
    %367 = vector.broadcast %5 : vector<1x128xf32> to vector<16x128xf32>
    %368 = arith.addf %366, %367 : vector<16x128xf32>
    %369 = math.tanh %368 : vector<16x128xf32>
    %370 = arith.mulf %369, %360 : vector<16x128xf32>
    %371 = vector.extract_strided_slice %370 {offsets = [0, 0], sizes = [16, 32], strides = [1, 1]} : vector<16x128xf32> to vector<16x32xf32>
    %372 = vector.extract_strided_slice %370 {offsets = [0, 32], sizes = [16, 32], strides = [1, 1]} : vector<16x128xf32> to vector<16x32xf32>
    %373 = arith.addf %371, %372 : vector<16x32xf32>
    %374 = vector.extract_strided_slice %370 {offsets = [0, 64], sizes = [16, 32], strides = [1, 1]} : vector<16x128xf32> to vector<16x32xf32>
    %375 = arith.addf %373, %374 : vector<16x32xf32>
    %376 = vector.extract_strided_slice %370 {offsets = [0, 96], sizes = [16, 32], strides = [1, 1]} : vector<16x128xf32> to vector<16x32xf32>
    %377 = arith.addf %375, %376 : vector<16x32xf32>
    %cst_87 = arith.constant 5.000000e-01 : f32
    %378 = vector.broadcast %cst_87 : f32 to vector<16x32xf32>
    %379 = arith.mulf %378, %377 : vector<16x32xf32>
    %380 = arith.addf %359, %379 : vector<16x32xf32>
    %cst_88 = arith.constant dense<0.000000e+00> : vector<16x32xf32>
    %381 = tpu.matmul %380, %2, %cst_88 {dimension_numbers = #tpu.dot_dimension_numbers<[1], [0], [0], [1], [0, 0, 1, 1], [], []>} : vector<16x32xf32>, vector<32x32xf32>, vector<16x32xf32> -> vector<16x32xf32>
    %382 = vector.broadcast %3 : vector<1x32xf32> to vector<16x32xf32>
    %383 = arith.addf %381, %382 : vector<16x32xf32>
    %cst_89 = arith.constant 0.000000e+00 : f32
    %384 = vector.broadcast %cst_89 : f32 to vector<16x32xf32>
    %385 = arith.maximumf %383, %384 : vector<16x32xf32>
    %cst_90 = arith.constant dense<0.000000e+00> : vector<16x128xf32>
    %386 = tpu.matmul %385, %4, %cst_90 {dimension_numbers = #tpu.dot_dimension_numbers<[1], [0], [0], [1], [0, 0, 1, 1], [], []>} : vector<16x32xf32>, vector<32x128xf32>, vector<16x128xf32> -> vector<16x128xf32>
    %387 = vector.broadcast %5 : vector<1x128xf32> to vector<16x128xf32>
    %388 = arith.addf %386, %387 : vector<16x128xf32>
    %389 = math.tanh %388 : vector<16x128xf32>
    %390 = arith.mulf %389, %360 : vector<16x128xf32>
    %391 = vector.extract_strided_slice %390 {offsets = [0, 0], sizes = [16, 32], strides = [1, 1]} : vector<16x128xf32> to vector<16x32xf32>
    %392 = vector.extract_strided_slice %390 {offsets = [0, 32], sizes = [16, 32], strides = [1, 1]} : vector<16x128xf32> to vector<16x32xf32>
    %393 = arith.addf %391, %392 : vector<16x32xf32>
    %394 = vector.extract_strided_slice %390 {offsets = [0, 64], sizes = [16, 32], strides = [1, 1]} : vector<16x128xf32> to vector<16x32xf32>
    %395 = arith.addf %393, %394 : vector<16x32xf32>
    %396 = vector.extract_strided_slice %390 {offsets = [0, 96], sizes = [16, 32], strides = [1, 1]} : vector<16x128xf32> to vector<16x32xf32>
    %397 = arith.addf %395, %396 : vector<16x32xf32>
    %cst_91 = arith.constant 5.000000e-01 : f32
    %398 = vector.broadcast %cst_91 : f32 to vector<16x32xf32>
    %399 = arith.mulf %398, %397 : vector<16x32xf32>
    %400 = arith.addf %359, %399 : vector<16x32xf32>
    %cst_92 = arith.constant dense<0.000000e+00> : vector<16x32xf32>
    %401 = tpu.matmul %400, %2, %cst_92 {dimension_numbers = #tpu.dot_dimension_numbers<[1], [0], [0], [1], [0, 0, 1, 1], [], []>} : vector<16x32xf32>, vector<32x32xf32>, vector<16x32xf32> -> vector<16x32xf32>
    %402 = vector.broadcast %3 : vector<1x32xf32> to vector<16x32xf32>
    %403 = arith.addf %401, %402 : vector<16x32xf32>
    %cst_93 = arith.constant 0.000000e+00 : f32
    %404 = vector.broadcast %cst_93 : f32 to vector<16x32xf32>
    %405 = arith.maximumf %403, %404 : vector<16x32xf32>
    %cst_94 = arith.constant dense<0.000000e+00> : vector<16x128xf32>
    %406 = tpu.matmul %405, %4, %cst_94 {dimension_numbers = #tpu.dot_dimension_numbers<[1], [0], [0], [1], [0, 0, 1, 1], [], []>} : vector<16x32xf32>, vector<32x128xf32>, vector<16x128xf32> -> vector<16x128xf32>
    %407 = vector.broadcast %5 : vector<1x128xf32> to vector<16x128xf32>
    %408 = arith.addf %406, %407 : vector<16x128xf32>
    %409 = math.tanh %408 : vector<16x128xf32>
    %410 = arith.mulf %409, %360 : vector<16x128xf32>
    %411 = vector.extract_strided_slice %410 {offsets = [0, 0], sizes = [16, 32], strides = [1, 1]} : vector<16x128xf32> to vector<16x32xf32>
    %412 = vector.extract_strided_slice %410 {offsets = [0, 32], sizes = [16, 32], strides = [1, 1]} : vector<16x128xf32> to vector<16x32xf32>
    %413 = arith.addf %411, %412 : vector<16x32xf32>
    %414 = vector.extract_strided_slice %410 {offsets = [0, 64], sizes = [16, 32], strides = [1, 1]} : vector<16x128xf32> to vector<16x32xf32>
    %415 = arith.addf %413, %414 : vector<16x32xf32>
    %416 = vector.extract_strided_slice %410 {offsets = [0, 96], sizes = [16, 32], strides = [1, 1]} : vector<16x128xf32> to vector<16x32xf32>
    %417 = arith.addf %415, %416 : vector<16x32xf32>
    %418 = arith.addf %359, %417 : vector<16x32xf32>
    %cst_95 = arith.constant dense<0.000000e+00> : vector<16x32xf32>
    %419 = tpu.matmul %418, %2, %cst_95 {dimension_numbers = #tpu.dot_dimension_numbers<[1], [0], [0], [1], [0, 0, 1, 1], [], []>} : vector<16x32xf32>, vector<32x32xf32>, vector<16x32xf32> -> vector<16x32xf32>
    %420 = vector.broadcast %3 : vector<1x32xf32> to vector<16x32xf32>
    %421 = arith.addf %419, %420 : vector<16x32xf32>
    %cst_96 = arith.constant 0.000000e+00 : f32
    %422 = vector.broadcast %cst_96 : f32 to vector<16x32xf32>
    %423 = arith.maximumf %421, %422 : vector<16x32xf32>
    %cst_97 = arith.constant dense<0.000000e+00> : vector<16x128xf32>
    %424 = tpu.matmul %423, %4, %cst_97 {dimension_numbers = #tpu.dot_dimension_numbers<[1], [0], [0], [1], [0, 0, 1, 1], [], []>} : vector<16x32xf32>, vector<32x128xf32>, vector<16x128xf32> -> vector<16x128xf32>
    %425 = vector.broadcast %5 : vector<1x128xf32> to vector<16x128xf32>
    %426 = arith.addf %424, %425 : vector<16x128xf32>
    %427 = math.tanh %426 : vector<16x128xf32>
    %428 = arith.mulf %427, %360 : vector<16x128xf32>
    %429 = vector.extract_strided_slice %428 {offsets = [0, 0], sizes = [16, 32], strides = [1, 1]} : vector<16x128xf32> to vector<16x32xf32>
    %430 = vector.extract_strided_slice %428 {offsets = [0, 32], sizes = [16, 32], strides = [1, 1]} : vector<16x128xf32> to vector<16x32xf32>
    %431 = arith.addf %429, %430 : vector<16x32xf32>
    %432 = vector.extract_strided_slice %428 {offsets = [0, 64], sizes = [16, 32], strides = [1, 1]} : vector<16x128xf32> to vector<16x32xf32>
    %433 = arith.addf %431, %432 : vector<16x32xf32>
    %434 = vector.extract_strided_slice %428 {offsets = [0, 96], sizes = [16, 32], strides = [1, 1]} : vector<16x128xf32> to vector<16x32xf32>
    %435 = arith.addf %433, %434 : vector<16x32xf32>
    %cst_98 = arith.constant 2.000000e+00 : f32
    %436 = vector.broadcast %cst_98 : f32 to vector<16x32xf32>
    %437 = arith.mulf %436, %397 : vector<16x32xf32>
    %438 = arith.addf %377, %437 : vector<16x32xf32>
    %cst_99 = arith.constant 2.000000e+00 : f32
    %439 = vector.broadcast %cst_99 : f32 to vector<16x32xf32>
    %440 = arith.mulf %439, %417 : vector<16x32xf32>
    %441 = arith.addf %438, %440 : vector<16x32xf32>
    %442 = arith.addf %441, %435 : vector<16x32xf32>
    %cst_100 = arith.constant 0.166666672 : f32
    %443 = vector.broadcast %cst_100 : f32 to vector<16x32xf32>
    %444 = arith.mulf %442, %443 : vector<16x32xf32>
    %445 = arith.addf %359, %444 : vector<16x32xf32>
    %446 = vector.extract_strided_slice %15 {offsets = [0, 640], sizes = [16, 128], strides = [1, 1]} : vector<16x896xf32> to vector<16x128xf32>
    %cst_101 = arith.constant dense<0.000000e+00> : vector<16x32xf32>
    %447 = tpu.matmul %445, %2, %cst_101 {dimension_numbers = #tpu.dot_dimension_numbers<[1], [0], [0], [1], [0, 0, 1, 1], [], []>} : vector<16x32xf32>, vector<32x32xf32>, vector<16x32xf32> -> vector<16x32xf32>
    %448 = vector.broadcast %3 : vector<1x32xf32> to vector<16x32xf32>
    %449 = arith.addf %447, %448 : vector<16x32xf32>
    %cst_102 = arith.constant 0.000000e+00 : f32
    %450 = vector.broadcast %cst_102 : f32 to vector<16x32xf32>
    %451 = arith.maximumf %449, %450 : vector<16x32xf32>
    %cst_103 = arith.constant dense<0.000000e+00> : vector<16x128xf32>
    %452 = tpu.matmul %451, %4, %cst_103 {dimension_numbers = #tpu.dot_dimension_numbers<[1], [0], [0], [1], [0, 0, 1, 1], [], []>} : vector<16x32xf32>, vector<32x128xf32>, vector<16x128xf32> -> vector<16x128xf32>
    %453 = vector.broadcast %5 : vector<1x128xf32> to vector<16x128xf32>
    %454 = arith.addf %452, %453 : vector<16x128xf32>
    %455 = math.tanh %454 : vector<16x128xf32>
    %456 = arith.mulf %455, %446 : vector<16x128xf32>
    %457 = vector.extract_strided_slice %456 {offsets = [0, 0], sizes = [16, 32], strides = [1, 1]} : vector<16x128xf32> to vector<16x32xf32>
    %458 = vector.extract_strided_slice %456 {offsets = [0, 32], sizes = [16, 32], strides = [1, 1]} : vector<16x128xf32> to vector<16x32xf32>
    %459 = arith.addf %457, %458 : vector<16x32xf32>
    %460 = vector.extract_strided_slice %456 {offsets = [0, 64], sizes = [16, 32], strides = [1, 1]} : vector<16x128xf32> to vector<16x32xf32>
    %461 = arith.addf %459, %460 : vector<16x32xf32>
    %462 = vector.extract_strided_slice %456 {offsets = [0, 96], sizes = [16, 32], strides = [1, 1]} : vector<16x128xf32> to vector<16x32xf32>
    %463 = arith.addf %461, %462 : vector<16x32xf32>
    %cst_104 = arith.constant 5.000000e-01 : f32
    %464 = vector.broadcast %cst_104 : f32 to vector<16x32xf32>
    %465 = arith.mulf %464, %463 : vector<16x32xf32>
    %466 = arith.addf %445, %465 : vector<16x32xf32>
    %cst_105 = arith.constant dense<0.000000e+00> : vector<16x32xf32>
    %467 = tpu.matmul %466, %2, %cst_105 {dimension_numbers = #tpu.dot_dimension_numbers<[1], [0], [0], [1], [0, 0, 1, 1], [], []>} : vector<16x32xf32>, vector<32x32xf32>, vector<16x32xf32> -> vector<16x32xf32>
    %468 = vector.broadcast %3 : vector<1x32xf32> to vector<16x32xf32>
    %469 = arith.addf %467, %468 : vector<16x32xf32>
    %cst_106 = arith.constant 0.000000e+00 : f32
    %470 = vector.broadcast %cst_106 : f32 to vector<16x32xf32>
    %471 = arith.maximumf %469, %470 : vector<16x32xf32>
    %cst_107 = arith.constant dense<0.000000e+00> : vector<16x128xf32>
    %472 = tpu.matmul %471, %4, %cst_107 {dimension_numbers = #tpu.dot_dimension_numbers<[1], [0], [0], [1], [0, 0, 1, 1], [], []>} : vector<16x32xf32>, vector<32x128xf32>, vector<16x128xf32> -> vector<16x128xf32>
    %473 = vector.broadcast %5 : vector<1x128xf32> to vector<16x128xf32>
    %474 = arith.addf %472, %473 : vector<16x128xf32>
    %475 = math.tanh %474 : vector<16x128xf32>
    %476 = arith.mulf %475, %446 : vector<16x128xf32>
    %477 = vector.extract_strided_slice %476 {offsets = [0, 0], sizes = [16, 32], strides = [1, 1]} : vector<16x128xf32> to vector<16x32xf32>
    %478 = vector.extract_strided_slice %476 {offsets = [0, 32], sizes = [16, 32], strides = [1, 1]} : vector<16x128xf32> to vector<16x32xf32>
    %479 = arith.addf %477, %478 : vector<16x32xf32>
    %480 = vector.extract_strided_slice %476 {offsets = [0, 64], sizes = [16, 32], strides = [1, 1]} : vector<16x128xf32> to vector<16x32xf32>
    %481 = arith.addf %479, %480 : vector<16x32xf32>
    %482 = vector.extract_strided_slice %476 {offsets = [0, 96], sizes = [16, 32], strides = [1, 1]} : vector<16x128xf32> to vector<16x32xf32>
    %483 = arith.addf %481, %482 : vector<16x32xf32>
    %cst_108 = arith.constant 5.000000e-01 : f32
    %484 = vector.broadcast %cst_108 : f32 to vector<16x32xf32>
    %485 = arith.mulf %484, %483 : vector<16x32xf32>
    %486 = arith.addf %445, %485 : vector<16x32xf32>
    %cst_109 = arith.constant dense<0.000000e+00> : vector<16x32xf32>
    %487 = tpu.matmul %486, %2, %cst_109 {dimension_numbers = #tpu.dot_dimension_numbers<[1], [0], [0], [1], [0, 0, 1, 1], [], []>} : vector<16x32xf32>, vector<32x32xf32>, vector<16x32xf32> -> vector<16x32xf32>
    %488 = vector.broadcast %3 : vector<1x32xf32> to vector<16x32xf32>
    %489 = arith.addf %487, %488 : vector<16x32xf32>
    %cst_110 = arith.constant 0.000000e+00 : f32
    %490 = vector.broadcast %cst_110 : f32 to vector<16x32xf32>
    %491 = arith.maximumf %489, %490 : vector<16x32xf32>
    %cst_111 = arith.constant dense<0.000000e+00> : vector<16x128xf32>
    %492 = tpu.matmul %491, %4, %cst_111 {dimension_numbers = #tpu.dot_dimension_numbers<[1], [0], [0], [1], [0, 0, 1, 1], [], []>} : vector<16x32xf32>, vector<32x128xf32>, vector<16x128xf32> -> vector<16x128xf32>
    %493 = vector.broadcast %5 : vector<1x128xf32> to vector<16x128xf32>
    %494 = arith.addf %492, %493 : vector<16x128xf32>
    %495 = math.tanh %494 : vector<16x128xf32>
    %496 = arith.mulf %495, %446 : vector<16x128xf32>
    %497 = vector.extract_strided_slice %496 {offsets = [0, 0], sizes = [16, 32], strides = [1, 1]} : vector<16x128xf32> to vector<16x32xf32>
    %498 = vector.extract_strided_slice %496 {offsets = [0, 32], sizes = [16, 32], strides = [1, 1]} : vector<16x128xf32> to vector<16x32xf32>
    %499 = arith.addf %497, %498 : vector<16x32xf32>
    %500 = vector.extract_strided_slice %496 {offsets = [0, 64], sizes = [16, 32], strides = [1, 1]} : vector<16x128xf32> to vector<16x32xf32>
    %501 = arith.addf %499, %500 : vector<16x32xf32>
    %502 = vector.extract_strided_slice %496 {offsets = [0, 96], sizes = [16, 32], strides = [1, 1]} : vector<16x128xf32> to vector<16x32xf32>
    %503 = arith.addf %501, %502 : vector<16x32xf32>
    %504 = arith.addf %445, %503 : vector<16x32xf32>
    %cst_112 = arith.constant dense<0.000000e+00> : vector<16x32xf32>
    %505 = tpu.matmul %504, %2, %cst_112 {dimension_numbers = #tpu.dot_dimension_numbers<[1], [0], [0], [1], [0, 0, 1, 1], [], []>} : vector<16x32xf32>, vector<32x32xf32>, vector<16x32xf32> -> vector<16x32xf32>
    %506 = vector.broadcast %3 : vector<1x32xf32> to vector<16x32xf32>
    %507 = arith.addf %505, %506 : vector<16x32xf32>
    %cst_113 = arith.constant 0.000000e+00 : f32
    %508 = vector.broadcast %cst_113 : f32 to vector<16x32xf32>
    %509 = arith.maximumf %507, %508 : vector<16x32xf32>
    %cst_114 = arith.constant dense<0.000000e+00> : vector<16x128xf32>
    %510 = tpu.matmul %509, %4, %cst_114 {dimension_numbers = #tpu.dot_dimension_numbers<[1], [0], [0], [1], [0, 0, 1, 1], [], []>} : vector<16x32xf32>, vector<32x128xf32>, vector<16x128xf32> -> vector<16x128xf32>
    %511 = vector.broadcast %5 : vector<1x128xf32> to vector<16x128xf32>
    %512 = arith.addf %510, %511 : vector<16x128xf32>
    %513 = math.tanh %512 : vector<16x128xf32>
    %514 = arith.mulf %513, %446 : vector<16x128xf32>
    %515 = vector.extract_strided_slice %514 {offsets = [0, 0], sizes = [16, 32], strides = [1, 1]} : vector<16x128xf32> to vector<16x32xf32>
    %516 = vector.extract_strided_slice %514 {offsets = [0, 32], sizes = [16, 32], strides = [1, 1]} : vector<16x128xf32> to vector<16x32xf32>
    %517 = arith.addf %515, %516 : vector<16x32xf32>
    %518 = vector.extract_strided_slice %514 {offsets = [0, 64], sizes = [16, 32], strides = [1, 1]} : vector<16x128xf32> to vector<16x32xf32>
    %519 = arith.addf %517, %518 : vector<16x32xf32>
    %520 = vector.extract_strided_slice %514 {offsets = [0, 96], sizes = [16, 32], strides = [1, 1]} : vector<16x128xf32> to vector<16x32xf32>
    %521 = arith.addf %519, %520 : vector<16x32xf32>
    %cst_115 = arith.constant 2.000000e+00 : f32
    %522 = vector.broadcast %cst_115 : f32 to vector<16x32xf32>
    %523 = arith.mulf %522, %483 : vector<16x32xf32>
    %524 = arith.addf %463, %523 : vector<16x32xf32>
    %cst_116 = arith.constant 2.000000e+00 : f32
    %525 = vector.broadcast %cst_116 : f32 to vector<16x32xf32>
    %526 = arith.mulf %525, %503 : vector<16x32xf32>
    %527 = arith.addf %524, %526 : vector<16x32xf32>
    %528 = arith.addf %527, %521 : vector<16x32xf32>
    %cst_117 = arith.constant 0.166666672 : f32
    %529 = vector.broadcast %cst_117 : f32 to vector<16x32xf32>
    %530 = arith.mulf %528, %529 : vector<16x32xf32>
    %531 = arith.addf %445, %530 : vector<16x32xf32>
    %532 = vector.extract_strided_slice %15 {offsets = [0, 768], sizes = [16, 128], strides = [1, 1]} : vector<16x896xf32> to vector<16x128xf32>
    %cst_118 = arith.constant dense<0.000000e+00> : vector<16x32xf32>
    %533 = tpu.matmul %531, %2, %cst_118 {dimension_numbers = #tpu.dot_dimension_numbers<[1], [0], [0], [1], [0, 0, 1, 1], [], []>} : vector<16x32xf32>, vector<32x32xf32>, vector<16x32xf32> -> vector<16x32xf32>
    %534 = vector.broadcast %3 : vector<1x32xf32> to vector<16x32xf32>
    %535 = arith.addf %533, %534 : vector<16x32xf32>
    %cst_119 = arith.constant 0.000000e+00 : f32
    %536 = vector.broadcast %cst_119 : f32 to vector<16x32xf32>
    %537 = arith.maximumf %535, %536 : vector<16x32xf32>
    %cst_120 = arith.constant dense<0.000000e+00> : vector<16x128xf32>
    %538 = tpu.matmul %537, %4, %cst_120 {dimension_numbers = #tpu.dot_dimension_numbers<[1], [0], [0], [1], [0, 0, 1, 1], [], []>} : vector<16x32xf32>, vector<32x128xf32>, vector<16x128xf32> -> vector<16x128xf32>
    %539 = vector.broadcast %5 : vector<1x128xf32> to vector<16x128xf32>
    %540 = arith.addf %538, %539 : vector<16x128xf32>
    %541 = math.tanh %540 : vector<16x128xf32>
    %542 = arith.mulf %541, %532 : vector<16x128xf32>
    %543 = vector.extract_strided_slice %542 {offsets = [0, 0], sizes = [16, 32], strides = [1, 1]} : vector<16x128xf32> to vector<16x32xf32>
    %544 = vector.extract_strided_slice %542 {offsets = [0, 32], sizes = [16, 32], strides = [1, 1]} : vector<16x128xf32> to vector<16x32xf32>
    %545 = arith.addf %543, %544 : vector<16x32xf32>
    %546 = vector.extract_strided_slice %542 {offsets = [0, 64], sizes = [16, 32], strides = [1, 1]} : vector<16x128xf32> to vector<16x32xf32>
    %547 = arith.addf %545, %546 : vector<16x32xf32>
    %548 = vector.extract_strided_slice %542 {offsets = [0, 96], sizes = [16, 32], strides = [1, 1]} : vector<16x128xf32> to vector<16x32xf32>
    %549 = arith.addf %547, %548 : vector<16x32xf32>
    %cst_121 = arith.constant 5.000000e-01 : f32
    %550 = vector.broadcast %cst_121 : f32 to vector<16x32xf32>
    %551 = arith.mulf %550, %549 : vector<16x32xf32>
    %552 = arith.addf %531, %551 : vector<16x32xf32>
    %cst_122 = arith.constant dense<0.000000e+00> : vector<16x32xf32>
    %553 = tpu.matmul %552, %2, %cst_122 {dimension_numbers = #tpu.dot_dimension_numbers<[1], [0], [0], [1], [0, 0, 1, 1], [], []>} : vector<16x32xf32>, vector<32x32xf32>, vector<16x32xf32> -> vector<16x32xf32>
    %554 = vector.broadcast %3 : vector<1x32xf32> to vector<16x32xf32>
    %555 = arith.addf %553, %554 : vector<16x32xf32>
    %cst_123 = arith.constant 0.000000e+00 : f32
    %556 = vector.broadcast %cst_123 : f32 to vector<16x32xf32>
    %557 = arith.maximumf %555, %556 : vector<16x32xf32>
    %cst_124 = arith.constant dense<0.000000e+00> : vector<16x128xf32>
    %558 = tpu.matmul %557, %4, %cst_124 {dimension_numbers = #tpu.dot_dimension_numbers<[1], [0], [0], [1], [0, 0, 1, 1], [], []>} : vector<16x32xf32>, vector<32x128xf32>, vector<16x128xf32> -> vector<16x128xf32>
    %559 = vector.broadcast %5 : vector<1x128xf32> to vector<16x128xf32>
    %560 = arith.addf %558, %559 : vector<16x128xf32>
    %561 = math.tanh %560 : vector<16x128xf32>
    %562 = arith.mulf %561, %532 : vector<16x128xf32>
    %563 = vector.extract_strided_slice %562 {offsets = [0, 0], sizes = [16, 32], strides = [1, 1]} : vector<16x128xf32> to vector<16x32xf32>
    %564 = vector.extract_strided_slice %562 {offsets = [0, 32], sizes = [16, 32], strides = [1, 1]} : vector<16x128xf32> to vector<16x32xf32>
    %565 = arith.addf %563, %564 : vector<16x32xf32>
    %566 = vector.extract_strided_slice %562 {offsets = [0, 64], sizes = [16, 32], strides = [1, 1]} : vector<16x128xf32> to vector<16x32xf32>
    %567 = arith.addf %565, %566 : vector<16x32xf32>
    %568 = vector.extract_strided_slice %562 {offsets = [0, 96], sizes = [16, 32], strides = [1, 1]} : vector<16x128xf32> to vector<16x32xf32>
    %569 = arith.addf %567, %568 : vector<16x32xf32>
    %cst_125 = arith.constant 5.000000e-01 : f32
    %570 = vector.broadcast %cst_125 : f32 to vector<16x32xf32>
    %571 = arith.mulf %570, %569 : vector<16x32xf32>
    %572 = arith.addf %531, %571 : vector<16x32xf32>
    %cst_126 = arith.constant dense<0.000000e+00> : vector<16x32xf32>
    %573 = tpu.matmul %572, %2, %cst_126 {dimension_numbers = #tpu.dot_dimension_numbers<[1], [0], [0], [1], [0, 0, 1, 1], [], []>} : vector<16x32xf32>, vector<32x32xf32>, vector<16x32xf32> -> vector<16x32xf32>
    %574 = vector.broadcast %3 : vector<1x32xf32> to vector<16x32xf32>
    %575 = arith.addf %573, %574 : vector<16x32xf32>
    %cst_127 = arith.constant 0.000000e+00 : f32
    %576 = vector.broadcast %cst_127 : f32 to vector<16x32xf32>
    %577 = arith.maximumf %575, %576 : vector<16x32xf32>
    %cst_128 = arith.constant dense<0.000000e+00> : vector<16x128xf32>
    %578 = tpu.matmul %577, %4, %cst_128 {dimension_numbers = #tpu.dot_dimension_numbers<[1], [0], [0], [1], [0, 0, 1, 1], [], []>} : vector<16x32xf32>, vector<32x128xf32>, vector<16x128xf32> -> vector<16x128xf32>
    %579 = vector.broadcast %5 : vector<1x128xf32> to vector<16x128xf32>
    %580 = arith.addf %578, %579 : vector<16x128xf32>
    %581 = math.tanh %580 : vector<16x128xf32>
    %582 = arith.mulf %581, %532 : vector<16x128xf32>
    %583 = vector.extract_strided_slice %582 {offsets = [0, 0], sizes = [16, 32], strides = [1, 1]} : vector<16x128xf32> to vector<16x32xf32>
    %584 = vector.extract_strided_slice %582 {offsets = [0, 32], sizes = [16, 32], strides = [1, 1]} : vector<16x128xf32> to vector<16x32xf32>
    %585 = arith.addf %583, %584 : vector<16x32xf32>
    %586 = vector.extract_strided_slice %582 {offsets = [0, 64], sizes = [16, 32], strides = [1, 1]} : vector<16x128xf32> to vector<16x32xf32>
    %587 = arith.addf %585, %586 : vector<16x32xf32>
    %588 = vector.extract_strided_slice %582 {offsets = [0, 96], sizes = [16, 32], strides = [1, 1]} : vector<16x128xf32> to vector<16x32xf32>
    %589 = arith.addf %587, %588 : vector<16x32xf32>
    %590 = arith.addf %531, %589 : vector<16x32xf32>
    %cst_129 = arith.constant dense<0.000000e+00> : vector<16x32xf32>
    %591 = tpu.matmul %590, %2, %cst_129 {dimension_numbers = #tpu.dot_dimension_numbers<[1], [0], [0], [1], [0, 0, 1, 1], [], []>} : vector<16x32xf32>, vector<32x32xf32>, vector<16x32xf32> -> vector<16x32xf32>
    %592 = vector.broadcast %3 : vector<1x32xf32> to vector<16x32xf32>
    %593 = arith.addf %591, %592 : vector<16x32xf32>
    %cst_130 = arith.constant 0.000000e+00 : f32
    %594 = vector.broadcast %cst_130 : f32 to vector<16x32xf32>
    %595 = arith.maximumf %593, %594 : vector<16x32xf32>
    %cst_131 = arith.constant dense<0.000000e+00> : vector<16x128xf32>
    %596 = tpu.matmul %595, %4, %cst_131 {dimension_numbers = #tpu.dot_dimension_numbers<[1], [0], [0], [1], [0, 0, 1, 1], [], []>} : vector<16x32xf32>, vector<32x128xf32>, vector<16x128xf32> -> vector<16x128xf32>
    %597 = vector.broadcast %5 : vector<1x128xf32> to vector<16x128xf32>
    %598 = arith.addf %596, %597 : vector<16x128xf32>
    %599 = math.tanh %598 : vector<16x128xf32>
    %600 = arith.mulf %599, %532 : vector<16x128xf32>
    %601 = vector.extract_strided_slice %600 {offsets = [0, 0], sizes = [16, 32], strides = [1, 1]} : vector<16x128xf32> to vector<16x32xf32>
    %602 = vector.extract_strided_slice %600 {offsets = [0, 32], sizes = [16, 32], strides = [1, 1]} : vector<16x128xf32> to vector<16x32xf32>
    %603 = arith.addf %601, %602 : vector<16x32xf32>
    %604 = vector.extract_strided_slice %600 {offsets = [0, 64], sizes = [16, 32], strides = [1, 1]} : vector<16x128xf32> to vector<16x32xf32>
    %605 = arith.addf %603, %604 : vector<16x32xf32>
    %606 = vector.extract_strided_slice %600 {offsets = [0, 96], sizes = [16, 32], strides = [1, 1]} : vector<16x128xf32> to vector<16x32xf32>
    %607 = arith.addf %605, %606 : vector<16x32xf32>
    %cst_132 = arith.constant 2.000000e+00 : f32
    %608 = vector.broadcast %cst_132 : f32 to vector<16x32xf32>
    %609 = arith.mulf %608, %569 : vector<16x32xf32>
    %610 = arith.addf %549, %609 : vector<16x32xf32>
    %cst_133 = arith.constant 2.000000e+00 : f32
    %611 = vector.broadcast %cst_133 : f32 to vector<16x32xf32>
    %612 = arith.mulf %611, %589 : vector<16x32xf32>
    %613 = arith.addf %610, %612 : vector<16x32xf32>
    %614 = arith.addf %613, %607 : vector<16x32xf32>
    %cst_134 = arith.constant 0.166666672 : f32
    %615 = vector.broadcast %cst_134 : f32 to vector<16x32xf32>
    %616 = arith.mulf %614, %615 : vector<16x32xf32>
    %617 = arith.addf %531, %616 : vector<16x32xf32>
    %c0_135 = arith.constant 0 : index
    %c0_136 = arith.constant 0 : index
    %618 = vector.load %arg9[%c0_135, %c0_136] : memref<32x16xf32, #tpu.memory_space<vmem>>, vector<32x16xf32>
    %619 = arith.mulf %617, %617 : vector<16x32xf32>
    %cst_137 = arith.constant dense<0.000000e+00> : vector<16x16xf32>
    %620 = tpu.matmul %619, %618, %cst_137 {dimension_numbers = #tpu.dot_dimension_numbers<[1], [0], [0], [1], [0, 0, 1, 1], [], []>} : vector<16x32xf32>, vector<32x16xf32>, vector<16x16xf32> -> vector<16x16xf32>
    %cst_138 = arith.constant dense<0xFF800000> : vector<16xf32>
    %621 = vector.multi_reduction <maximumf>, %620, %cst_138 [1] : vector<16x16xf32> to vector<16xf32>
    %622 = vector.shape_cast %621 : vector<16xf32> to vector<16x1xf32>
    %623 = vector.broadcast %622 : vector<16x1xf32> to vector<16x16xf32>
    %624 = arith.subf %620, %623 : vector<16x16xf32>
    %625 = math.exp %624 : vector<16x16xf32>
    %cst_139 = arith.constant dense<0.000000e+00> : vector<16xf32>
    %626 = vector.multi_reduction <add>, %625, %cst_139 [1] : vector<16x16xf32> to vector<16xf32>
    %627 = vector.shape_cast %626 : vector<16xf32> to vector<16x1xf32>
    %628 = vector.broadcast %627 : vector<16x1xf32> to vector<16x16xf32>
    %629 = arith.divf %625, %628 : vector<16x16xf32>
    %c0_140 = arith.constant 0 : index
    %c0_141 = arith.constant 0 : index
    %630 = vector.load %arg10[%c0_140, %c0_141] : memref<16x16xf32, #tpu.memory_space<vmem>>, vector<16x16xf32>
    tpu.vector_store %arg10[%c0_140, %c0_141], %629 {strides = array<i32>} : memref<16x16xf32, #tpu.memory_space<vmem>>, vector<16x16xf32>,
    return
  }
  func.func @transform_0(%arg0: i32) -> (i32, i32) {
    %c0_i32 = arith.constant 0 : i32
    %c0_i32_0 = arith.constant 0 : i32
    return %arg0, %c0_i32 : i32, i32
  }
  func.func @transform_1(%arg0: i32) -> (i32, i32) {
    %c0_i32 = arith.constant 0 : i32
    %c0_i32_0 = arith.constant 0 : i32
    %c0_i32_1 = arith.constant 0 : i32
    return %c0_i32, %c0_i32_0 : i32, i32
  }
  func.func @transform_2(%arg0: i32) -> (i32, i32) {
    %c0_i32 = arith.constant 0 : i32
    %c0_i32_0 = arith.constant 0 : i32
    %c0_i32_1 = arith.constant 0 : i32
    return %c0_i32, %c0_i32_0 : i32, i32
  }
  func.func @transform_3(%arg0: i32) -> (i32, i32) {
    %c0_i32 = arith.constant 0 : i32
    %c0_i32_0 = arith.constant 0 : i32
    %c0_i32_1 = arith.constant 0 : i32
    return %c0_i32, %c0_i32_0 : i32, i32
  }
  func.func @transform_4(%arg0: i32) -> (i32, i32) {
    %c0_i32 = arith.constant 0 : i32
    %c0_i32_0 = arith.constant 0 : i32
    %c0_i32_1 = arith.constant 0 : i32
    return %c0_i32, %c0_i32_0 : i32, i32
  }
  func.func @transform_5(%arg0: i32) -> (i32, i32) {
    %c0_i32 = arith.constant 0 : i32
    %c0_i32_0 = arith.constant 0 : i32
    %c0_i32_1 = arith.constant 0 : i32
    return %c0_i32, %c0_i32_0 : i32, i32
  }
  func.func @transform_6(%arg0: i32) -> (i32, i32) {
    %c0_i32 = arith.constant 0 : i32
    %c0_i32_0 = arith.constant 0 : i32
    %c0_i32_1 = arith.constant 0 : i32
    return %c0_i32, %c0_i32_0 : i32, i32
  }
  func.func @transform_7(%arg0: i32) -> (i32, i32) {
    %c0_i32 = arith.constant 0 : i32
    %c0_i32_0 = arith.constant 0 : i32
    %c0_i32_1 = arith.constant 0 : i32
    return %c0_i32, %c0_i32_0 : i32, i32
  }
  func.func @transform_8(%arg0: i32) -> (i32, i32) {
    %c0_i32 = arith.constant 0 : i32
    %c0_i32_0 = arith.constant 0 : i32
    %c0_i32_1 = arith.constant 0 : i32
    return %c0_i32, %c0_i32_0 : i32, i32
  }
  func.func @transform_9(%arg0: i32) -> (i32, i32) {
    %c0_i32 = arith.constant 0 : i32
    %c0_i32_0 = arith.constant 0 : i32
    return %arg0, %c0_i32 : i32, i32
  }
}

</mosaic_0001>

<llo_original>
// kernel: tpu_custom_call.1
$region0: #{tpu_custom_call.1}
  #allocation0 [shape = 'u32[]', space=smem, size = 0x4, offset = 0x4, fixed_abs, tag = 'smem constant byte address 0x4 - core index']
  #allocation1 [shape = 'u32[144,128]{1,0:T(1,128)}', space=vmem, size = 0x12000, scoped, tag = 'internal scratch']
  %s0 = inlined_call_operand.vmem [shape: f32[16,32], index: 0, kind: input, shape index: {}]
  %s1 = inlined_call_operand.vmem [shape: f32[4,32], index: 1, kind: input, shape index: {}]
  %s2 = inlined_call_operand.vmem [shape: f32[1,32], index: 2, kind: input, shape index: {}]
  %s3 = inlined_call_operand.vmem [shape: f32[32,32], index: 3, kind: input, shape index: {}]
  %s4 = inlined_call_operand.vmem [shape: f32[1,32], index: 4, kind: input, shape index: {}]
  %s5 = inlined_call_operand.hbm [shape: f32[32,128], index: 5, kind: input, shape index: {}]
  %s6 = inlined_call_operand.vmem [shape: f32[1,128], index: 6, kind: input, shape index: {}]
  %s7 = inlined_call_operand.hbm [shape: f32[28,896], index: 7, kind: input, shape index: {}]
  %s8 = inlined_call_operand.vmem [shape: f32[32,16], index: 8, kind: input, shape index: {}]
  %s9 = inlined_call_operand.hbm [shape: f32[16,16], index: 9, kind: output, shape index: {}]
  %s10 = sld [smem:[#allocation0]]
  $region54: #{tpu_custom_call.1} parent=0
    _
  %s12 = ssub.s32 1, %s10
  %s13 = scalar_select 0, %s12, %s10
  $region1: #{tpu_custom_call.1} parent=0
    #allocation2 [shape = 'u8[16384]{0}', space=vmem, size = 0x4000, scoped, tag = 'input window, operand 5, single buffered']
    #allocation3 [shape = 's32[1]{0}', space=sflag, size = 0x4, scoped, tag = 'scoped memory for tpu_custom_call.1']
    #allocation4 [shape = 's32[1]{0}', space=sflag, size = 0x4, scoped, tag = 'scoped memory for tpu_custom_call.1']
    #allocation5 [shape = 'u8[114688]{0}', space=vmem, size = 0x1c000, scoped, tag = 'input window, operand 7, single buffered']
    #allocation6 [shape = 's32[1]{0}', space=sflag, size = 0x4, scoped, tag = 'scoped memory for tpu_custom_call.1']
    #allocation7 [shape = 'u8[8192]{0}', space=vmem, size = 0x2000, scoped, tag = 'output window, operand 0, single buffered']
    %14 = vsyncpa [#allocation3], 0
    %15 = vsyncpa [#allocation6], 0
    %16 = vsyncpa [#allocation4], 0
    // Predicated region
    $region2: #{tpu_custom_call.1} parent=1 // pred_check
      _
    $region3: #{tpu_custom_call.1} parent=1 // pred_check_branch
      %18 = sbr.rel (0) target = $region5
    $region4: #{tpu_custom_call.1} parent=1 // pred_region
      _
    $region5: #{tpu_custom_call.1} parent=1 // pred_fallthru
      _
    // Predicated region
    $region6: #{tpu_custom_call.1} parent=1 // pred_check
      _
    $region7: #{tpu_custom_call.1} parent=1 // pred_check_branch
      %20 = sbr.rel (0) target = $region9
    $region8: #{tpu_custom_call.1} parent=1 // pred_region
      _
    $region9: #{tpu_custom_call.1} parent=1 // pred_fallthru
      _
    // Predicated region
    $region10: #{tpu_custom_call.1} parent=1 // pred_check
      _
    $region11: #{tpu_custom_call.1} parent=1 // pred_check_branch
      %22 = sbr.rel (0) target = $region13
    $region12: #{tpu_custom_call.1} parent=1 // pred_region
      _
    $region13: #{tpu_custom_call.1} parent=1 // pred_fallthru
      _
    // Predicated region
    $region14: #{tpu_custom_call.1} parent=1 // pred_check
      _
    $region15: #{tpu_custom_call.1} parent=1 // pred_check_branch
      %24 = sbr.rel (0) target = $region17
    $region16: #{tpu_custom_call.1} parent=1 // pred_region
      _
    $region17: #{tpu_custom_call.1} parent=1 // pred_fallthru
      _
    // Predicated region
    $region18: #{tpu_custom_call.1} parent=1 // pred_check
      _
    $region19: #{tpu_custom_call.1} parent=1 // pred_check_branch
      %26 = sbr.rel (0) target = $region21
    $region20: #{tpu_custom_call.1} parent=1 // pred_region
      _
    $region21: #{tpu_custom_call.1} parent=1 // pred_fallthru
      _
    // Predicated region
    $region22: #{tpu_custom_call.1} parent=1 // pred_check
      _
    $region23: #{tpu_custom_call.1} parent=1 // pred_check_branch
      %28 = sbr.rel (0) target = $region25
    $region24: #{tpu_custom_call.1} parent=1 // pred_region
      %s30 = ssub.s32 512, 512
      %31 = vsyncadd [#allocation3], %s30
      %s32 = sshll.u32 [#allocation2], 4
      %s33 = int_to_ptr.vmem [resolvable:$true] %s32
      %38 = dma.hbm_to_vmem [thread:$0]  %s5, 512, %s33, [#allocation3], 128, 128, 8
    $region25: #{tpu_custom_call.1} parent=1 // pred_fallthru
      _
    // Predicated region
    $region26: #{tpu_custom_call.1} parent=1 // pred_check
      _
    $region27: #{tpu_custom_call.1} parent=1 // pred_check_branch
      %40 = sbr.rel (0) target = $region29
    $region28: #{tpu_custom_call.1} parent=1 // pred_region
      _
    $region29: #{tpu_custom_call.1} parent=1 // pred_fallthru
      _
    // Predicated region
    $region30: #{tpu_custom_call.1} parent=1 // pred_check
      _
    $region31: #{tpu_custom_call.1} parent=1 // pred_check_branch
      %42 = sbr.rel (0) target = $region33
    $region32: #{tpu_custom_call.1} parent=1 // pred_region
      %s44 = ssub.s32 3584, 3584
      %45 = vsyncadd [#allocation6], %s44
      %s46 = sshll.u32 [#allocation5], 4
      %s47 = int_to_ptr.vmem [resolvable:$true] %s46
      %52 = dma.hbm_to_vmem [thread:$0]  %s7, 3584, %s47, [#allocation6], 896, 896, 56
    $region33: #{tpu_custom_call.1} parent=1 // pred_fallthru
      _
    // Predicated region
    $region34: #{tpu_custom_call.1} parent=1 // pred_check
      _
    $region35: #{tpu_custom_call.1} parent=1 // pred_check_branch
      %54 = sbr.rel (0) target = $region37
    $region36: #{tpu_custom_call.1} parent=1 // pred_region
      _
    $region37: #{tpu_custom_call.1} parent=1 // pred_fallthru
      _
    // Predicated region
    $region38: #{tpu_custom_call.1} parent=1 // pred_check
      _
    $region39: #{tpu_custom_call.1} parent=1 // pred_check_branch
      %56 = sbr.rel (0) target = $region41
    $region40: #{tpu_custom_call.1} parent=1 // pred_region
      %57 = dma.done [#allocation3], 512
    $region41: #{tpu_custom_call.1} parent=1 // pred_fallthru
      _
    // Predicated region
    $region42: #{tpu_custom_call.1} parent=1 // pred_check
      _
    $region43: #{tpu_custom_call.1} parent=1 // pred_check_branch
      %59 = sbr.rel (0) target = $region45
    $region44: #{tpu_custom_call.1} parent=1 // pred_region
      %60 = dma.done [#allocation6], 3584
    $region45: #{tpu_custom_call.1} parent=1 // pred_fallthru
      _
    %v61 = vld [vmem:[%s1] sm:$0xf]
    %v62 = vld [vmem:[%s2] sm:$0x1]
    %v63 = vld [vmem:[%s3] sm:$0xff]
    %v64 = vld [vmem:[%s3 + $0x8] sm:$0xff]
    %v65 = vld [vmem:[%s3 + $0x10] sm:$0xff]
    %v66 = vld [vmem:[%s3 + $0x18] sm:$0xff]
    %v67 = vld [vmem:[%s4] sm:$0x1]
    %v68 = vld [vmem:[#allocation2] sm:$0xff]
    %v69 = vld [vmem:[#allocation2 + $0x8] sm:$0xff]
    %v70 = vld [vmem:[#allocation2 + $0x10] sm:$0xff]
    %v71 = vld [vmem:[#allocation2 + $0x18] sm:$0xff]
    %v72 = vld [vmem:[%s6] sm:$0x1]
    %v73 = vld [vmem:[%s0] sm:$0xff]
    %v74 = vld [vmem:[%s0 + $0x8] sm:$0xff]
    %v76 = vlaneseq
    %v77 = vshrl.u32 %v76, 7
    %v78 = vsub.s32 0, %v77
    %v79 = vrot.slane %v62, %v78
    %vm81 = vcmask 31744
    %v83 = vsel %vm81, %v73, 0
    %v86 = vsel %vm81, %v74, 0
    %vm88 = vcmask 1043456
    %v90 = vsel %vm88, %v61, 0
    %92 = vmatprep.subr.mxu0 0.0
    %93 = vmatpush1.msra.mxu0 0.0
    %94 = vmatprep.subr.mxu0 0.0
    %95 = vmatpush1.msra.mxu0 0.0
    %96 = vmatprep.subr.mxu0 0.0
    %97 = vmatpush1.msra.mxu0 0.0
    %98 = vmatprep.subr.mxu0 0.0
    %99 = vmatpush1.msra.mxu0 0.0
    %100 = vmatprep.subr.mxu0 0.0
    %101 = vmatpush1.msra.mxu0 0.0
    %102 = vmatprep.subr.mxu0 0.0
    %103 = vmatpush1.msra.mxu0 0.0
    %104 = vmatprep.subr.mxu0 0.0
    %105 = vmatpush1.msra.mxu0 0.0
    %106 = vmatprep.subr.mxu0 0.0
    %107 = vmatpush1.msra.mxu0 0.0
    %108 = vmatprep.subr.mxu0 0.0
    %109 = vmatpush1.msra.mxu0 0.0
    %110 = vmatprep.subr.mxu0 0.0
    %111 = vmatpush1.msra.mxu0 0.0
    %112 = vmatprep.subr.mxu0 0.0
    %113 = vmatpush1.msra.mxu0 0.0
    %114 = vmatprep.subr.mxu0 0.0
    %115 = vmatpush1.msra.mxu0 0.0
    %116 = vmatprep.subr.mxu0 0.0
    %117 = vmatpush1.msra.mxu0 0.0
    %118 = vmatprep.subr.mxu0 0.0
    %119 = vmatpush1.msra.mxu0 0.0
    %120 = vmatprep.subr.mxu0 0.0
    %121 = vmatpush1.msra.mxu0 0.0
    %122 = vmatprep.subr.mxu0 0.0
    %123 = vmatpush1.msra.mxu0 %v90
    %124 = vmatprep.subr.mxu0 0.0
    %125 = vmatpush2.msra.mxu0 0.0
    %126 = vmatprep.subr.mxu0 0.0
    %127 = vmatpush2.msra.mxu0 0.0
    %128 = vmatprep.subr.mxu0 0.0
    %129 = vmatpush2.msra.mxu0 0.0
    %130 = vmatprep.subr.mxu0 0.0
    %131 = vmatpush2.msra.mxu0 0.0
    %132 = vmatprep.subr.mxu0 0.0
    %133 = vmatpush2.msra.mxu0 0.0
    %134 = vmatprep.subr.mxu0 0.0
    %135 = vmatpush2.msra.mxu0 0.0
    %136 = vmatprep.subr.mxu0 0.0
    %137 = vmatpush2.msra.mxu0 0.0
    %138 = vmatprep.subr.mxu0 0.0
    %139 = vmatpush2.msra.mxu0 0.0
    %140 = vmatprep.subr.mxu0 0.0
    %141 = vmatpush2.msra.mxu0 0.0
    %142 = vmatprep.subr.mxu0 0.0
    %143 = vmatpush2.msra.mxu0 0.0
    %144 = vmatprep.subr.mxu0 0.0
    %145 = vmatpush2.msra.mxu0 0.0
    %146 = vmatprep.subr.mxu0 0.0
    %147 = vmatpush2.msra.mxu0 0.0
    %148 = vmatprep.subr.mxu0 0.0
    %149 = vmatpush2.msra.mxu0 0.0
    %150 = vmatprep.subr.mxu0 0.0
    %151 = vmatpush2.msra.mxu0 0.0
    %152 = vmatprep.subr.mxu0 0.0
    %153 = vmatpush2.msra.mxu0 0.0
    %154 = vmatprep.subr.mxu0 0.0
    %155 = vmatpush2.msra.mxu0 0.0
    %156 = vmatprep.mubr.f32.mxu0 0.0
    %157 = vmatmul.mubr.f32.gmra.mxu0 %v83
    %v158 = vpop.f32.mrf.mxu0
    %v159 = vadd.f32 %v79, %v158
    %v160 = vpop.f32.mrf.mxu0
    %161 = vmatprep.mubr.f32.mxu0 0.0
    %162 = vmatmul.mubr.f32.gmra.mxu0 %v86
    %v163 = vpop.f32.mrf.mxu0
    %v164 = vadd.f32 %v79, %v163
    %v165 = vpop.f32.mrf.mxu0
    %166 = vdwg.mxu0
    %167 = vrot.lane.b32.xlu0 %v73, 4
    %v168 = vpop.permute.xlu0 %167
    %169 = vrot.lane.b32.xlu0 %v74, 4
    %v170 = vpop.permute.xlu0 %169
    %v173 = vsub.f32 %v73, %v168
    %v174 = vsub.f32 %v74, %v170
    %v175 = vld [vmem:[#allocation5] sm:$0xff]
    %v176 = vld [vmem:[#allocation5 + $0x8] sm:$0xff]
    %v177 = vld [vmem:[#allocation5 + $0x10] sm:$0xff]
    %v178 = vld [vmem:[#allocation5 + $0x18] sm:$0xff]
    %v179 = vld [vmem:[#allocation5 + $0x20] sm:$0xff]
    %v180 = vld [vmem:[#allocation5 + $0x28] sm:$0xff]
    %v181 = vld [vmem:[#allocation5 + $0x30] sm:$0xff]
    %v182 = vld [vmem:[#allocation5 + $0x38] sm:$0xff]
    %v183 = vld [vmem:[#allocation5 + $0x40] sm:$0xff]
    %v184 = vld [vmem:[#allocation5 + $0x48] sm:$0xff]
    %v185 = vld [vmem:[#allocation5 + $0x50] sm:$0xff]
    %v186 = vld [vmem:[#allocation5 + $0x58] sm:$0xff]
    %v187 = vld [vmem:[#allocation5 + $0x60] sm:$0xff]
    %v188 = vld [vmem:[#allocation5 + $0x68] sm:$0xff]
    %v189 = vld [vmem:[#allocation5 + $0x70] sm:$0xff]
    %v190 = vld [vmem:[#allocation5 + $0x78] sm:$0xff]
    %v191 = vld [vmem:[#allocation5 + $0x80] sm:$0xff]
    %v192 = vld [vmem:[#allocation5 + $0x88] sm:$0xff]
    %v193 = vld [vmem:[#allocation5 + $0x90] sm:$0xff]
    %v194 = vld [vmem:[#allocation5 + $0x98] sm:$0xff]
    %v195 = vld [vmem:[#allocation5 + $0xa0] sm:$0xff]
    %v196 = vld [vmem:[#allocation5 + $0xa8] sm:$0xf]
    %v197 = vld [vmem:[#allocation5 + $0xb0] sm:$0xf]
    %v198 = vld [vmem:[#allocation5 + $0xb8] sm:$0xf]
    %v199 = vld [vmem:[#allocation5 + $0xc0] sm:$0xf]
    %v200 = vld [vmem:[#allocation5 + $0xc8] sm:$0xf]
    %v201 = vld [vmem:[#allocation5 + $0xd0] sm:$0xf]
    %v202 = vld [vmem:[#allocation5 + $0xd8] sm:$0xf]
    %205 = vrot.lane.b32.xlu0 %v173, 124
    %v206 = vpop.permute.xlu0 %205
    %207 = vrot.lane.b32.xlu0 %v174, 124
    %v208 = vpop.permute.xlu0 %207
    %vm209 = vcmask 228352
    %v210 = vsel %vm209, %v206, 0
    %v212 = vsel %vm209, %v208, 0
    %v215 = vsel %vm88, %v196, 0
    %v218 = vsel %vm88, %v197, 0
    %v221 = vsel %vm88, %v198, 0
    %v224 = vsel %vm88, %v199, 0
    %v227 = vsel %vm88, %v200, 0
    %v230 = vsel %vm88, %v201, 0
    %v233 = vsel %vm88, %v202, 0
    %235 = vmatprep.subr.mxu0 0.0
    %236 = vmatpush1.msra.mxu0 0.0
    %237 = vmatprep.subr.mxu0 0.0
    %238 = vmatpush1.msra.mxu0 0.0
    %239 = vmatprep.subr.mxu0 0.0
    %240 = vmatpush1.msra.mxu0 0.0
    %241 = vmatprep.subr.mxu0 0.0
    %242 = vmatpush1.msra.mxu0 0.0
    %243 = vmatprep.subr.mxu0 0.0
    %244 = vmatpush1.msra.mxu0 0.0
    %245 = vmatprep.subr.mxu0 0.0
    %246 = vmatpush1.msra.mxu0 0.0
    %247 = vmatprep.subr.mxu0 0.0
    %248 = vmatpush1.msra.mxu0 0.0
    %249 = vmatprep.subr.mxu0 0.0
    %250 = vmatpush1.msra.mxu0 0.0
    %251 = vmatprep.subr.mxu0 0.0
    %252 = vmatpush1.msra.mxu0 0.0
    %253 = vmatprep.subr.mxu0 0.0
    %254 = vmatpush1.msra.mxu0 0.0
    %255 = vmatprep.subr.mxu0 0.0
    %256 = vmatpush1.msra.mxu0 0.0
    %257 = vmatprep.subr.mxu0 0.0
    %258 = vmatpush1.msra.mxu0 0.0
    %259 = vmatprep.subr.mxu0 %v218
    %260 = vmatpush1.msra.mxu0 %v215
    %261 = vmatprep.subr.mxu0 %v190
    %262 = vmatpush1.msra.mxu0 %v189
    %263 = vmatprep.subr.mxu0 %v183
    %264 = vmatpush1.msra.mxu0 %v182
    %265 = vmatprep.subr.mxu0 %v176
    %266 = vmatpush1.msra.mxu0 %v175
    %267 = vmatprep.subr.mxu0 0.0
    %268 = vmatpush2.msra.mxu0 0.0
    %269 = vmatprep.subr.mxu0 0.0
    %270 = vmatpush2.msra.mxu0 0.0
    %271 = vmatprep.subr.mxu0 0.0
    %272 = vmatpush2.msra.mxu0 0.0
    %273 = vmatprep.subr.mxu0 0.0
    %274 = vmatpush2.msra.mxu0 0.0
    %275 = vmatprep.subr.mxu0 0.0
    %276 = vmatpush2.msra.mxu0 0.0
    %277 = vmatprep.subr.mxu0 0.0
    %278 = vmatpush2.msra.mxu0 0.0
    %279 = vmatprep.subr.mxu0 0.0
    %280 = vmatpush2.msra.mxu0 0.0
    %281 = vmatprep.subr.mxu0 0.0
    %282 = vmatpush2.msra.mxu0 0.0
    %283 = vmatprep.subr.mxu0 0.0
    %284 = vmatpush2.msra.mxu0 0.0
    %285 = vmatprep.subr.mxu0 0.0
    %286 = vmatpush2.msra.mxu0 0.0
    %287 = vmatprep.subr.mxu0 0.0
    %288 = vmatpush2.msra.mxu0 0.0
    %289 = vmatprep.subr.mxu0 0.0
    %290 = vmatpush2.msra.mxu0 0.0
    %291 = vmatprep.subr.mxu0 0.0
    %292 = vmatpush2.msra.mxu0 0.0
    %293 = vmatprep.subr.mxu0 0.0
    %294 = vmatpush2.msra.mxu0 0.0
    %295 = vmatprep.subr.mxu0 0.0
    %296 = vmatpush2.msra.mxu0 0.0
    %297 = vmatprep.subr.mxu0 0.0
    %298 = vmatpush2.msra.mxu0 0.0
    %299 = vmatprep.mubr.f32.mxu0 0.0
    %300 = vmatmul.mubr.f32.gmra.mxu0 %v210
    %v301 = vpop.f32.mrf.mxu0
    %v302 = vadd.f32 0.0, %v301
    %v303 = vpop.f32.mrf.mxu0
    %v304 = vadd.f32 0.0, %v303
    %305 = vmatprep.mubr.f32.mxu0 0.0
    %306 = vmatmul.mubr.f32.gmra.mxu0 %v212
    %v307 = vpop.f32.mrf.mxu0
    %v308 = vadd.f32 0.0, %v307
    %v309 = vpop.f32.mrf.mxu0
    %v310 = vadd.f32 0.0, %v309
    %311 = vdwg.mxu0
    %312 = vmatprep.subr.mxu0 0.0
    %313 = vmatpush1.msra.mxu0 0.0
    %314 = vmatprep.subr.mxu0 0.0
    %315 = vmatpush1.msra.mxu0 0.0
    %316 = vmatprep.subr.mxu0 0.0
    %317 = vmatpush1.msra.mxu0 0.0
    %318 = vmatprep.subr.mxu0 0.0
    %319 = vmatpush1.msra.mxu0 0.0
    %320 = vmatprep.subr.mxu0 0.0
    %321 = vmatpush1.msra.mxu0 0.0
    %322 = vmatprep.subr.mxu0 0.0
    %323 = vmatpush1.msra.mxu0 0.0
    %324 = vmatprep.subr.mxu0 0.0
    %325 = vmatpush1.msra.mxu0 0.0
    %326 = vmatprep.subr.mxu0 0.0
    %327 = vmatpush1.msra.mxu0 0.0
    %328 = vmatprep.subr.mxu0 0.0
    %329 = vmatpush1.msra.mxu0 0.0
    %330 = vmatprep.subr.mxu0 0.0
    %331 = vmatpush1.msra.mxu0 0.0
    %332 = vmatprep.subr.mxu0 0.0
    %333 = vmatpush1.msra.mxu0 0.0
    %334 = vmatprep.subr.mxu0 0.0
    %335 = vmatpush1.msra.mxu0 0.0
    %336 = vmatprep.subr.mxu0 %v224
    %337 = vmatpush1.msra.mxu0 %v221
    %338 = vmatprep.subr.mxu0 %v192
    %339 = vmatpush1.msra.mxu0 %v191
    %340 = vmatprep.subr.mxu0 %v185
    %341 = vmatpush1.msra.mxu0 %v184
    %342 = vmatprep.subr.mxu0 %v178
    %343 = vmatpush1.msra.mxu0 %v177
    %344 = vmatprep.subr.mxu0 0.0
    %345 = vmatpush2.msra.mxu0 0.0
    %346 = vmatprep.subr.mxu0 0.0
    %347 = vmatpush2.msra.mxu0 0.0
    %348 = vmatprep.subr.mxu0 0.0
    %349 = vmatpush2.msra.mxu0 0.0
    %350 = vmatprep.subr.mxu0 0.0
    %351 = vmatpush2.msra.mxu0 0.0
    %352 = vmatprep.subr.mxu0 0.0
    %353 = vmatpush2.msra.mxu0 0.0
    %354 = vmatprep.subr.mxu0 0.0
    %355 = vmatpush2.msra.mxu0 0.0
    %356 = vmatprep.subr.mxu0 0.0
    %357 = vmatpush2.msra.mxu0 0.0
    %358 = vmatprep.subr.mxu0 0.0
    %359 = vmatpush2.msra.mxu0 0.0
    %360 = vmatprep.subr.mxu0 0.0
    %361 = vmatpush2.msra.mxu0 0.0
    %362 = vmatprep.subr.mxu0 0.0
    %363 = vmatpush2.msra.mxu0 0.0
    %364 = vmatprep.subr.mxu0 0.0
    %365 = vmatpush2.msra.mxu0 0.0
    %366 = vmatprep.subr.mxu0 0.0
    %367 = vmatpush2.msra.mxu0 0.0
    %368 = vmatprep.subr.mxu0 0.0
    %369 = vmatpush2.msra.mxu0 0.0
    %370 = vmatprep.subr.mxu0 0.0
    %371 = vmatpush2.msra.mxu0 0.0
    %372 = vmatprep.subr.mxu0 0.0
    %373 = vmatpush2.msra.mxu0 0.0
    %374 = vmatprep.subr.mxu0 0.0
    %375 = vmatpush2.msra.mxu0 0.0
    %376 = vmatprep.mubr.f32.mxu0 0.0
    %377 = vmatmul.mubr.f32.gmra.mxu0 %v210
    %v378 = vpop.f32.mrf.mxu0
    %v379 = vadd.f32 0.0, %v378
    %v380 = vpop.f32.mrf.mxu0
    %v381 = vadd.f32 0.0, %v380
    %382 = vmatprep.mubr.f32.mxu0 0.0
    %383 = vmatmul.mubr.f32.gmra.mxu0 %v212
    %v384 = vpop.f32.mrf.mxu0
    %v385 = vadd.f32 0.0, %v384
    %v386 = vpop.f32.mrf.mxu0
    %v387 = vadd.f32 0.0, %v386
    %388 = vdwg.mxu0
    %389 = vmatprep.subr.mxu0 0.0
    %390 = vmatpush1.msra.mxu0 0.0
    %391 = vmatprep.subr.mxu0 0.0
    %392 = vmatpush1.msra.mxu0 0.0
    %393 = vmatprep.subr.mxu0 0.0
    %394 = vmatpush1.msra.mxu0 0.0
    %395 = vmatprep.subr.mxu0 0.0
    %396 = vmatpush1.msra.mxu0 0.0
    %397 = vmatprep.subr.mxu0 0.0
    %398 = vmatpush1.msra.mxu0 0.0
    %399 = vmatprep.subr.mxu0 0.0
    %400 = vmatpush1.msra.mxu0 0.0
    %401 = vmatprep.subr.mxu0 0.0
    %402 = vmatpush1.msra.mxu0 0.0
    %403 = vmatprep.subr.mxu0 0.0
    %404 = vmatpush1.msra.mxu0 0.0
    %405 = vmatprep.subr.mxu0 0.0
    %406 = vmatpush1.msra.mxu0 0.0
    %407 = vmatprep.subr.mxu0 0.0
    %408 = vmatpush1.msra.mxu0 0.0
    %409 = vmatprep.subr.mxu0 0.0
    %410 = vmatpush1.msra.mxu0 0.0
    %411 = vmatprep.subr.mxu0 0.0
    %412 = vmatpush1.msra.mxu0 0.0
    %413 = vmatprep.subr.mxu0 %v230
    %414 = vmatpush1.msra.mxu0 %v227
    %415 = vmatprep.subr.mxu0 %v194
    %416 = vmatpush1.msra.mxu0 %v193
    %417 = vmatprep.subr.mxu0 %v187
    %418 = vmatpush1.msra.mxu0 %v186
    %419 = vmatprep.subr.mxu0 %v180
    %420 = vmatpush1.msra.mxu0 %v179
    %421 = vmatprep.subr.mxu0 0.0
    %422 = vmatpush2.msra.mxu0 0.0
    %423 = vmatprep.subr.mxu0 0.0
    %424 = vmatpush2.msra.mxu0 0.0
    %425 = vmatprep.subr.mxu0 0.0
    %426 = vmatpush2.msra.mxu0 0.0
    %427 = vmatprep.subr.mxu0 0.0
    %428 = vmatpush2.msra.mxu0 0.0
    %429 = vmatprep.subr.mxu0 0.0
    %430 = vmatpush2.msra.mxu0 0.0
    %431 = vmatprep.subr.mxu0 0.0
    %432 = vmatpush2.msra.mxu0 0.0
    %433 = vmatprep.subr.mxu0 0.0
    %434 = vmatpush2.msra.mxu0 0.0
    %435 = vmatprep.subr.mxu0 0.0
    %436 = vmatpush2.msra.mxu0 0.0
    %437 = vmatprep.subr.mxu0 0.0
    %438 = vmatpush2.msra.mxu0 0.0
    %439 = vmatprep.subr.mxu0 0.0
    %440 = vmatpush2.msra.mxu0 0.0
    %441 = vmatprep.subr.mxu0 0.0
    %442 = vmatpush2.msra.mxu0 0.0
    %443 = vmatprep.subr.mxu0 0.0
    %444 = vmatpush2.msra.mxu0 0.0
    %445 = vmatprep.subr.mxu0 0.0
    %446 = vmatpush2.msra.mxu0 0.0
    %447 = vmatprep.subr.mxu0 0.0
    %448 = vmatpush2.msra.mxu0 0.0
    %449 = vmatprep.subr.mxu0 0.0
    %450 = vmatpush2.msra.mxu0 0.0
    %451 = vmatprep.subr.mxu0 0.0
    %452 = vmatpush2.msra.mxu0 0.0
    %453 = vmatprep.mubr.f32.mxu0 0.0
    %454 = vmatmul.mubr.f32.gmra.mxu0 %v210
    %v455 = vpop.f32.mrf.mxu0
    %v456 = vadd.f32 0.0, %v455
    %v457 = vpop.f32.mrf.mxu0
    %v458 = vadd.f32 0.0, %v457
    %459 = vmatprep.mubr.f32.mxu0 0.0
    %460 = vmatmul.mubr.f32.gmra.mxu0 %v212
    %v461 = vpop.f32.mrf.mxu0
    %v462 = vadd.f32 0.0, %v461
    %v463 = vpop.f32.mrf.mxu0
    %v464 = vadd.f32 0.0, %v463
    %465 = vdwg.mxu0
    %466 = vmatprep.subr.mxu0 0.0
    %467 = vmatpush1.msra.mxu0 0.0
    %468 = vmatprep.subr.mxu0 0.0
    %469 = vmatpush1.msra.mxu0 0.0
    %470 = vmatprep.subr.mxu0 0.0
    %471 = vmatpush1.msra.mxu0 0.0
    %472 = vmatprep.subr.mxu0 0.0
    %473 = vmatpush1.msra.mxu0 0.0
    %474 = vmatprep.subr.mxu0 0.0
    %475 = vmatpush1.msra.mxu0 0.0
    %476 = vmatprep.subr.mxu0 0.0
    %477 = vmatpush1.msra.mxu0 0.0
    %478 = vmatprep.subr.mxu0 0.0
    %479 = vmatpush1.msra.mxu0 0.0
    %480 = vmatprep.subr.mxu0 0.0
    %481 = vmatpush1.msra.mxu0 0.0
    %482 = vmatprep.subr.mxu0 0.0
    %483 = vmatpush1.msra.mxu0 0.0
    %484 = vmatprep.subr.mxu0 0.0
    %485 = vmatpush1.msra.mxu0 0.0
    %486 = vmatprep.subr.mxu0 0.0
    %487 = vmatpush1.msra.mxu0 0.0
    %488 = vmatprep.subr.mxu0 0.0
    %489 = vmatpush1.msra.mxu0 0.0
    %490 = vmatprep.subr.mxu0 0.0
    %491 = vmatpush1.msra.mxu0 %v233
    %492 = vmatprep.subr.mxu0 0.0
    %493 = vmatpush1.msra.mxu0 %v195
    %494 = vmatprep.subr.mxu0 0.0
    %495 = vmatpush1.msra.mxu0 %v188
    %496 = vmatprep.subr.mxu0 0.0
    %497 = vmatpush1.msra.mxu0 %v181
    %498 = vmatprep.subr.mxu0 0.0
    %499 = vmatpush2.msra.mxu0 0.0
    %500 = vmatprep.subr.mxu0 0.0
    %501 = vmatpush2.msra.mxu0 0.0
    %502 = vmatprep.subr.mxu0 0.0
    %503 = vmatpush2.msra.mxu0 0.0
    %504 = vmatprep.subr.mxu0 0.0
    %505 = vmatpush2.msra.mxu0 0.0
    %506 = vmatprep.subr.mxu0 0.0
    %507 = vmatpush2.msra.mxu0 0.0
    %508 = vmatprep.subr.mxu0 0.0
    %509 = vmatpush2.msra.mxu0 0.0
    %510 = vmatprep.subr.mxu0 0.0
    %511 = vmatpush2.msra.mxu0 0.0
    %512 = vmatprep.subr.mxu0 0.0
    %513 = vmatpush2.msra.mxu0 0.0
    %514 = vmatprep.subr.mxu0 0.0
    %515 = vmatpush2.msra.mxu0 0.0
    %516 = vmatprep.subr.mxu0 0.0
    %517 = vmatpush2.msra.mxu0 0.0
    %518 = vmatprep.subr.mxu0 0.0
    %519 = vmatpush2.msra.mxu0 0.0
    %520 = vmatprep.subr.mxu0 0.0
    %521 = vmatpush2.msra.mxu0 0.0
    %522 = vmatprep.subr.mxu0 0.0
    %523 = vmatpush2.msra.mxu0 0.0
    %524 = vmatprep.subr.mxu0 0.0
    %525 = vmatpush2.msra.mxu0 0.0
    %526 = vmatprep.subr.mxu0 0.0
    %527 = vmatpush2.msra.mxu0 0.0
    %528 = vmatprep.subr.mxu0 0.0
    %529 = vmatpush2.msra.mxu0 0.0
    %530 = vmatprep.mubr.f32.mxu0 0.0
    %531 = vmatmul.mubr.f32.gmra.mxu0 %v210
    %v532 = vpop.f32.mrf.mxu0
    %v533 = vadd.f32 0.0, %v532
    %v534 = vpop.f32.mrf.mxu0
    %535 = vmatprep.mubr.f32.mxu0 0.0
    %536 = vmatmul.mubr.f32.gmra.mxu0 %v212
    %v537 = vpop.f32.mrf.mxu0
    %v538 = vadd.f32 0.0, %v537
    %v539 = vpop.f32.mrf.mxu0
    %540 = vdwg.mxu0
    %v542 = vlaneseq
    %v543 = vshrl.u32 %v542, 7
    %v544 = vsub.s32 0, %v543
    %v545 = vrot.slane %v67, %v544
    %vm547 = vcmask 261120
    %v549 = vsel %vm547, %v159, 0
    %v552 = vsel %vm547, %v164, 0
    %554 = vmatprep.subr.mxu0 0.0
    %555 = vmatpush1.msra.mxu0 0.0
    %556 = vmatprep.subr.mxu0 0.0
    %557 = vmatpush1.msra.mxu0 0.0
    %558 = vmatprep.subr.mxu0 0.0
    %559 = vmatpush1.msra.mxu0 0.0
    %560 = vmatprep.subr.mxu0 0.0
    %561 = vmatpush1.msra.mxu0 0.0
    %562 = vmatprep.subr.mxu0 0.0
    %563 = vmatpush1.msra.mxu0 0.0
    %564 = vmatprep.subr.mxu0 0.0
    %565 = vmatpush1.msra.mxu0 0.0
    %566 = vmatprep.subr.mxu0 0.0
    %567 = vmatpush1.msra.mxu0 0.0
    %568 = vmatprep.subr.mxu0 0.0
    %569 = vmatpush1.msra.mxu0 0.0
    %570 = vmatprep.subr.mxu0 0.0
    %571 = vmatpush1.msra.mxu0 0.0
    %572 = vmatprep.subr.mxu0 0.0
    %573 = vmatpush1.msra.mxu0 0.0
    %574 = vmatprep.subr.mxu0 0.0
    %575 = vmatpush1.msra.mxu0 0.0
    %576 = vmatprep.subr.mxu0 0.0
    %577 = vmatpush1.msra.mxu0 0.0
    %578 = vmatprep.subr.mxu0 0.0
    %579 = vmatpush1.msra.mxu0 %v66
    %580 = vmatprep.subr.mxu0 0.0
    %581 = vmatpush1.msra.mxu0 %v65
    %582 = vmatprep.subr.mxu0 0.0
    %583 = vmatpush1.msra.mxu0 %v64
    %584 = vmatprep.subr.mxu0 0.0
    %585 = vmatpush1.msra.mxu0 %v63
    %586 = vmatprep.subr.mxu0 0.0
    %587 = vmatpush2.msra.mxu0 0.0
    %588 = vmatprep.subr.mxu0 0.0
    %589 = vmatpush2.msra.mxu0 0.0
    %590 = vmatprep.subr.mxu0 0.0
    %591 = vmatpush2.msra.mxu0 0.0
    %592 = vmatprep.subr.mxu0 0.0
    %593 = vmatpush2.msra.mxu0 0.0
    %594 = vmatprep.subr.mxu0 0.0
    %595 = vmatpush2.msra.mxu0 0.0
    %596 = vmatprep.subr.mxu0 0.0
    %597 = vmatpush2.msra.mxu0 0.0
    %598 = vmatprep.subr.mxu0 0.0
    %599 = vmatpush2.msra.mxu0 0.0
    %600 = vmatprep.subr.mxu0 0.0
    %601 = vmatpush2.msra.mxu0 0.0
    %602 = vmatprep.subr.mxu0 0.0
    %603 = vmatpush2.msra.mxu0 0.0
    %604 = vmatprep.subr.mxu0 0.0
    %605 = vmatpush2.msra.mxu0 0.0
    %606 = vmatprep.subr.mxu0 0.0
    %607 = vmatpush2.msra.mxu0 0.0
    %608 = vmatprep.subr.mxu0 0.0
    %609 = vmatpush2.msra.mxu0 0.0
    %610 = vmatprep.subr.mxu0 0.0
    %611 = vmatpush2.msra.mxu0 0.0
    %612 = vmatprep.subr.mxu0 0.0
    %613 = vmatpush2.msra.mxu0 0.0
    %614 = vmatprep.subr.mxu0 0.0
    %615 = vmatpush2.msra.mxu0 0.0
    %616 = vmatprep.subr.mxu0 0.0
    %617 = vmatpush2.msra.mxu0 0.0
    %618 = vmatprep.mubr.f32.mxu0 0.0
    %619 = vmatmul.mubr.f32.gmra.mxu0 %v549
    %v620 = vpop.f32.mrf.mxu0
    %v621 = vadd.f32 %v545, %v620
    %v622 = vpop.f32.mrf.mxu0
    %623 = vmatprep.mubr.f32.mxu0 0.0
    %624 = vmatmul.mubr.f32.gmra.mxu0 %v552
    %v625 = vpop.f32.mrf.mxu0
    %v626 = vadd.f32 %v545, %v625
    %v627 = vpop.f32.mrf.mxu0
    %628 = vdwg.mxu0
    %v629 = vmax.f32 %v621, 0.0
    %v630 = vmax.f32 %v626, 0.0
    %v632 = vlaneseq
    %v633 = vshrl.u32 %v632, 7
    %v634 = vsub.s32 0, %v633
    %v635 = vrot.slane %v72, %v634
    %v638 = vsel %vm547, %v629, 0
    %v641 = vsel %vm547, %v630, 0
    %643 = vmatprep.subr.mxu0 0.0
    %644 = vmatpush1.msra.mxu0 0.0
    %645 = vmatprep.subr.mxu0 0.0
    %646 = vmatpush1.msra.mxu0 0.0
    %647 = vmatprep.subr.mxu0 0.0
    %648 = vmatpush1.msra.mxu0 0.0
    %649 = vmatprep.subr.mxu0 0.0
    %650 = vmatpush1.msra.mxu0 0.0
    %651 = vmatprep.subr.mxu0 0.0
    %652 = vmatpush1.msra.mxu0 0.0
    %653 = vmatprep.subr.mxu0 0.0
    %654 = vmatpush1.msra.mxu0 0.0
    %655 = vmatprep.subr.mxu0 0.0
    %656 = vmatpush1.msra.mxu0 0.0
    %657 = vmatprep.subr.mxu0 0.0
    %658 = vmatpush1.msra.mxu0 0.0
    %659 = vmatprep.subr.mxu0 0.0
    %660 = vmatpush1.msra.mxu0 0.0
    %661 = vmatprep.subr.mxu0 0.0
    %662 = vmatpush1.msra.mxu0 0.0
    %663 = vmatprep.subr.mxu0 0.0
    %664 = vmatpush1.msra.mxu0 0.0
    %665 = vmatprep.subr.mxu0 0.0
    %666 = vmatpush1.msra.mxu0 0.0
    %667 = vmatprep.subr.mxu0 0.0
    %668 = vmatpush1.msra.mxu0 %v71
    %669 = vmatprep.subr.mxu0 0.0
    %670 = vmatpush1.msra.mxu0 %v70
    %671 = vmatprep.subr.mxu0 0.0
    %672 = vmatpush1.msra.mxu0 %v69
    %673 = vmatprep.subr.mxu0 0.0
    %674 = vmatpush1.msra.mxu0 %v68
    %675 = vmatprep.subr.mxu0 0.0
    %676 = vmatpush2.msra.mxu0 0.0
    %677 = vmatprep.subr.mxu0 0.0
    %678 = vmatpush2.msra.mxu0 0.0
    %679 = vmatprep.subr.mxu0 0.0
    %680 = vmatpush2.msra.mxu0 0.0
    %681 = vmatprep.subr.mxu0 0.0
    %682 = vmatpush2.msra.mxu0 0.0
    %683 = vmatprep.subr.mxu0 0.0
    %684 = vmatpush2.msra.mxu0 0.0
    %685 = vmatprep.subr.mxu0 0.0
    %686 = vmatpush2.msra.mxu0 0.0
    %687 = vmatprep.subr.mxu0 0.0
    %688 = vmatpush2.msra.mxu0 0.0
    %689 = vmatprep.subr.mxu0 0.0
    %690 = vmatpush2.msra.mxu0 0.0
    %691 = vmatprep.subr.mxu0 0.0
    %692 = vmatpush2.msra.mxu0 0.0
    %693 = vmatprep.subr.mxu0 0.0
    %694 = vmatpush2.msra.mxu0 0.0
    %695 = vmatprep.subr.mxu0 0.0
    %696 = vmatpush2.msra.mxu0 0.0
    %697 = vmatprep.subr.mxu0 0.0
    %698 = vmatpush2.msra.mxu0 0.0
    %699 = vmatprep.subr.mxu0 0.0
    %700 = vmatpush2.msra.mxu0 0.0
    %701 = vmatprep.subr.mxu0 0.0
    %702 = vmatpush2.msra.mxu0 0.0
    %703 = vmatprep.subr.mxu0 0.0
    %704 = vmatpush2.msra.mxu0 0.0
    %705 = vmatprep.subr.mxu0 0.0
    %706 = vmatpush2.msra.mxu0 0.0
    %707 = vmatprep.mubr.f32.mxu0 0.0
    %708 = vmatmul.mubr.f32.gmra.mxu0 %v638
    %v709 = vpop.f32.mrf.mxu0
    %v710 = vadd.f32 %v635, %v709
    %v711 = vpop.f32.mrf.mxu0
    %712 = vmatprep.mubr.f32.mxu0 0.0
    %713 = vmatmul.mubr.f32.gmra.mxu0 %v641
    %v714 = vpop.f32.mrf.mxu0
    %v715 = vadd.f32 %v635, %v714
    %v716 = vpop.f32.mrf.mxu0
    %717 = vdwg.mxu0
    %v718 = vtanh.pop %v710
    %v719 = vtanh.pop %v715
    %v720 = vmul.f32 %v718, %v302
    %v721 = vmul.f32 %v719, %v308
    %724 = vrot.lane.b32.xlu0 %v720, 96
    %v725 = vpop.permute.xlu0 %724
    %726 = vrot.lane.b32.xlu0 %v721, 96
    %v727 = vpop.permute.xlu0 %726
    %v730 = vadd.f32 %v720, %v725
    %v731 = vadd.f32 %v721, %v727
    %732 = vrot.lane.b32.xlu0 %v720, 64
    %v733 = vpop.permute.xlu0 %732
    %734 = vrot.lane.b32.xlu0 %v721, 64
    %v735 = vpop.permute.xlu0 %734
    %v738 = vadd.f32 %v730, %v733
    %v739 = vadd.f32 %v731, %v735
    %740 = vrot.lane.b32.xlu0 %v720, 32
    %v741 = vpop.permute.xlu0 %740
    %742 = vrot.lane.b32.xlu0 %v721, 32
    %v743 = vpop.permute.xlu0 %742
    %v746 = vadd.f32 %v738, %v741
    %v747 = vadd.f32 %v739, %v743
    %v748 = vmul.f32 %v746, 0.5
    %v749 = vmul.f32 %v747, 0.5
    %v750 = vadd.f32 %v159, %v748
    %v751 = vadd.f32 %v164, %v749
    %v753 = vsel %vm547, %v750, 0
    %v756 = vsel %vm547, %v751, 0
    %758 = vmatprep.subr.mxu0 0.0
    %759 = vmatpush1.msra.mxu0 0.0
    %760 = vmatprep.subr.mxu0 0.0
    %761 = vmatpush1.msra.mxu0 0.0
    %762 = vmatprep.subr.mxu0 0.0
    %763 = vmatpush1.msra.mxu0 0.0
    %764 = vmatprep.subr.mxu0 0.0
    %765 = vmatpush1.msra.mxu0 0.0
    %766 = vmatprep.subr.mxu0 0.0
    %767 = vmatpush1.msra.mxu0 0.0
    %768 = vmatprep.subr.mxu0 0.0
    %769 = vmatpush1.msra.mxu0 0.0
    %770 = vmatprep.subr.mxu0 0.0
    %771 = vmatpush1.msra.mxu0 0.0
    %772 = vmatprep.subr.mxu0 0.0
    %773 = vmatpush1.msra.mxu0 0.0
    %774 = vmatprep.subr.mxu0 0.0
    %775 = vmatpush1.msra.mxu0 0.0
    %776 = vmatprep.subr.mxu0 0.0
    %777 = vmatpush1.msra.mxu0 0.0
    %778 = vmatprep.subr.mxu0 0.0
    %779 = vmatpush1.msra.mxu0 0.0
    %780 = vmatprep.subr.mxu0 0.0
    %781 = vmatpush1.msra.mxu0 0.0
    %782 = vmatprep.subr.mxu0 0.0
    %783 = vmatpush1.msra.mxu0 %v66
    %784 = vmatprep.subr.mxu0 0.0
    %785 = vmatpush1.msra.mxu0 %v65
    %786 = vmatprep.subr.mxu0 0.0
    %787 = vmatpush1.msra.mxu0 %v64
    %788 = vmatprep.subr.mxu0 0.0
    %789 = vmatpush1.msra.mxu0 %v63
    %790 = vmatprep.subr.mxu0 0.0
    %791 = vmatpush2.msra.mxu0 0.0
    %792 = vmatprep.subr.mxu0 0.0
    %793 = vmatpush2.msra.mxu0 0.0
    %794 = vmatprep.subr.mxu0 0.0
    %795 = vmatpush2.msra.mxu0 0.0
    %796 = vmatprep.subr.mxu0 0.0
    %797 = vmatpush2.msra.mxu0 0.0
    %798 = vmatprep.subr.mxu0 0.0
    %799 = vmatpush2.msra.mxu0 0.0
    %800 = vmatprep.subr.mxu0 0.0
    %801 = vmatpush2.msra.mxu0 0.0
    %802 = vmatprep.subr.mxu0 0.0
    %803 = vmatpush2.msra.mxu0 0.0
    %804 = vmatprep.subr.mxu0 0.0
    %805 = vmatpush2.msra.mxu0 0.0
    %806 = vmatprep.subr.mxu0 0.0
    %807 = vmatpush2.msra.mxu0 0.0
    %808 = vmatprep.subr.mxu0 0.0
    %809 = vmatpush2.msra.mxu0 0.0
    %810 = vmatprep.subr.mxu0 0.0
    %811 = vmatpush2.msra.mxu0 0.0
    %812 = vmatprep.subr.mxu0 0.0
    %813 = vmatpush2.msra.mxu0 0.0
    %814 = vmatprep.subr.mxu0 0.0
    %815 = vmatpush2.msra.mxu0 0.0
    %816 = vmatprep.subr.mxu0 0.0
    %817 = vmatpush2.msra.mxu0 0.0
    %818 = vmatprep.subr.mxu0 0.0
    %819 = vmatpush2.msra.mxu0 0.0
    %820 = vmatprep.subr.mxu0 0.0
    %821 = vmatpush2.msra.mxu0 0.0
    %822 = vmatprep.mubr.f32.mxu0 0.0
    %823 = vmatmul.mubr.f32.gmra.mxu0 %v753
    %v824 = vpop.f32.mrf.mxu0
    %v825 = vadd.f32 %v545, %v824
    %v826 = vpop.f32.mrf.mxu0
    %827 = vmatprep.mubr.f32.mxu0 0.0
    %828 = vmatmul.mubr.f32.gmra.mxu0 %v756
    %v829 = vpop.f32.mrf.mxu0
    %v830 = vadd.f32 %v545, %v829
    %v831 = vpop.f32.mrf.mxu0
    %832 = vdwg.mxu0
    %v833 = vmax.f32 %v825, 0.0
    %v834 = vmax.f32 %v830, 0.0
    %v836 = vsel %vm547, %v833, 0
    %v839 = vsel %vm547, %v834, 0
    %841 = vmatprep.subr.mxu0 0.0
    %842 = vmatpush1.msra.mxu0 0.0
    %843 = vmatprep.subr.mxu0 0.0
    %844 = vmatpush1.msra.mxu0 0.0
    %845 = vmatprep.subr.mxu0 0.0
    %846 = vmatpush1.msra.mxu0 0.0
    %847 = vmatprep.subr.mxu0 0.0
    %848 = vmatpush1.msra.mxu0 0.0
    %849 = vmatprep.subr.mxu0 0.0
    %850 = vmatpush1.msra.mxu0 0.0
    %851 = vmatprep.subr.mxu0 0.0
    %852 = vmatpush1.msra.mxu0 0.0
    %853 = vmatprep.subr.mxu0 0.0
    %854 = vmatpush1.msra.mxu0 0.0
    %855 = vmatprep.subr.mxu0 0.0
    %856 = vmatpush1.msra.mxu0 0.0
    %857 = vmatprep.subr.mxu0 0.0
    %858 = vmatpush1.msra.mxu0 0.0
    %859 = vmatprep.subr.mxu0 0.0
    %860 = vmatpush1.msra.mxu0 0.0
    %861 = vmatprep.subr.mxu0 0.0
    %862 = vmatpush1.msra.mxu0 0.0
    %863 = vmatprep.subr.mxu0 0.0
    %864 = vmatpush1.msra.mxu0 0.0
    %865 = vmatprep.subr.mxu0 0.0
    %866 = vmatpush1.msra.mxu0 %v71
    %867 = vmatprep.subr.mxu0 0.0
    %868 = vmatpush1.msra.mxu0 %v70
    %869 = vmatprep.subr.mxu0 0.0
    %870 = vmatpush1.msra.mxu0 %v69
    %871 = vmatprep.subr.mxu0 0.0
    %872 = vmatpush1.msra.mxu0 %v68
    %873 = vmatprep.subr.mxu0 0.0
    %874 = vmatpush2.msra.mxu0 0.0
    %875 = vmatprep.subr.mxu0 0.0
    %876 = vmatpush2.msra.mxu0 0.0
    %877 = vmatprep.subr.mxu0 0.0
    %878 = vmatpush2.msra.mxu0 0.0
    %879 = vmatprep.subr.mxu0 0.0
    %880 = vmatpush2.msra.mxu0 0.0
    %881 = vmatprep.subr.mxu0 0.0
    %882 = vmatpush2.msra.mxu0 0.0
    %883 = vmatprep.subr.mxu0 0.0
    %884 = vmatpush2.msra.mxu0 0.0
    %885 = vmatprep.subr.mxu0 0.0
    %886 = vmatpush2.msra.mxu0 0.0
    %887 = vmatprep.subr.mxu0 0.0
    %888 = vmatpush2.msra.mxu0 0.0
    %889 = vmatprep.subr.mxu0 0.0
    %890 = vmatpush2.msra.mxu0 0.0
    %891 = vmatprep.subr.mxu0 0.0
    %892 = vmatpush2.msra.mxu0 0.0
    %893 = vmatprep.subr.mxu0 0.0
    %894 = vmatpush2.msra.mxu0 0.0
    %895 = vmatprep.subr.mxu0 0.0
    %896 = vmatpush2.msra.mxu0 0.0
    %897 = vmatprep.subr.mxu0 0.0
    %898 = vmatpush2.msra.mxu0 0.0
    %899 = vmatprep.subr.mxu0 0.0
    %900 = vmatpush2.msra.mxu0 0.0
    %901 = vmatprep.subr.mxu0 0.0
    %902 = vmatpush2.msra.mxu0 0.0
    %903 = vmatprep.subr.mxu0 0.0
    %904 = vmatpush2.msra.mxu0 0.0
    %905 = vmatprep.mubr.f32.mxu0 0.0
    %906 = vmatmul.mubr.f32.gmra.mxu0 %v836
    %v907 = vpop.f32.mrf.mxu0
    %v908 = vadd.f32 %v635, %v907
    %v909 = vpop.f32.mrf.mxu0
    %910 = vmatprep.mubr.f32.mxu0 0.0
    %911 = vmatmul.mubr.f32.gmra.mxu0 %v839
    %v912 = vpop.f32.mrf.mxu0
    %v913 = vadd.f32 %v635, %v912
    %v914 = vpop.f32.mrf.mxu0
    %915 = vdwg.mxu0
    %v916 = vtanh.pop %v908
    %v917 = vtanh.pop %v913
    %v918 = vmul.f32 %v916, %v302
    %v919 = vmul.f32 %v917, %v308
    %922 = vrot.lane.b32.xlu0 %v918, 96
    %v923 = vpop.permute.xlu0 %922
    %924 = vrot.lane.b32.xlu0 %v919, 96
    %v925 = vpop.permute.xlu0 %924
    %v928 = vadd.f32 %v918, %v923
    %v929 = vadd.f32 %v919, %v925
    %930 = vrot.lane.b32.xlu0 %v918, 64
    %v931 = vpop.permute.xlu0 %930
    %932 = vrot.lane.b32.xlu0 %v919, 64
    %v933 = vpop.permute.xlu0 %932
    %v936 = vadd.f32 %v928, %v931
    %v937 = vadd.f32 %v929, %v933
    %938 = vrot.lane.b32.xlu0 %v918, 32
    %v939 = vpop.permute.xlu0 %938
    %940 = vrot.lane.b32.xlu0 %v919, 32
    %v941 = vpop.permute.xlu0 %940
    %v944 = vadd.f32 %v936, %v939
    %v945 = vadd.f32 %v937, %v941
    %v946 = vmul.f32 %v944, 0.5
    %v947 = vmul.f32 %v945, 0.5
    %v948 = vadd.f32 %v159, %v946
    %v949 = vadd.f32 %v164, %v947
    %v951 = vsel %vm547, %v948, 0
    %v954 = vsel %vm547, %v949, 0
    %956 = vmatprep.subr.mxu0 0.0
    %957 = vmatpush1.msra.mxu0 0.0
    %958 = vmatprep.subr.mxu0 0.0
    %959 = vmatpush1.msra.mxu0 0.0
    %960 = vmatprep.subr.mxu0 0.0
    %961 = vmatpush1.msra.mxu0 0.0
    %962 = vmatprep.subr.mxu0 0.0
    %963 = vmatpush1.msra.mxu0 0.0
    %964 = vmatprep.subr.mxu0 0.0
    %965 = vmatpush1.msra.mxu0 0.0
    %966 = vmatprep.subr.mxu0 0.0
    %967 = vmatpush1.msra.mxu0 0.0
    %968 = vmatprep.subr.mxu0 0.0
    %969 = vmatpush1.msra.mxu0 0.0
    %970 = vmatprep.subr.mxu0 0.0
    %971 = vmatpush1.msra.mxu0 0.0
    %972 = vmatprep.subr.mxu0 0.0
    %973 = vmatpush1.msra.mxu0 0.0
    %974 = vmatprep.subr.mxu0 0.0
    %975 = vmatpush1.msra.mxu0 0.0
    %976 = vmatprep.subr.mxu0 0.0
    %977 = vmatpush1.msra.mxu0 0.0
    %978 = vmatprep.subr.mxu0 0.0
    %979 = vmatpush1.msra.mxu0 0.0
    %980 = vmatprep.subr.mxu0 0.0
    %981 = vmatpush1.msra.mxu0 %v66
    %982 = vmatprep.subr.mxu0 0.0
    %983 = vmatpush1.msra.mxu0 %v65
    %984 = vmatprep.subr.mxu0 0.0
    %985 = vmatpush1.msra.mxu0 %v64
    %986 = vmatprep.subr.mxu0 0.0
    %987 = vmatpush1.msra.mxu0 %v63
    %988 = vmatprep.subr.mxu0 0.0
    %989 = vmatpush2.msra.mxu0 0.0
    %990 = vmatprep.subr.mxu0 0.0
    %991 = vmatpush2.msra.mxu0 0.0
    %992 = vmatprep.subr.mxu0 0.0
    %993 = vmatpush2.msra.mxu0 0.0
    %994 = vmatprep.subr.mxu0 0.0
    %995 = vmatpush2.msra.mxu0 0.0
    %996 = vmatprep.subr.mxu0 0.0
    %997 = vmatpush2.msra.mxu0 0.0
    %998 = vmatprep.subr.mxu0 0.0
    %999 = vmatpush2.msra.mxu0 0.0
    %1000 = vmatprep.subr.mxu0 0.0
    %1001 = vmatpush2.msra.mxu0 0.0
    %1002 = vmatprep.subr.mxu0 0.0
    %1003 = vmatpush2.msra.mxu0 0.0
    %1004 = vmatprep.subr.mxu0 0.0
    %1005 = vmatpush2.msra.mxu0 0.0
    %1006 = vmatprep.subr.mxu0 0.0
    %1007 = vmatpush2.msra.mxu0 0.0
    %1008 = vmatprep.subr.mxu0 0.0
    %1009 = vmatpush2.msra.mxu0 0.0
    %1010 = vmatprep.subr.mxu0 0.0
    %1011 = vmatpush2.msra.mxu0 0.0
    %1012 = vmatprep.subr.mxu0 0.0
    %1013 = vmatpush2.msra.mxu0 0.0
    %1014 = vmatprep.subr.mxu0 0.0
    %1015 = vmatpush2.msra.mxu0 0.0
    %1016 = vmatprep.subr.mxu0 0.0
    %1017 = vmatpush2.msra.mxu0 0.0
    %1018 = vmatprep.subr.mxu0 0.0
    %1019 = vmatpush2.msra.mxu0 0.0
    %1020 = vmatprep.mubr.f32.mxu0 0.0
    %1021 = vmatmul.mubr.f32.gmra.mxu0 %v951
    %v1022 = vpop.f32.mrf.mxu0
    %v1023 = vadd.f32 %v545, %v1022
    %v1024 = vpop.f32.mrf.mxu0
    %1025 = vmatprep.mubr.f32.mxu0 0.0
    %1026 = vmatmul.mubr.f32.gmra.mxu0 %v954
    %v1027 = vpop.f32.mrf.mxu0
    %v1028 = vadd.f32 %v545, %v1027
    %v1029 = vpop.f32.mrf.mxu0
    %1030 = vdwg.mxu0
    %v1031 = vmax.f32 %v1023, 0.0
    %v1032 = vmax.f32 %v1028, 0.0
    %v1034 = vsel %vm547, %v1031, 0
    %v1037 = vsel %vm547, %v1032, 0
    %1039 = vmatprep.subr.mxu0 0.0
    %1040 = vmatpush1.msra.mxu0 0.0
    %1041 = vmatprep.subr.mxu0 0.0
    %1042 = vmatpush1.msra.mxu0 0.0
    %1043 = vmatprep.subr.mxu0 0.0
    %1044 = vmatpush1.msra.mxu0 0.0
    %1045 = vmatprep.subr.mxu0 0.0
    %1046 = vmatpush1.msra.mxu0 0.0
    %1047 = vmatprep.subr.mxu0 0.0
    %1048 = vmatpush1.msra.mxu0 0.0
    %1049 = vmatprep.subr.mxu0 0.0
    %1050 = vmatpush1.msra.mxu0 0.0
    %1051 = vmatprep.subr.mxu0 0.0
    %1052 = vmatpush1.msra.mxu0 0.0
    %1053 = vmatprep.subr.mxu0 0.0
    %1054 = vmatpush1.msra.mxu0 0.0
    %1055 = vmatprep.subr.mxu0 0.0
    %1056 = vmatpush1.msra.mxu0 0.0
    %1057 = vmatprep.subr.mxu0 0.0
    %1058 = vmatpush1.msra.mxu0 0.0
    %1059 = vmatprep.subr.mxu0 0.0
    %1060 = vmatpush1.msra.mxu0 0.0
    %1061 = vmatprep.subr.mxu0 0.0
    %1062 = vmatpush1.msra.mxu0 0.0
    %1063 = vmatprep.subr.mxu0 0.0
    %1064 = vmatpush1.msra.mxu0 %v71
    %1065 = vmatprep.subr.mxu0 0.0
    %1066 = vmatpush1.msra.mxu0 %v70
    %1067 = vmatprep.subr.mxu0 0.0
    %1068 = vmatpush1.msra.mxu0 %v69
    %1069 = vmatprep.subr.mxu0 0.0
    %1070 = vmatpush1.msra.mxu0 %v68
    %1071 = vmatprep.subr.mxu0 0.0
    %1072 = vmatpush2.msra.mxu0 0.0
    %1073 = vmatprep.subr.mxu0 0.0
    %1074 = vmatpush2.msra.mxu0 0.0
    %1075 = vmatprep.subr.mxu0 0.0
    %1076 = vmatpush2.msra.mxu0 0.0
    %1077 = vmatprep.subr.mxu0 0.0
    %1078 = vmatpush2.msra.mxu0 0.0
    %1079 = vmatprep.subr.mxu0 0.0
    %1080 = vmatpush2.msra.mxu0 0.0
    %1081 = vmatprep.subr.mxu0 0.0
    %1082 = vmatpush2.msra.mxu0 0.0
    %1083 = vmatprep.subr.mxu0 0.0
    %1084 = vmatpush2.msra.mxu0 0.0
    %1085 = vmatprep.subr.mxu0 0.0
    %1086 = vmatpush2.msra.mxu0 0.0
    %1087 = vmatprep.subr.mxu0 0.0
    %1088 = vmatpush2.msra.mxu0 0.0
    %1089 = vmatprep.subr.mxu0 0.0
    %1090 = vmatpush2.msra.mxu0 0.0
    %1091 = vmatprep.subr.mxu0 0.0
    %1092 = vmatpush2.msra.mxu0 0.0
    %1093 = vmatprep.subr.mxu0 0.0
    %1094 = vmatpush2.msra.mxu0 0.0
    %1095 = vmatprep.subr.mxu0 0.0
    %1096 = vmatpush2.msra.mxu0 0.0
    %1097 = vmatprep.subr.mxu0 0.0
    %1098 = vmatpush2.msra.mxu0 0.0
    %1099 = vmatprep.subr.mxu0 0.0
    %1100 = vmatpush2.msra.mxu0 0.0
    %1101 = vmatprep.subr.mxu0 0.0
    %1102 = vmatpush2.msra.mxu0 0.0
    %1103 = vmatprep.mubr.f32.mxu0 0.0
    %1104 = vmatmul.mubr.f32.gmra.mxu0 %v1034
    %v1105 = vpop.f32.mrf.mxu0
    %v1106 = vadd.f32 %v635, %v1105
    %v1107 = vpop.f32.mrf.mxu0
    %1108 = vmatprep.mubr.f32.mxu0 0.0
    %1109 = vmatmul.mubr.f32.gmra.mxu0 %v1037
    %v1110 = vpop.f32.mrf.mxu0
    %v1111 = vadd.f32 %v635, %v1110
    %v1112 = vpop.f32.mrf.mxu0
    %1113 = vdwg.mxu0
    %v1114 = vtanh.pop %v1106
    %v1115 = vtanh.pop %v1111
    %v1116 = vmul.f32 %v1114, %v302
    %v1117 = vmul.f32 %v1115, %v308
    %1120 = vrot.lane.b32.xlu0 %v1116, 96
    %v1121 = vpop.permute.xlu0 %1120
    %1122 = vrot.lane.b32.xlu0 %v1117, 96
    %v1123 = vpop.permute.xlu0 %1122
    %v1126 = vadd.f32 %v1116, %v1121
    %v1127 = vadd.f32 %v1117, %v1123
    %1128 = vrot.lane.b32.xlu0 %v1116, 64
    %v1129 = vpop.permute.xlu0 %1128
    %1130 = vrot.lane.b32.xlu0 %v1117, 64
    %v1131 = vpop.permute.xlu0 %1130
    %v1134 = vadd.f32 %v1126, %v1129
    %v1135 = vadd.f32 %v1127, %v1131
    %1136 = vrot.lane.b32.xlu0 %v1116, 32
    %v1137 = vpop.permute.xlu0 %1136
    %1138 = vrot.lane.b32.xlu0 %v1117, 32
    %v1139 = vpop.permute.xlu0 %1138
    %v1142 = vadd.f32 %v1134, %v1137
    %v1143 = vadd.f32 %v1135, %v1139
    %v1144 = vadd.f32 %v159, %v1142
    %v1145 = vadd.f32 %v164, %v1143
    %v1147 = vsel %vm547, %v1144, 0
    %v1150 = vsel %vm547, %v1145, 0
    %1152 = vmatprep.subr.mxu0 0.0
    %1153 = vmatpush1.msra.mxu0 0.0
    %1154 = vmatprep.subr.mxu0 0.0
    %1155 = vmatpush1.msra.mxu0 0.0
    %1156 = vmatprep.subr.mxu0 0.0
    %1157 = vmatpush1.msra.mxu0 0.0
    %1158 = vmatprep.subr.mxu0 0.0
    %1159 = vmatpush1.msra.mxu0 0.0
    %1160 = vmatprep.subr.mxu0 0.0
    %1161 = vmatpush1.msra.mxu0 0.0
    %1162 = vmatprep.subr.mxu0 0.0
    %1163 = vmatpush1.msra.mxu0 0.0
    %1164 = vmatprep.subr.mxu0 0.0
    %1165 = vmatpush1.msra.mxu0 0.0
    %1166 = vmatprep.subr.mxu0 0.0
    %1167 = vmatpush1.msra.mxu0 0.0
    %1168 = vmatprep.subr.mxu0 0.0
    %1169 = vmatpush1.msra.mxu0 0.0
    %1170 = vmatprep.subr.mxu0 0.0
    %1171 = vmatpush1.msra.mxu0 0.0
    %1172 = vmatprep.subr.mxu0 0.0
    %1173 = vmatpush1.msra.mxu0 0.0
    %1174 = vmatprep.subr.mxu0 0.0
    %1175 = vmatpush1.msra.mxu0 0.0
    %1176 = vmatprep.subr.mxu0 0.0
    %1177 = vmatpush1.msra.mxu0 %v66
    %1178 = vmatprep.subr.mxu0 0.0
    %1179 = vmatpush1.msra.mxu0 %v65
    %1180 = vmatprep.subr.mxu0 0.0
    %1181 = vmatpush1.msra.mxu0 %v64
    %1182 = vmatprep.subr.mxu0 0.0
    %1183 = vmatpush1.msra.mxu0 %v63
    %1184 = vmatprep.subr.mxu0 0.0
    %1185 = vmatpush2.msra.mxu0 0.0
    %1186 = vmatprep.subr.mxu0 0.0
    %1187 = vmatpush2.msra.mxu0 0.0
    %1188 = vmatprep.subr.mxu0 0.0
    %1189 = vmatpush2.msra.mxu0 0.0
    %1190 = vmatprep.subr.mxu0 0.0
    %1191 = vmatpush2.msra.mxu0 0.0
    %1192 = vmatprep.subr.mxu0 0.0
    %1193 = vmatpush2.msra.mxu0 0.0
    %1194 = vmatprep.subr.mxu0 0.0
    %1195 = vmatpush2.msra.mxu0 0.0
    %1196 = vmatprep.subr.mxu0 0.0
    %1197 = vmatpush2.msra.mxu0 0.0
    %1198 = vmatprep.subr.mxu0 0.0
    %1199 = vmatpush2.msra.mxu0 0.0
    %1200 = vmatprep.subr.mxu0 0.0
    %1201 = vmatpush2.msra.mxu0 0.0
    %1202 = vmatprep.subr.mxu0 0.0
    %1203 = vmatpush2.msra.mxu0 0.0
    %1204 = vmatprep.subr.mxu0 0.0
    %1205 = vmatpush2.msra.mxu0 0.0
    %1206 = vmatprep.subr.mxu0 0.0
    %1207 = vmatpush2.msra.mxu0 0.0
    %1208 = vmatprep.subr.mxu0 0.0
    %1209 = vmatpush2.msra.mxu0 0.0
    %1210 = vmatprep.subr.mxu0 0.0
    %1211 = vmatpush2.msra.mxu0 0.0
    %1212 = vmatprep.subr.mxu0 0.0
    %1213 = vmatpush2.msra.mxu0 0.0
    %1214 = vmatprep.subr.mxu0 0.0
    %1215 = vmatpush2.msra.mxu0 0.0
    %1216 = vmatprep.mubr.f32.mxu0 0.0
    %1217 = vmatmul.mubr.f32.gmra.mxu0 %v1147
    %v1218 = vpop.f32.mrf.mxu0
    %v1219 = vadd.f32 %v545, %v1218
    %v1220 = vpop.f32.mrf.mxu0
    %1221 = vmatprep.mubr.f32.mxu0 0.0
    %1222 = vmatmul.mubr.f32.gmra.mxu0 %v1150
    %v1223 = vpop.f32.mrf.mxu0
    %v1224 = vadd.f32 %v545, %v1223
    %v1225 = vpop.f32.mrf.mxu0
    %1226 = vdwg.mxu0
    %v1227 = vmax.f32 %v1219, 0.0
    %v1228 = vmax.f32 %v1224, 0.0
    %v1230 = vsel %vm547, %v1227, 0
    %v1233 = vsel %vm547, %v1228, 0
    %1235 = vmatprep.subr.mxu0 0.0
    %1236 = vmatpush1.msra.mxu0 0.0
    %1237 = vmatprep.subr.mxu0 0.0
    %1238 = vmatpush1.msra.mxu0 0.0
    %1239 = vmatprep.subr.mxu0 0.0
    %1240 = vmatpush1.msra.mxu0 0.0
    %1241 = vmatprep.subr.mxu0 0.0
    %1242 = vmatpush1.msra.mxu0 0.0
    %1243 = vmatprep.subr.mxu0 0.0
    %1244 = vmatpush1.msra.mxu0 0.0
    %1245 = vmatprep.subr.mxu0 0.0
    %1246 = vmatpush1.msra.mxu0 0.0
    %1247 = vmatprep.subr.mxu0 0.0
    %1248 = vmatpush1.msra.mxu0 0.0
    %1249 = vmatprep.subr.mxu0 0.0
    %1250 = vmatpush1.msra.mxu0 0.0
    %1251 = vmatprep.subr.mxu0 0.0
    %1252 = vmatpush1.msra.mxu0 0.0
    %1253 = vmatprep.subr.mxu0 0.0
    %1254 = vmatpush1.msra.mxu0 0.0
    %1255 = vmatprep.subr.mxu0 0.0
    %1256 = vmatpush1.msra.mxu0 0.0
    %1257 = vmatprep.subr.mxu0 0.0
    %1258 = vmatpush1.msra.mxu0 0.0
    %1259 = vmatprep.subr.mxu0 0.0
    %1260 = vmatpush1.msra.mxu0 %v71
    %1261 = vmatprep.subr.mxu0 0.0
    %1262 = vmatpush1.msra.mxu0 %v70
    %1263 = vmatprep.subr.mxu0 0.0
    %1264 = vmatpush1.msra.mxu0 %v69
    %1265 = vmatprep.subr.mxu0 0.0
    %1266 = vmatpush1.msra.mxu0 %v68
    %1267 = vmatprep.subr.mxu0 0.0
    %1268 = vmatpush2.msra.mxu0 0.0
    %1269 = vmatprep.subr.mxu0 0.0
    %1270 = vmatpush2.msra.mxu0 0.0
    %1271 = vmatprep.subr.mxu0 0.0
    %1272 = vmatpush2.msra.mxu0 0.0
    %1273 = vmatprep.subr.mxu0 0.0
    %1274 = vmatpush2.msra.mxu0 0.0
    %1275 = vmatprep.subr.mxu0 0.0
    %1276 = vmatpush2.msra.mxu0 0.0
    %1277 = vmatprep.subr.mxu0 0.0
    %1278 = vmatpush2.msra.mxu0 0.0
    %1279 = vmatprep.subr.mxu0 0.0
    %1280 = vmatpush2.msra.mxu0 0.0
    %1281 = vmatprep.subr.mxu0 0.0
    %1282 = vmatpush2.msra.mxu0 0.0
    %1283 = vmatprep.subr.mxu0 0.0
    %1284 = vmatpush2.msra.mxu0 0.0
    %1285 = vmatprep.subr.mxu0 0.0
    %1286 = vmatpush2.msra.mxu0 0.0
    %1287 = vmatprep.subr.mxu0 0.0
    %1288 = vmatpush2.msra.mxu0 0.0
    %1289 = vmatprep.subr.mxu0 0.0
    %1290 = vmatpush2.msra.mxu0 0.0
    %1291 = vmatprep.subr.mxu0 0.0
    %1292 = vmatpush2.msra.mxu0 0.0
    %1293 = vmatprep.subr.mxu0 0.0
    %1294 = vmatpush2.msra.mxu0 0.0
    %1295 = vmatprep.subr.mxu0 0.0
    %1296 = vmatpush2.msra.mxu0 0.0
    %1297 = vmatprep.subr.mxu0 0.0
    %1298 = vmatpush2.msra.mxu0 0.0
    %1299 = vmatprep.mubr.f32.mxu0 0.0
    %1300 = vmatmul.mubr.f32.gmra.mxu0 %v1230
    %v1301 = vpop.f32.mrf.mxu0
    %v1302 = vadd.f32 %v635, %v1301
    %v1303 = vpop.f32.mrf.mxu0
    %1304 = vmatprep.mubr.f32.mxu0 0.0
    %1305 = vmatmul.mubr.f32.gmra.mxu0 %v1233
    %v1306 = vpop.f32.mrf.mxu0
    %v1307 = vadd.f32 %v635, %v1306
    %v1308 = vpop.f32.mrf.mxu0
    %1309 = vdwg.mxu0
    %v1310 = vtanh.pop %v1302
    %v1311 = vtanh.pop %v1307
    %v1312 = vmul.f32 %v1310, %v302
    %v1313 = vmul.f32 %v1311, %v308
    %1316 = vrot.lane.b32.xlu0 %v1312, 96
    %v1317 = vpop.permute.xlu0 %1316
    %1318 = vrot.lane.b32.xlu0 %v1313, 96
    %v1319 = vpop.permute.xlu0 %1318
    %v1322 = vadd.f32 %v1312, %v1317
    %v1323 = vadd.f32 %v1313, %v1319
    %1324 = vrot.lane.b32.xlu0 %v1312, 64
    %v1325 = vpop.permute.xlu0 %1324
    %1326 = vrot.lane.b32.xlu0 %v1313, 64
    %v1327 = vpop.permute.xlu0 %1326
    %v1330 = vadd.f32 %v1322, %v1325
    %v1331 = vadd.f32 %v1323, %v1327
    %1332 = vrot.lane.b32.xlu0 %v1312, 32
    %v1333 = vpop.permute.xlu0 %1332
    %1334 = vrot.lane.b32.xlu0 %v1313, 32
    %v1335 = vpop.permute.xlu0 %1334
    %v1338 = vadd.f32 %v1330, %v1333
    %v1339 = vadd.f32 %v1331, %v1335
    %v1340 = vmul.f32 %v944, 2.0
    %v1341 = vmul.f32 %v945, 2.0
    %v1342 = vadd.f32 %v746, %v1340
    %v1343 = vadd.f32 %v747, %v1341
    %v1344 = vmul.f32 %v1142, 2.0
    %v1345 = vmul.f32 %v1143, 2.0
    %v1346 = vadd.f32 %v1342, %v1344
    %v1347 = vadd.f32 %v1343, %v1345
    %v1348 = vadd.f32 %v1346, %v1338
    %v1349 = vadd.f32 %v1347, %v1339
    %v1350 = vmul.f32 %v1348, 0.16666667
    %v1351 = vmul.f32 %v1349, 0.16666667
    %v1352 = vadd.f32 %v159, %v1350
    %v1353 = vadd.f32 %v164, %v1351
    %v1355 = vsel %vm547, %v1352, 0
    %v1358 = vsel %vm547, %v1353, 0
    %1360 = vmatprep.subr.mxu0 0.0
    %1361 = vmatpush1.msra.mxu0 0.0
    %1362 = vmatprep.subr.mxu0 0.0
    %1363 = vmatpush1.msra.mxu0 0.0
    %1364 = vmatprep.subr.mxu0 0.0
    %1365 = vmatpush1.msra.mxu0 0.0
    %1366 = vmatprep.subr.mxu0 0.0
    %1367 = vmatpush1.msra.mxu0 0.0
    %1368 = vmatprep.subr.mxu0 0.0
    %1369 = vmatpush1.msra.mxu0 0.0
    %1370 = vmatprep.subr.mxu0 0.0
    %1371 = vmatpush1.msra.mxu0 0.0
    %1372 = vmatprep.subr.mxu0 0.0
    %1373 = vmatpush1.msra.mxu0 0.0
    %1374 = vmatprep.subr.mxu0 0.0
    %1375 = vmatpush1.msra.mxu0 0.0
    %1376 = vmatprep.subr.mxu0 0.0
    %1377 = vmatpush1.msra.mxu0 0.0
    %1378 = vmatprep.subr.mxu0 0.0
    %1379 = vmatpush1.msra.mxu0 0.0
    %1380 = vmatprep.subr.mxu0 0.0
    %1381 = vmatpush1.msra.mxu0 0.0
    %1382 = vmatprep.subr.mxu0 0.0
    %1383 = vmatpush1.msra.mxu0 0.0
    %1384 = vmatprep.subr.mxu0 0.0
    %1385 = vmatpush1.msra.mxu0 %v66
    %1386 = vmatprep.subr.mxu0 0.0
    %1387 = vmatpush1.msra.mxu0 %v65
    %1388 = vmatprep.subr.mxu0 0.0
    %1389 = vmatpush1.msra.mxu0 %v64
    %1390 = vmatprep.subr.mxu0 0.0
    %1391 = vmatpush1.msra.mxu0 %v63
    %1392 = vmatprep.subr.mxu0 0.0
    %1393 = vmatpush2.msra.mxu0 0.0
    %1394 = vmatprep.subr.mxu0 0.0
    %1395 = vmatpush2.msra.mxu0 0.0
    %1396 = vmatprep.subr.mxu0 0.0
    %1397 = vmatpush2.msra.mxu0 0.0
    %1398 = vmatprep.subr.mxu0 0.0
    %1399 = vmatpush2.msra.mxu0 0.0
    %1400 = vmatprep.subr.mxu0 0.0
    %1401 = vmatpush2.msra.mxu0 0.0
    %1402 = vmatprep.subr.mxu0 0.0
    %1403 = vmatpush2.msra.mxu0 0.0
    %1404 = vmatprep.subr.mxu0 0.0
    %1405 = vmatpush2.msra.mxu0 0.0
    %1406 = vmatprep.subr.mxu0 0.0
    %1407 = vmatpush2.msra.mxu0 0.0
    %1408 = vmatprep.subr.mxu0 0.0
    %1409 = vmatpush2.msra.mxu0 0.0
    %1410 = vmatprep.subr.mxu0 0.0
    %1411 = vmatpush2.msra.mxu0 0.0
    %1412 = vmatprep.subr.mxu0 0.0
    %1413 = vmatpush2.msra.mxu0 0.0
    %1414 = vmatprep.subr.mxu0 0.0
    %1415 = vmatpush2.msra.mxu0 0.0
    %1416 = vmatprep.subr.mxu0 0.0
    %1417 = vmatpush2.msra.mxu0 0.0
    %1418 = vmatprep.subr.mxu0 0.0
    %1419 = vmatpush2.msra.mxu0 0.0
    %1420 = vmatprep.subr.mxu0 0.0
    %1421 = vmatpush2.msra.mxu0 0.0
    %1422 = vmatprep.subr.mxu0 0.0
    %1423 = vmatpush2.msra.mxu0 0.0
    %1424 = vmatprep.mubr.f32.mxu0 0.0
    %1425 = vmatmul.mubr.f32.gmra.mxu0 %v1355
    %v1426 = vpop.f32.mrf.mxu0
    %v1427 = vadd.f32 %v545, %v1426
    %v1428 = vpop.f32.mrf.mxu0
    %1429 = vmatprep.mubr.f32.mxu0 0.0
    %1430 = vmatmul.mubr.f32.gmra.mxu0 %v1358
    %v1431 = vpop.f32.mrf.mxu0
    %v1432 = vadd.f32 %v545, %v1431
    %v1433 = vpop.f32.mrf.mxu0
    %1434 = vdwg.mxu0
    %v1435 = vmax.f32 %v1427, 0.0
    %v1436 = vmax.f32 %v1432, 0.0
    %v1438 = vsel %vm547, %v1435, 0
    %v1441 = vsel %vm547, %v1436, 0
    %1443 = vmatprep.subr.mxu0 0.0
    %1444 = vmatpush1.msra.mxu0 0.0
    %1445 = vmatprep.subr.mxu0 0.0
    %1446 = vmatpush1.msra.mxu0 0.0
    %1447 = vmatprep.subr.mxu0 0.0
    %1448 = vmatpush1.msra.mxu0 0.0
    %1449 = vmatprep.subr.mxu0 0.0
    %1450 = vmatpush1.msra.mxu0 0.0
    %1451 = vmatprep.subr.mxu0 0.0
    %1452 = vmatpush1.msra.mxu0 0.0
    %1453 = vmatprep.subr.mxu0 0.0
    %1454 = vmatpush1.msra.mxu0 0.0
    %1455 = vmatprep.subr.mxu0 0.0
    %1456 = vmatpush1.msra.mxu0 0.0
    %1457 = vmatprep.subr.mxu0 0.0
    %1458 = vmatpush1.msra.mxu0 0.0
    %1459 = vmatprep.subr.mxu0 0.0
    %1460 = vmatpush1.msra.mxu0 0.0
    %1461 = vmatprep.subr.mxu0 0.0
    %1462 = vmatpush1.msra.mxu0 0.0
    %1463 = vmatprep.subr.mxu0 0.0
    %1464 = vmatpush1.msra.mxu0 0.0
    %1465 = vmatprep.subr.mxu0 0.0
    %1466 = vmatpush1.msra.mxu0 0.0
    %1467 = vmatprep.subr.mxu0 0.0
    %1468 = vmatpush1.msra.mxu0 %v71
    %1469 = vmatprep.subr.mxu0 0.0
    %1470 = vmatpush1.msra.mxu0 %v70
    %1471 = vmatprep.subr.mxu0 0.0
    %1472 = vmatpush1.msra.mxu0 %v69
    %1473 = vmatprep.subr.mxu0 0.0
    %1474 = vmatpush1.msra.mxu0 %v68
    %1475 = vmatprep.subr.mxu0 0.0
    %1476 = vmatpush2.msra.mxu0 0.0
    %1477 = vmatprep.subr.mxu0 0.0
    %1478 = vmatpush2.msra.mxu0 0.0
    %1479 = vmatprep.subr.mxu0 0.0
    %1480 = vmatpush2.msra.mxu0 0.0
    %1481 = vmatprep.subr.mxu0 0.0
    %1482 = vmatpush2.msra.mxu0 0.0
    %1483 = vmatprep.subr.mxu0 0.0
    %1484 = vmatpush2.msra.mxu0 0.0
    %1485 = vmatprep.subr.mxu0 0.0
    %1486 = vmatpush2.msra.mxu0 0.0
    %1487 = vmatprep.subr.mxu0 0.0
    %1488 = vmatpush2.msra.mxu0 0.0
    %1489 = vmatprep.subr.mxu0 0.0
    %1490 = vmatpush2.msra.mxu0 0.0
    %1491 = vmatprep.subr.mxu0 0.0
    %1492 = vmatpush2.msra.mxu0 0.0
    %1493 = vmatprep.subr.mxu0 0.0
    %1494 = vmatpush2.msra.mxu0 0.0
    %1495 = vmatprep.subr.mxu0 0.0
    %1496 = vmatpush2.msra.mxu0 0.0
    %1497 = vmatprep.subr.mxu0 0.0
    %1498 = vmatpush2.msra.mxu0 0.0
    %1499 = vmatprep.subr.mxu0 0.0
    %1500 = vmatpush2.msra.mxu0 0.0
    %1501 = vmatprep.subr.mxu0 0.0
    %1502 = vmatpush2.msra.mxu0 0.0
    %1503 = vmatprep.subr.mxu0 0.0
    %1504 = vmatpush2.msra.mxu0 0.0
    %1505 = vmatprep.subr.mxu0 0.0
    %1506 = vmatpush2.msra.mxu0 0.0
    %1507 = vmatprep.mubr.f32.mxu0 0.0
    %1508 = vmatmul.mubr.f32.gmra.mxu0 %v1438
    %v1509 = vpop.f32.mrf.mxu0
    %v1510 = vadd.f32 %v635, %v1509
    %v1511 = vpop.f32.mrf.mxu0
    %1512 = vmatprep.mubr.f32.mxu0 0.0
    %1513 = vmatmul.mubr.f32.gmra.mxu0 %v1441
    %v1514 = vpop.f32.mrf.mxu0
    %v1515 = vadd.f32 %v635, %v1514
    %v1516 = vpop.f32.mrf.mxu0
    %1517 = vdwg.mxu0
    %v1518 = vtanh.pop %v1510
    %v1519 = vtanh.pop %v1515
    %v1520 = vmul.f32 %v1518, %v304
    %v1521 = vmul.f32 %v1519, %v310
    %1524 = vrot.lane.b32.xlu0 %v1520, 96
    %v1525 = vpop.permute.xlu0 %1524
    %1526 = vrot.lane.b32.xlu0 %v1521, 96
    %v1527 = vpop.permute.xlu0 %1526
    %v1530 = vadd.f32 %v1520, %v1525
    %v1531 = vadd.f32 %v1521, %v1527
    %1532 = vrot.lane.b32.xlu0 %v1520, 64
    %v1533 = vpop.permute.xlu0 %1532
    %1534 = vrot.lane.b32.xlu0 %v1521, 64
    %v1535 = vpop.permute.xlu0 %1534
    %v1538 = vadd.f32 %v1530, %v1533
    %v1539 = vadd.f32 %v1531, %v1535
    %1540 = vrot.lane.b32.xlu0 %v1520, 32
    %v1541 = vpop.permute.xlu0 %1540
    %1542 = vrot.lane.b32.xlu0 %v1521, 32
    %v1543 = vpop.permute.xlu0 %1542
    %v1546 = vadd.f32 %v1538, %v1541
    %v1547 = vadd.f32 %v1539, %v1543
    %v1548 = vmul.f32 %v1546, 0.5
    %v1549 = vmul.f32 %v1547, 0.5
    %v1550 = vadd.f32 %v1352, %v1548
    %v1551 = vadd.f32 %v1353, %v1549
    %v1553 = vsel %vm547, %v1550, 0
    %v1556 = vsel %vm547, %v1551, 0
    %1558 = vmatprep.subr.mxu0 0.0
    %1559 = vmatpush1.msra.mxu0 0.0
    %1560 = vmatprep.subr.mxu0 0.0
    %1561 = vmatpush1.msra.mxu0 0.0
    %1562 = vmatprep.subr.mxu0 0.0
    %1563 = vmatpush1.msra.mxu0 0.0
    %1564 = vmatprep.subr.mxu0 0.0
    %1565 = vmatpush1.msra.mxu0 0.0
    %1566 = vmatprep.subr.mxu0 0.0
    %1567 = vmatpush1.msra.mxu0 0.0
    %1568 = vmatprep.subr.mxu0 0.0
    %1569 = vmatpush1.msra.mxu0 0.0
    %1570 = vmatprep.subr.mxu0 0.0
    %1571 = vmatpush1.msra.mxu0 0.0
    %1572 = vmatprep.subr.mxu0 0.0
    %1573 = vmatpush1.msra.mxu0 0.0
    %1574 = vmatprep.subr.mxu0 0.0
    %1575 = vmatpush1.msra.mxu0 0.0
    %1576 = vmatprep.subr.mxu0 0.0
    %1577 = vmatpush1.msra.mxu0 0.0
    %1578 = vmatprep.subr.mxu0 0.0
    %1579 = vmatpush1.msra.mxu0 0.0
    %1580 = vmatprep.subr.mxu0 0.0
    %1581 = vmatpush1.msra.mxu0 0.0
    %1582 = vmatprep.subr.mxu0 0.0
    %1583 = vmatpush1.msra.mxu0 %v66
    %1584 = vmatprep.subr.mxu0 0.0
    %1585 = vmatpush1.msra.mxu0 %v65
    %1586 = vmatprep.subr.mxu0 0.0
    %1587 = vmatpush1.msra.mxu0 %v64
    %1588 = vmatprep.subr.mxu0 0.0
    %1589 = vmatpush1.msra.mxu0 %v63
    %1590 = vmatprep.subr.mxu0 0.0
    %1591 = vmatpush2.msra.mxu0 0.0
    %1592 = vmatprep.subr.mxu0 0.0
    %1593 = vmatpush2.msra.mxu0 0.0
    %1594 = vmatprep.subr.mxu0 0.0
    %1595 = vmatpush2.msra.mxu0 0.0
    %1596 = vmatprep.subr.mxu0 0.0
    %1597 = vmatpush2.msra.mxu0 0.0
    %1598 = vmatprep.subr.mxu0 0.0
    %1599 = vmatpush2.msra.mxu0 0.0
    %1600 = vmatprep.subr.mxu0 0.0
    %1601 = vmatpush2.msra.mxu0 0.0
    %1602 = vmatprep.subr.mxu0 0.0
    %1603 = vmatpush2.msra.mxu0 0.0
    %1604 = vmatprep.subr.mxu0 0.0
    %1605 = vmatpush2.msra.mxu0 0.0
    %1606 = vmatprep.subr.mxu0 0.0
    %1607 = vmatpush2.msra.mxu0 0.0
    %1608 = vmatprep.subr.mxu0 0.0
    %1609 = vmatpush2.msra.mxu0 0.0
    %1610 = vmatprep.subr.mxu0 0.0
    %1611 = vmatpush2.msra.mxu0 0.0
    %1612 = vmatprep.subr.mxu0 0.0
    %1613 = vmatpush2.msra.mxu0 0.0
    %1614 = vmatprep.subr.mxu0 0.0
    %1615 = vmatpush2.msra.mxu0 0.0
    %1616 = vmatprep.subr.mxu0 0.0
    %1617 = vmatpush2.msra.mxu0 0.0
    %1618 = vmatprep.subr.mxu0 0.0
    %1619 = vmatpush2.msra.mxu0 0.0
    %1620 = vmatprep.subr.mxu0 0.0
    %1621 = vmatpush2.msra.mxu0 0.0
    %1622 = vmatprep.mubr.f32.mxu0 0.0
    %1623 = vmatmul.mubr.f32.gmra.mxu0 %v1553
    %v1624 = vpop.f32.mrf.mxu0
    %v1625 = vadd.f32 %v545, %v1624
    %v1626 = vpop.f32.mrf.mxu0
    %1627 = vmatprep.mubr.f32.mxu0 0.0
    %1628 = vmatmul.mubr.f32.gmra.mxu0 %v1556
    %v1629 = vpop.f32.mrf.mxu0
    %v1630 = vadd.f32 %v545, %v1629
    %v1631 = vpop.f32.mrf.mxu0
    %1632 = vdwg.mxu0
    %v1633 = vmax.f32 %v1625, 0.0
    %v1634 = vmax.f32 %v1630, 0.0
    %v1636 = vsel %vm547, %v1633, 0
    %v1639 = vsel %vm547, %v1634, 0
    %1641 = vmatprep.subr.mxu0 0.0
    %1642 = vmatpush1.msra.mxu0 0.0
    %1643 = vmatprep.subr.mxu0 0.0
    %1644 = vmatpush1.msra.mxu0 0.0
    %1645 = vmatprep.subr.mxu0 0.0
    %1646 = vmatpush1.msra.mxu0 0.0
    %1647 = vmatprep.subr.mxu0 0.0
    %1648 = vmatpush1.msra.mxu0 0.0
    %1649 = vmatprep.subr.mxu0 0.0
    %1650 = vmatpush1.msra.mxu0 0.0
    %1651 = vmatprep.subr.mxu0 0.0
    %1652 = vmatpush1.msra.mxu0 0.0
    %1653 = vmatprep.subr.mxu0 0.0
    %1654 = vmatpush1.msra.mxu0 0.0
    %1655 = vmatprep.subr.mxu0 0.0
    %1656 = vmatpush1.msra.mxu0 0.0
    %1657 = vmatprep.subr.mxu0 0.0
    %1658 = vmatpush1.msra.mxu0 0.0
    %1659 = vmatprep.subr.mxu0 0.0
    %1660 = vmatpush1.msra.mxu0 0.0
    %1661 = vmatprep.subr.mxu0 0.0
    %1662 = vmatpush1.msra.mxu0 0.0
    %1663 = vmatprep.subr.mxu0 0.0
    %1664 = vmatpush1.msra.mxu0 0.0
    %1665 = vmatprep.subr.mxu0 0.0
    %1666 = vmatpush1.msra.mxu0 %v71
    %1667 = vmatprep.subr.mxu0 0.0
    %1668 = vmatpush1.msra.mxu0 %v70
    %1669 = vmatprep.subr.mxu0 0.0
    %1670 = vmatpush1.msra.mxu0 %v69
    %1671 = vmatprep.subr.mxu0 0.0
    %1672 = vmatpush1.msra.mxu0 %v68
    %1673 = vmatprep.subr.mxu0 0.0
    %1674 = vmatpush2.msra.mxu0 0.0
    %1675 = vmatprep.subr.mxu0 0.0
    %1676 = vmatpush2.msra.mxu0 0.0
    %1677 = vmatprep.subr.mxu0 0.0
    %1678 = vmatpush2.msra.mxu0 0.0
    %1679 = vmatprep.subr.mxu0 0.0
    %1680 = vmatpush2.msra.mxu0 0.0
    %1681 = vmatprep.subr.mxu0 0.0
    %1682 = vmatpush2.msra.mxu0 0.0
    %1683 = vmatprep.subr.mxu0 0.0
    %1684 = vmatpush2.msra.mxu0 0.0
    %1685 = vmatprep.subr.mxu0 0.0
    %1686 = vmatpush2.msra.mxu0 0.0
    %1687 = vmatprep.subr.mxu0 0.0
    %1688 = vmatpush2.msra.mxu0 0.0
    %1689 = vmatprep.subr.mxu0 0.0
    %1690 = vmatpush2.msra.mxu0 0.0
    %1691 = vmatprep.subr.mxu0 0.0
    %1692 = vmatpush2.msra.mxu0 0.0
    %1693 = vmatprep.subr.mxu0 0.0
    %1694 = vmatpush2.msra.mxu0 0.0
    %1695 = vmatprep.subr.mxu0 0.0
    %1696 = vmatpush2.msra.mxu0 0.0
    %1697 = vmatprep.subr.mxu0 0.0
    %1698 = vmatpush2.msra.mxu0 0.0
    %1699 = vmatprep.subr.mxu0 0.0
    %1700 = vmatpush2.msra.mxu0 0.0
    %1701 = vmatprep.subr.mxu0 0.0
    %1702 = vmatpush2.msra.mxu0 0.0
    %1703 = vmatprep.subr.mxu0 0.0
    %1704 = vmatpush2.msra.mxu0 0.0
    %1705 = vmatprep.mubr.f32.mxu0 0.0
    %1706 = vmatmul.mubr.f32.gmra.mxu0 %v1636
    %v1707 = vpop.f32.mrf.mxu0
    %v1708 = vadd.f32 %v635, %v1707
    %v1709 = vpop.f32.mrf.mxu0
    %1710 = vmatprep.mubr.f32.mxu0 0.0
    %1711 = vmatmul.mubr.f32.gmra.mxu0 %v1639
    %v1712 = vpop.f32.mrf.mxu0
    %v1713 = vadd.f32 %v635, %v1712
    %v1714 = vpop.f32.mrf.mxu0
    %1715 = vdwg.mxu0
    %v1716 = vtanh.pop %v1708
    %v1717 = vtanh.pop %v1713
    %v1718 = vmul.f32 %v1716, %v304
    %v1719 = vmul.f32 %v1717, %v310
    %1722 = vrot.lane.b32.xlu0 %v1718, 96
    %v1723 = vpop.permute.xlu0 %1722
    %1724 = vrot.lane.b32.xlu0 %v1719, 96
    %v1725 = vpop.permute.xlu0 %1724
    %v1728 = vadd.f32 %v1718, %v1723
    %v1729 = vadd.f32 %v1719, %v1725
    %1730 = vrot.lane.b32.xlu0 %v1718, 64
    %v1731 = vpop.permute.xlu0 %1730
    %1732 = vrot.lane.b32.xlu0 %v1719, 64
    %v1733 = vpop.permute.xlu0 %1732
    %v1736 = vadd.f32 %v1728, %v1731
    %v1737 = vadd.f32 %v1729, %v1733
    %1738 = vrot.lane.b32.xlu0 %v1718, 32
    %v1739 = vpop.permute.xlu0 %1738
    %1740 = vrot.lane.b32.xlu0 %v1719, 32
    %v1741 = vpop.permute.xlu0 %1740
    %v1744 = vadd.f32 %v1736, %v1739
    %v1745 = vadd.f32 %v1737, %v1741
    %v1746 = vmul.f32 %v1744, 0.5
    %v1747 = vmul.f32 %v1745, 0.5
    %v1748 = vadd.f32 %v1352, %v1746
    %v1749 = vadd.f32 %v1353, %v1747
    %v1751 = vsel %vm547, %v1748, 0
    %v1754 = vsel %vm547, %v1749, 0
    %1756 = vmatprep.subr.mxu0 0.0
    %1757 = vmatpush1.msra.mxu0 0.0
    %1758 = vmatprep.subr.mxu0 0.0
    %1759 = vmatpush1.msra.mxu0 0.0
    %1760 = vmatprep.subr.mxu0 0.0
    %1761 = vmatpush1.msra.mxu0 0.0
    %1762 = vmatprep.subr.mxu0 0.0
    %1763 = vmatpush1.msra.mxu0 0.0
    %1764 = vmatprep.subr.mxu0 0.0
    %1765 = vmatpush1.msra.mxu0 0.0
    %1766 = vmatprep.subr.mxu0 0.0
    %1767 = vmatpush1.msra.mxu0 0.0
    %1768 = vmatprep.subr.mxu0 0.0
    %1769 = vmatpush1.msra.mxu0 0.0
    %1770 = vmatprep.subr.mxu0 0.0
    %1771 = vmatpush1.msra.mxu0 0.0
    %1772 = vmatprep.subr.mxu0 0.0
    %1773 = vmatpush1.msra.mxu0 0.0
    %1774 = vmatprep.subr.mxu0 0.0
    %1775 = vmatpush1.msra.mxu0 0.0
    %1776 = vmatprep.subr.mxu0 0.0
    %1777 = vmatpush1.msra.mxu0 0.0
    %1778 = vmatprep.subr.mxu0 0.0
    %1779 = vmatpush1.msra.mxu0 0.0
    %1780 = vmatprep.subr.mxu0 0.0
    %1781 = vmatpush1.msra.mxu0 %v66
    %1782 = vmatprep.subr.mxu0 0.0
    %1783 = vmatpush1.msra.mxu0 %v65
    %1784 = vmatprep.subr.mxu0 0.0
    %1785 = vmatpush1.msra.mxu0 %v64
    %1786 = vmatprep.subr.mxu0 0.0
    %1787 = vmatpush1.msra.mxu0 %v63
    %1788 = vmatprep.subr.mxu0 0.0
    %1789 = vmatpush2.msra.mxu0 0.0
    %1790 = vmatprep.subr.mxu0 0.0
    %1791 = vmatpush2.msra.mxu0 0.0
    %1792 = vmatprep.subr.mxu0 0.0
    %1793 = vmatpush2.msra.mxu0 0.0
    %1794 = vmatprep.subr.mxu0 0.0
    %1795 = vmatpush2.msra.mxu0 0.0
    %1796 = vmatprep.subr.mxu0 0.0
    %1797 = vmatpush2.msra.mxu0 0.0
    %1798 = vmatprep.subr.mxu0 0.0
    %1799 = vmatpush2.msra.mxu0 0.0
    %1800 = vmatprep.subr.mxu0 0.0
    %1801 = vmatpush2.msra.mxu0 0.0
    %1802 = vmatprep.subr.mxu0 0.0
    %1803 = vmatpush2.msra.mxu0 0.0
    %1804 = vmatprep.subr.mxu0 0.0
    %1805 = vmatpush2.msra.mxu0 0.0
    %1806 = vmatprep.subr.mxu0 0.0
    %1807 = vmatpush2.msra.mxu0 0.0
    %1808 = vmatprep.subr.mxu0 0.0
    %1809 = vmatpush2.msra.mxu0 0.0
    %1810 = vmatprep.subr.mxu0 0.0
    %1811 = vmatpush2.msra.mxu0 0.0
    %1812 = vmatprep.subr.mxu0 0.0
    %1813 = vmatpush2.msra.mxu0 0.0
    %1814 = vmatprep.subr.mxu0 0.0
    %1815 = vmatpush2.msra.mxu0 0.0
    %1816 = vmatprep.subr.mxu0 0.0
    %1817 = vmatpush2.msra.mxu0 0.0
    %1818 = vmatprep.subr.mxu0 0.0
    %1819 = vmatpush2.msra.mxu0 0.0
    %1820 = vmatprep.mubr.f32.mxu0 0.0
    %1821 = vmatmul.mubr.f32.gmra.mxu0 %v1751
    %v1822 = vpop.f32.mrf.mxu0
    %v1823 = vadd.f32 %v545, %v1822
    %v1824 = vpop.f32.mrf.mxu0
    %1825 = vmatprep.mubr.f32.mxu0 0.0
    %1826 = vmatmul.mubr.f32.gmra.mxu0 %v1754
    %v1827 = vpop.f32.mrf.mxu0
    %v1828 = vadd.f32 %v545, %v1827
    %v1829 = vpop.f32.mrf.mxu0
    %1830 = vdwg.mxu0
    %v1831 = vmax.f32 %v1823, 0.0
    %v1832 = vmax.f32 %v1828, 0.0
    %v1834 = vsel %vm547, %v1831, 0
    %v1837 = vsel %vm547, %v1832, 0
    %1839 = vmatprep.subr.mxu0 0.0
    %1840 = vmatpush1.msra.mxu0 0.0
    %1841 = vmatprep.subr.mxu0 0.0
    %1842 = vmatpush1.msra.mxu0 0.0
    %1843 = vmatprep.subr.mxu0 0.0
    %1844 = vmatpush1.msra.mxu0 0.0
    %1845 = vmatprep.subr.mxu0 0.0
    %1846 = vmatpush1.msra.mxu0 0.0
    %1847 = vmatprep.subr.mxu0 0.0
    %1848 = vmatpush1.msra.mxu0 0.0
    %1849 = vmatprep.subr.mxu0 0.0
    %1850 = vmatpush1.msra.mxu0 0.0
    %1851 = vmatprep.subr.mxu0 0.0
    %1852 = vmatpush1.msra.mxu0 0.0
    %1853 = vmatprep.subr.mxu0 0.0
    %1854 = vmatpush1.msra.mxu0 0.0
    %1855 = vmatprep.subr.mxu0 0.0
    %1856 = vmatpush1.msra.mxu0 0.0
    %1857 = vmatprep.subr.mxu0 0.0
    %1858 = vmatpush1.msra.mxu0 0.0
    %1859 = vmatprep.subr.mxu0 0.0
    %1860 = vmatpush1.msra.mxu0 0.0
    %1861 = vmatprep.subr.mxu0 0.0
    %1862 = vmatpush1.msra.mxu0 0.0
    %1863 = vmatprep.subr.mxu0 0.0
    %1864 = vmatpush1.msra.mxu0 %v71
    %1865 = vmatprep.subr.mxu0 0.0
    %1866 = vmatpush1.msra.mxu0 %v70
    %1867 = vmatprep.subr.mxu0 0.0
    %1868 = vmatpush1.msra.mxu0 %v69
    %1869 = vmatprep.subr.mxu0 0.0
    %1870 = vmatpush1.msra.mxu0 %v68
    %1871 = vmatprep.subr.mxu0 0.0
    %1872 = vmatpush2.msra.mxu0 0.0
    %1873 = vmatprep.subr.mxu0 0.0
    %1874 = vmatpush2.msra.mxu0 0.0
    %1875 = vmatprep.subr.mxu0 0.0
    %1876 = vmatpush2.msra.mxu0 0.0
    %1877 = vmatprep.subr.mxu0 0.0
    %1878 = vmatpush2.msra.mxu0 0.0
    %1879 = vmatprep.subr.mxu0 0.0
    %1880 = vmatpush2.msra.mxu0 0.0
    %1881 = vmatprep.subr.mxu0 0.0
    %1882 = vmatpush2.msra.mxu0 0.0
    %1883 = vmatprep.subr.mxu0 0.0
    %1884 = vmatpush2.msra.mxu0 0.0
    %1885 = vmatprep.subr.mxu0 0.0
    %1886 = vmatpush2.msra.mxu0 0.0
    %1887 = vmatprep.subr.mxu0 0.0
    %1888 = vmatpush2.msra.mxu0 0.0
    %1889 = vmatprep.subr.mxu0 0.0
    %1890 = vmatpush2.msra.mxu0 0.0
    %1891 = vmatprep.subr.mxu0 0.0
    %1892 = vmatpush2.msra.mxu0 0.0
    %1893 = vmatprep.subr.mxu0 0.0
    %1894 = vmatpush2.msra.mxu0 0.0
    %1895 = vmatprep.subr.mxu0 0.0
    %1896 = vmatpush2.msra.mxu0 0.0
    %1897 = vmatprep.subr.mxu0 0.0
    %1898 = vmatpush2.msra.mxu0 0.0
    %1899 = vmatprep.subr.mxu0 0.0
    %1900 = vmatpush2.msra.mxu0 0.0
    %1901 = vmatprep.subr.mxu0 0.0
    %1902 = vmatpush2.msra.mxu0 0.0
    %1903 = vmatprep.mubr.f32.mxu0 0.0
    %1904 = vmatmul.mubr.f32.gmra.mxu0 %v1834
    %v1905 = vpop.f32.mrf.mxu0
    %v1906 = vadd.f32 %v635, %v1905
    %v1907 = vpop.f32.mrf.mxu0
    %1908 = vmatprep.mubr.f32.mxu0 0.0
    %1909 = vmatmul.mubr.f32.gmra.mxu0 %v1837
    %v1910 = vpop.f32.mrf.mxu0
    %v1911 = vadd.f32 %v635, %v1910
    %v1912 = vpop.f32.mrf.mxu0
    %1913 = vdwg.mxu0
    %v1914 = vtanh.pop %v1906
    %v1915 = vtanh.pop %v1911
    %v1916 = vmul.f32 %v1914, %v304
    %v1917 = vmul.f32 %v1915, %v310
    %1920 = vrot.lane.b32.xlu0 %v1916, 96
    %v1921 = vpop.permute.xlu0 %1920
    %1922 = vrot.lane.b32.xlu0 %v1917, 96
    %v1923 = vpop.permute.xlu0 %1922
    %v1926 = vadd.f32 %v1916, %v1921
    %v1927 = vadd.f32 %v1917, %v1923
    %1928 = vrot.lane.b32.xlu0 %v1916, 64
    %v1929 = vpop.permute.xlu0 %1928
    %1930 = vrot.lane.b32.xlu0 %v1917, 64
    %v1931 = vpop.permute.xlu0 %1930
    %v1934 = vadd.f32 %v1926, %v1929
    %v1935 = vadd.f32 %v1927, %v1931
    %1936 = vrot.lane.b32.xlu0 %v1916, 32
    %v1937 = vpop.permute.xlu0 %1936
    %1938 = vrot.lane.b32.xlu0 %v1917, 32
    %v1939 = vpop.permute.xlu0 %1938
    %v1942 = vadd.f32 %v1934, %v1937
    %v1943 = vadd.f32 %v1935, %v1939
    %v1944 = vadd.f32 %v1352, %v1942
    %v1945 = vadd.f32 %v1353, %v1943
    %v1947 = vsel %vm547, %v1944, 0
    %v1950 = vsel %vm547, %v1945, 0
    %1952 = vmatprep.subr.mxu0 0.0
    %1953 = vmatpush1.msra.mxu0 0.0
    %1954 = vmatprep.subr.mxu0 0.0
    %1955 = vmatpush1.msra.mxu0 0.0
    %1956 = vmatprep.subr.mxu0 0.0
    %1957 = vmatpush1.msra.mxu0 0.0
    %1958 = vmatprep.subr.mxu0 0.0
    %1959 = vmatpush1.msra.mxu0 0.0
    %1960 = vmatprep.subr.mxu0 0.0
    %1961 = vmatpush1.msra.mxu0 0.0
    %1962 = vmatprep.subr.mxu0 0.0
    %1963 = vmatpush1.msra.mxu0 0.0
    %1964 = vmatprep.subr.mxu0 0.0
    %1965 = vmatpush1.msra.mxu0 0.0
    %1966 = vmatprep.subr.mxu0 0.0
    %1967 = vmatpush1.msra.mxu0 0.0
    %1968 = vmatprep.subr.mxu0 0.0
    %1969 = vmatpush1.msra.mxu0 0.0
    %1970 = vmatprep.subr.mxu0 0.0
    %1971 = vmatpush1.msra.mxu0 0.0
    %1972 = vmatprep.subr.mxu0 0.0
    %1973 = vmatpush1.msra.mxu0 0.0
    %1974 = vmatprep.subr.mxu0 0.0
    %1975 = vmatpush1.msra.mxu0 0.0
    %1976 = vmatprep.subr.mxu0 0.0
    %1977 = vmatpush1.msra.mxu0 %v66
    %1978 = vmatprep.subr.mxu0 0.0
    %1979 = vmatpush1.msra.mxu0 %v65
    %1980 = vmatprep.subr.mxu0 0.0
    %1981 = vmatpush1.msra.mxu0 %v64
    %1982 = vmatprep.subr.mxu0 0.0
    %1983 = vmatpush1.msra.mxu0 %v63
    %1984 = vmatprep.subr.mxu0 0.0
    %1985 = vmatpush2.msra.mxu0 0.0
    %1986 = vmatprep.subr.mxu0 0.0
    %1987 = vmatpush2.msra.mxu0 0.0
    %1988 = vmatprep.subr.mxu0 0.0
    %1989 = vmatpush2.msra.mxu0 0.0
    %1990 = vmatprep.subr.mxu0 0.0
    %1991 = vmatpush2.msra.mxu0 0.0
    %1992 = vmatprep.subr.mxu0 0.0
    %1993 = vmatpush2.msra.mxu0 0.0
    %1994 = vmatprep.subr.mxu0 0.0
    %1995 = vmatpush2.msra.mxu0 0.0
    %1996 = vmatprep.subr.mxu0 0.0
    %1997 = vmatpush2.msra.mxu0 0.0
    %1998 = vmatprep.subr.mxu0 0.0
    %1999 = vmatpush2.msra.mxu0 0.0
    %2000 = vmatprep.subr.mxu0 0.0
    %2001 = vmatpush2.msra.mxu0 0.0
    %2002 = vmatprep.subr.mxu0 0.0
    %2003 = vmatpush2.msra.mxu0 0.0
    %2004 = vmatprep.subr.mxu0 0.0
    %2005 = vmatpush2.msra.mxu0 0.0
    %2006 = vmatprep.subr.mxu0 0.0
    %2007 = vmatpush2.msra.mxu0 0.0
    %2008 = vmatprep.subr.mxu0 0.0
    %2009 = vmatpush2.msra.mxu0 0.0
    %2010 = vmatprep.subr.mxu0 0.0
    %2011 = vmatpush2.msra.mxu0 0.0
    %2012 = vmatprep.subr.mxu0 0.0
    %2013 = vmatpush2.msra.mxu0 0.0
    %2014 = vmatprep.subr.mxu0 0.0
    %2015 = vmatpush2.msra.mxu0 0.0
    %2016 = vmatprep.mubr.f32.mxu0 0.0
    %2017 = vmatmul.mubr.f32.gmra.mxu0 %v1947
    %v2018 = vpop.f32.mrf.mxu0
    %v2019 = vadd.f32 %v545, %v2018
    %v2020 = vpop.f32.mrf.mxu0
    %2021 = vmatprep.mubr.f32.mxu0 0.0
    %2022 = vmatmul.mubr.f32.gmra.mxu0 %v1950
    %v2023 = vpop.f32.mrf.mxu0
    %v2024 = vadd.f32 %v545, %v2023
    %v2025 = vpop.f32.mrf.mxu0
    %2026 = vdwg.mxu0
    %v2027 = vmax.f32 %v2019, 0.0
    %v2028 = vmax.f32 %v2024, 0.0
    %v2030 = vsel %vm547, %v2027, 0
    %v2033 = vsel %vm547, %v2028, 0
    %2035 = vmatprep.subr.mxu0 0.0
    %2036 = vmatpush1.msra.mxu0 0.0
    %2037 = vmatprep.subr.mxu0 0.0
    %2038 = vmatpush1.msra.mxu0 0.0
    %2039 = vmatprep.subr.mxu0 0.0
    %2040 = vmatpush1.msra.mxu0 0.0
    %2041 = vmatprep.subr.mxu0 0.0
    %2042 = vmatpush1.msra.mxu0 0.0
    %2043 = vmatprep.subr.mxu0 0.0
    %2044 = vmatpush1.msra.mxu0 0.0
    %2045 = vmatprep.subr.mxu0 0.0
    %2046 = vmatpush1.msra.mxu0 0.0
    %2047 = vmatprep.subr.mxu0 0.0
    %2048 = vmatpush1.msra.mxu0 0.0
    %2049 = vmatprep.subr.mxu0 0.0
    %2050 = vmatpush1.msra.mxu0 0.0
    %2051 = vmatprep.subr.mxu0 0.0
    %2052 = vmatpush1.msra.mxu0 0.0
    %2053 = vmatprep.subr.mxu0 0.0
    %2054 = vmatpush1.msra.mxu0 0.0
    %2055 = vmatprep.subr.mxu0 0.0
    %2056 = vmatpush1.msra.mxu0 0.0
    %2057 = vmatprep.subr.mxu0 0.0
    %2058 = vmatpush1.msra.mxu0 0.0
    %2059 = vmatprep.subr.mxu0 0.0
    %2060 = vmatpush1.msra.mxu0 %v71
    %2061 = vmatprep.subr.mxu0 0.0
    %2062 = vmatpush1.msra.mxu0 %v70
    %2063 = vmatprep.subr.mxu0 0.0
    %2064 = vmatpush1.msra.mxu0 %v69
    %2065 = vmatprep.subr.mxu0 0.0
    %2066 = vmatpush1.msra.mxu0 %v68
    %2067 = vmatprep.subr.mxu0 0.0
    %2068 = vmatpush2.msra.mxu0 0.0
    %2069 = vmatprep.subr.mxu0 0.0
    %2070 = vmatpush2.msra.mxu0 0.0
    %2071 = vmatprep.subr.mxu0 0.0
    %2072 = vmatpush2.msra.mxu0 0.0
    %2073 = vmatprep.subr.mxu0 0.0
    %2074 = vmatpush2.msra.mxu0 0.0
    %2075 = vmatprep.subr.mxu0 0.0
    %2076 = vmatpush2.msra.mxu0 0.0
    %2077 = vmatprep.subr.mxu0 0.0
    %2078 = vmatpush2.msra.mxu0 0.0
    %2079 = vmatprep.subr.mxu0 0.0
    %2080 = vmatpush2.msra.mxu0 0.0
    %2081 = vmatprep.subr.mxu0 0.0
    %2082 = vmatpush2.msra.mxu0 0.0
    %2083 = vmatprep.subr.mxu0 0.0
    %2084 = vmatpush2.msra.mxu0 0.0
    %2085 = vmatprep.subr.mxu0 0.0
    %2086 = vmatpush2.msra.mxu0 0.0
    %2087 = vmatprep.subr.mxu0 0.0
    %2088 = vmatpush2.msra.mxu0 0.0
    %2089 = vmatprep.subr.mxu0 0.0
    %2090 = vmatpush2.msra.mxu0 0.0
    %2091 = vmatprep.subr.mxu0 0.0
    %2092 = vmatpush2.msra.mxu0 0.0
    %2093 = vmatprep.subr.mxu0 0.0
    %2094 = vmatpush2.msra.mxu0 0.0
    %2095 = vmatprep.subr.mxu0 0.0
    %2096 = vmatpush2.msra.mxu0 0.0
    %2097 = vmatprep.subr.mxu0 0.0
    %2098 = vmatpush2.msra.mxu0 0.0
    %2099 = vmatprep.mubr.f32.mxu0 0.0
    %2100 = vmatmul.mubr.f32.gmra.mxu0 %v2030
    %v2101 = vpop.f32.mrf.mxu0
    %v2102 = vadd.f32 %v635, %v2101
    %v2103 = vpop.f32.mrf.mxu0
    %2104 = vmatprep.mubr.f32.mxu0 0.0
    %2105 = vmatmul.mubr.f32.gmra.mxu0 %v2033
    %v2106 = vpop.f32.mrf.mxu0
    %v2107 = vadd.f32 %v635, %v2106
    %v2108 = vpop.f32.mrf.mxu0
    %2109 = vdwg.mxu0
    %v2110 = vtanh.pop %v2102
    %v2111 = vtanh.pop %v2107
    %v2112 = vmul.f32 %v2110, %v304
    %v2113 = vmul.f32 %v2111, %v310
    %2116 = vrot.lane.b32.xlu0 %v2112, 96
    %v2117 = vpop.permute.xlu0 %2116
    %2118 = vrot.lane.b32.xlu0 %v2113, 96
    %v2119 = vpop.permute.xlu0 %2118
    %v2122 = vadd.f32 %v2112, %v2117
    %v2123 = vadd.f32 %v2113, %v2119
    %2124 = vrot.lane.b32.xlu0 %v2112, 64
    %v2125 = vpop.permute.xlu0 %2124
    %2126 = vrot.lane.b32.xlu0 %v2113, 64
    %v2127 = vpop.permute.xlu0 %2126
    %v2130 = vadd.f32 %v2122, %v2125
    %v2131 = vadd.f32 %v2123, %v2127
    %2132 = vrot.lane.b32.xlu0 %v2112, 32
    %v2133 = vpop.permute.xlu0 %2132
    %2134 = vrot.lane.b32.xlu0 %v2113, 32
    %v2135 = vpop.permute.xlu0 %2134
    %v2138 = vadd.f32 %v2130, %v2133
    %v2139 = vadd.f32 %v2131, %v2135
    %v2140 = vmul.f32 %v1744, 2.0
    %v2141 = vmul.f32 %v1745, 2.0
    %v2142 = vadd.f32 %v1546, %v2140
    %v2143 = vadd.f32 %v1547, %v2141
    %v2144 = vmul.f32 %v1942, 2.0
    %v2145 = vmul.f32 %v1943, 2.0
    %v2146 = vadd.f32 %v2142, %v2144
    %v2147 = vadd.f32 %v2143, %v2145
    %v2148 = vadd.f32 %v2146, %v2138
    %v2149 = vadd.f32 %v2147, %v2139
    %v2150 = vmul.f32 %v2148, 0.16666667
    %v2151 = vmul.f32 %v2149, 0.16666667
    %v2152 = vadd.f32 %v1352, %v2150
    %v2153 = vadd.f32 %v1353, %v2151
    %v2155 = vsel %vm547, %v2152, 0
    %v2158 = vsel %vm547, %v2153, 0
    %2160 = vmatprep.subr.mxu0 0.0
    %2161 = vmatpush1.msra.mxu0 0.0
    %2162 = vmatprep.subr.mxu0 0.0
    %2163 = vmatpush1.msra.mxu0 0.0
    %2164 = vmatprep.subr.mxu0 0.0
    %2165 = vmatpush1.msra.mxu0 0.0
    %2166 = vmatprep.subr.mxu0 0.0
    %2167 = vmatpush1.msra.mxu0 0.0
    %2168 = vmatprep.subr.mxu0 0.0
    %2169 = vmatpush1.msra.mxu0 0.0
    %2170 = vmatprep.subr.mxu0 0.0
    %2171 = vmatpush1.msra.mxu0 0.0
    %2172 = vmatprep.subr.mxu0 0.0
    %2173 = vmatpush1.msra.mxu0 0.0
    %2174 = vmatprep.subr.mxu0 0.0
    %2175 = vmatpush1.msra.mxu0 0.0
    %2176 = vmatprep.subr.mxu0 0.0
    %2177 = vmatpush1.msra.mxu0 0.0
    %2178 = vmatprep.subr.mxu0 0.0
    %2179 = vmatpush1.msra.mxu0 0.0
    %2180 = vmatprep.subr.mxu0 0.0
    %2181 = vmatpush1.msra.mxu0 0.0
    %2182 = vmatprep.subr.mxu0 0.0
    %2183 = vmatpush1.msra.mxu0 0.0
    %2184 = vmatprep.subr.mxu0 0.0
    %2185 = vmatpush1.msra.mxu0 %v66
    %2186 = vmatprep.subr.mxu0 0.0
    %2187 = vmatpush1.msra.mxu0 %v65
    %2188 = vmatprep.subr.mxu0 0.0
    %2189 = vmatpush1.msra.mxu0 %v64
    %2190 = vmatprep.subr.mxu0 0.0
    %2191 = vmatpush1.msra.mxu0 %v63
    %2192 = vmatprep.subr.mxu0 0.0
    %2193 = vmatpush2.msra.mxu0 0.0
    %2194 = vmatprep.subr.mxu0 0.0
    %2195 = vmatpush2.msra.mxu0 0.0
    %2196 = vmatprep.subr.mxu0 0.0
    %2197 = vmatpush2.msra.mxu0 0.0
    %2198 = vmatprep.subr.mxu0 0.0
    %2199 = vmatpush2.msra.mxu0 0.0
    %2200 = vmatprep.subr.mxu0 0.0
    %2201 = vmatpush2.msra.mxu0 0.0
    %2202 = vmatprep.subr.mxu0 0.0
    %2203 = vmatpush2.msra.mxu0 0.0
    %2204 = vmatprep.subr.mxu0 0.0
    %2205 = vmatpush2.msra.mxu0 0.0
    %2206 = vmatprep.subr.mxu0 0.0
    %2207 = vmatpush2.msra.mxu0 0.0
    %2208 = vmatprep.subr.mxu0 0.0
    %2209 = vmatpush2.msra.mxu0 0.0
    %2210 = vmatprep.subr.mxu0 0.0
    %2211 = vmatpush2.msra.mxu0 0.0
    %2212 = vmatprep.subr.mxu0 0.0
    %2213 = vmatpush2.msra.mxu0 0.0
    %2214 = vmatprep.subr.mxu0 0.0
    %2215 = vmatpush2.msra.mxu0 0.0
    %2216 = vmatprep.subr.mxu0 0.0
    %2217 = vmatpush2.msra.mxu0 0.0
    %2218 = vmatprep.subr.mxu0 0.0
    %2219 = vmatpush2.msra.mxu0 0.0
    %2220 = vmatprep.subr.mxu0 0.0
    %2221 = vmatpush2.msra.mxu0 0.0
    %2222 = vmatprep.subr.mxu0 0.0
    %2223 = vmatpush2.msra.mxu0 0.0
    %2224 = vmatprep.mubr.f32.mxu0 0.0
    %2225 = vmatmul.mubr.f32.gmra.mxu0 %v2155
    %v2226 = vpop.f32.mrf.mxu0
    %v2227 = vadd.f32 %v545, %v2226
    %v2228 = vpop.f32.mrf.mxu0
    %2229 = vmatprep.mubr.f32.mxu0 0.0
    %2230 = vmatmul.mubr.f32.gmra.mxu0 %v2158
    %v2231 = vpop.f32.mrf.mxu0
    %v2232 = vadd.f32 %v545, %v2231
    %v2233 = vpop.f32.mrf.mxu0
    %2234 = vdwg.mxu0
    %v2235 = vmax.f32 %v2227, 0.0
    %v2236 = vmax.f32 %v2232, 0.0
    %v2238 = vsel %vm547, %v2235, 0
    %v2241 = vsel %vm547, %v2236, 0
    %2243 = vmatprep.subr.mxu0 0.0
    %2244 = vmatpush1.msra.mxu0 0.0
    %2245 = vmatprep.subr.mxu0 0.0
    %2246 = vmatpush1.msra.mxu0 0.0
    %2247 = vmatprep.subr.mxu0 0.0
    %2248 = vmatpush1.msra.mxu0 0.0
    %2249 = vmatprep.subr.mxu0 0.0
    %2250 = vmatpush1.msra.mxu0 0.0
    %2251 = vmatprep.subr.mxu0 0.0
    %2252 = vmatpush1.msra.mxu0 0.0
    %2253 = vmatprep.subr.mxu0 0.0
    %2254 = vmatpush1.msra.mxu0 0.0
    %2255 = vmatprep.subr.mxu0 0.0
    %2256 = vmatpush1.msra.mxu0 0.0
    %2257 = vmatprep.subr.mxu0 0.0
    %2258 = vmatpush1.msra.mxu0 0.0
    %2259 = vmatprep.subr.mxu0 0.0
    %2260 = vmatpush1.msra.mxu0 0.0
    %2261 = vmatprep.subr.mxu0 0.0
    %2262 = vmatpush1.msra.mxu0 0.0
    %2263 = vmatprep.subr.mxu0 0.0
    %2264 = vmatpush1.msra.mxu0 0.0
    %2265 = vmatprep.subr.mxu0 0.0
    %2266 = vmatpush1.msra.mxu0 0.0
    %2267 = vmatprep.subr.mxu0 0.0
    %2268 = vmatpush1.msra.mxu0 %v71
    %2269 = vmatprep.subr.mxu0 0.0
    %2270 = vmatpush1.msra.mxu0 %v70
    %2271 = vmatprep.subr.mxu0 0.0
    %2272 = vmatpush1.msra.mxu0 %v69
    %2273 = vmatprep.subr.mxu0 0.0
    %2274 = vmatpush1.msra.mxu0 %v68
    %2275 = vmatprep.subr.mxu0 0.0
    %2276 = vmatpush2.msra.mxu0 0.0
    %2277 = vmatprep.subr.mxu0 0.0
    %2278 = vmatpush2.msra.mxu0 0.0
    %2279 = vmatprep.subr.mxu0 0.0
    %2280 = vmatpush2.msra.mxu0 0.0
    %2281 = vmatprep.subr.mxu0 0.0
    %2282 = vmatpush2.msra.mxu0 0.0
    %2283 = vmatprep.subr.mxu0 0.0
    %2284 = vmatpush2.msra.mxu0 0.0
    %2285 = vmatprep.subr.mxu0 0.0
    %2286 = vmatpush2.msra.mxu0 0.0
    %2287 = vmatprep.subr.mxu0 0.0
    %2288 = vmatpush2.msra.mxu0 0.0
    %2289 = vmatprep.subr.mxu0 0.0
    %2290 = vmatpush2.msra.mxu0 0.0
    %2291 = vmatprep.subr.mxu0 0.0
    %2292 = vmatpush2.msra.mxu0 0.0
    %2293 = vmatprep.subr.mxu0 0.0
    %2294 = vmatpush2.msra.mxu0 0.0
    %2295 = vmatprep.subr.mxu0 0.0
    %2296 = vmatpush2.msra.mxu0 0.0
    %2297 = vmatprep.subr.mxu0 0.0
    %2298 = vmatpush2.msra.mxu0 0.0
    %2299 = vmatprep.subr.mxu0 0.0
    %2300 = vmatpush2.msra.mxu0 0.0
    %2301 = vmatprep.subr.mxu0 0.0
    %2302 = vmatpush2.msra.mxu0 0.0
    %2303 = vmatprep.subr.mxu0 0.0
    %2304 = vmatpush2.msra.mxu0 0.0
    %2305 = vmatprep.subr.mxu0 0.0
    %2306 = vmatpush2.msra.mxu0 0.0
    %2307 = vmatprep.mubr.f32.mxu0 0.0
    %2308 = vmatmul.mubr.f32.gmra.mxu0 %v2238
    %v2309 = vpop.f32.mrf.mxu0
    %v2310 = vadd.f32 %v635, %v2309
    %v2311 = vpop.f32.mrf.mxu0
    %2312 = vmatprep.mubr.f32.mxu0 0.0
    %2313 = vmatmul.mubr.f32.gmra.mxu0 %v2241
    %v2314 = vpop.f32.mrf.mxu0
    %v2315 = vadd.f32 %v635, %v2314
    %v2316 = vpop.f32.mrf.mxu0
    %2317 = vdwg.mxu0
    %v2318 = vtanh.pop %v2310
    %v2319 = vtanh.pop %v2315
    %v2320 = vmul.f32 %v2318, %v379
    %v2321 = vmul.f32 %v2319, %v385
    %2324 = vrot.lane.b32.xlu0 %v2320, 96
    %v2325 = vpop.permute.xlu0 %2324
    %2326 = vrot.lane.b32.xlu0 %v2321, 96
    %v2327 = vpop.permute.xlu0 %2326
    %v2330 = vadd.f32 %v2320, %v2325
    %v2331 = vadd.f32 %v2321, %v2327
    %2332 = vrot.lane.b32.xlu0 %v2320, 64
    %v2333 = vpop.permute.xlu0 %2332
    %2334 = vrot.lane.b32.xlu0 %v2321, 64
    %v2335 = vpop.permute.xlu0 %2334
    %v2338 = vadd.f32 %v2330, %v2333
    %v2339 = vadd.f32 %v2331, %v2335
    %2340 = vrot.lane.b32.xlu0 %v2320, 32
    %v2341 = vpop.permute.xlu0 %2340
    %2342 = vrot.lane.b32.xlu0 %v2321, 32
    %v2343 = vpop.permute.xlu0 %2342
    %v2346 = vadd.f32 %v2338, %v2341
    %v2347 = vadd.f32 %v2339, %v2343
    %v2348 = vmul.f32 %v2346, 0.5
    %v2349 = vmul.f32 %v2347, 0.5
    %v2350 = vadd.f32 %v2152, %v2348
    %v2351 = vadd.f32 %v2153, %v2349
    %v2353 = vsel %vm547, %v2350, 0
    %v2356 = vsel %vm547, %v2351, 0
    %2358 = vmatprep.subr.mxu0 0.0
    %2359 = vmatpush1.msra.mxu0 0.0
    %2360 = vmatprep.subr.mxu0 0.0
    %2361 = vmatpush1.msra.mxu0 0.0
    %2362 = vmatprep.subr.mxu0 0.0
    %2363 = vmatpush1.msra.mxu0 0.0
    %2364 = vmatprep.subr.mxu0 0.0
    %2365 = vmatpush1.msra.mxu0 0.0
    %2366 = vmatprep.subr.mxu0 0.0
    %2367 = vmatpush1.msra.mxu0 0.0
    %2368 = vmatprep.subr.mxu0 0.0
    %2369 = vmatpush1.msra.mxu0 0.0
    %2370 = vmatprep.subr.mxu0 0.0
    %2371 = vmatpush1.msra.mxu0 0.0
    %2372 = vmatprep.subr.mxu0 0.0
    %2373 = vmatpush1.msra.mxu0 0.0
    %2374 = vmatprep.subr.mxu0 0.0
    %2375 = vmatpush1.msra.mxu0 0.0
    %2376 = vmatprep.subr.mxu0 0.0
    %2377 = vmatpush1.msra.mxu0 0.0
    %2378 = vmatprep.subr.mxu0 0.0
    %2379 = vmatpush1.msra.mxu0 0.0
    %2380 = vmatprep.subr.mxu0 0.0
    %2381 = vmatpush1.msra.mxu0 0.0
    %2382 = vmatprep.subr.mxu0 0.0
    %2383 = vmatpush1.msra.mxu0 %v66
    %2384 = vmatprep.subr.mxu0 0.0
    %2385 = vmatpush1.msra.mxu0 %v65
    %2386 = vmatprep.subr.mxu0 0.0
    %2387 = vmatpush1.msra.mxu0 %v64
    %2388 = vmatprep.subr.mxu0 0.0
    %2389 = vmatpush1.msra.mxu0 %v63
    %2390 = vmatprep.subr.mxu0 0.0
    %2391 = vmatpush2.msra.mxu0 0.0
    %2392 = vmatprep.subr.mxu0 0.0
    %2393 = vmatpush2.msra.mxu0 0.0
    %2394 = vmatprep.subr.mxu0 0.0
    %2395 = vmatpush2.msra.mxu0 0.0
    %2396 = vmatprep.subr.mxu0 0.0
    %2397 = vmatpush2.msra.mxu0 0.0
    %2398 = vmatprep.subr.mxu0 0.0
    %2399 = vmatpush2.msra.mxu0 0.0
    %2400 = vmatprep.subr.mxu0 0.0
    %2401 = vmatpush2.msra.mxu0 0.0
    %2402 = vmatprep.subr.mxu0 0.0
    %2403 = vmatpush2.msra.mxu0 0.0
    %2404 = vmatprep.subr.mxu0 0.0
    %2405 = vmatpush2.msra.mxu0 0.0
    %2406 = vmatprep.subr.mxu0 0.0
    %2407 = vmatpush2.msra.mxu0 0.0
    %2408 = vmatprep.subr.mxu0 0.0
    %2409 = vmatpush2.msra.mxu0 0.0
    %2410 = vmatprep.subr.mxu0 0.0
    %2411 = vmatpush2.msra.mxu0 0.0
    %2412 = vmatprep.subr.mxu0 0.0
    %2413 = vmatpush2.msra.mxu0 0.0
    %2414 = vmatprep.subr.mxu0 0.0
    %2415 = vmatpush2.msra.mxu0 0.0
    %2416 = vmatprep.subr.mxu0 0.0
    %2417 = vmatpush2.msra.mxu0 0.0
    %2418 = vmatprep.subr.mxu0 0.0
    %2419 = vmatpush2.msra.mxu0 0.0
    %2420 = vmatprep.subr.mxu0 0.0
    %2421 = vmatpush2.msra.mxu0 0.0
    %2422 = vmatprep.mubr.f32.mxu0 0.0
    %2423 = vmatmul.mubr.f32.gmra.mxu0 %v2353
    %v2424 = vpop.f32.mrf.mxu0
    %v2425 = vadd.f32 %v545, %v2424
    %v2426 = vpop.f32.mrf.mxu0
    %2427 = vmatprep.mubr.f32.mxu0 0.0
    %2428 = vmatmul.mubr.f32.gmra.mxu0 %v2356
    %v2429 = vpop.f32.mrf.mxu0
    %v2430 = vadd.f32 %v545, %v2429
    %v2431 = vpop.f32.mrf.mxu0
    %2432 = vdwg.mxu0
    %v2433 = vmax.f32 %v2425, 0.0
    %v2434 = vmax.f32 %v2430, 0.0
    %v2436 = vsel %vm547, %v2433, 0
    %v2439 = vsel %vm547, %v2434, 0
    %2441 = vmatprep.subr.mxu0 0.0
    %2442 = vmatpush1.msra.mxu0 0.0
    %2443 = vmatprep.subr.mxu0 0.0
    %2444 = vmatpush1.msra.mxu0 0.0
    %2445 = vmatprep.subr.mxu0 0.0
    %2446 = vmatpush1.msra.mxu0 0.0
    %2447 = vmatprep.subr.mxu0 0.0
    %2448 = vmatpush1.msra.mxu0 0.0
    %2449 = vmatprep.subr.mxu0 0.0
    %2450 = vmatpush1.msra.mxu0 0.0
    %2451 = vmatprep.subr.mxu0 0.0
    %2452 = vmatpush1.msra.mxu0 0.0
    %2453 = vmatprep.subr.mxu0 0.0
    %2454 = vmatpush1.msra.mxu0 0.0
    %2455 = vmatprep.subr.mxu0 0.0
    %2456 = vmatpush1.msra.mxu0 0.0
    %2457 = vmatprep.subr.mxu0 0.0
    %2458 = vmatpush1.msra.mxu0 0.0
    %2459 = vmatprep.subr.mxu0 0.0
    %2460 = vmatpush1.msra.mxu0 0.0
    %2461 = vmatprep.subr.mxu0 0.0
    %2462 = vmatpush1.msra.mxu0 0.0
    %2463 = vmatprep.subr.mxu0 0.0
    %2464 = vmatpush1.msra.mxu0 0.0
    %2465 = vmatprep.subr.mxu0 0.0
    %2466 = vmatpush1.msra.mxu0 %v71
    %2467 = vmatprep.subr.mxu0 0.0
    %2468 = vmatpush1.msra.mxu0 %v70
    %2469 = vmatprep.subr.mxu0 0.0
    %2470 = vmatpush1.msra.mxu0 %v69
    %2471 = vmatprep.subr.mxu0 0.0
    %2472 = vmatpush1.msra.mxu0 %v68
    %2473 = vmatprep.subr.mxu0 0.0
    %2474 = vmatpush2.msra.mxu0 0.0
    %2475 = vmatprep.subr.mxu0 0.0
    %2476 = vmatpush2.msra.mxu0 0.0
    %2477 = vmatprep.subr.mxu0 0.0
    %2478 = vmatpush2.msra.mxu0 0.0
    %2479 = vmatprep.subr.mxu0 0.0
    %2480 = vmatpush2.msra.mxu0 0.0
    %2481 = vmatprep.subr.mxu0 0.0
    %2482 = vmatpush2.msra.mxu0 0.0
    %2483 = vmatprep.subr.mxu0 0.0
    %2484 = vmatpush2.msra.mxu0 0.0
    %2485 = vmatprep.subr.mxu0 0.0
    %2486 = vmatpush2.msra.mxu0 0.0
    %2487 = vmatprep.subr.mxu0 0.0
    %2488 = vmatpush2.msra.mxu0 0.0
    %2489 = vmatprep.subr.mxu0 0.0
    %2490 = vmatpush2.msra.mxu0 0.0
    %2491 = vmatprep.subr.mxu0 0.0
    %2492 = vmatpush2.msra.mxu0 0.0
    %2493 = vmatprep.subr.mxu0 0.0
    %2494 = vmatpush2.msra.mxu0 0.0
    %2495 = vmatprep.subr.mxu0 0.0
    %2496 = vmatpush2.msra.mxu0 0.0
    %2497 = vmatprep.subr.mxu0 0.0
    %2498 = vmatpush2.msra.mxu0 0.0
    %2499 = vmatprep.subr.mxu0 0.0
    %2500 = vmatpush2.msra.mxu0 0.0
    %2501 = vmatprep.subr.mxu0 0.0
    %2502 = vmatpush2.msra.mxu0 0.0
    %2503 = vmatprep.subr.mxu0 0.0
    %2504 = vmatpush2.msra.mxu0 0.0
    %2505 = vmatprep.mubr.f32.mxu0 0.0
    %2506 = vmatmul.mubr.f32.gmra.mxu0 %v2436
    %v2507 = vpop.f32.mrf.mxu0
    %v2508 = vadd.f32 %v635, %v2507
    %v2509 = vpop.f32.mrf.mxu0
    %2510 = vmatprep.mubr.f32.mxu0 0.0
    %2511 = vmatmul.mubr.f32.gmra.mxu0 %v2439
    %v2512 = vpop.f32.mrf.mxu0
    %v2513 = vadd.f32 %v635, %v2512
    %v2514 = vpop.f32.mrf.mxu0
    %2515 = vdwg.mxu0
    %v2516 = vtanh.pop %v2508
    %v2517 = vtanh.pop %v2513
    %v2518 = vmul.f32 %v2516, %v379
    %v2519 = vmul.f32 %v2517, %v385
    %2522 = vrot.lane.b32.xlu0 %v2518, 96
    %v2523 = vpop.permute.xlu0 %2522
    %2524 = vrot.lane.b32.xlu0 %v2519, 96
    %v2525 = vpop.permute.xlu0 %2524
    %v2528 = vadd.f32 %v2518, %v2523
    %v2529 = vadd.f32 %v2519, %v2525
    %2530 = vrot.lane.b32.xlu0 %v2518, 64
    %v2531 = vpop.permute.xlu0 %2530
    %2532 = vrot.lane.b32.xlu0 %v2519, 64
    %v2533 = vpop.permute.xlu0 %2532
    %v2536 = vadd.f32 %v2528, %v2531
    %v2537 = vadd.f32 %v2529, %v2533
    %2538 = vrot.lane.b32.xlu0 %v2518, 32
    %v2539 = vpop.permute.xlu0 %2538
    %2540 = vrot.lane.b32.xlu0 %v2519, 32
    %v2541 = vpop.permute.xlu0 %2540
    %v2544 = vadd.f32 %v2536, %v2539
    %v2545 = vadd.f32 %v2537, %v2541
    %v2546 = vmul.f32 %v2544, 0.5
    %v2547 = vmul.f32 %v2545, 0.5
    %v2548 = vadd.f32 %v2152, %v2546
    %v2549 = vadd.f32 %v2153, %v2547
    %v2551 = vsel %vm547, %v2548, 0
    %v2554 = vsel %vm547, %v2549, 0
    %2556 = vmatprep.subr.mxu0 0.0
    %2557 = vmatpush1.msra.mxu0 0.0
    %2558 = vmatprep.subr.mxu0 0.0
    %2559 = vmatpush1.msra.mxu0 0.0
    %2560 = vmatprep.subr.mxu0 0.0
    %2561 = vmatpush1.msra.mxu0 0.0
    %2562 = vmatprep.subr.mxu0 0.0
    %2563 = vmatpush1.msra.mxu0 0.0
    %2564 = vmatprep.subr.mxu0 0.0
    %2565 = vmatpush1.msra.mxu0 0.0
    %2566 = vmatprep.subr.mxu0 0.0
    %2567 = vmatpush1.msra.mxu0 0.0
    %2568 = vmatprep.subr.mxu0 0.0
    %2569 = vmatpush1.msra.mxu0 0.0
    %2570 = vmatprep.subr.mxu0 0.0
    %2571 = vmatpush1.msra.mxu0 0.0
    %2572 = vmatprep.subr.mxu0 0.0
    %2573 = vmatpush1.msra.mxu0 0.0
    %2574 = vmatprep.subr.mxu0 0.0
    %2575 = vmatpush1.msra.mxu0 0.0
    %2576 = vmatprep.subr.mxu0 0.0
    %2577 = vmatpush1.msra.mxu0 0.0
    %2578 = vmatprep.subr.mxu0 0.0
    %2579 = vmatpush1.msra.mxu0 0.0
    %2580 = vmatprep.subr.mxu0 0.0
    %2581 = vmatpush1.msra.mxu0 %v66
    %2582 = vmatprep.subr.mxu0 0.0
    %2583 = vmatpush1.msra.mxu0 %v65
    %2584 = vmatprep.subr.mxu0 0.0
    %2585 = vmatpush1.msra.mxu0 %v64
    %2586 = vmatprep.subr.mxu0 0.0
    %2587 = vmatpush1.msra.mxu0 %v63
    %2588 = vmatprep.subr.mxu0 0.0
    %2589 = vmatpush2.msra.mxu0 0.0
    %2590 = vmatprep.subr.mxu0 0.0
    %2591 = vmatpush2.msra.mxu0 0.0
    %2592 = vmatprep.subr.mxu0 0.0
    %2593 = vmatpush2.msra.mxu0 0.0
    %2594 = vmatprep.subr.mxu0 0.0
    %2595 = vmatpush2.msra.mxu0 0.0
    %2596 = vmatprep.subr.mxu0 0.0
    %2597 = vmatpush2.msra.mxu0 0.0
    %2598 = vmatprep.subr.mxu0 0.0
    %2599 = vmatpush2.msra.mxu0 0.0
    %2600 = vmatprep.subr.mxu0 0.0
    %2601 = vmatpush2.msra.mxu0 0.0
    %2602 = vmatprep.subr.mxu0 0.0
    %2603 = vmatpush2.msra.mxu0 0.0
    %2604 = vmatprep.subr.mxu0 0.0
    %2605 = vmatpush2.msra.mxu0 0.0
    %2606 = vmatprep.subr.mxu0 0.0
    %2607 = vmatpush2.msra.mxu0 0.0
    %2608 = vmatprep.subr.mxu0 0.0
    %2609 = vmatpush2.msra.mxu0 0.0
    %2610 = vmatprep.subr.mxu0 0.0
    %2611 = vmatpush2.msra.mxu0 0.0
    %2612 = vmatprep.subr.mxu0 0.0
    %2613 = vmatpush2.msra.mxu0 0.0
    %2614 = vmatprep.subr.mxu0 0.0
    %2615 = vmatpush2.msra.mxu0 0.0
    %2616 = vmatprep.subr.mxu0 0.0
    %2617 = vmatpush2.msra.mxu0 0.0
    %2618 = vmatprep.subr.mxu0 0.0
    %2619 = vmatpush2.msra.mxu0 0.0
    %2620 = vmatprep.mubr.f32.mxu0 0.0
    %2621 = vmatmul.mubr.f32.gmra.mxu0 %v2551
    %v2622 = vpop.f32.mrf.mxu0
    %v2623 = vadd.f32 %v545, %v2622
    %v2624 = vpop.f32.mrf.mxu0
    %2625 = vmatprep.mubr.f32.mxu0 0.0
    %2626 = vmatmul.mubr.f32.gmra.mxu0 %v2554
    %v2627 = vpop.f32.mrf.mxu0
    %v2628 = vadd.f32 %v545, %v2627
    %v2629 = vpop.f32.mrf.mxu0
    %2630 = vdwg.mxu0
    %v2631 = vmax.f32 %v2623, 0.0
    %v2632 = vmax.f32 %v2628, 0.0
    %v2634 = vsel %vm547, %v2631, 0
    %v2637 = vsel %vm547, %v2632, 0
    %2639 = vmatprep.subr.mxu0 0.0
    %2640 = vmatpush1.msra.mxu0 0.0
    %2641 = vmatprep.subr.mxu0 0.0
    %2642 = vmatpush1.msra.mxu0 0.0
    %2643 = vmatprep.subr.mxu0 0.0
    %2644 = vmatpush1.msra.mxu0 0.0
    %2645 = vmatprep.subr.mxu0 0.0
    %2646 = vmatpush1.msra.mxu0 0.0
    %2647 = vmatprep.subr.mxu0 0.0
    %2648 = vmatpush1.msra.mxu0 0.0
    %2649 = vmatprep.subr.mxu0 0.0
    %2650 = vmatpush1.msra.mxu0 0.0
    %2651 = vmatprep.subr.mxu0 0.0
    %2652 = vmatpush1.msra.mxu0 0.0
    %2653 = vmatprep.subr.mxu0 0.0
    %2654 = vmatpush1.msra.mxu0 0.0
    %2655 = vmatprep.subr.mxu0 0.0
    %2656 = vmatpush1.msra.mxu0 0.0
    %2657 = vmatprep.subr.mxu0 0.0
    %2658 = vmatpush1.msra.mxu0 0.0
    %2659 = vmatprep.subr.mxu0 0.0
    %2660 = vmatpush1.msra.mxu0 0.0
    %2661 = vmatprep.subr.mxu0 0.0
    %2662 = vmatpush1.msra.mxu0 0.0
    %2663 = vmatprep.subr.mxu0 0.0
    %2664 = vmatpush1.msra.mxu0 %v71
    %2665 = vmatprep.subr.mxu0 0.0
    %2666 = vmatpush1.msra.mxu0 %v70
    %2667 = vmatprep.subr.mxu0 0.0
    %2668 = vmatpush1.msra.mxu0 %v69
    %2669 = vmatprep.subr.mxu0 0.0
    %2670 = vmatpush1.msra.mxu0 %v68
    %2671 = vmatprep.subr.mxu0 0.0
    %2672 = vmatpush2.msra.mxu0 0.0
    %2673 = vmatprep.subr.mxu0 0.0
    %2674 = vmatpush2.msra.mxu0 0.0
    %2675 = vmatprep.subr.mxu0 0.0
    %2676 = vmatpush2.msra.mxu0 0.0
    %2677 = vmatprep.subr.mxu0 0.0
    %2678 = vmatpush2.msra.mxu0 0.0
    %2679 = vmatprep.subr.mxu0 0.0
    %2680 = vmatpush2.msra.mxu0 0.0
    %2681 = vmatprep.subr.mxu0 0.0
    %2682 = vmatpush2.msra.mxu0 0.0
    %2683 = vmatprep.subr.mxu0 0.0
    %2684 = vmatpush2.msra.mxu0 0.0
    %2685 = vmatprep.subr.mxu0 0.0
    %2686 = vmatpush2.msra.mxu0 0.0
    %2687 = vmatprep.subr.mxu0 0.0
    %2688 = vmatpush2.msra.mxu0 0.0
    %2689 = vmatprep.subr.mxu0 0.0
    %2690 = vmatpush2.msra.mxu0 0.0
    %2691 = vmatprep.subr.mxu0 0.0
    %2692 = vmatpush2.msra.mxu0 0.0
    %2693 = vmatprep.subr.mxu0 0.0
    %2694 = vmatpush2.msra.mxu0 0.0
    %2695 = vmatprep.subr.mxu0 0.0
    %2696 = vmatpush2.msra.mxu0 0.0
    %2697 = vmatprep.subr.mxu0 0.0
    %2698 = vmatpush2.msra.mxu0 0.0
    %2699 = vmatprep.subr.mxu0 0.0
    %2700 = vmatpush2.msra.mxu0 0.0
    %2701 = vmatprep.subr.mxu0 0.0
    %2702 = vmatpush2.msra.mxu0 0.0
    %2703 = vmatprep.mubr.f32.mxu0 0.0
    %2704 = vmatmul.mubr.f32.gmra.mxu0 %v2634
    %v2705 = vpop.f32.mrf.mxu0
    %v2706 = vadd.f32 %v635, %v2705
    %v2707 = vpop.f32.mrf.mxu0
    %2708 = vmatprep.mubr.f32.mxu0 0.0
    %2709 = vmatmul.mubr.f32.gmra.mxu0 %v2637
    %v2710 = vpop.f32.mrf.mxu0
    %v2711 = vadd.f32 %v635, %v2710
    %v2712 = vpop.f32.mrf.mxu0
    %2713 = vdwg.mxu0
    %v2714 = vtanh.pop %v2706
    %v2715 = vtanh.pop %v2711
    %v2716 = vmul.f32 %v2714, %v379
    %v2717 = vmul.f32 %v2715, %v385
    %2720 = vrot.lane.b32.xlu0 %v2716, 96
    %v2721 = vpop.permute.xlu0 %2720
    %2722 = vrot.lane.b32.xlu0 %v2717, 96
    %v2723 = vpop.permute.xlu0 %2722
    %v2726 = vadd.f32 %v2716, %v2721
    %v2727 = vadd.f32 %v2717, %v2723
    %2728 = vrot.lane.b32.xlu0 %v2716, 64
    %v2729 = vpop.permute.xlu0 %2728
    %2730 = vrot.lane.b32.xlu0 %v2717, 64
    %v2731 = vpop.permute.xlu0 %2730
    %v2734 = vadd.f32 %v2726, %v2729
    %v2735 = vadd.f32 %v2727, %v2731
    %2736 = vrot.lane.b32.xlu0 %v2716, 32
    %v2737 = vpop.permute.xlu0 %2736
    %2738 = vrot.lane.b32.xlu0 %v2717, 32
    %v2739 = vpop.permute.xlu0 %2738
    %v2742 = vadd.f32 %v2734, %v2737
    %v2743 = vadd.f32 %v2735, %v2739
    %v2744 = vadd.f32 %v2152, %v2742
    %v2745 = vadd.f32 %v2153, %v2743
    %v2747 = vsel %vm547, %v2744, 0
    %v2750 = vsel %vm547, %v2745, 0
    %2752 = vmatprep.subr.mxu0 0.0
    %2753 = vmatpush1.msra.mxu0 0.0
    %2754 = vmatprep.subr.mxu0 0.0
    %2755 = vmatpush1.msra.mxu0 0.0
    %2756 = vmatprep.subr.mxu0 0.0
    %2757 = vmatpush1.msra.mxu0 0.0
    %2758 = vmatprep.subr.mxu0 0.0
    %2759 = vmatpush1.msra.mxu0 0.0
    %2760 = vmatprep.subr.mxu0 0.0
    %2761 = vmatpush1.msra.mxu0 0.0
    %2762 = vmatprep.subr.mxu0 0.0
    %2763 = vmatpush1.msra.mxu0 0.0
    %2764 = vmatprep.subr.mxu0 0.0
    %2765 = vmatpush1.msra.mxu0 0.0
    %2766 = vmatprep.subr.mxu0 0.0
    %2767 = vmatpush1.msra.mxu0 0.0
    %2768 = vmatprep.subr.mxu0 0.0
    %2769 = vmatpush1.msra.mxu0 0.0
    %2770 = vmatprep.subr.mxu0 0.0
    %2771 = vmatpush1.msra.mxu0 0.0
    %2772 = vmatprep.subr.mxu0 0.0
    %2773 = vmatpush1.msra.mxu0 0.0
    %2774 = vmatprep.subr.mxu0 0.0
    %2775 = vmatpush1.msra.mxu0 0.0
    %2776 = vmatprep.subr.mxu0 0.0
    %2777 = vmatpush1.msra.mxu0 %v66
    %2778 = vmatprep.subr.mxu0 0.0
    %2779 = vmatpush1.msra.mxu0 %v65
    %2780 = vmatprep.subr.mxu0 0.0
    %2781 = vmatpush1.msra.mxu0 %v64
    %2782 = vmatprep.subr.mxu0 0.0
    %2783 = vmatpush1.msra.mxu0 %v63
    %2784 = vmatprep.subr.mxu0 0.0
    %2785 = vmatpush2.msra.mxu0 0.0
    %2786 = vmatprep.subr.mxu0 0.0
    %2787 = vmatpush2.msra.mxu0 0.0
    %2788 = vmatprep.subr.mxu0 0.0
    %2789 = vmatpush2.msra.mxu0 0.0
    %2790 = vmatprep.subr.mxu0 0.0
    %2791 = vmatpush2.msra.mxu0 0.0
    %2792 = vmatprep.subr.mxu0 0.0
    %2793 = vmatpush2.msra.mxu0 0.0
    %2794 = vmatprep.subr.mxu0 0.0
    %2795 = vmatpush2.msra.mxu0 0.0
    %2796 = vmatprep.subr.mxu0 0.0
    %2797 = vmatpush2.msra.mxu0 0.0
    %2798 = vmatprep.subr.mxu0 0.0
    %2799 = vmatpush2.msra.mxu0 0.0
    %2800 = vmatprep.subr.mxu0 0.0
    %2801 = vmatpush2.msra.mxu0 0.0
    %2802 = vmatprep.subr.mxu0 0.0
    %2803 = vmatpush2.msra.mxu0 0.0
    %2804 = vmatprep.subr.mxu0 0.0
    %2805 = vmatpush2.msra.mxu0 0.0
    %2806 = vmatprep.subr.mxu0 0.0
    %2807 = vmatpush2.msra.mxu0 0.0
    %2808 = vmatprep.subr.mxu0 0.0
    %2809 = vmatpush2.msra.mxu0 0.0
    %2810 = vmatprep.subr.mxu0 0.0
    %2811 = vmatpush2.msra.mxu0 0.0
    %2812 = vmatprep.subr.mxu0 0.0
    %2813 = vmatpush2.msra.mxu0 0.0
    %2814 = vmatprep.subr.mxu0 0.0
    %2815 = vmatpush2.msra.mxu0 0.0
    %2816 = vmatprep.mubr.f32.mxu0 0.0
    %2817 = vmatmul.mubr.f32.gmra.mxu0 %v2747
    %v2818 = vpop.f32.mrf.mxu0
    %v2819 = vadd.f32 %v545, %v2818
    %v2820 = vpop.f32.mrf.mxu0
    %2821 = vmatprep.mubr.f32.mxu0 0.0
    %2822 = vmatmul.mubr.f32.gmra.mxu0 %v2750
    %v2823 = vpop.f32.mrf.mxu0
    %v2824 = vadd.f32 %v545, %v2823
    %v2825 = vpop.f32.mrf.mxu0
    %2826 = vdwg.mxu0
    %v2827 = vmax.f32 %v2819, 0.0
    %v2828 = vmax.f32 %v2824, 0.0
    %v2830 = vsel %vm547, %v2827, 0
    %v2833 = vsel %vm547, %v2828, 0
    %2835 = vmatprep.subr.mxu0 0.0
    %2836 = vmatpush1.msra.mxu0 0.0
    %2837 = vmatprep.subr.mxu0 0.0
    %2838 = vmatpush1.msra.mxu0 0.0
    %2839 = vmatprep.subr.mxu0 0.0
    %2840 = vmatpush1.msra.mxu0 0.0
    %2841 = vmatprep.subr.mxu0 0.0
    %2842 = vmatpush1.msra.mxu0 0.0
    %2843 = vmatprep.subr.mxu0 0.0
    %2844 = vmatpush1.msra.mxu0 0.0
    %2845 = vmatprep.subr.mxu0 0.0
    %2846 = vmatpush1.msra.mxu0 0.0
    %2847 = vmatprep.subr.mxu0 0.0
    %2848 = vmatpush1.msra.mxu0 0.0
    %2849 = vmatprep.subr.mxu0 0.0
    %2850 = vmatpush1.msra.mxu0 0.0
    %2851 = vmatprep.subr.mxu0 0.0
    %2852 = vmatpush1.msra.mxu0 0.0
    %2853 = vmatprep.subr.mxu0 0.0
    %2854 = vmatpush1.msra.mxu0 0.0
    %2855 = vmatprep.subr.mxu0 0.0
    %2856 = vmatpush1.msra.mxu0 0.0
    %2857 = vmatprep.subr.mxu0 0.0
    %2858 = vmatpush1.msra.mxu0 0.0
    %2859 = vmatprep.subr.mxu0 0.0
    %2860 = vmatpush1.msra.mxu0 %v71
    %2861 = vmatprep.subr.mxu0 0.0
    %2862 = vmatpush1.msra.mxu0 %v70
    %2863 = vmatprep.subr.mxu0 0.0
    %2864 = vmatpush1.msra.mxu0 %v69
    %2865 = vmatprep.subr.mxu0 0.0
    %2866 = vmatpush1.msra.mxu0 %v68
    %2867 = vmatprep.subr.mxu0 0.0
    %2868 = vmatpush2.msra.mxu0 0.0
    %2869 = vmatprep.subr.mxu0 0.0
    %2870 = vmatpush2.msra.mxu0 0.0
    %2871 = vmatprep.subr.mxu0 0.0
    %2872 = vmatpush2.msra.mxu0 0.0
    %2873 = vmatprep.subr.mxu0 0.0
    %2874 = vmatpush2.msra.mxu0 0.0
    %2875 = vmatprep.subr.mxu0 0.0
    %2876 = vmatpush2.msra.mxu0 0.0
    %2877 = vmatprep.subr.mxu0 0.0
    %2878 = vmatpush2.msra.mxu0 0.0
    %2879 = vmatprep.subr.mxu0 0.0
    %2880 = vmatpush2.msra.mxu0 0.0
    %2881 = vmatprep.subr.mxu0 0.0
    %2882 = vmatpush2.msra.mxu0 0.0
    %2883 = vmatprep.subr.mxu0 0.0
    %2884 = vmatpush2.msra.mxu0 0.0
    %2885 = vmatprep.subr.mxu0 0.0
    %2886 = vmatpush2.msra.mxu0 0.0
    %2887 = vmatprep.subr.mxu0 0.0
    %2888 = vmatpush2.msra.mxu0 0.0
    %2889 = vmatprep.subr.mxu0 0.0
    %2890 = vmatpush2.msra.mxu0 0.0
    %2891 = vmatprep.subr.mxu0 0.0
    %2892 = vmatpush2.msra.mxu0 0.0
    %2893 = vmatprep.subr.mxu0 0.0
    %2894 = vmatpush2.msra.mxu0 0.0
    %2895 = vmatprep.subr.mxu0 0.0
    %2896 = vmatpush2.msra.mxu0 0.0
    %2897 = vmatprep.subr.mxu0 0.0
    %2898 = vmatpush2.msra.mxu0 0.0
    %2899 = vmatprep.mubr.f32.mxu0 0.0
    %2900 = vmatmul.mubr.f32.gmra.mxu0 %v2830
    %v2901 = vpop.f32.mrf.mxu0
    %v2902 = vadd.f32 %v635, %v2901
    %v2903 = vpop.f32.mrf.mxu0
    %2904 = vmatprep.mubr.f32.mxu0 0.0
    %2905 = vmatmul.mubr.f32.gmra.mxu0 %v2833
    %v2906 = vpop.f32.mrf.mxu0
    %v2907 = vadd.f32 %v635, %v2906
    %v2908 = vpop.f32.mrf.mxu0
    %2909 = vdwg.mxu0
    %v2910 = vtanh.pop %v2902
    %v2911 = vtanh.pop %v2907
    %v2912 = vmul.f32 %v2910, %v379
    %v2913 = vmul.f32 %v2911, %v385
    %2916 = vrot.lane.b32.xlu0 %v2912, 96
    %v2917 = vpop.permute.xlu0 %2916
    %2918 = vrot.lane.b32.xlu0 %v2913, 96
    %v2919 = vpop.permute.xlu0 %2918
    %v2922 = vadd.f32 %v2912, %v2917
    %v2923 = vadd.f32 %v2913, %v2919
    %2924 = vrot.lane.b32.xlu0 %v2912, 64
    %v2925 = vpop.permute.xlu0 %2924
    %2926 = vrot.lane.b32.xlu0 %v2913, 64
    %v2927 = vpop.permute.xlu0 %2926
    %v2930 = vadd.f32 %v2922, %v2925
    %v2931 = vadd.f32 %v2923, %v2927
    %2932 = vrot.lane.b32.xlu0 %v2912, 32
    %v2933 = vpop.permute.xlu0 %2932
    %2934 = vrot.lane.b32.xlu0 %v2913, 32
    %v2935 = vpop.permute.xlu0 %2934
    %v2938 = vadd.f32 %v2930, %v2933
    %v2939 = vadd.f32 %v2931, %v2935
    %v2940 = vmul.f32 %v2544, 2.0
    %v2941 = vmul.f32 %v2545, 2.0
    %v2942 = vadd.f32 %v2346, %v2940
    %v2943 = vadd.f32 %v2347, %v2941
    %v2944 = vmul.f32 %v2742, 2.0
    %v2945 = vmul.f32 %v2743, 2.0
    %v2946 = vadd.f32 %v2942, %v2944
    %v2947 = vadd.f32 %v2943, %v2945
    %v2948 = vadd.f32 %v2946, %v2938
    %v2949 = vadd.f32 %v2947, %v2939
    %v2950 = vmul.f32 %v2948, 0.16666667
    %v2951 = vmul.f32 %v2949, 0.16666667
    %v2952 = vadd.f32 %v2152, %v2950
    %v2953 = vadd.f32 %v2153, %v2951
    %v2955 = vsel %vm547, %v2952, 0
    %v2958 = vsel %vm547, %v2953, 0
    %2960 = vmatprep.subr.mxu0 0.0
    %2961 = vmatpush1.msra.mxu0 0.0
    %2962 = vmatprep.subr.mxu0 0.0
    %2963 = vmatpush1.msra.mxu0 0.0
    %2964 = vmatprep.subr.mxu0 0.0
    %2965 = vmatpush1.msra.mxu0 0.0
    %2966 = vmatprep.subr.mxu0 0.0
    %2967 = vmatpush1.msra.mxu0 0.0
    %2968 = vmatprep.subr.mxu0 0.0
    %2969 = vmatpush1.msra.mxu0 0.0
    %2970 = vmatprep.subr.mxu0 0.0
    %2971 = vmatpush1.msra.mxu0 0.0
    %2972 = vmatprep.subr.mxu0 0.0
    %2973 = vmatpush1.msra.mxu0 0.0
    %2974 = vmatprep.subr.mxu0 0.0
    %2975 = vmatpush1.msra.mxu0 0.0
    %2976 = vmatprep.subr.mxu0 0.0
    %2977 = vmatpush1.msra.mxu0 0.0
    %2978 = vmatprep.subr.mxu0 0.0
    %2979 = vmatpush1.msra.mxu0 0.0
    %2980 = vmatprep.subr.mxu0 0.0
    %2981 = vmatpush1.msra.mxu0 0.0
    %2982 = vmatprep.subr.mxu0 0.0
    %2983 = vmatpush1.msra.mxu0 0.0
    %2984 = vmatprep.subr.mxu0 0.0
    %2985 = vmatpush1.msra.mxu0 %v66
    %2986 = vmatprep.subr.mxu0 0.0
    %2987 = vmatpush1.msra.mxu0 %v65
    %2988 = vmatprep.subr.mxu0 0.0
    %2989 = vmatpush1.msra.mxu0 %v64
    %2990 = vmatprep.subr.mxu0 0.0
    %2991 = vmatpush1.msra.mxu0 %v63
    %2992 = vmatprep.subr.mxu0 0.0
    %2993 = vmatpush2.msra.mxu0 0.0
    %2994 = vmatprep.subr.mxu0 0.0
    %2995 = vmatpush2.msra.mxu0 0.0
    %2996 = vmatprep.subr.mxu0 0.0
    %2997 = vmatpush2.msra.mxu0 0.0
    %2998 = vmatprep.subr.mxu0 0.0
    %2999 = vmatpush2.msra.mxu0 0.0
    %3000 = vmatprep.subr.mxu0 0.0
    %3001 = vmatpush2.msra.mxu0 0.0
    %3002 = vmatprep.subr.mxu0 0.0
    %3003 = vmatpush2.msra.mxu0 0.0
    %3004 = vmatprep.subr.mxu0 0.0
    %3005 = vmatpush2.msra.mxu0 0.0
    %3006 = vmatprep.subr.mxu0 0.0
    %3007 = vmatpush2.msra.mxu0 0.0
    %3008 = vmatprep.subr.mxu0 0.0
    %3009 = vmatpush2.msra.mxu0 0.0
    %3010 = vmatprep.subr.mxu0 0.0
    %3011 = vmatpush2.msra.mxu0 0.0
    %3012 = vmatprep.subr.mxu0 0.0
    %3013 = vmatpush2.msra.mxu0 0.0
    %3014 = vmatprep.subr.mxu0 0.0
    %3015 = vmatpush2.msra.mxu0 0.0
    %3016 = vmatprep.subr.mxu0 0.0
    %3017 = vmatpush2.msra.mxu0 0.0
    %3018 = vmatprep.subr.mxu0 0.0
    %3019 = vmatpush2.msra.mxu0 0.0
    %3020 = vmatprep.subr.mxu0 0.0
    %3021 = vmatpush2.msra.mxu0 0.0
    %3022 = vmatprep.subr.mxu0 0.0
    %3023 = vmatpush2.msra.mxu0 0.0
    %3024 = vmatprep.mubr.f32.mxu0 0.0
    %3025 = vmatmul.mubr.f32.gmra.mxu0 %v2955
    %v3026 = vpop.f32.mrf.mxu0
    %v3027 = vadd.f32 %v545, %v3026
    %v3028 = vpop.f32.mrf.mxu0
    %3029 = vmatprep.mubr.f32.mxu0 0.0
    %3030 = vmatmul.mubr.f32.gmra.mxu0 %v2958
    %v3031 = vpop.f32.mrf.mxu0
    %v3032 = vadd.f32 %v545, %v3031
    %v3033 = vpop.f32.mrf.mxu0
    %3034 = vdwg.mxu0
    %v3035 = vmax.f32 %v3027, 0.0
    %v3036 = vmax.f32 %v3032, 0.0
    %v3038 = vsel %vm547, %v3035, 0
    %v3041 = vsel %vm547, %v3036, 0
    %3043 = vmatprep.subr.mxu0 0.0
    %3044 = vmatpush1.msra.mxu0 0.0
    %3045 = vmatprep.subr.mxu0 0.0
    %3046 = vmatpush1.msra.mxu0 0.0
    %3047 = vmatprep.subr.mxu0 0.0
    %3048 = vmatpush1.msra.mxu0 0.0
    %3049 = vmatprep.subr.mxu0 0.0
    %3050 = vmatpush1.msra.mxu0 0.0
    %3051 = vmatprep.subr.mxu0 0.0
    %3052 = vmatpush1.msra.mxu0 0.0
    %3053 = vmatprep.subr.mxu0 0.0
    %3054 = vmatpush1.msra.mxu0 0.0
    %3055 = vmatprep.subr.mxu0 0.0
    %3056 = vmatpush1.msra.mxu0 0.0
    %3057 = vmatprep.subr.mxu0 0.0
    %3058 = vmatpush1.msra.mxu0 0.0
    %3059 = vmatprep.subr.mxu0 0.0
    %3060 = vmatpush1.msra.mxu0 0.0
    %3061 = vmatprep.subr.mxu0 0.0
    %3062 = vmatpush1.msra.mxu0 0.0
    %3063 = vmatprep.subr.mxu0 0.0
    %3064 = vmatpush1.msra.mxu0 0.0
    %3065 = vmatprep.subr.mxu0 0.0
    %3066 = vmatpush1.msra.mxu0 0.0
    %3067 = vmatprep.subr.mxu0 0.0
    %3068 = vmatpush1.msra.mxu0 %v71
    %3069 = vmatprep.subr.mxu0 0.0
    %3070 = vmatpush1.msra.mxu0 %v70
    %3071 = vmatprep.subr.mxu0 0.0
    %3072 = vmatpush1.msra.mxu0 %v69
    %3073 = vmatprep.subr.mxu0 0.0
    %3074 = vmatpush1.msra.mxu0 %v68
    %3075 = vmatprep.subr.mxu0 0.0
    %3076 = vmatpush2.msra.mxu0 0.0
    %3077 = vmatprep.subr.mxu0 0.0
    %3078 = vmatpush2.msra.mxu0 0.0
    %3079 = vmatprep.subr.mxu0 0.0
    %3080 = vmatpush2.msra.mxu0 0.0
    %3081 = vmatprep.subr.mxu0 0.0
    %3082 = vmatpush2.msra.mxu0 0.0
    %3083 = vmatprep.subr.mxu0 0.0
    %3084 = vmatpush2.msra.mxu0 0.0
    %3085 = vmatprep.subr.mxu0 0.0
    %3086 = vmatpush2.msra.mxu0 0.0
    %3087 = vmatprep.subr.mxu0 0.0
    %3088 = vmatpush2.msra.mxu0 0.0
    %3089 = vmatprep.subr.mxu0 0.0
    %3090 = vmatpush2.msra.mxu0 0.0
    %3091 = vmatprep.subr.mxu0 0.0
    %3092 = vmatpush2.msra.mxu0 0.0
    %3093 = vmatprep.subr.mxu0 0.0
    %3094 = vmatpush2.msra.mxu0 0.0
    %3095 = vmatprep.subr.mxu0 0.0
    %3096 = vmatpush2.msra.mxu0 0.0
    %3097 = vmatprep.subr.mxu0 0.0
    %3098 = vmatpush2.msra.mxu0 0.0
    %3099 = vmatprep.subr.mxu0 0.0
    %3100 = vmatpush2.msra.mxu0 0.0
    %3101 = vmatprep.subr.mxu0 0.0
    %3102 = vmatpush2.msra.mxu0 0.0
    %3103 = vmatprep.subr.mxu0 0.0
    %3104 = vmatpush2.msra.mxu0 0.0
    %3105 = vmatprep.subr.mxu0 0.0
    %3106 = vmatpush2.msra.mxu0 0.0
    %3107 = vmatprep.mubr.f32.mxu0 0.0
    %3108 = vmatmul.mubr.f32.gmra.mxu0 %v3038
    %v3109 = vpop.f32.mrf.mxu0
    %v3110 = vadd.f32 %v635, %v3109
    %v3111 = vpop.f32.mrf.mxu0
    %3112 = vmatprep.mubr.f32.mxu0 0.0
    %3113 = vmatmul.mubr.f32.gmra.mxu0 %v3041
    %v3114 = vpop.f32.mrf.mxu0
    %v3115 = vadd.f32 %v635, %v3114
    %v3116 = vpop.f32.mrf.mxu0
    %3117 = vdwg.mxu0
    %v3118 = vtanh.pop %v3110
    %v3119 = vtanh.pop %v3115
    %v3120 = vmul.f32 %v3118, %v381
    %v3121 = vmul.f32 %v3119, %v387
    %3124 = vrot.lane.b32.xlu0 %v3120, 96
    %v3125 = vpop.permute.xlu0 %3124
    %3126 = vrot.lane.b32.xlu0 %v3121, 96
    %v3127 = vpop.permute.xlu0 %3126
    %v3130 = vadd.f32 %v3120, %v3125
    %v3131 = vadd.f32 %v3121, %v3127
    %3132 = vrot.lane.b32.xlu0 %v3120, 64
    %v3133 = vpop.permute.xlu0 %3132
    %3134 = vrot.lane.b32.xlu0 %v3121, 64
    %v3135 = vpop.permute.xlu0 %3134
    %v3138 = vadd.f32 %v3130, %v3133
    %v3139 = vadd.f32 %v3131, %v3135
    %3140 = vrot.lane.b32.xlu0 %v3120, 32
    %v3141 = vpop.permute.xlu0 %3140
    %3142 = vrot.lane.b32.xlu0 %v3121, 32
    %v3143 = vpop.permute.xlu0 %3142
    %v3146 = vadd.f32 %v3138, %v3141
    %v3147 = vadd.f32 %v3139, %v3143
    %v3148 = vmul.f32 %v3146, 0.5
    %v3149 = vmul.f32 %v3147, 0.5
    %v3150 = vadd.f32 %v2952, %v3148
    %v3151 = vadd.f32 %v2953, %v3149
    %v3153 = vsel %vm547, %v3150, 0
    %v3156 = vsel %vm547, %v3151, 0
    %3158 = vmatprep.subr.mxu0 0.0
    %3159 = vmatpush1.msra.mxu0 0.0
    %3160 = vmatprep.subr.mxu0 0.0
    %3161 = vmatpush1.msra.mxu0 0.0
    %3162 = vmatprep.subr.mxu0 0.0
    %3163 = vmatpush1.msra.mxu0 0.0
    %3164 = vmatprep.subr.mxu0 0.0
    %3165 = vmatpush1.msra.mxu0 0.0
    %3166 = vmatprep.subr.mxu0 0.0
    %3167 = vmatpush1.msra.mxu0 0.0
    %3168 = vmatprep.subr.mxu0 0.0
    %3169 = vmatpush1.msra.mxu0 0.0
    %3170 = vmatprep.subr.mxu0 0.0
    %3171 = vmatpush1.msra.mxu0 0.0
    %3172 = vmatprep.subr.mxu0 0.0
    %3173 = vmatpush1.msra.mxu0 0.0
    %3174 = vmatprep.subr.mxu0 0.0
    %3175 = vmatpush1.msra.mxu0 0.0
    %3176 = vmatprep.subr.mxu0 0.0
    %3177 = vmatpush1.msra.mxu0 0.0
    %3178 = vmatprep.subr.mxu0 0.0
    %3179 = vmatpush1.msra.mxu0 0.0
    %3180 = vmatprep.subr.mxu0 0.0
    %3181 = vmatpush1.msra.mxu0 0.0
    %3182 = vmatprep.subr.mxu0 0.0
    %3183 = vmatpush1.msra.mxu0 %v66
    %3184 = vmatprep.subr.mxu0 0.0
    %3185 = vmatpush1.msra.mxu0 %v65
    %3186 = vmatprep.subr.mxu0 0.0
    %3187 = vmatpush1.msra.mxu0 %v64
    %3188 = vmatprep.subr.mxu0 0.0
    %3189 = vmatpush1.msra.mxu0 %v63
    %3190 = vmatprep.subr.mxu0 0.0
    %3191 = vmatpush2.msra.mxu0 0.0
    %3192 = vmatprep.subr.mxu0 0.0
    %3193 = vmatpush2.msra.mxu0 0.0
    %3194 = vmatprep.subr.mxu0 0.0
    %3195 = vmatpush2.msra.mxu0 0.0
    %3196 = vmatprep.subr.mxu0 0.0
    %3197 = vmatpush2.msra.mxu0 0.0
    %3198 = vmatprep.subr.mxu0 0.0
    %3199 = vmatpush2.msra.mxu0 0.0
    %3200 = vmatprep.subr.mxu0 0.0
    %3201 = vmatpush2.msra.mxu0 0.0
    %3202 = vmatprep.subr.mxu0 0.0
    %3203 = vmatpush2.msra.mxu0 0.0
    %3204 = vmatprep.subr.mxu0 0.0
    %3205 = vmatpush2.msra.mxu0 0.0
    %3206 = vmatprep.subr.mxu0 0.0
    %3207 = vmatpush2.msra.mxu0 0.0
    %3208 = vmatprep.subr.mxu0 0.0
    %3209 = vmatpush2.msra.mxu0 0.0
    %3210 = vmatprep.subr.mxu0 0.0
    %3211 = vmatpush2.msra.mxu0 0.0
    %3212 = vmatprep.subr.mxu0 0.0
    %3213 = vmatpush2.msra.mxu0 0.0
    %3214 = vmatprep.subr.mxu0 0.0
    %3215 = vmatpush2.msra.mxu0 0.0
    %3216 = vmatprep.subr.mxu0 0.0
    %3217 = vmatpush2.msra.mxu0 0.0
    %3218 = vmatprep.subr.mxu0 0.0
    %3219 = vmatpush2.msra.mxu0 0.0
    %3220 = vmatprep.subr.mxu0 0.0
    %3221 = vmatpush2.msra.mxu0 0.0
    %3222 = vmatprep.mubr.f32.mxu0 0.0
    %3223 = vmatmul.mubr.f32.gmra.mxu0 %v3153
    %v3224 = vpop.f32.mrf.mxu0
    %v3225 = vadd.f32 %v545, %v3224
    %v3226 = vpop.f32.mrf.mxu0
    %3227 = vmatprep.mubr.f32.mxu0 0.0
    %3228 = vmatmul.mubr.f32.gmra.mxu0 %v3156
    %v3229 = vpop.f32.mrf.mxu0
    %v3230 = vadd.f32 %v545, %v3229
    %v3231 = vpop.f32.mrf.mxu0
    %3232 = vdwg.mxu0
    %v3233 = vmax.f32 %v3225, 0.0
    %v3234 = vmax.f32 %v3230, 0.0
    %v3236 = vsel %vm547, %v3233, 0
    %v3239 = vsel %vm547, %v3234, 0
    %3241 = vmatprep.subr.mxu0 0.0
    %3242 = vmatpush1.msra.mxu0 0.0
    %3243 = vmatprep.subr.mxu0 0.0
    %3244 = vmatpush1.msra.mxu0 0.0
    %3245 = vmatprep.subr.mxu0 0.0
    %3246 = vmatpush1.msra.mxu0 0.0
    %3247 = vmatprep.subr.mxu0 0.0
    %3248 = vmatpush1.msra.mxu0 0.0
    %3249 = vmatprep.subr.mxu0 0.0
    %3250 = vmatpush1.msra.mxu0 0.0
    %3251 = vmatprep.subr.mxu0 0.0
    %3252 = vmatpush1.msra.mxu0 0.0
    %3253 = vmatprep.subr.mxu0 0.0
    %3254 = vmatpush1.msra.mxu0 0.0
    %3255 = vmatprep.subr.mxu0 0.0
    %3256 = vmatpush1.msra.mxu0 0.0
    %3257 = vmatprep.subr.mxu0 0.0
    %3258 = vmatpush1.msra.mxu0 0.0
    %3259 = vmatprep.subr.mxu0 0.0
    %3260 = vmatpush1.msra.mxu0 0.0
    %3261 = vmatprep.subr.mxu0 0.0
    %3262 = vmatpush1.msra.mxu0 0.0
    %3263 = vmatprep.subr.mxu0 0.0
    %3264 = vmatpush1.msra.mxu0 0.0
    %3265 = vmatprep.subr.mxu0 0.0
    %3266 = vmatpush1.msra.mxu0 %v71
    %3267 = vmatprep.subr.mxu0 0.0
    %3268 = vmatpush1.msra.mxu0 %v70
    %3269 = vmatprep.subr.mxu0 0.0
    %3270 = vmatpush1.msra.mxu0 %v69
    %3271 = vmatprep.subr.mxu0 0.0
    %3272 = vmatpush1.msra.mxu0 %v68
    %3273 = vmatprep.subr.mxu0 0.0
    %3274 = vmatpush2.msra.mxu0 0.0
    %3275 = vmatprep.subr.mxu0 0.0
    %3276 = vmatpush2.msra.mxu0 0.0
    %3277 = vmatprep.subr.mxu0 0.0
    %3278 = vmatpush2.msra.mxu0 0.0
    %3279 = vmatprep.subr.mxu0 0.0
    %3280 = vmatpush2.msra.mxu0 0.0
    %3281 = vmatprep.subr.mxu0 0.0
    %3282 = vmatpush2.msra.mxu0 0.0
    %3283 = vmatprep.subr.mxu0 0.0
    %3284 = vmatpush2.msra.mxu0 0.0
    %3285 = vmatprep.subr.mxu0 0.0
    %3286 = vmatpush2.msra.mxu0 0.0
    %3287 = vmatprep.subr.mxu0 0.0
    %3288 = vmatpush2.msra.mxu0 0.0
    %3289 = vmatprep.subr.mxu0 0.0
    %3290 = vmatpush2.msra.mxu0 0.0
    %3291 = vmatprep.subr.mxu0 0.0
    %3292 = vmatpush2.msra.mxu0 0.0
    %3293 = vmatprep.subr.mxu0 0.0
    %3294 = vmatpush2.msra.mxu0 0.0
    %3295 = vmatprep.subr.mxu0 0.0
    %3296 = vmatpush2.msra.mxu0 0.0
    %3297 = vmatprep.subr.mxu0 0.0
    %3298 = vmatpush2.msra.mxu0 0.0
    %3299 = vmatprep.subr.mxu0 0.0
    %3300 = vmatpush2.msra.mxu0 0.0
    %3301 = vmatprep.subr.mxu0 0.0
    %3302 = vmatpush2.msra.mxu0 0.0
    %3303 = vmatprep.subr.mxu0 0.0
    %3304 = vmatpush2.msra.mxu0 0.0
    %3305 = vmatprep.mubr.f32.mxu0 0.0
    %3306 = vmatmul.mubr.f32.gmra.mxu0 %v3236
    %v3307 = vpop.f32.mrf.mxu0
    %v3308 = vadd.f32 %v635, %v3307
    %v3309 = vpop.f32.mrf.mxu0
    %3310 = vmatprep.mubr.f32.mxu0 0.0
    %3311 = vmatmul.mubr.f32.gmra.mxu0 %v3239
    %v3312 = vpop.f32.mrf.mxu0
    %v3313 = vadd.f32 %v635, %v3312
    %v3314 = vpop.f32.mrf.mxu0
    %3315 = vdwg.mxu0
    %v3316 = vtanh.pop %v3308
    %v3317 = vtanh.pop %v3313
    %v3318 = vmul.f32 %v3316, %v381
    %v3319 = vmul.f32 %v3317, %v387
    %3322 = vrot.lane.b32.xlu0 %v3318, 96
    %v3323 = vpop.permute.xlu0 %3322
    %3324 = vrot.lane.b32.xlu0 %v3319, 96
    %v3325 = vpop.permute.xlu0 %3324
    %v3328 = vadd.f32 %v3318, %v3323
    %v3329 = vadd.f32 %v3319, %v3325
    %3330 = vrot.lane.b32.xlu0 %v3318, 64
    %v3331 = vpop.permute.xlu0 %3330
    %3332 = vrot.lane.b32.xlu0 %v3319, 64
    %v3333 = vpop.permute.xlu0 %3332
    %v3336 = vadd.f32 %v3328, %v3331
    %v3337 = vadd.f32 %v3329, %v3333
    %3338 = vrot.lane.b32.xlu0 %v3318, 32
    %v3339 = vpop.permute.xlu0 %3338
    %3340 = vrot.lane.b32.xlu0 %v3319, 32
    %v3341 = vpop.permute.xlu0 %3340
    %v3344 = vadd.f32 %v3336, %v3339
    %v3345 = vadd.f32 %v3337, %v3341
    %v3346 = vmul.f32 %v3344, 0.5
    %v3347 = vmul.f32 %v3345, 0.5
    %v3348 = vadd.f32 %v2952, %v3346
    %v3349 = vadd.f32 %v2953, %v3347
    %v3351 = vsel %vm547, %v3348, 0
    %v3354 = vsel %vm547, %v3349, 0
    %3356 = vmatprep.subr.mxu0 0.0
    %3357 = vmatpush1.msra.mxu0 0.0
    %3358 = vmatprep.subr.mxu0 0.0
    %3359 = vmatpush1.msra.mxu0 0.0
    %3360 = vmatprep.subr.mxu0 0.0
    %3361 = vmatpush1.msra.mxu0 0.0
    %3362 = vmatprep.subr.mxu0 0.0
    %3363 = vmatpush1.msra.mxu0 0.0
    %3364 = vmatprep.subr.mxu0 0.0
    %3365 = vmatpush1.msra.mxu0 0.0
    %3366 = vmatprep.subr.mxu0 0.0
    %3367 = vmatpush1.msra.mxu0 0.0
    %3368 = vmatprep.subr.mxu0 0.0
    %3369 = vmatpush1.msra.mxu0 0.0
    %3370 = vmatprep.subr.mxu0 0.0
    %3371 = vmatpush1.msra.mxu0 0.0
    %3372 = vmatprep.subr.mxu0 0.0
    %3373 = vmatpush1.msra.mxu0 0.0
    %3374 = vmatprep.subr.mxu0 0.0
    %3375 = vmatpush1.msra.mxu0 0.0
    %3376 = vmatprep.subr.mxu0 0.0
    %3377 = vmatpush1.msra.mxu0 0.0
    %3378 = vmatprep.subr.mxu0 0.0
    %3379 = vmatpush1.msra.mxu0 0.0
    %3380 = vmatprep.subr.mxu0 0.0
    %3381 = vmatpush1.msra.mxu0 %v66
    %3382 = vmatprep.subr.mxu0 0.0
    %3383 = vmatpush1.msra.mxu0 %v65
    %3384 = vmatprep.subr.mxu0 0.0
    %3385 = vmatpush1.msra.mxu0 %v64
    %3386 = vmatprep.subr.mxu0 0.0
    %3387 = vmatpush1.msra.mxu0 %v63
    %3388 = vmatprep.subr.mxu0 0.0
    %3389 = vmatpush2.msra.mxu0 0.0
    %3390 = vmatprep.subr.mxu0 0.0
    %3391 = vmatpush2.msra.mxu0 0.0
    %3392 = vmatprep.subr.mxu0 0.0
    %3393 = vmatpush2.msra.mxu0 0.0
    %3394 = vmatprep.subr.mxu0 0.0
    %3395 = vmatpush2.msra.mxu0 0.0
    %3396 = vmatprep.subr.mxu0 0.0
    %3397 = vmatpush2.msra.mxu0 0.0
    %3398 = vmatprep.subr.mxu0 0.0
    %3399 = vmatpush2.msra.mxu0 0.0
    %3400 = vmatprep.subr.mxu0 0.0
    %3401 = vmatpush2.msra.mxu0 0.0
    %3402 = vmatprep.subr.mxu0 0.0
    %3403 = vmatpush2.msra.mxu0 0.0
    %3404 = vmatprep.subr.mxu0 0.0
    %3405 = vmatpush2.msra.mxu0 0.0
    %3406 = vmatprep.subr.mxu0 0.0
    %3407 = vmatpush2.msra.mxu0 0.0
    %3408 = vmatprep.subr.mxu0 0.0
    %3409 = vmatpush2.msra.mxu0 0.0
    %3410 = vmatprep.subr.mxu0 0.0
    %3411 = vmatpush2.msra.mxu0 0.0
    %3412 = vmatprep.subr.mxu0 0.0
    %3413 = vmatpush2.msra.mxu0 0.0
    %3414 = vmatprep.subr.mxu0 0.0
    %3415 = vmatpush2.msra.mxu0 0.0
    %3416 = vmatprep.subr.mxu0 0.0
    %3417 = vmatpush2.msra.mxu0 0.0
    %3418 = vmatprep.subr.mxu0 0.0
    %3419 = vmatpush2.msra.mxu0 0.0
    %3420 = vmatprep.mubr.f32.mxu0 0.0
    %3421 = vmatmul.mubr.f32.gmra.mxu0 %v3351
    %v3422 = vpop.f32.mrf.mxu0
    %v3423 = vadd.f32 %v545, %v3422
    %v3424 = vpop.f32.mrf.mxu0
    %3425 = vmatprep.mubr.f32.mxu0 0.0
    %3426 = vmatmul.mubr.f32.gmra.mxu0 %v3354
    %v3427 = vpop.f32.mrf.mxu0
    %v3428 = vadd.f32 %v545, %v3427
    %v3429 = vpop.f32.mrf.mxu0
    %3430 = vdwg.mxu0
    %v3431 = vmax.f32 %v3423, 0.0
    %v3432 = vmax.f32 %v3428, 0.0
    %v3434 = vsel %vm547, %v3431, 0
    %v3437 = vsel %vm547, %v3432, 0
    %3439 = vmatprep.subr.mxu0 0.0
    %3440 = vmatpush1.msra.mxu0 0.0
    %3441 = vmatprep.subr.mxu0 0.0
    %3442 = vmatpush1.msra.mxu0 0.0
    %3443 = vmatprep.subr.mxu0 0.0
    %3444 = vmatpush1.msra.mxu0 0.0
    %3445 = vmatprep.subr.mxu0 0.0
    %3446 = vmatpush1.msra.mxu0 0.0
    %3447 = vmatprep.subr.mxu0 0.0
    %3448 = vmatpush1.msra.mxu0 0.0
    %3449 = vmatprep.subr.mxu0 0.0
    %3450 = vmatpush1.msra.mxu0 0.0
    %3451 = vmatprep.subr.mxu0 0.0
    %3452 = vmatpush1.msra.mxu0 0.0
    %3453 = vmatprep.subr.mxu0 0.0
    %3454 = vmatpush1.msra.mxu0 0.0
    %3455 = vmatprep.subr.mxu0 0.0
    %3456 = vmatpush1.msra.mxu0 0.0
    %3457 = vmatprep.subr.mxu0 0.0
    %3458 = vmatpush1.msra.mxu0 0.0
    %3459 = vmatprep.subr.mxu0 0.0
    %3460 = vmatpush1.msra.mxu0 0.0
    %3461 = vmatprep.subr.mxu0 0.0
    %3462 = vmatpush1.msra.mxu0 0.0
    %3463 = vmatprep.subr.mxu0 0.0
    %3464 = vmatpush1.msra.mxu0 %v71
    %3465 = vmatprep.subr.mxu0 0.0
    %3466 = vmatpush1.msra.mxu0 %v70
    %3467 = vmatprep.subr.mxu0 0.0
    %3468 = vmatpush1.msra.mxu0 %v69
    %3469 = vmatprep.subr.mxu0 0.0
    %3470 = vmatpush1.msra.mxu0 %v68
    %3471 = vmatprep.subr.mxu0 0.0
    %3472 = vmatpush2.msra.mxu0 0.0
    %3473 = vmatprep.subr.mxu0 0.0
    %3474 = vmatpush2.msra.mxu0 0.0
    %3475 = vmatprep.subr.mxu0 0.0
    %3476 = vmatpush2.msra.mxu0 0.0
    %3477 = vmatprep.subr.mxu0 0.0
    %3478 = vmatpush2.msra.mxu0 0.0
    %3479 = vmatprep.subr.mxu0 0.0
    %3480 = vmatpush2.msra.mxu0 0.0
    %3481 = vmatprep.subr.mxu0 0.0
    %3482 = vmatpush2.msra.mxu0 0.0
    %3483 = vmatprep.subr.mxu0 0.0
    %3484 = vmatpush2.msra.mxu0 0.0
    %3485 = vmatprep.subr.mxu0 0.0
    %3486 = vmatpush2.msra.mxu0 0.0
    %3487 = vmatprep.subr.mxu0 0.0
    %3488 = vmatpush2.msra.mxu0 0.0
    %3489 = vmatprep.subr.mxu0 0.0
    %3490 = vmatpush2.msra.mxu0 0.0
    %3491 = vmatprep.subr.mxu0 0.0
    %3492 = vmatpush2.msra.mxu0 0.0
    %3493 = vmatprep.subr.mxu0 0.0
    %3494 = vmatpush2.msra.mxu0 0.0
    %3495 = vmatprep.subr.mxu0 0.0
    %3496 = vmatpush2.msra.mxu0 0.0
    %3497 = vmatprep.subr.mxu0 0.0
    %3498 = vmatpush2.msra.mxu0 0.0
    %3499 = vmatprep.subr.mxu0 0.0
    %3500 = vmatpush2.msra.mxu0 0.0
    %3501 = vmatprep.subr.mxu0 0.0
    %3502 = vmatpush2.msra.mxu0 0.0
    %3503 = vmatprep.mubr.f32.mxu0 0.0
    %3504 = vmatmul.mubr.f32.gmra.mxu0 %v3434
    %v3505 = vpop.f32.mrf.mxu0
    %v3506 = vadd.f32 %v635, %v3505
    %v3507 = vpop.f32.mrf.mxu0
    %3508 = vmatprep.mubr.f32.mxu0 0.0
    %3509 = vmatmul.mubr.f32.gmra.mxu0 %v3437
    %v3510 = vpop.f32.mrf.mxu0
    %v3511 = vadd.f32 %v635, %v3510
    %v3512 = vpop.f32.mrf.mxu0
    %3513 = vdwg.mxu0
    %v3514 = vtanh.pop %v3506
    %v3515 = vtanh.pop %v3511
    %v3516 = vmul.f32 %v3514, %v381
    %v3517 = vmul.f32 %v3515, %v387
    %3520 = vrot.lane.b32.xlu0 %v3516, 96
    %v3521 = vpop.permute.xlu0 %3520
    %3522 = vrot.lane.b32.xlu0 %v3517, 96
    %v3523 = vpop.permute.xlu0 %3522
    %v3526 = vadd.f32 %v3516, %v3521
    %v3527 = vadd.f32 %v3517, %v3523
    %3528 = vrot.lane.b32.xlu0 %v3516, 64
    %v3529 = vpop.permute.xlu0 %3528
    %3530 = vrot.lane.b32.xlu0 %v3517, 64
    %v3531 = vpop.permute.xlu0 %3530
    %v3534 = vadd.f32 %v3526, %v3529
    %v3535 = vadd.f32 %v3527, %v3531
    %3536 = vrot.lane.b32.xlu0 %v3516, 32
    %v3537 = vpop.permute.xlu0 %3536
    %3538 = vrot.lane.b32.xlu0 %v3517, 32
    %v3539 = vpop.permute.xlu0 %3538
    %v3542 = vadd.f32 %v3534, %v3537
    %v3543 = vadd.f32 %v3535, %v3539
    %v3544 = vadd.f32 %v2952, %v3542
    %v3545 = vadd.f32 %v2953, %v3543
    %v3547 = vsel %vm547, %v3544, 0
    %v3550 = vsel %vm547, %v3545, 0
    %3552 = vmatprep.subr.mxu0 0.0
    %3553 = vmatpush1.msra.mxu0 0.0
    %3554 = vmatprep.subr.mxu0 0.0
    %3555 = vmatpush1.msra.mxu0 0.0
    %3556 = vmatprep.subr.mxu0 0.0
    %3557 = vmatpush1.msra.mxu0 0.0
    %3558 = vmatprep.subr.mxu0 0.0
    %3559 = vmatpush1.msra.mxu0 0.0
    %3560 = vmatprep.subr.mxu0 0.0
    %3561 = vmatpush1.msra.mxu0 0.0
    %3562 = vmatprep.subr.mxu0 0.0
    %3563 = vmatpush1.msra.mxu0 0.0
    %3564 = vmatprep.subr.mxu0 0.0
    %3565 = vmatpush1.msra.mxu0 0.0
    %3566 = vmatprep.subr.mxu0 0.0
    %3567 = vmatpush1.msra.mxu0 0.0
    %3568 = vmatprep.subr.mxu0 0.0
    %3569 = vmatpush1.msra.mxu0 0.0
    %3570 = vmatprep.subr.mxu0 0.0
    %3571 = vmatpush1.msra.mxu0 0.0
    %3572 = vmatprep.subr.mxu0 0.0
    %3573 = vmatpush1.msra.mxu0 0.0
    %3574 = vmatprep.subr.mxu0 0.0
    %3575 = vmatpush1.msra.mxu0 0.0
    %3576 = vmatprep.subr.mxu0 0.0
    %3577 = vmatpush1.msra.mxu0 %v66
    %3578 = vmatprep.subr.mxu0 0.0
    %3579 = vmatpush1.msra.mxu0 %v65
    %3580 = vmatprep.subr.mxu0 0.0
    %3581 = vmatpush1.msra.mxu0 %v64
    %3582 = vmatprep.subr.mxu0 0.0
    %3583 = vmatpush1.msra.mxu0 %v63
    %3584 = vmatprep.subr.mxu0 0.0
    %3585 = vmatpush2.msra.mxu0 0.0
    %3586 = vmatprep.subr.mxu0 0.0
    %3587 = vmatpush2.msra.mxu0 0.0
    %3588 = vmatprep.subr.mxu0 0.0
    %3589 = vmatpush2.msra.mxu0 0.0
    %3590 = vmatprep.subr.mxu0 0.0
    %3591 = vmatpush2.msra.mxu0 0.0
    %3592 = vmatprep.subr.mxu0 0.0
    %3593 = vmatpush2.msra.mxu0 0.0
    %3594 = vmatprep.subr.mxu0 0.0
    %3595 = vmatpush2.msra.mxu0 0.0
    %3596 = vmatprep.subr.mxu0 0.0
    %3597 = vmatpush2.msra.mxu0 0.0
    %3598 = vmatprep.subr.mxu0 0.0
    %3599 = vmatpush2.msra.mxu0 0.0
    %3600 = vmatprep.subr.mxu0 0.0
    %3601 = vmatpush2.msra.mxu0 0.0
    %3602 = vmatprep.subr.mxu0 0.0
    %3603 = vmatpush2.msra.mxu0 0.0
    %3604 = vmatprep.subr.mxu0 0.0
    %3605 = vmatpush2.msra.mxu0 0.0
    %3606 = vmatprep.subr.mxu0 0.0
    %3607 = vmatpush2.msra.mxu0 0.0
    %3608 = vmatprep.subr.mxu0 0.0
    %3609 = vmatpush2.msra.mxu0 0.0
    %3610 = vmatprep.subr.mxu0 0.0
    %3611 = vmatpush2.msra.mxu0 0.0
    %3612 = vmatprep.subr.mxu0 0.0
    %3613 = vmatpush2.msra.mxu0 0.0
    %3614 = vmatprep.subr.mxu0 0.0
    %3615 = vmatpush2.msra.mxu0 0.0
    %3616 = vmatprep.mubr.f32.mxu0 0.0
    %3617 = vmatmul.mubr.f32.gmra.mxu0 %v3547
    %v3618 = vpop.f32.mrf.mxu0
    %v3619 = vadd.f32 %v545, %v3618
    %v3620 = vpop.f32.mrf.mxu0
    %3621 = vmatprep.mubr.f32.mxu0 0.0
    %3622 = vmatmul.mubr.f32.gmra.mxu0 %v3550
    %v3623 = vpop.f32.mrf.mxu0
    %v3624 = vadd.f32 %v545, %v3623
    %v3625 = vpop.f32.mrf.mxu0
    %3626 = vdwg.mxu0
    %v3627 = vmax.f32 %v3619, 0.0
    %v3628 = vmax.f32 %v3624, 0.0
    %v3630 = vsel %vm547, %v3627, 0
    %v3633 = vsel %vm547, %v3628, 0
    %3635 = vmatprep.subr.mxu0 0.0
    %3636 = vmatpush1.msra.mxu0 0.0
    %3637 = vmatprep.subr.mxu0 0.0
    %3638 = vmatpush1.msra.mxu0 0.0
    %3639 = vmatprep.subr.mxu0 0.0
    %3640 = vmatpush1.msra.mxu0 0.0
    %3641 = vmatprep.subr.mxu0 0.0
    %3642 = vmatpush1.msra.mxu0 0.0
    %3643 = vmatprep.subr.mxu0 0.0
    %3644 = vmatpush1.msra.mxu0 0.0
    %3645 = vmatprep.subr.mxu0 0.0
    %3646 = vmatpush1.msra.mxu0 0.0
    %3647 = vmatprep.subr.mxu0 0.0
    %3648 = vmatpush1.msra.mxu0 0.0
    %3649 = vmatprep.subr.mxu0 0.0
    %3650 = vmatpush1.msra.mxu0 0.0
    %3651 = vmatprep.subr.mxu0 0.0
    %3652 = vmatpush1.msra.mxu0 0.0
    %3653 = vmatprep.subr.mxu0 0.0
    %3654 = vmatpush1.msra.mxu0 0.0
    %3655 = vmatprep.subr.mxu0 0.0
    %3656 = vmatpush1.msra.mxu0 0.0
    %3657 = vmatprep.subr.mxu0 0.0
    %3658 = vmatpush1.msra.mxu0 0.0
    %3659 = vmatprep.subr.mxu0 0.0
    %3660 = vmatpush1.msra.mxu0 %v71
    %3661 = vmatprep.subr.mxu0 0.0
    %3662 = vmatpush1.msra.mxu0 %v70
    %3663 = vmatprep.subr.mxu0 0.0
    %3664 = vmatpush1.msra.mxu0 %v69
    %3665 = vmatprep.subr.mxu0 0.0
    %3666 = vmatpush1.msra.mxu0 %v68
    %3667 = vmatprep.subr.mxu0 0.0
    %3668 = vmatpush2.msra.mxu0 0.0
    %3669 = vmatprep.subr.mxu0 0.0
    %3670 = vmatpush2.msra.mxu0 0.0
    %3671 = vmatprep.subr.mxu0 0.0
    %3672 = vmatpush2.msra.mxu0 0.0
    %3673 = vmatprep.subr.mxu0 0.0
    %3674 = vmatpush2.msra.mxu0 0.0
    %3675 = vmatprep.subr.mxu0 0.0
    %3676 = vmatpush2.msra.mxu0 0.0
    %3677 = vmatprep.subr.mxu0 0.0
    %3678 = vmatpush2.msra.mxu0 0.0
    %3679 = vmatprep.subr.mxu0 0.0
    %3680 = vmatpush2.msra.mxu0 0.0
    %3681 = vmatprep.subr.mxu0 0.0
    %3682 = vmatpush2.msra.mxu0 0.0
    %3683 = vmatprep.subr.mxu0 0.0
    %3684 = vmatpush2.msra.mxu0 0.0
    %3685 = vmatprep.subr.mxu0 0.0
    %3686 = vmatpush2.msra.mxu0 0.0
    %3687 = vmatprep.subr.mxu0 0.0
    %3688 = vmatpush2.msra.mxu0 0.0
    %3689 = vmatprep.subr.mxu0 0.0
    %3690 = vmatpush2.msra.mxu0 0.0
    %3691 = vmatprep.subr.mxu0 0.0
    %3692 = vmatpush2.msra.mxu0 0.0
    %3693 = vmatprep.subr.mxu0 0.0
    %3694 = vmatpush2.msra.mxu0 0.0
    %3695 = vmatprep.subr.mxu0 0.0
    %3696 = vmatpush2.msra.mxu0 0.0
    %3697 = vmatprep.subr.mxu0 0.0
    %3698 = vmatpush2.msra.mxu0 0.0
    %3699 = vmatprep.mubr.f32.mxu0 0.0
    %3700 = vmatmul.mubr.f32.gmra.mxu0 %v3630
    %v3701 = vpop.f32.mrf.mxu0
    %v3702 = vadd.f32 %v635, %v3701
    %v3703 = vpop.f32.mrf.mxu0
    %3704 = vmatprep.mubr.f32.mxu0 0.0
    %3705 = vmatmul.mubr.f32.gmra.mxu0 %v3633
    %v3706 = vpop.f32.mrf.mxu0
    %v3707 = vadd.f32 %v635, %v3706
    %v3708 = vpop.f32.mrf.mxu0
    %3709 = vdwg.mxu0
    %v3710 = vtanh.pop %v3702
    %v3711 = vtanh.pop %v3707
    %v3712 = vmul.f32 %v3710, %v381
    %v3713 = vmul.f32 %v3711, %v387
    %3716 = vrot.lane.b32.xlu0 %v3712, 96
    %v3717 = vpop.permute.xlu0 %3716
    %3718 = vrot.lane.b32.xlu0 %v3713, 96
    %v3719 = vpop.permute.xlu0 %3718
    %v3722 = vadd.f32 %v3712, %v3717
    %v3723 = vadd.f32 %v3713, %v3719
    %3724 = vrot.lane.b32.xlu0 %v3712, 64
    %v3725 = vpop.permute.xlu0 %3724
    %3726 = vrot.lane.b32.xlu0 %v3713, 64
    %v3727 = vpop.permute.xlu0 %3726
    %v3730 = vadd.f32 %v3722, %v3725
    %v3731 = vadd.f32 %v3723, %v3727
    %3732 = vrot.lane.b32.xlu0 %v3712, 32
    %v3733 = vpop.permute.xlu0 %3732
    %3734 = vrot.lane.b32.xlu0 %v3713, 32
    %v3735 = vpop.permute.xlu0 %3734
    %v3738 = vadd.f32 %v3730, %v3733
    %v3739 = vadd.f32 %v3731, %v3735
    %v3740 = vmul.f32 %v3344, 2.0
    %v3741 = vmul.f32 %v3345, 2.0
    %v3742 = vadd.f32 %v3146, %v3740
    %v3743 = vadd.f32 %v3147, %v3741
    %v3744 = vmul.f32 %v3542, 2.0
    %v3745 = vmul.f32 %v3543, 2.0
    %v3746 = vadd.f32 %v3742, %v3744
    %v3747 = vadd.f32 %v3743, %v3745
    %v3748 = vadd.f32 %v3746, %v3738
    %v3749 = vadd.f32 %v3747, %v3739
    %v3750 = vmul.f32 %v3748, 0.16666667
    %v3751 = vmul.f32 %v3749, 0.16666667
    %v3752 = vadd.f32 %v2952, %v3750
    %v3753 = vadd.f32 %v2953, %v3751
    %v3755 = vsel %vm547, %v3752, 0
    %v3758 = vsel %vm547, %v3753, 0
    %3760 = vmatprep.subr.mxu0 0.0
    %3761 = vmatpush1.msra.mxu0 0.0
    %3762 = vmatprep.subr.mxu0 0.0
    %3763 = vmatpush1.msra.mxu0 0.0
    %3764 = vmatprep.subr.mxu0 0.0
    %3765 = vmatpush1.msra.mxu0 0.0
    %3766 = vmatprep.subr.mxu0 0.0
    %3767 = vmatpush1.msra.mxu0 0.0
    %3768 = vmatprep.subr.mxu0 0.0
    %3769 = vmatpush1.msra.mxu0 0.0
    %3770 = vmatprep.subr.mxu0 0.0
    %3771 = vmatpush1.msra.mxu0 0.0
    %3772 = vmatprep.subr.mxu0 0.0
    %3773 = vmatpush1.msra.mxu0 0.0
    %3774 = vmatprep.subr.mxu0 0.0
    %3775 = vmatpush1.msra.mxu0 0.0
    %3776 = vmatprep.subr.mxu0 0.0
    %3777 = vmatpush1.msra.mxu0 0.0
    %3778 = vmatprep.subr.mxu0 0.0
    %3779 = vmatpush1.msra.mxu0 0.0
    %3780 = vmatprep.subr.mxu0 0.0
    %3781 = vmatpush1.msra.mxu0 0.0
    %3782 = vmatprep.subr.mxu0 0.0
    %3783 = vmatpush1.msra.mxu0 0.0
    %3784 = vmatprep.subr.mxu0 0.0
    %3785 = vmatpush1.msra.mxu0 %v66
    %3786 = vmatprep.subr.mxu0 0.0
    %3787 = vmatpush1.msra.mxu0 %v65
    %3788 = vmatprep.subr.mxu0 0.0
    %3789 = vmatpush1.msra.mxu0 %v64
    %3790 = vmatprep.subr.mxu0 0.0
    %3791 = vmatpush1.msra.mxu0 %v63
    %3792 = vmatprep.subr.mxu0 0.0
    %3793 = vmatpush2.msra.mxu0 0.0
    %3794 = vmatprep.subr.mxu0 0.0
    %3795 = vmatpush2.msra.mxu0 0.0
    %3796 = vmatprep.subr.mxu0 0.0
    %3797 = vmatpush2.msra.mxu0 0.0
    %3798 = vmatprep.subr.mxu0 0.0
    %3799 = vmatpush2.msra.mxu0 0.0
    %3800 = vmatprep.subr.mxu0 0.0
    %3801 = vmatpush2.msra.mxu0 0.0
    %3802 = vmatprep.subr.mxu0 0.0
    %3803 = vmatpush2.msra.mxu0 0.0
    %3804 = vmatprep.subr.mxu0 0.0
    %3805 = vmatpush2.msra.mxu0 0.0
    %3806 = vmatprep.subr.mxu0 0.0
    %3807 = vmatpush2.msra.mxu0 0.0
    %3808 = vmatprep.subr.mxu0 0.0
    %3809 = vmatpush2.msra.mxu0 0.0
    %3810 = vmatprep.subr.mxu0 0.0
    %3811 = vmatpush2.msra.mxu0 0.0
    %3812 = vmatprep.subr.mxu0 0.0
    %3813 = vmatpush2.msra.mxu0 0.0
    %3814 = vmatprep.subr.mxu0 0.0
    %3815 = vmatpush2.msra.mxu0 0.0
    %3816 = vmatprep.subr.mxu0 0.0
    %3817 = vmatpush2.msra.mxu0 0.0
    %3818 = vmatprep.subr.mxu0 0.0
    %3819 = vmatpush2.msra.mxu0 0.0
    %3820 = vmatprep.subr.mxu0 0.0
    %3821 = vmatpush2.msra.mxu0 0.0
    %3822 = vmatprep.subr.mxu0 0.0
    %3823 = vmatpush2.msra.mxu0 0.0
    %3824 = vmatprep.mubr.f32.mxu0 0.0
    %3825 = vmatmul.mubr.f32.gmra.mxu0 %v3755
    %v3826 = vpop.f32.mrf.mxu0
    %v3827 = vadd.f32 %v545, %v3826
    %v3828 = vpop.f32.mrf.mxu0
    %3829 = vmatprep.mubr.f32.mxu0 0.0
    %3830 = vmatmul.mubr.f32.gmra.mxu0 %v3758
    %v3831 = vpop.f32.mrf.mxu0
    %v3832 = vadd.f32 %v545, %v3831
    %v3833 = vpop.f32.mrf.mxu0
    %3834 = vdwg.mxu0
    %v3835 = vmax.f32 %v3827, 0.0
    %v3836 = vmax.f32 %v3832, 0.0
    %v3838 = vsel %vm547, %v3835, 0
    %v3841 = vsel %vm547, %v3836, 0
    %3843 = vmatprep.subr.mxu0 0.0
    %3844 = vmatpush1.msra.mxu0 0.0
    %3845 = vmatprep.subr.mxu0 0.0
    %3846 = vmatpush1.msra.mxu0 0.0
    %3847 = vmatprep.subr.mxu0 0.0
    %3848 = vmatpush1.msra.mxu0 0.0
    %3849 = vmatprep.subr.mxu0 0.0
    %3850 = vmatpush1.msra.mxu0 0.0
    %3851 = vmatprep.subr.mxu0 0.0
    %3852 = vmatpush1.msra.mxu0 0.0
    %3853 = vmatprep.subr.mxu0 0.0
    %3854 = vmatpush1.msra.mxu0 0.0
    %3855 = vmatprep.subr.mxu0 0.0
    %3856 = vmatpush1.msra.mxu0 0.0
    %3857 = vmatprep.subr.mxu0 0.0
    %3858 = vmatpush1.msra.mxu0 0.0
    %3859 = vmatprep.subr.mxu0 0.0
    %3860 = vmatpush1.msra.mxu0 0.0
    %3861 = vmatprep.subr.mxu0 0.0
    %3862 = vmatpush1.msra.mxu0 0.0
    %3863 = vmatprep.subr.mxu0 0.0
    %3864 = vmatpush1.msra.mxu0 0.0
    %3865 = vmatprep.subr.mxu0 0.0
    %3866 = vmatpush1.msra.mxu0 0.0
    %3867 = vmatprep.subr.mxu0 0.0
    %3868 = vmatpush1.msra.mxu0 %v71
    %3869 = vmatprep.subr.mxu0 0.0
    %3870 = vmatpush1.msra.mxu0 %v70
    %3871 = vmatprep.subr.mxu0 0.0
    %3872 = vmatpush1.msra.mxu0 %v69
    %3873 = vmatprep.subr.mxu0 0.0
    %3874 = vmatpush1.msra.mxu0 %v68
    %3875 = vmatprep.subr.mxu0 0.0
    %3876 = vmatpush2.msra.mxu0 0.0
    %3877 = vmatprep.subr.mxu0 0.0
    %3878 = vmatpush2.msra.mxu0 0.0
    %3879 = vmatprep.subr.mxu0 0.0
    %3880 = vmatpush2.msra.mxu0 0.0
    %3881 = vmatprep.subr.mxu0 0.0
    %3882 = vmatpush2.msra.mxu0 0.0
    %3883 = vmatprep.subr.mxu0 0.0
    %3884 = vmatpush2.msra.mxu0 0.0
    %3885 = vmatprep.subr.mxu0 0.0
    %3886 = vmatpush2.msra.mxu0 0.0
    %3887 = vmatprep.subr.mxu0 0.0
    %3888 = vmatpush2.msra.mxu0 0.0
    %3889 = vmatprep.subr.mxu0 0.0
    %3890 = vmatpush2.msra.mxu0 0.0
    %3891 = vmatprep.subr.mxu0 0.0
    %3892 = vmatpush2.msra.mxu0 0.0
    %3893 = vmatprep.subr.mxu0 0.0
    %3894 = vmatpush2.msra.mxu0 0.0
    %3895 = vmatprep.subr.mxu0 0.0
    %3896 = vmatpush2.msra.mxu0 0.0
    %3897 = vmatprep.subr.mxu0 0.0
    %3898 = vmatpush2.msra.mxu0 0.0
    %3899 = vmatprep.subr.mxu0 0.0
    %3900 = vmatpush2.msra.mxu0 0.0
    %3901 = vmatprep.subr.mxu0 0.0
    %3902 = vmatpush2.msra.mxu0 0.0
    %3903 = vmatprep.subr.mxu0 0.0
    %3904 = vmatpush2.msra.mxu0 0.0
    %3905 = vmatprep.subr.mxu0 0.0
    %3906 = vmatpush2.msra.mxu0 0.0
    %3907 = vmatprep.mubr.f32.mxu0 0.0
    %3908 = vmatmul.mubr.f32.gmra.mxu0 %v3838
    %v3909 = vpop.f32.mrf.mxu0
    %v3910 = vadd.f32 %v635, %v3909
    %v3911 = vpop.f32.mrf.mxu0
    %3912 = vmatprep.mubr.f32.mxu0 0.0
    %3913 = vmatmul.mubr.f32.gmra.mxu0 %v3841
    %v3914 = vpop.f32.mrf.mxu0
    %v3915 = vadd.f32 %v635, %v3914
    %v3916 = vpop.f32.mrf.mxu0
    %3917 = vdwg.mxu0
    %v3918 = vtanh.pop %v3910
    %v3919 = vtanh.pop %v3915
    %v3920 = vmul.f32 %v3918, %v456
    %v3921 = vmul.f32 %v3919, %v462
    %3924 = vrot.lane.b32.xlu0 %v3920, 96
    %v3925 = vpop.permute.xlu0 %3924
    %3926 = vrot.lane.b32.xlu0 %v3921, 96
    %v3927 = vpop.permute.xlu0 %3926
    %v3930 = vadd.f32 %v3920, %v3925
    %v3931 = vadd.f32 %v3921, %v3927
    %3932 = vrot.lane.b32.xlu0 %v3920, 64
    %v3933 = vpop.permute.xlu0 %3932
    %3934 = vrot.lane.b32.xlu0 %v3921, 64
    %v3935 = vpop.permute.xlu0 %3934
    %v3938 = vadd.f32 %v3930, %v3933
    %v3939 = vadd.f32 %v3931, %v3935
    %3940 = vrot.lane.b32.xlu0 %v3920, 32
    %v3941 = vpop.permute.xlu0 %3940
    %3942 = vrot.lane.b32.xlu0 %v3921, 32
    %v3943 = vpop.permute.xlu0 %3942
    %v3946 = vadd.f32 %v3938, %v3941
    %v3947 = vadd.f32 %v3939, %v3943
    %v3948 = vmul.f32 %v3946, 0.5
    %v3949 = vmul.f32 %v3947, 0.5
    %v3950 = vadd.f32 %v3752, %v3948
    %v3951 = vadd.f32 %v3753, %v3949
    %v3953 = vsel %vm547, %v3950, 0
    %v3956 = vsel %vm547, %v3951, 0
    %3958 = vmatprep.subr.mxu0 0.0
    %3959 = vmatpush1.msra.mxu0 0.0
    %3960 = vmatprep.subr.mxu0 0.0
    %3961 = vmatpush1.msra.mxu0 0.0
    %3962 = vmatprep.subr.mxu0 0.0
    %3963 = vmatpush1.msra.mxu0 0.0
    %3964 = vmatprep.subr.mxu0 0.0
    %3965 = vmatpush1.msra.mxu0 0.0
    %3966 = vmatprep.subr.mxu0 0.0
    %3967 = vmatpush1.msra.mxu0 0.0
    %3968 = vmatprep.subr.mxu0 0.0
    %3969 = vmatpush1.msra.mxu0 0.0
    %3970 = vmatprep.subr.mxu0 0.0
    %3971 = vmatpush1.msra.mxu0 0.0
    %3972 = vmatprep.subr.mxu0 0.0
    %3973 = vmatpush1.msra.mxu0 0.0
    %3974 = vmatprep.subr.mxu0 0.0
    %3975 = vmatpush1.msra.mxu0 0.0
    %3976 = vmatprep.subr.mxu0 0.0
    %3977 = vmatpush1.msra.mxu0 0.0
    %3978 = vmatprep.subr.mxu0 0.0
    %3979 = vmatpush1.msra.mxu0 0.0
    %3980 = vmatprep.subr.mxu0 0.0
    %3981 = vmatpush1.msra.mxu0 0.0
    %3982 = vmatprep.subr.mxu0 0.0
    %3983 = vmatpush1.msra.mxu0 %v66
    %3984 = vmatprep.subr.mxu0 0.0
    %3985 = vmatpush1.msra.mxu0 %v65
    %3986 = vmatprep.subr.mxu0 0.0
    %3987 = vmatpush1.msra.mxu0 %v64
    %3988 = vmatprep.subr.mxu0 0.0
    %3989 = vmatpush1.msra.mxu0 %v63
    %3990 = vmatprep.subr.mxu0 0.0
    %3991 = vmatpush2.msra.mxu0 0.0
    %3992 = vmatprep.subr.mxu0 0.0
    %3993 = vmatpush2.msra.mxu0 0.0
    %3994 = vmatprep.subr.mxu0 0.0
    %3995 = vmatpush2.msra.mxu0 0.0
    %3996 = vmatprep.subr.mxu0 0.0
    %3997 = vmatpush2.msra.mxu0 0.0
    %3998 = vmatprep.subr.mxu0 0.0
    %3999 = vmatpush2.msra.mxu0 0.0
    %4000 = vmatprep.subr.mxu0 0.0
    %4001 = vmatpush2.msra.mxu0 0.0
    %4002 = vmatprep.subr.mxu0 0.0
    %4003 = vmatpush2.msra.mxu0 0.0
    %4004 = vmatprep.subr.mxu0 0.0
    %4005 = vmatpush2.msra.mxu0 0.0
    %4006 = vmatprep.subr.mxu0 0.0
    %4007 = vmatpush2.msra.mxu0 0.0
    %4008 = vmatprep.subr.mxu0 0.0
    %4009 = vmatpush2.msra.mxu0 0.0
    %4010 = vmatprep.subr.mxu0 0.0
    %4011 = vmatpush2.msra.mxu0 0.0
    %4012 = vmatprep.subr.mxu0 0.0
    %4013 = vmatpush2.msra.mxu0 0.0
    %4014 = vmatprep.subr.mxu0 0.0
    %4015 = vmatpush2.msra.mxu0 0.0
    %4016 = vmatprep.subr.mxu0 0.0
    %4017 = vmatpush2.msra.mxu0 0.0
    %4018 = vmatprep.subr.mxu0 0.0
    %4019 = vmatpush2.msra.mxu0 0.0
    %4020 = vmatprep.subr.mxu0 0.0
    %4021 = vmatpush2.msra.mxu0 0.0
    %4022 = vmatprep.mubr.f32.mxu0 0.0
    %4023 = vmatmul.mubr.f32.gmra.mxu0 %v3953
    %v4024 = vpop.f32.mrf.mxu0
    %v4025 = vadd.f32 %v545, %v4024
    %v4026 = vpop.f32.mrf.mxu0
    %4027 = vmatprep.mubr.f32.mxu0 0.0
    %4028 = vmatmul.mubr.f32.gmra.mxu0 %v3956
    %v4029 = vpop.f32.mrf.mxu0
    %v4030 = vadd.f32 %v545, %v4029
    %v4031 = vpop.f32.mrf.mxu0
    %4032 = vdwg.mxu0
    %v4033 = vmax.f32 %v4025, 0.0
    %v4034 = vmax.f32 %v4030, 0.0
    %v4036 = vsel %vm547, %v4033, 0
    %v4039 = vsel %vm547, %v4034, 0
    %4041 = vmatprep.subr.mxu0 0.0
    %4042 = vmatpush1.msra.mxu0 0.0
    %4043 = vmatprep.subr.mxu0 0.0
    %4044 = vmatpush1.msra.mxu0 0.0
    %4045 = vmatprep.subr.mxu0 0.0
    %4046 = vmatpush1.msra.mxu0 0.0
    %4047 = vmatprep.subr.mxu0 0.0
    %4048 = vmatpush1.msra.mxu0 0.0
    %4049 = vmatprep.subr.mxu0 0.0
    %4050 = vmatpush1.msra.mxu0 0.0
    %4051 = vmatprep.subr.mxu0 0.0
    %4052 = vmatpush1.msra.mxu0 0.0
    %4053 = vmatprep.subr.mxu0 0.0
    %4054 = vmatpush1.msra.mxu0 0.0
    %4055 = vmatprep.subr.mxu0 0.0
    %4056 = vmatpush1.msra.mxu0 0.0
    %4057 = vmatprep.subr.mxu0 0.0
    %4058 = vmatpush1.msra.mxu0 0.0
    %4059 = vmatprep.subr.mxu0 0.0
    %4060 = vmatpush1.msra.mxu0 0.0
    %4061 = vmatprep.subr.mxu0 0.0
    %4062 = vmatpush1.msra.mxu0 0.0
    %4063 = vmatprep.subr.mxu0 0.0
    %4064 = vmatpush1.msra.mxu0 0.0
    %4065 = vmatprep.subr.mxu0 0.0
    %4066 = vmatpush1.msra.mxu0 %v71
    %4067 = vmatprep.subr.mxu0 0.0
    %4068 = vmatpush1.msra.mxu0 %v70
    %4069 = vmatprep.subr.mxu0 0.0
    %4070 = vmatpush1.msra.mxu0 %v69
    %4071 = vmatprep.subr.mxu0 0.0
    %4072 = vmatpush1.msra.mxu0 %v68
    %4073 = vmatprep.subr.mxu0 0.0
    %4074 = vmatpush2.msra.mxu0 0.0
    %4075 = vmatprep.subr.mxu0 0.0
    %4076 = vmatpush2.msra.mxu0 0.0
    %4077 = vmatprep.subr.mxu0 0.0
    %4078 = vmatpush2.msra.mxu0 0.0
    %4079 = vmatprep.subr.mxu0 0.0
    %4080 = vmatpush2.msra.mxu0 0.0
    %4081 = vmatprep.subr.mxu0 0.0
    %4082 = vmatpush2.msra.mxu0 0.0
    %4083 = vmatprep.subr.mxu0 0.0
    %4084 = vmatpush2.msra.mxu0 0.0
    %4085 = vmatprep.subr.mxu0 0.0
    %4086 = vmatpush2.msra.mxu0 0.0
    %4087 = vmatprep.subr.mxu0 0.0
    %4088 = vmatpush2.msra.mxu0 0.0
    %4089 = vmatprep.subr.mxu0 0.0
    %4090 = vmatpush2.msra.mxu0 0.0
    %4091 = vmatprep.subr.mxu0 0.0
    %4092 = vmatpush2.msra.mxu0 0.0
    %4093 = vmatprep.subr.mxu0 0.0
    %4094 = vmatpush2.msra.mxu0 0.0
    %4095 = vmatprep.subr.mxu0 0.0
    %4096 = vmatpush2.msra.mxu0 0.0
    %4097 = vmatprep.subr.mxu0 0.0
    %4098 = vmatpush2.msra.mxu0 0.0
    %4099 = vmatprep.subr.mxu0 0.0
    %4100 = vmatpush2.msra.mxu0 0.0
    %4101 = vmatprep.subr.mxu0 0.0
    %4102 = vmatpush2.msra.mxu0 0.0
    %4103 = vmatprep.subr.mxu0 0.0
    %4104 = vmatpush2.msra.mxu0 0.0
    %4105 = vmatprep.mubr.f32.mxu0 0.0
    %4106 = vmatmul.mubr.f32.gmra.mxu0 %v4036
    %v4107 = vpop.f32.mrf.mxu0
    %v4108 = vadd.f32 %v635, %v4107
    %v4109 = vpop.f32.mrf.mxu0
    %4110 = vmatprep.mubr.f32.mxu0 0.0
    %4111 = vmatmul.mubr.f32.gmra.mxu0 %v4039
    %v4112 = vpop.f32.mrf.mxu0
    %v4113 = vadd.f32 %v635, %v4112
    %v4114 = vpop.f32.mrf.mxu0
    %4115 = vdwg.mxu0
    %v4116 = vtanh.pop %v4108
    %v4117 = vtanh.pop %v4113
    %v4118 = vmul.f32 %v4116, %v456
    %v4119 = vmul.f32 %v4117, %v462
    %4122 = vrot.lane.b32.xlu0 %v4118, 96
    %v4123 = vpop.permute.xlu0 %4122
    %4124 = vrot.lane.b32.xlu0 %v4119, 96
    %v4125 = vpop.permute.xlu0 %4124
    %v4128 = vadd.f32 %v4118, %v4123
    %v4129 = vadd.f32 %v4119, %v4125
    %4130 = vrot.lane.b32.xlu0 %v4118, 64
    %v4131 = vpop.permute.xlu0 %4130
    %4132 = vrot.lane.b32.xlu0 %v4119, 64
    %v4133 = vpop.permute.xlu0 %4132
    %v4136 = vadd.f32 %v4128, %v4131
    %v4137 = vadd.f32 %v4129, %v4133
    %4138 = vrot.lane.b32.xlu0 %v4118, 32
    %v4139 = vpop.permute.xlu0 %4138
    %4140 = vrot.lane.b32.xlu0 %v4119, 32
    %v4141 = vpop.permute.xlu0 %4140
    %v4144 = vadd.f32 %v4136, %v4139
    %v4145 = vadd.f32 %v4137, %v4141
    %v4146 = vmul.f32 %v4144, 0.5
    %v4147 = vmul.f32 %v4145, 0.5
    %v4148 = vadd.f32 %v3752, %v4146
    %v4149 = vadd.f32 %v3753, %v4147
    %v4151 = vsel %vm547, %v4148, 0
    %v4154 = vsel %vm547, %v4149, 0
    %4156 = vmatprep.subr.mxu0 0.0
    %4157 = vmatpush1.msra.mxu0 0.0
    %4158 = vmatprep.subr.mxu0 0.0
    %4159 = vmatpush1.msra.mxu0 0.0
    %4160 = vmatprep.subr.mxu0 0.0
    %4161 = vmatpush1.msra.mxu0 0.0
    %4162 = vmatprep.subr.mxu0 0.0
    %4163 = vmatpush1.msra.mxu0 0.0
    %4164 = vmatprep.subr.mxu0 0.0
    %4165 = vmatpush1.msra.mxu0 0.0
    %4166 = vmatprep.subr.mxu0 0.0
    %4167 = vmatpush1.msra.mxu0 0.0
    %4168 = vmatprep.subr.mxu0 0.0
    %4169 = vmatpush1.msra.mxu0 0.0
    %4170 = vmatprep.subr.mxu0 0.0
    %4171 = vmatpush1.msra.mxu0 0.0
    %4172 = vmatprep.subr.mxu0 0.0
    %4173 = vmatpush1.msra.mxu0 0.0
    %4174 = vmatprep.subr.mxu0 0.0
    %4175 = vmatpush1.msra.mxu0 0.0
    %4176 = vmatprep.subr.mxu0 0.0
    %4177 = vmatpush1.msra.mxu0 0.0
    %4178 = vmatprep.subr.mxu0 0.0
    %4179 = vmatpush1.msra.mxu0 0.0
    %4180 = vmatprep.subr.mxu0 0.0
    %4181 = vmatpush1.msra.mxu0 %v66
    %4182 = vmatprep.subr.mxu0 0.0
    %4183 = vmatpush1.msra.mxu0 %v65
    %4184 = vmatprep.subr.mxu0 0.0
    %4185 = vmatpush1.msra.mxu0 %v64
    %4186 = vmatprep.subr.mxu0 0.0
    %4187 = vmatpush1.msra.mxu0 %v63
    %4188 = vmatprep.subr.mxu0 0.0
    %4189 = vmatpush2.msra.mxu0 0.0
    %4190 = vmatprep.subr.mxu0 0.0
    %4191 = vmatpush2.msra.mxu0 0.0
    %4192 = vmatprep.subr.mxu0 0.0
    %4193 = vmatpush2.msra.mxu0 0.0
    %4194 = vmatprep.subr.mxu0 0.0
    %4195 = vmatpush2.msra.mxu0 0.0
    %4196 = vmatprep.subr.mxu0 0.0
    %4197 = vmatpush2.msra.mxu0 0.0
    %4198 = vmatprep.subr.mxu0 0.0
    %4199 = vmatpush2.msra.mxu0 0.0
    %4200 = vmatprep.subr.mxu0 0.0
    %4201 = vmatpush2.msra.mxu0 0.0
    %4202 = vmatprep.subr.mxu0 0.0
    %4203 = vmatpush2.msra.mxu0 0.0
    %4204 = vmatprep.subr.mxu0 0.0
    %4205 = vmatpush2.msra.mxu0 0.0
    %4206 = vmatprep.subr.mxu0 0.0
    %4207 = vmatpush2.msra.mxu0 0.0
    %4208 = vmatprep.subr.mxu0 0.0
    %4209 = vmatpush2.msra.mxu0 0.0
    %4210 = vmatprep.subr.mxu0 0.0
    %4211 = vmatpush2.msra.mxu0 0.0
    %4212 = vmatprep.subr.mxu0 0.0
    %4213 = vmatpush2.msra.mxu0 0.0
    %4214 = vmatprep.subr.mxu0 0.0
    %4215 = vmatpush2.msra.mxu0 0.0
    %4216 = vmatprep.subr.mxu0 0.0
    %4217 = vmatpush2.msra.mxu0 0.0
    %4218 = vmatprep.subr.mxu0 0.0
    %4219 = vmatpush2.msra.mxu0 0.0
    %4220 = vmatprep.mubr.f32.mxu0 0.0
    %4221 = vmatmul.mubr.f32.gmra.mxu0 %v4151
    %v4222 = vpop.f32.mrf.mxu0
    %v4223 = vadd.f32 %v545, %v4222
    %v4224 = vpop.f32.mrf.mxu0
    %4225 = vmatprep.mubr.f32.mxu0 0.0
    %4226 = vmatmul.mubr.f32.gmra.mxu0 %v4154
    %v4227 = vpop.f32.mrf.mxu0
    %v4228 = vadd.f32 %v545, %v4227
    %v4229 = vpop.f32.mrf.mxu0
    %4230 = vdwg.mxu0
    %v4231 = vmax.f32 %v4223, 0.0
    %v4232 = vmax.f32 %v4228, 0.0
    %v4234 = vsel %vm547, %v4231, 0
    %v4237 = vsel %vm547, %v4232, 0
    %4239 = vmatprep.subr.mxu0 0.0
    %4240 = vmatpush1.msra.mxu0 0.0
    %4241 = vmatprep.subr.mxu0 0.0
    %4242 = vmatpush1.msra.mxu0 0.0
    %4243 = vmatprep.subr.mxu0 0.0
    %4244 = vmatpush1.msra.mxu0 0.0
    %4245 = vmatprep.subr.mxu0 0.0
    %4246 = vmatpush1.msra.mxu0 0.0
    %4247 = vmatprep.subr.mxu0 0.0
    %4248 = vmatpush1.msra.mxu0 0.0
    %4249 = vmatprep.subr.mxu0 0.0
    %4250 = vmatpush1.msra.mxu0 0.0
    %4251 = vmatprep.subr.mxu0 0.0
    %4252 = vmatpush1.msra.mxu0 0.0
    %4253 = vmatprep.subr.mxu0 0.0
    %4254 = vmatpush1.msra.mxu0 0.0
    %4255 = vmatprep.subr.mxu0 0.0
    %4256 = vmatpush1.msra.mxu0 0.0
    %4257 = vmatprep.subr.mxu0 0.0
    %4258 = vmatpush1.msra.mxu0 0.0
    %4259 = vmatprep.subr.mxu0 0.0
    %4260 = vmatpush1.msra.mxu0 0.0
    %4261 = vmatprep.subr.mxu0 0.0
    %4262 = vmatpush1.msra.mxu0 0.0
    %4263 = vmatprep.subr.mxu0 0.0
    %4264 = vmatpush1.msra.mxu0 %v71
    %4265 = vmatprep.subr.mxu0 0.0
    %4266 = vmatpush1.msra.mxu0 %v70
    %4267 = vmatprep.subr.mxu0 0.0
    %4268 = vmatpush1.msra.mxu0 %v69
    %4269 = vmatprep.subr.mxu0 0.0
    %4270 = vmatpush1.msra.mxu0 %v68
    %4271 = vmatprep.subr.mxu0 0.0
    %4272 = vmatpush2.msra.mxu0 0.0
    %4273 = vmatprep.subr.mxu0 0.0
    %4274 = vmatpush2.msra.mxu0 0.0
    %4275 = vmatprep.subr.mxu0 0.0
    %4276 = vmatpush2.msra.mxu0 0.0
    %4277 = vmatprep.subr.mxu0 0.0
    %4278 = vmatpush2.msra.mxu0 0.0
    %4279 = vmatprep.subr.mxu0 0.0
    %4280 = vmatpush2.msra.mxu0 0.0
    %4281 = vmatprep.subr.mxu0 0.0
    %4282 = vmatpush2.msra.mxu0 0.0
    %4283 = vmatprep.subr.mxu0 0.0
    %4284 = vmatpush2.msra.mxu0 0.0
    %4285 = vmatprep.subr.mxu0 0.0
    %4286 = vmatpush2.msra.mxu0 0.0
    %4287 = vmatprep.subr.mxu0 0.0
    %4288 = vmatpush2.msra.mxu0 0.0
    %4289 = vmatprep.subr.mxu0 0.0
    %4290 = vmatpush2.msra.mxu0 0.0
    %4291 = vmatprep.subr.mxu0 0.0
    %4292 = vmatpush2.msra.mxu0 0.0
    %4293 = vmatprep.subr.mxu0 0.0
    %4294 = vmatpush2.msra.mxu0 0.0
    %4295 = vmatprep.subr.mxu0 0.0
    %4296 = vmatpush2.msra.mxu0 0.0
    %4297 = vmatprep.subr.mxu0 0.0
    %4298 = vmatpush2.msra.mxu0 0.0
    %4299 = vmatprep.subr.mxu0 0.0
    %4300 = vmatpush2.msra.mxu0 0.0
    %4301 = vmatprep.subr.mxu0 0.0
    %4302 = vmatpush2.msra.mxu0 0.0
    %4303 = vmatprep.mubr.f32.mxu0 0.0
    %4304 = vmatmul.mubr.f32.gmra.mxu0 %v4234
    %v4305 = vpop.f32.mrf.mxu0
    %v4306 = vadd.f32 %v635, %v4305
    %v4307 = vpop.f32.mrf.mxu0
    %4308 = vmatprep.mubr.f32.mxu0 0.0
    %4309 = vmatmul.mubr.f32.gmra.mxu0 %v4237
    %v4310 = vpop.f32.mrf.mxu0
    %v4311 = vadd.f32 %v635, %v4310
    %v4312 = vpop.f32.mrf.mxu0
    %4313 = vdwg.mxu0
    %v4314 = vtanh.pop %v4306
    %v4315 = vtanh.pop %v4311
    %v4316 = vmul.f32 %v4314, %v456
    %v4317 = vmul.f32 %v4315, %v462
    %4320 = vrot.lane.b32.xlu0 %v4316, 96
    %v4321 = vpop.permute.xlu0 %4320
    %4322 = vrot.lane.b32.xlu0 %v4317, 96
    %v4323 = vpop.permute.xlu0 %4322
    %v4326 = vadd.f32 %v4316, %v4321
    %v4327 = vadd.f32 %v4317, %v4323
    %4328 = vrot.lane.b32.xlu0 %v4316, 64
    %v4329 = vpop.permute.xlu0 %4328
    %4330 = vrot.lane.b32.xlu0 %v4317, 64
    %v4331 = vpop.permute.xlu0 %4330
    %v4334 = vadd.f32 %v4326, %v4329
    %v4335 = vadd.f32 %v4327, %v4331
    %4336 = vrot.lane.b32.xlu0 %v4316, 32
    %v4337 = vpop.permute.xlu0 %4336
    %4338 = vrot.lane.b32.xlu0 %v4317, 32
    %v4339 = vpop.permute.xlu0 %4338
    %v4342 = vadd.f32 %v4334, %v4337
    %v4343 = vadd.f32 %v4335, %v4339
    %v4344 = vadd.f32 %v3752, %v4342
    %v4345 = vadd.f32 %v3753, %v4343
    %v4347 = vsel %vm547, %v4344, 0
    %v4350 = vsel %vm547, %v4345, 0
    %4352 = vmatprep.subr.mxu0 0.0
    %4353 = vmatpush1.msra.mxu0 0.0
    %4354 = vmatprep.subr.mxu0 0.0
    %4355 = vmatpush1.msra.mxu0 0.0
    %4356 = vmatprep.subr.mxu0 0.0
    %4357 = vmatpush1.msra.mxu0 0.0
    %4358 = vmatprep.subr.mxu0 0.0
    %4359 = vmatpush1.msra.mxu0 0.0
    %4360 = vmatprep.subr.mxu0 0.0
    %4361 = vmatpush1.msra.mxu0 0.0
    %4362 = vmatprep.subr.mxu0 0.0
    %4363 = vmatpush1.msra.mxu0 0.0
    %4364 = vmatprep.subr.mxu0 0.0
    %4365 = vmatpush1.msra.mxu0 0.0
    %4366 = vmatprep.subr.mxu0 0.0
    %4367 = vmatpush1.msra.mxu0 0.0
    %4368 = vmatprep.subr.mxu0 0.0
    %4369 = vmatpush1.msra.mxu0 0.0
    %4370 = vmatprep.subr.mxu0 0.0
    %4371 = vmatpush1.msra.mxu0 0.0
    %4372 = vmatprep.subr.mxu0 0.0
    %4373 = vmatpush1.msra.mxu0 0.0
    %4374 = vmatprep.subr.mxu0 0.0
    %4375 = vmatpush1.msra.mxu0 0.0
    %4376 = vmatprep.subr.mxu0 0.0
    %4377 = vmatpush1.msra.mxu0 %v66
    %4378 = vmatprep.subr.mxu0 0.0
    %4379 = vmatpush1.msra.mxu0 %v65
    %4380 = vmatprep.subr.mxu0 0.0
    %4381 = vmatpush1.msra.mxu0 %v64
    %4382 = vmatprep.subr.mxu0 0.0
    %4383 = vmatpush1.msra.mxu0 %v63
    %4384 = vmatprep.subr.mxu0 0.0
    %4385 = vmatpush2.msra.mxu0 0.0
    %4386 = vmatprep.subr.mxu0 0.0
    %4387 = vmatpush2.msra.mxu0 0.0
    %4388 = vmatprep.subr.mxu0 0.0
    %4389 = vmatpush2.msra.mxu0 0.0
    %4390 = vmatprep.subr.mxu0 0.0
    %4391 = vmatpush2.msra.mxu0 0.0
    %4392 = vmatprep.subr.mxu0 0.0
    %4393 = vmatpush2.msra.mxu0 0.0
    %4394 = vmatprep.subr.mxu0 0.0
    %4395 = vmatpush2.msra.mxu0 0.0
    %4396 = vmatprep.subr.mxu0 0.0
    %4397 = vmatpush2.msra.mxu0 0.0
    %4398 = vmatprep.subr.mxu0 0.0
    %4399 = vmatpush2.msra.mxu0 0.0
    %4400 = vmatprep.subr.mxu0 0.0
    %4401 = vmatpush2.msra.mxu0 0.0
    %4402 = vmatprep.subr.mxu0 0.0
    %4403 = vmatpush2.msra.mxu0 0.0
    %4404 = vmatprep.subr.mxu0 0.0
    %4405 = vmatpush2.msra.mxu0 0.0
    %4406 = vmatprep.subr.mxu0 0.0
    %4407 = vmatpush2.msra.mxu0 0.0
    %4408 = vmatprep.subr.mxu0 0.0
    %4409 = vmatpush2.msra.mxu0 0.0
    %4410 = vmatprep.subr.mxu0 0.0
    %4411 = vmatpush2.msra.mxu0 0.0
    %4412 = vmatprep.subr.mxu0 0.0
    %4413 = vmatpush2.msra.mxu0 0.0
    %4414 = vmatprep.subr.mxu0 0.0
    %4415 = vmatpush2.msra.mxu0 0.0
    %4416 = vmatprep.mubr.f32.mxu0 0.0
    %4417 = vmatmul.mubr.f32.gmra.mxu0 %v4347
    %v4418 = vpop.f32.mrf.mxu0
    %v4419 = vadd.f32 %v545, %v4418
    %v4420 = vpop.f32.mrf.mxu0
    %4421 = vmatprep.mubr.f32.mxu0 0.0
    %4422 = vmatmul.mubr.f32.gmra.mxu0 %v4350
    %v4423 = vpop.f32.mrf.mxu0
    %v4424 = vadd.f32 %v545, %v4423
    %v4425 = vpop.f32.mrf.mxu0
    %4426 = vdwg.mxu0
    %v4427 = vmax.f32 %v4419, 0.0
    %v4428 = vmax.f32 %v4424, 0.0
    %v4430 = vsel %vm547, %v4427, 0
    %v4433 = vsel %vm547, %v4428, 0
    %4435 = vmatprep.subr.mxu0 0.0
    %4436 = vmatpush1.msra.mxu0 0.0
    %4437 = vmatprep.subr.mxu0 0.0
    %4438 = vmatpush1.msra.mxu0 0.0
    %4439 = vmatprep.subr.mxu0 0.0
    %4440 = vmatpush1.msra.mxu0 0.0
    %4441 = vmatprep.subr.mxu0 0.0
    %4442 = vmatpush1.msra.mxu0 0.0
    %4443 = vmatprep.subr.mxu0 0.0
    %4444 = vmatpush1.msra.mxu0 0.0
    %4445 = vmatprep.subr.mxu0 0.0
    %4446 = vmatpush1.msra.mxu0 0.0
    %4447 = vmatprep.subr.mxu0 0.0
    %4448 = vmatpush1.msra.mxu0 0.0
    %4449 = vmatprep.subr.mxu0 0.0
    %4450 = vmatpush1.msra.mxu0 0.0
    %4451 = vmatprep.subr.mxu0 0.0
    %4452 = vmatpush1.msra.mxu0 0.0
    %4453 = vmatprep.subr.mxu0 0.0
    %4454 = vmatpush1.msra.mxu0 0.0
    %4455 = vmatprep.subr.mxu0 0.0
    %4456 = vmatpush1.msra.mxu0 0.0
    %4457 = vmatprep.subr.mxu0 0.0
    %4458 = vmatpush1.msra.mxu0 0.0
    %4459 = vmatprep.subr.mxu0 0.0
    %4460 = vmatpush1.msra.mxu0 %v71
    %4461 = vmatprep.subr.mxu0 0.0
    %4462 = vmatpush1.msra.mxu0 %v70
    %4463 = vmatprep.subr.mxu0 0.0
    %4464 = vmatpush1.msra.mxu0 %v69
    %4465 = vmatprep.subr.mxu0 0.0
    %4466 = vmatpush1.msra.mxu0 %v68
    %4467 = vmatprep.subr.mxu0 0.0
    %4468 = vmatpush2.msra.mxu0 0.0
    %4469 = vmatprep.subr.mxu0 0.0
    %4470 = vmatpush2.msra.mxu0 0.0
    %4471 = vmatprep.subr.mxu0 0.0
    %4472 = vmatpush2.msra.mxu0 0.0
    %4473 = vmatprep.subr.mxu0 0.0
    %4474 = vmatpush2.msra.mxu0 0.0
    %4475 = vmatprep.subr.mxu0 0.0
    %4476 = vmatpush2.msra.mxu0 0.0
    %4477 = vmatprep.subr.mxu0 0.0
    %4478 = vmatpush2.msra.mxu0 0.0
    %4479 = vmatprep.subr.mxu0 0.0
    %4480 = vmatpush2.msra.mxu0 0.0
    %4481 = vmatprep.subr.mxu0 0.0
    %4482 = vmatpush2.msra.mxu0 0.0
    %4483 = vmatprep.subr.mxu0 0.0
    %4484 = vmatpush2.msra.mxu0 0.0
    %4485 = vmatprep.subr.mxu0 0.0
    %4486 = vmatpush2.msra.mxu0 0.0
    %4487 = vmatprep.subr.mxu0 0.0
    %4488 = vmatpush2.msra.mxu0 0.0
    %4489 = vmatprep.subr.mxu0 0.0
    %4490 = vmatpush2.msra.mxu0 0.0
    %4491 = vmatprep.subr.mxu0 0.0
    %4492 = vmatpush2.msra.mxu0 0.0
    %4493 = vmatprep.subr.mxu0 0.0
    %4494 = vmatpush2.msra.mxu0 0.0
    %4495 = vmatprep.subr.mxu0 0.0
    %4496 = vmatpush2.msra.mxu0 0.0
    %4497 = vmatprep.subr.mxu0 0.0
    %4498 = vmatpush2.msra.mxu0 0.0
    %4499 = vmatprep.mubr.f32.mxu0 0.0
    %4500 = vmatmul.mubr.f32.gmra.mxu0 %v4430
    %v4501 = vpop.f32.mrf.mxu0
    %v4502 = vadd.f32 %v635, %v4501
    %v4503 = vpop.f32.mrf.mxu0
    %4504 = vmatprep.mubr.f32.mxu0 0.0
    %4505 = vmatmul.mubr.f32.gmra.mxu0 %v4433
    %v4506 = vpop.f32.mrf.mxu0
    %v4507 = vadd.f32 %v635, %v4506
    %v4508 = vpop.f32.mrf.mxu0
    %4509 = vdwg.mxu0
    %v4510 = vtanh.pop %v4502
    %v4511 = vtanh.pop %v4507
    %v4512 = vmul.f32 %v4510, %v456
    %v4513 = vmul.f32 %v4511, %v462
    %4516 = vrot.lane.b32.xlu0 %v4512, 96
    %v4517 = vpop.permute.xlu0 %4516
    %4518 = vrot.lane.b32.xlu0 %v4513, 96
    %v4519 = vpop.permute.xlu0 %4518
    %v4522 = vadd.f32 %v4512, %v4517
    %v4523 = vadd.f32 %v4513, %v4519
    %4524 = vrot.lane.b32.xlu0 %v4512, 64
    %v4525 = vpop.permute.xlu0 %4524
    %4526 = vrot.lane.b32.xlu0 %v4513, 64
    %v4527 = vpop.permute.xlu0 %4526
    %v4530 = vadd.f32 %v4522, %v4525
    %v4531 = vadd.f32 %v4523, %v4527
    %4532 = vrot.lane.b32.xlu0 %v4512, 32
    %v4533 = vpop.permute.xlu0 %4532
    %4534 = vrot.lane.b32.xlu0 %v4513, 32
    %v4535 = vpop.permute.xlu0 %4534
    %v4538 = vadd.f32 %v4530, %v4533
    %v4539 = vadd.f32 %v4531, %v4535
    %v4540 = vmul.f32 %v4144, 2.0
    %v4541 = vmul.f32 %v4145, 2.0
    %v4542 = vadd.f32 %v3946, %v4540
    %v4543 = vadd.f32 %v3947, %v4541
    %v4544 = vmul.f32 %v4342, 2.0
    %v4545 = vmul.f32 %v4343, 2.0
    %v4546 = vadd.f32 %v4542, %v4544
    %v4547 = vadd.f32 %v4543, %v4545
    %v4548 = vadd.f32 %v4546, %v4538
    %v4549 = vadd.f32 %v4547, %v4539
    %v4550 = vmul.f32 %v4548, 0.16666667
    %v4551 = vmul.f32 %v4549, 0.16666667
    %v4552 = vadd.f32 %v3752, %v4550
    %v4553 = vadd.f32 %v3753, %v4551
    %v4555 = vsel %vm547, %v4552, 0
    %v4558 = vsel %vm547, %v4553, 0
    %4560 = vmatprep.subr.mxu0 0.0
    %4561 = vmatpush1.msra.mxu0 0.0
    %4562 = vmatprep.subr.mxu0 0.0
    %4563 = vmatpush1.msra.mxu0 0.0
    %4564 = vmatprep.subr.mxu0 0.0
    %4565 = vmatpush1.msra.mxu0 0.0
    %4566 = vmatprep.subr.mxu0 0.0
    %4567 = vmatpush1.msra.mxu0 0.0
    %4568 = vmatprep.subr.mxu0 0.0
    %4569 = vmatpush1.msra.mxu0 0.0
    %4570 = vmatprep.subr.mxu0 0.0
    %4571 = vmatpush1.msra.mxu0 0.0
    %4572 = vmatprep.subr.mxu0 0.0
    %4573 = vmatpush1.msra.mxu0 0.0
    %4574 = vmatprep.subr.mxu0 0.0
    %4575 = vmatpush1.msra.mxu0 0.0
    %4576 = vmatprep.subr.mxu0 0.0
    %4577 = vmatpush1.msra.mxu0 0.0
    %4578 = vmatprep.subr.mxu0 0.0
    %4579 = vmatpush1.msra.mxu0 0.0
    %4580 = vmatprep.subr.mxu0 0.0
    %4581 = vmatpush1.msra.mxu0 0.0
    %4582 = vmatprep.subr.mxu0 0.0
    %4583 = vmatpush1.msra.mxu0 0.0
    %4584 = vmatprep.subr.mxu0 0.0
    %4585 = vmatpush1.msra.mxu0 %v66
    %4586 = vmatprep.subr.mxu0 0.0
    %4587 = vmatpush1.msra.mxu0 %v65
    %4588 = vmatprep.subr.mxu0 0.0
    %4589 = vmatpush1.msra.mxu0 %v64
    %4590 = vmatprep.subr.mxu0 0.0
    %4591 = vmatpush1.msra.mxu0 %v63
    %4592 = vmatprep.subr.mxu0 0.0
    %4593 = vmatpush2.msra.mxu0 0.0
    %4594 = vmatprep.subr.mxu0 0.0
    %4595 = vmatpush2.msra.mxu0 0.0
    %4596 = vmatprep.subr.mxu0 0.0
    %4597 = vmatpush2.msra.mxu0 0.0
    %4598 = vmatprep.subr.mxu0 0.0
    %4599 = vmatpush2.msra.mxu0 0.0
    %4600 = vmatprep.subr.mxu0 0.0
    %4601 = vmatpush2.msra.mxu0 0.0
    %4602 = vmatprep.subr.mxu0 0.0
    %4603 = vmatpush2.msra.mxu0 0.0
    %4604 = vmatprep.subr.mxu0 0.0
    %4605 = vmatpush2.msra.mxu0 0.0
    %4606 = vmatprep.subr.mxu0 0.0
    %4607 = vmatpush2.msra.mxu0 0.0
    %4608 = vmatprep.subr.mxu0 0.0
    %4609 = vmatpush2.msra.mxu0 0.0
    %4610 = vmatprep.subr.mxu0 0.0
    %4611 = vmatpush2.msra.mxu0 0.0
    %4612 = vmatprep.subr.mxu0 0.0
    %4613 = vmatpush2.msra.mxu0 0.0
    %4614 = vmatprep.subr.mxu0 0.0
    %4615 = vmatpush2.msra.mxu0 0.0
    %4616 = vmatprep.subr.mxu0 0.0
    %4617 = vmatpush2.msra.mxu0 0.0
    %4618 = vmatprep.subr.mxu0 0.0
    %4619 = vmatpush2.msra.mxu0 0.0
    %4620 = vmatprep.subr.mxu0 0.0
    %4621 = vmatpush2.msra.mxu0 0.0
    %4622 = vmatprep.subr.mxu0 0.0
    %4623 = vmatpush2.msra.mxu0 0.0
    %4624 = vmatprep.mubr.f32.mxu0 0.0
    %4625 = vmatmul.mubr.f32.gmra.mxu0 %v4555
    %v4626 = vpop.f32.mrf.mxu0
    %v4627 = vadd.f32 %v545, %v4626
    %v4628 = vpop.f32.mrf.mxu0
    %4629 = vmatprep.mubr.f32.mxu0 0.0
    %4630 = vmatmul.mubr.f32.gmra.mxu0 %v4558
    %v4631 = vpop.f32.mrf.mxu0
    %v4632 = vadd.f32 %v545, %v4631
    %v4633 = vpop.f32.mrf.mxu0
    %4634 = vdwg.mxu0
    %v4635 = vmax.f32 %v4627, 0.0
    %v4636 = vmax.f32 %v4632, 0.0
    %v4638 = vsel %vm547, %v4635, 0
    %v4641 = vsel %vm547, %v4636, 0
    %4643 = vmatprep.subr.mxu0 0.0
    %4644 = vmatpush1.msra.mxu0 0.0
    %4645 = vmatprep.subr.mxu0 0.0
    %4646 = vmatpush1.msra.mxu0 0.0
    %4647 = vmatprep.subr.mxu0 0.0
    %4648 = vmatpush1.msra.mxu0 0.0
    %4649 = vmatprep.subr.mxu0 0.0
    %4650 = vmatpush1.msra.mxu0 0.0
    %4651 = vmatprep.subr.mxu0 0.0
    %4652 = vmatpush1.msra.mxu0 0.0
    %4653 = vmatprep.subr.mxu0 0.0
    %4654 = vmatpush1.msra.mxu0 0.0
    %4655 = vmatprep.subr.mxu0 0.0
    %4656 = vmatpush1.msra.mxu0 0.0
    %4657 = vmatprep.subr.mxu0 0.0
    %4658 = vmatpush1.msra.mxu0 0.0
    %4659 = vmatprep.subr.mxu0 0.0
    %4660 = vmatpush1.msra.mxu0 0.0
    %4661 = vmatprep.subr.mxu0 0.0
    %4662 = vmatpush1.msra.mxu0 0.0
    %4663 = vmatprep.subr.mxu0 0.0
    %4664 = vmatpush1.msra.mxu0 0.0
    %4665 = vmatprep.subr.mxu0 0.0
    %4666 = vmatpush1.msra.mxu0 0.0
    %4667 = vmatprep.subr.mxu0 0.0
    %4668 = vmatpush1.msra.mxu0 %v71
    %4669 = vmatprep.subr.mxu0 0.0
    %4670 = vmatpush1.msra.mxu0 %v70
    %4671 = vmatprep.subr.mxu0 0.0
    %4672 = vmatpush1.msra.mxu0 %v69
    %4673 = vmatprep.subr.mxu0 0.0
    %4674 = vmatpush1.msra.mxu0 %v68
    %4675 = vmatprep.subr.mxu0 0.0
    %4676 = vmatpush2.msra.mxu0 0.0
    %4677 = vmatprep.subr.mxu0 0.0
    %4678 = vmatpush2.msra.mxu0 0.0
    %4679 = vmatprep.subr.mxu0 0.0
    %4680 = vmatpush2.msra.mxu0 0.0
    %4681 = vmatprep.subr.mxu0 0.0
    %4682 = vmatpush2.msra.mxu0 0.0
    %4683 = vmatprep.subr.mxu0 0.0
    %4684 = vmatpush2.msra.mxu0 0.0
    %4685 = vmatprep.subr.mxu0 0.0
    %4686 = vmatpush2.msra.mxu0 0.0
    %4687 = vmatprep.subr.mxu0 0.0
    %4688 = vmatpush2.msra.mxu0 0.0
    %4689 = vmatprep.subr.mxu0 0.0
    %4690 = vmatpush2.msra.mxu0 0.0
    %4691 = vmatprep.subr.mxu0 0.0
    %4692 = vmatpush2.msra.mxu0 0.0
    %4693 = vmatprep.subr.mxu0 0.0
    %4694 = vmatpush2.msra.mxu0 0.0
    %4695 = vmatprep.subr.mxu0 0.0
    %4696 = vmatpush2.msra.mxu0 0.0
    %4697 = vmatprep.subr.mxu0 0.0
    %4698 = vmatpush2.msra.mxu0 0.0
    %4699 = vmatprep.subr.mxu0 0.0
    %4700 = vmatpush2.msra.mxu0 0.0
    %4701 = vmatprep.subr.mxu0 0.0
    %4702 = vmatpush2.msra.mxu0 0.0
    %4703 = vmatprep.subr.mxu0 0.0
    %4704 = vmatpush2.msra.mxu0 0.0
    %4705 = vmatprep.subr.mxu0 0.0
    %4706 = vmatpush2.msra.mxu0 0.0
    %4707 = vmatprep.mubr.f32.mxu0 0.0
    %4708 = vmatmul.mubr.f32.gmra.mxu0 %v4638
    %v4709 = vpop.f32.mrf.mxu0
    %v4710 = vadd.f32 %v635, %v4709
    %v4711 = vpop.f32.mrf.mxu0
    %4712 = vmatprep.mubr.f32.mxu0 0.0
    %4713 = vmatmul.mubr.f32.gmra.mxu0 %v4641
    %v4714 = vpop.f32.mrf.mxu0
    %v4715 = vadd.f32 %v635, %v4714
    %v4716 = vpop.f32.mrf.mxu0
    %4717 = vdwg.mxu0
    %v4718 = vtanh.pop %v4710
    %v4719 = vtanh.pop %v4715
    %v4720 = vmul.f32 %v4718, %v458
    %v4721 = vmul.f32 %v4719, %v464
    %4724 = vrot.lane.b32.xlu0 %v4720, 96
    %v4725 = vpop.permute.xlu0 %4724
    %4726 = vrot.lane.b32.xlu0 %v4721, 96
    %v4727 = vpop.permute.xlu0 %4726
    %v4730 = vadd.f32 %v4720, %v4725
    %v4731 = vadd.f32 %v4721, %v4727
    %4732 = vrot.lane.b32.xlu0 %v4720, 64
    %v4733 = vpop.permute.xlu0 %4732
    %4734 = vrot.lane.b32.xlu0 %v4721, 64
    %v4735 = vpop.permute.xlu0 %4734
    %v4738 = vadd.f32 %v4730, %v4733
    %v4739 = vadd.f32 %v4731, %v4735
    %4740 = vrot.lane.b32.xlu0 %v4720, 32
    %v4741 = vpop.permute.xlu0 %4740
    %4742 = vrot.lane.b32.xlu0 %v4721, 32
    %v4743 = vpop.permute.xlu0 %4742
    %v4746 = vadd.f32 %v4738, %v4741
    %v4747 = vadd.f32 %v4739, %v4743
    %v4748 = vmul.f32 %v4746, 0.5
    %v4749 = vmul.f32 %v4747, 0.5
    %v4750 = vadd.f32 %v4552, %v4748
    %v4751 = vadd.f32 %v4553, %v4749
    %v4753 = vsel %vm547, %v4750, 0
    %v4756 = vsel %vm547, %v4751, 0
    %4758 = vmatprep.subr.mxu0 0.0
    %4759 = vmatpush1.msra.mxu0 0.0
    %4760 = vmatprep.subr.mxu0 0.0
    %4761 = vmatpush1.msra.mxu0 0.0
    %4762 = vmatprep.subr.mxu0 0.0
    %4763 = vmatpush1.msra.mxu0 0.0
    %4764 = vmatprep.subr.mxu0 0.0
    %4765 = vmatpush1.msra.mxu0 0.0
    %4766 = vmatprep.subr.mxu0 0.0
    %4767 = vmatpush1.msra.mxu0 0.0
    %4768 = vmatprep.subr.mxu0 0.0
    %4769 = vmatpush1.msra.mxu0 0.0
    %4770 = vmatprep.subr.mxu0 0.0
    %4771 = vmatpush1.msra.mxu0 0.0
    %4772 = vmatprep.subr.mxu0 0.0
    %4773 = vmatpush1.msra.mxu0 0.0
    %4774 = vmatprep.subr.mxu0 0.0
    %4775 = vmatpush1.msra.mxu0 0.0
    %4776 = vmatprep.subr.mxu0 0.0
    %4777 = vmatpush1.msra.mxu0 0.0
    %4778 = vmatprep.subr.mxu0 0.0
    %4779 = vmatpush1.msra.mxu0 0.0
    %4780 = vmatprep.subr.mxu0 0.0
    %4781 = vmatpush1.msra.mxu0 0.0
    %4782 = vmatprep.subr.mxu0 0.0
    %4783 = vmatpush1.msra.mxu0 %v66
    %4784 = vmatprep.subr.mxu0 0.0
    %4785 = vmatpush1.msra.mxu0 %v65
    %4786 = vmatprep.subr.mxu0 0.0
    %4787 = vmatpush1.msra.mxu0 %v64
    %4788 = vmatprep.subr.mxu0 0.0
    %4789 = vmatpush1.msra.mxu0 %v63
    %4790 = vmatprep.subr.mxu0 0.0
    %4791 = vmatpush2.msra.mxu0 0.0
    %4792 = vmatprep.subr.mxu0 0.0
    %4793 = vmatpush2.msra.mxu0 0.0
    %4794 = vmatprep.subr.mxu0 0.0
    %4795 = vmatpush2.msra.mxu0 0.0
    %4796 = vmatprep.subr.mxu0 0.0
    %4797 = vmatpush2.msra.mxu0 0.0
    %4798 = vmatprep.subr.mxu0 0.0
    %4799 = vmatpush2.msra.mxu0 0.0
    %4800 = vmatprep.subr.mxu0 0.0
    %4801 = vmatpush2.msra.mxu0 0.0
    %4802 = vmatprep.subr.mxu0 0.0
    %4803 = vmatpush2.msra.mxu0 0.0
    %4804 = vmatprep.subr.mxu0 0.0
    %4805 = vmatpush2.msra.mxu0 0.0
    %4806 = vmatprep.subr.mxu0 0.0
    %4807 = vmatpush2.msra.mxu0 0.0
    %4808 = vmatprep.subr.mxu0 0.0
    %4809 = vmatpush2.msra.mxu0 0.0
    %4810 = vmatprep.subr.mxu0 0.0
    %4811 = vmatpush2.msra.mxu0 0.0
    %4812 = vmatprep.subr.mxu0 0.0
    %4813 = vmatpush2.msra.mxu0 0.0
    %4814 = vmatprep.subr.mxu0 0.0
    %4815 = vmatpush2.msra.mxu0 0.0
    %4816 = vmatprep.subr.mxu0 0.0
    %4817 = vmatpush2.msra.mxu0 0.0
    %4818 = vmatprep.subr.mxu0 0.0
    %4819 = vmatpush2.msra.mxu0 0.0
    %4820 = vmatprep.subr.mxu0 0.0
    %4821 = vmatpush2.msra.mxu0 0.0
    %4822 = vmatprep.mubr.f32.mxu0 0.0
    %4823 = vmatmul.mubr.f32.gmra.mxu0 %v4753
    %v4824 = vpop.f32.mrf.mxu0
    %v4825 = vadd.f32 %v545, %v4824
    %v4826 = vpop.f32.mrf.mxu0
    %4827 = vmatprep.mubr.f32.mxu0 0.0
    %4828 = vmatmul.mubr.f32.gmra.mxu0 %v4756
    %v4829 = vpop.f32.mrf.mxu0
    %v4830 = vadd.f32 %v545, %v4829
    %v4831 = vpop.f32.mrf.mxu0
    %4832 = vdwg.mxu0
    %v4833 = vmax.f32 %v4825, 0.0
    %v4834 = vmax.f32 %v4830, 0.0
    %v4836 = vsel %vm547, %v4833, 0
    %v4839 = vsel %vm547, %v4834, 0
    %4841 = vmatprep.subr.mxu0 0.0
    %4842 = vmatpush1.msra.mxu0 0.0
    %4843 = vmatprep.subr.mxu0 0.0
    %4844 = vmatpush1.msra.mxu0 0.0
    %4845 = vmatprep.subr.mxu0 0.0
    %4846 = vmatpush1.msra.mxu0 0.0
    %4847 = vmatprep.subr.mxu0 0.0
    %4848 = vmatpush1.msra.mxu0 0.0
    %4849 = vmatprep.subr.mxu0 0.0
    %4850 = vmatpush1.msra.mxu0 0.0
    %4851 = vmatprep.subr.mxu0 0.0
    %4852 = vmatpush1.msra.mxu0 0.0
    %4853 = vmatprep.subr.mxu0 0.0
    %4854 = vmatpush1.msra.mxu0 0.0
    %4855 = vmatprep.subr.mxu0 0.0
    %4856 = vmatpush1.msra.mxu0 0.0
    %4857 = vmatprep.subr.mxu0 0.0
    %4858 = vmatpush1.msra.mxu0 0.0
    %4859 = vmatprep.subr.mxu0 0.0
    %4860 = vmatpush1.msra.mxu0 0.0
    %4861 = vmatprep.subr.mxu0 0.0
    %4862 = vmatpush1.msra.mxu0 0.0
    %4863 = vmatprep.subr.mxu0 0.0
    %4864 = vmatpush1.msra.mxu0 0.0
    %4865 = vmatprep.subr.mxu0 0.0
    %4866 = vmatpush1.msra.mxu0 %v71
    %4867 = vmatprep.subr.mxu0 0.0
    %4868 = vmatpush1.msra.mxu0 %v70
    %4869 = vmatprep.subr.mxu0 0.0
    %4870 = vmatpush1.msra.mxu0 %v69
    %4871 = vmatprep.subr.mxu0 0.0
    %4872 = vmatpush1.msra.mxu0 %v68
    %4873 = vmatprep.subr.mxu0 0.0
    %4874 = vmatpush2.msra.mxu0 0.0
    %4875 = vmatprep.subr.mxu0 0.0
    %4876 = vmatpush2.msra.mxu0 0.0
    %4877 = vmatprep.subr.mxu0 0.0
    %4878 = vmatpush2.msra.mxu0 0.0
    %4879 = vmatprep.subr.mxu0 0.0
    %4880 = vmatpush2.msra.mxu0 0.0
    %4881 = vmatprep.subr.mxu0 0.0
    %4882 = vmatpush2.msra.mxu0 0.0
    %4883 = vmatprep.subr.mxu0 0.0
    %4884 = vmatpush2.msra.mxu0 0.0
    %4885 = vmatprep.subr.mxu0 0.0
    %4886 = vmatpush2.msra.mxu0 0.0
    %4887 = vmatprep.subr.mxu0 0.0
    %4888 = vmatpush2.msra.mxu0 0.0
    %4889 = vmatprep.subr.mxu0 0.0
    %4890 = vmatpush2.msra.mxu0 0.0
    %4891 = vmatprep.subr.mxu0 0.0
    %4892 = vmatpush2.msra.mxu0 0.0
    %4893 = vmatprep.subr.mxu0 0.0
    %4894 = vmatpush2.msra.mxu0 0.0
    %4895 = vmatprep.subr.mxu0 0.0
    %4896 = vmatpush2.msra.mxu0 0.0
    %4897 = vmatprep.subr.mxu0 0.0
    %4898 = vmatpush2.msra.mxu0 0.0
    %4899 = vmatprep.subr.mxu0 0.0
    %4900 = vmatpush2.msra.mxu0 0.0
    %4901 = vmatprep.subr.mxu0 0.0
    %4902 = vmatpush2.msra.mxu0 0.0
    %4903 = vmatprep.subr.mxu0 0.0
    %4904 = vmatpush2.msra.mxu0 0.0
    %4905 = vmatprep.mubr.f32.mxu0 0.0
    %4906 = vmatmul.mubr.f32.gmra.mxu0 %v4836
    %v4907 = vpop.f32.mrf.mxu0
    %v4908 = vadd.f32 %v635, %v4907
    %v4909 = vpop.f32.mrf.mxu0
    %4910 = vmatprep.mubr.f32.mxu0 0.0
    %4911 = vmatmul.mubr.f32.gmra.mxu0 %v4839
    %v4912 = vpop.f32.mrf.mxu0
    %v4913 = vadd.f32 %v635, %v4912
    %v4914 = vpop.f32.mrf.mxu0
    %4915 = vdwg.mxu0
    %v4916 = vtanh.pop %v4908
    %v4917 = vtanh.pop %v4913
    %v4918 = vmul.f32 %v4916, %v458
    %v4919 = vmul.f32 %v4917, %v464
    %4922 = vrot.lane.b32.xlu0 %v4918, 96
    %v4923 = vpop.permute.xlu0 %4922
    %4924 = vrot.lane.b32.xlu0 %v4919, 96
    %v4925 = vpop.permute.xlu0 %4924
    %v4928 = vadd.f32 %v4918, %v4923
    %v4929 = vadd.f32 %v4919, %v4925
    %4930 = vrot.lane.b32.xlu0 %v4918, 64
    %v4931 = vpop.permute.xlu0 %4930
    %4932 = vrot.lane.b32.xlu0 %v4919, 64
    %v4933 = vpop.permute.xlu0 %4932
    %v4936 = vadd.f32 %v4928, %v4931
    %v4937 = vadd.f32 %v4929, %v4933
    %4938 = vrot.lane.b32.xlu0 %v4918, 32
    %v4939 = vpop.permute.xlu0 %4938
    %4940 = vrot.lane.b32.xlu0 %v4919, 32
    %v4941 = vpop.permute.xlu0 %4940
    %v4944 = vadd.f32 %v4936, %v4939
    %v4945 = vadd.f32 %v4937, %v4941
    %v4946 = vmul.f32 %v4944, 0.5
    %v4947 = vmul.f32 %v4945, 0.5
    %v4948 = vadd.f32 %v4552, %v4946
    %v4949 = vadd.f32 %v4553, %v4947
    %v4951 = vsel %vm547, %v4948, 0
    %v4954 = vsel %vm547, %v4949, 0
    %4956 = vmatprep.subr.mxu0 0.0
    %4957 = vmatpush1.msra.mxu0 0.0
    %4958 = vmatprep.subr.mxu0 0.0
    %4959 = vmatpush1.msra.mxu0 0.0
    %4960 = vmatprep.subr.mxu0 0.0
    %4961 = vmatpush1.msra.mxu0 0.0
    %4962 = vmatprep.subr.mxu0 0.0
    %4963 = vmatpush1.msra.mxu0 0.0
    %4964 = vmatprep.subr.mxu0 0.0
    %4965 = vmatpush1.msra.mxu0 0.0
    %4966 = vmatprep.subr.mxu0 0.0
    %4967 = vmatpush1.msra.mxu0 0.0
    %4968 = vmatprep.subr.mxu0 0.0
    %4969 = vmatpush1.msra.mxu0 0.0
    %4970 = vmatprep.subr.mxu0 0.0
    %4971 = vmatpush1.msra.mxu0 0.0
    %4972 = vmatprep.subr.mxu0 0.0
    %4973 = vmatpush1.msra.mxu0 0.0
    %4974 = vmatprep.subr.mxu0 0.0
    %4975 = vmatpush1.msra.mxu0 0.0
    %4976 = vmatprep.subr.mxu0 0.0
    %4977 = vmatpush1.msra.mxu0 0.0
    %4978 = vmatprep.subr.mxu0 0.0
    %4979 = vmatpush1.msra.mxu0 0.0
    %4980 = vmatprep.subr.mxu0 0.0
    %4981 = vmatpush1.msra.mxu0 %v66
    %4982 = vmatprep.subr.mxu0 0.0
    %4983 = vmatpush1.msra.mxu0 %v65
    %4984 = vmatprep.subr.mxu0 0.0
    %4985 = vmatpush1.msra.mxu0 %v64
    %4986 = vmatprep.subr.mxu0 0.0
    %4987 = vmatpush1.msra.mxu0 %v63
    %4988 = vmatprep.subr.mxu0 0.0
    %4989 = vmatpush2.msra.mxu0 0.0
    %4990 = vmatprep.subr.mxu0 0.0
    %4991 = vmatpush2.msra.mxu0 0.0
    %4992 = vmatprep.subr.mxu0 0.0
    %4993 = vmatpush2.msra.mxu0 0.0
    %4994 = vmatprep.subr.mxu0 0.0
    %4995 = vmatpush2.msra.mxu0 0.0
    %4996 = vmatprep.subr.mxu0 0.0
    %4997 = vmatpush2.msra.mxu0 0.0
    %4998 = vmatprep.subr.mxu0 0.0
    %4999 = vmatpush2.msra.mxu0 0.0
    %5000 = vmatprep.subr.mxu0 0.0
    %5001 = vmatpush2.msra.mxu0 0.0
    %5002 = vmatprep.subr.mxu0 0.0
    %5003 = vmatpush2.msra.mxu0 0.0
    %5004 = vmatprep.subr.mxu0 0.0
    %5005 = vmatpush2.msra.mxu0 0.0
    %5006 = vmatprep.subr.mxu0 0.0
    %5007 = vmatpush2.msra.mxu0 0.0
    %5008 = vmatprep.subr.mxu0 0.0
    %5009 = vmatpush2.msra.mxu0 0.0
    %5010 = vmatprep.subr.mxu0 0.0
    %5011 = vmatpush2.msra.mxu0 0.0
    %5012 = vmatprep.subr.mxu0 0.0
    %5013 = vmatpush2.msra.mxu0 0.0
    %5014 = vmatprep.subr.mxu0 0.0
    %5015 = vmatpush2.msra.mxu0 0.0
    %5016 = vmatprep.subr.mxu0 0.0
    %5017 = vmatpush2.msra.mxu0 0.0
    %5018 = vmatprep.subr.mxu0 0.0
    %5019 = vmatpush2.msra.mxu0 0.0
    %5020 = vmatprep.mubr.f32.mxu0 0.0
    %5021 = vmatmul.mubr.f32.gmra.mxu0 %v4951
    %v5022 = vpop.f32.mrf.mxu0
    %v5023 = vadd.f32 %v545, %v5022
    %v5024 = vpop.f32.mrf.mxu0
    %5025 = vmatprep.mubr.f32.mxu0 0.0
    %5026 = vmatmul.mubr.f32.gmra.mxu0 %v4954
    %v5027 = vpop.f32.mrf.mxu0
    %v5028 = vadd.f32 %v545, %v5027
    %v5029 = vpop.f32.mrf.mxu0
    %5030 = vdwg.mxu0
    %v5031 = vmax.f32 %v5023, 0.0
    %v5032 = vmax.f32 %v5028, 0.0
    %v5034 = vsel %vm547, %v5031, 0
    %v5037 = vsel %vm547, %v5032, 0
    %5039 = vmatprep.subr.mxu0 0.0
    %5040 = vmatpush1.msra.mxu0 0.0
    %5041 = vmatprep.subr.mxu0 0.0
    %5042 = vmatpush1.msra.mxu0 0.0
    %5043 = vmatprep.subr.mxu0 0.0
    %5044 = vmatpush1.msra.mxu0 0.0
    %5045 = vmatprep.subr.mxu0 0.0
    %5046 = vmatpush1.msra.mxu0 0.0
    %5047 = vmatprep.subr.mxu0 0.0
    %5048 = vmatpush1.msra.mxu0 0.0
    %5049 = vmatprep.subr.mxu0 0.0
    %5050 = vmatpush1.msra.mxu0 0.0
    %5051 = vmatprep.subr.mxu0 0.0
    %5052 = vmatpush1.msra.mxu0 0.0
    %5053 = vmatprep.subr.mxu0 0.0
    %5054 = vmatpush1.msra.mxu0 0.0
    %5055 = vmatprep.subr.mxu0 0.0
    %5056 = vmatpush1.msra.mxu0 0.0
    %5057 = vmatprep.subr.mxu0 0.0
    %5058 = vmatpush1.msra.mxu0 0.0
    %5059 = vmatprep.subr.mxu0 0.0
    %5060 = vmatpush1.msra.mxu0 0.0
    %5061 = vmatprep.subr.mxu0 0.0
    %5062 = vmatpush1.msra.mxu0 0.0
    %5063 = vmatprep.subr.mxu0 0.0
    %5064 = vmatpush1.msra.mxu0 %v71
    %5065 = vmatprep.subr.mxu0 0.0
    %5066 = vmatpush1.msra.mxu0 %v70
    %5067 = vmatprep.subr.mxu0 0.0
    %5068 = vmatpush1.msra.mxu0 %v69
    %5069 = vmatprep.subr.mxu0 0.0
    %5070 = vmatpush1.msra.mxu0 %v68
    %5071 = vmatprep.subr.mxu0 0.0
    %5072 = vmatpush2.msra.mxu0 0.0
    %5073 = vmatprep.subr.mxu0 0.0
    %5074 = vmatpush2.msra.mxu0 0.0
    %5075 = vmatprep.subr.mxu0 0.0
    %5076 = vmatpush2.msra.mxu0 0.0
    %5077 = vmatprep.subr.mxu0 0.0
    %5078 = vmatpush2.msra.mxu0 0.0
    %5079 = vmatprep.subr.mxu0 0.0
    %5080 = vmatpush2.msra.mxu0 0.0
    %5081 = vmatprep.subr.mxu0 0.0
    %5082 = vmatpush2.msra.mxu0 0.0
    %5083 = vmatprep.subr.mxu0 0.0
    %5084 = vmatpush2.msra.mxu0 0.0
    %5085 = vmatprep.subr.mxu0 0.0
    %5086 = vmatpush2.msra.mxu0 0.0
    %5087 = vmatprep.subr.mxu0 0.0
    %5088 = vmatpush2.msra.mxu0 0.0
    %5089 = vmatprep.subr.mxu0 0.0
    %5090 = vmatpush2.msra.mxu0 0.0
    %5091 = vmatprep.subr.mxu0 0.0
    %5092 = vmatpush2.msra.mxu0 0.0
    %5093 = vmatprep.subr.mxu0 0.0
    %5094 = vmatpush2.msra.mxu0 0.0
    %5095 = vmatprep.subr.mxu0 0.0
    %5096 = vmatpush2.msra.mxu0 0.0
    %5097 = vmatprep.subr.mxu0 0.0
    %5098 = vmatpush2.msra.mxu0 0.0
    %5099 = vmatprep.subr.mxu0 0.0
    %5100 = vmatpush2.msra.mxu0 0.0
    %5101 = vmatprep.subr.mxu0 0.0
    %5102 = vmatpush2.msra.mxu0 0.0
    %5103 = vmatprep.mubr.f32.mxu0 0.0
    %5104 = vmatmul.mubr.f32.gmra.mxu0 %v5034
    %v5105 = vpop.f32.mrf.mxu0
    %v5106 = vadd.f32 %v635, %v5105
    %v5107 = vpop.f32.mrf.mxu0
    %5108 = vmatprep.mubr.f32.mxu0 0.0
    %5109 = vmatmul.mubr.f32.gmra.mxu0 %v5037
    %v5110 = vpop.f32.mrf.mxu0
    %v5111 = vadd.f32 %v635, %v5110
    %v5112 = vpop.f32.mrf.mxu0
    %5113 = vdwg.mxu0
    %v5114 = vtanh.pop %v5106
    %v5115 = vtanh.pop %v5111
    %v5116 = vmul.f32 %v5114, %v458
    %v5117 = vmul.f32 %v5115, %v464
    %5120 = vrot.lane.b32.xlu0 %v5116, 96
    %v5121 = vpop.permute.xlu0 %5120
    %5122 = vrot.lane.b32.xlu0 %v5117, 96
    %v5123 = vpop.permute.xlu0 %5122
    %v5126 = vadd.f32 %v5116, %v5121
    %v5127 = vadd.f32 %v5117, %v5123
    %5128 = vrot.lane.b32.xlu0 %v5116, 64
    %v5129 = vpop.permute.xlu0 %5128
    %5130 = vrot.lane.b32.xlu0 %v5117, 64
    %v5131 = vpop.permute.xlu0 %5130
    %v5134 = vadd.f32 %v5126, %v5129
    %v5135 = vadd.f32 %v5127, %v5131
    %5136 = vrot.lane.b32.xlu0 %v5116, 32
    %v5137 = vpop.permute.xlu0 %5136
    %5138 = vrot.lane.b32.xlu0 %v5117, 32
    %v5139 = vpop.permute.xlu0 %5138
    %v5142 = vadd.f32 %v5134, %v5137
    %v5143 = vadd.f32 %v5135, %v5139
    %v5144 = vadd.f32 %v4552, %v5142
    %v5145 = vadd.f32 %v4553, %v5143
    %v5147 = vsel %vm547, %v5144, 0
    %v5150 = vsel %vm547, %v5145, 0
    %5152 = vmatprep.subr.mxu0 0.0
    %5153 = vmatpush1.msra.mxu0 0.0
    %5154 = vmatprep.subr.mxu0 0.0
    %5155 = vmatpush1.msra.mxu0 0.0
    %5156 = vmatprep.subr.mxu0 0.0
    %5157 = vmatpush1.msra.mxu0 0.0
    %5158 = vmatprep.subr.mxu0 0.0
    %5159 = vmatpush1.msra.mxu0 0.0
    %5160 = vmatprep.subr.mxu0 0.0
    %5161 = vmatpush1.msra.mxu0 0.0
    %5162 = vmatprep.subr.mxu0 0.0
    %5163 = vmatpush1.msra.mxu0 0.0
    %5164 = vmatprep.subr.mxu0 0.0
    %5165 = vmatpush1.msra.mxu0 0.0
    %5166 = vmatprep.subr.mxu0 0.0
    %5167 = vmatpush1.msra.mxu0 0.0
    %5168 = vmatprep.subr.mxu0 0.0
    %5169 = vmatpush1.msra.mxu0 0.0
    %5170 = vmatprep.subr.mxu0 0.0
    %5171 = vmatpush1.msra.mxu0 0.0
    %5172 = vmatprep.subr.mxu0 0.0
    %5173 = vmatpush1.msra.mxu0 0.0
    %5174 = vmatprep.subr.mxu0 0.0
    %5175 = vmatpush1.msra.mxu0 0.0
    %5176 = vmatprep.subr.mxu0 0.0
    %5177 = vmatpush1.msra.mxu0 %v66
    %5178 = vmatprep.subr.mxu0 0.0
    %5179 = vmatpush1.msra.mxu0 %v65
    %5180 = vmatprep.subr.mxu0 0.0
    %5181 = vmatpush1.msra.mxu0 %v64
    %5182 = vmatprep.subr.mxu0 0.0
    %5183 = vmatpush1.msra.mxu0 %v63
    %5184 = vmatprep.subr.mxu0 0.0
    %5185 = vmatpush2.msra.mxu0 0.0
    %5186 = vmatprep.subr.mxu0 0.0
    %5187 = vmatpush2.msra.mxu0 0.0
    %5188 = vmatprep.subr.mxu0 0.0
    %5189 = vmatpush2.msra.mxu0 0.0
    %5190 = vmatprep.subr.mxu0 0.0
    %5191 = vmatpush2.msra.mxu0 0.0
    %5192 = vmatprep.subr.mxu0 0.0
    %5193 = vmatpush2.msra.mxu0 0.0
    %5194 = vmatprep.subr.mxu0 0.0
    %5195 = vmatpush2.msra.mxu0 0.0
    %5196 = vmatprep.subr.mxu0 0.0
    %5197 = vmatpush2.msra.mxu0 0.0
    %5198 = vmatprep.subr.mxu0 0.0
    %5199 = vmatpush2.msra.mxu0 0.0
    %5200 = vmatprep.subr.mxu0 0.0
    %5201 = vmatpush2.msra.mxu0 0.0
    %5202 = vmatprep.subr.mxu0 0.0
    %5203 = vmatpush2.msra.mxu0 0.0
    %5204 = vmatprep.subr.mxu0 0.0
    %5205 = vmatpush2.msra.mxu0 0.0
    %5206 = vmatprep.subr.mxu0 0.0
    %5207 = vmatpush2.msra.mxu0 0.0
    %5208 = vmatprep.subr.mxu0 0.0
    %5209 = vmatpush2.msra.mxu0 0.0
    %5210 = vmatprep.subr.mxu0 0.0
    %5211 = vmatpush2.msra.mxu0 0.0
    %5212 = vmatprep.subr.mxu0 0.0
    %5213 = vmatpush2.msra.mxu0 0.0
    %5214 = vmatprep.subr.mxu0 0.0
    %5215 = vmatpush2.msra.mxu0 0.0
    %5216 = vmatprep.mubr.f32.mxu0 0.0
    %5217 = vmatmul.mubr.f32.gmra.mxu0 %v5147
    %v5218 = vpop.f32.mrf.mxu0
    %v5219 = vadd.f32 %v545, %v5218
    %v5220 = vpop.f32.mrf.mxu0
    %5221 = vmatprep.mubr.f32.mxu0 0.0
    %5222 = vmatmul.mubr.f32.gmra.mxu0 %v5150
    %v5223 = vpop.f32.mrf.mxu0
    %v5224 = vadd.f32 %v545, %v5223
    %v5225 = vpop.f32.mrf.mxu0
    %5226 = vdwg.mxu0
    %v5227 = vmax.f32 %v5219, 0.0
    %v5228 = vmax.f32 %v5224, 0.0
    %v5230 = vsel %vm547, %v5227, 0
    %v5233 = vsel %vm547, %v5228, 0
    %5235 = vmatprep.subr.mxu0 0.0
    %5236 = vmatpush1.msra.mxu0 0.0
    %5237 = vmatprep.subr.mxu0 0.0
    %5238 = vmatpush1.msra.mxu0 0.0
    %5239 = vmatprep.subr.mxu0 0.0
    %5240 = vmatpush1.msra.mxu0 0.0
    %5241 = vmatprep.subr.mxu0 0.0
    %5242 = vmatpush1.msra.mxu0 0.0
    %5243 = vmatprep.subr.mxu0 0.0
    %5244 = vmatpush1.msra.mxu0 0.0
    %5245 = vmatprep.subr.mxu0 0.0
    %5246 = vmatpush1.msra.mxu0 0.0
    %5247 = vmatprep.subr.mxu0 0.0
    %5248 = vmatpush1.msra.mxu0 0.0
    %5249 = vmatprep.subr.mxu0 0.0
    %5250 = vmatpush1.msra.mxu0 0.0
    %5251 = vmatprep.subr.mxu0 0.0
    %5252 = vmatpush1.msra.mxu0 0.0
    %5253 = vmatprep.subr.mxu0 0.0
    %5254 = vmatpush1.msra.mxu0 0.0
    %5255 = vmatprep.subr.mxu0 0.0
    %5256 = vmatpush1.msra.mxu0 0.0
    %5257 = vmatprep.subr.mxu0 0.0
    %5258 = vmatpush1.msra.mxu0 0.0
    %5259 = vmatprep.subr.mxu0 0.0
    %5260 = vmatpush1.msra.mxu0 %v71
    %5261 = vmatprep.subr.mxu0 0.0
    %5262 = vmatpush1.msra.mxu0 %v70
    %5263 = vmatprep.subr.mxu0 0.0
    %5264 = vmatpush1.msra.mxu0 %v69
    %5265 = vmatprep.subr.mxu0 0.0
    %5266 = vmatpush1.msra.mxu0 %v68
    %5267 = vmatprep.subr.mxu0 0.0
    %5268 = vmatpush2.msra.mxu0 0.0
    %5269 = vmatprep.subr.mxu0 0.0
    %5270 = vmatpush2.msra.mxu0 0.0
    %5271 = vmatprep.subr.mxu0 0.0
    %5272 = vmatpush2.msra.mxu0 0.0
    %5273 = vmatprep.subr.mxu0 0.0
    %5274 = vmatpush2.msra.mxu0 0.0
    %5275 = vmatprep.subr.mxu0 0.0
    %5276 = vmatpush2.msra.mxu0 0.0
    %5277 = vmatprep.subr.mxu0 0.0
    %5278 = vmatpush2.msra.mxu0 0.0
    %5279 = vmatprep.subr.mxu0 0.0
    %5280 = vmatpush2.msra.mxu0 0.0
    %5281 = vmatprep.subr.mxu0 0.0
    %5282 = vmatpush2.msra.mxu0 0.0
    %5283 = vmatprep.subr.mxu0 0.0
    %5284 = vmatpush2.msra.mxu0 0.0
    %5285 = vmatprep.subr.mxu0 0.0
    %5286 = vmatpush2.msra.mxu0 0.0
    %5287 = vmatprep.subr.mxu0 0.0
    %5288 = vmatpush2.msra.mxu0 0.0
    %5289 = vmatprep.subr.mxu0 0.0
    %5290 = vmatpush2.msra.mxu0 0.0
    %5291 = vmatprep.subr.mxu0 0.0
    %5292 = vmatpush2.msra.mxu0 0.0
    %5293 = vmatprep.subr.mxu0 0.0
    %5294 = vmatpush2.msra.mxu0 0.0
    %5295 = vmatprep.subr.mxu0 0.0
    %5296 = vmatpush2.msra.mxu0 0.0
    %5297 = vmatprep.subr.mxu0 0.0
    %5298 = vmatpush2.msra.mxu0 0.0
    %5299 = vmatprep.mubr.f32.mxu0 0.0
    %5300 = vmatmul.mubr.f32.gmra.mxu0 %v5230
    %v5301 = vpop.f32.mrf.mxu0
    %v5302 = vadd.f32 %v635, %v5301
    %v5303 = vpop.f32.mrf.mxu0
    %5304 = vmatprep.mubr.f32.mxu0 0.0
    %5305 = vmatmul.mubr.f32.gmra.mxu0 %v5233
    %v5306 = vpop.f32.mrf.mxu0
    %v5307 = vadd.f32 %v635, %v5306
    %v5308 = vpop.f32.mrf.mxu0
    %5309 = vdwg.mxu0
    %v5310 = vtanh.pop %v5302
    %v5311 = vtanh.pop %v5307
    %v5312 = vmul.f32 %v5310, %v458
    %v5313 = vmul.f32 %v5311, %v464
    %5316 = vrot.lane.b32.xlu0 %v5312, 96
    %v5317 = vpop.permute.xlu0 %5316
    %5318 = vrot.lane.b32.xlu0 %v5313, 96
    %v5319 = vpop.permute.xlu0 %5318
    %v5322 = vadd.f32 %v5312, %v5317
    %v5323 = vadd.f32 %v5313, %v5319
    %5324 = vrot.lane.b32.xlu0 %v5312, 64
    %v5325 = vpop.permute.xlu0 %5324
    %5326 = vrot.lane.b32.xlu0 %v5313, 64
    %v5327 = vpop.permute.xlu0 %5326
    %v5330 = vadd.f32 %v5322, %v5325
    %v5331 = vadd.f32 %v5323, %v5327
    %5332 = vrot.lane.b32.xlu0 %v5312, 32
    %v5333 = vpop.permute.xlu0 %5332
    %5334 = vrot.lane.b32.xlu0 %v5313, 32
    %v5335 = vpop.permute.xlu0 %5334
    %v5338 = vadd.f32 %v5330, %v5333
    %v5339 = vadd.f32 %v5331, %v5335
    %v5340 = vmul.f32 %v4944, 2.0
    %v5341 = vmul.f32 %v4945, 2.0
    %v5342 = vadd.f32 %v4746, %v5340
    %v5343 = vadd.f32 %v4747, %v5341
    %v5344 = vmul.f32 %v5142, 2.0
    %v5345 = vmul.f32 %v5143, 2.0
    %v5346 = vadd.f32 %v5342, %v5344
    %v5347 = vadd.f32 %v5343, %v5345
    %v5348 = vadd.f32 %v5346, %v5338
    %v5349 = vadd.f32 %v5347, %v5339
    %v5350 = vmul.f32 %v5348, 0.16666667
    %v5351 = vmul.f32 %v5349, 0.16666667
    %v5352 = vadd.f32 %v4552, %v5350
    %v5353 = vadd.f32 %v4553, %v5351
    %v5355 = vsel %vm547, %v5352, 0
    %v5358 = vsel %vm547, %v5353, 0
    %5360 = vmatprep.subr.mxu0 0.0
    %5361 = vmatpush1.msra.mxu0 0.0
    %5362 = vmatprep.subr.mxu0 0.0
    %5363 = vmatpush1.msra.mxu0 0.0
    %5364 = vmatprep.subr.mxu0 0.0
    %5365 = vmatpush1.msra.mxu0 0.0
    %5366 = vmatprep.subr.mxu0 0.0
    %5367 = vmatpush1.msra.mxu0 0.0
    %5368 = vmatprep.subr.mxu0 0.0
    %5369 = vmatpush1.msra.mxu0 0.0
    %5370 = vmatprep.subr.mxu0 0.0
    %5371 = vmatpush1.msra.mxu0 0.0
    %5372 = vmatprep.subr.mxu0 0.0
    %5373 = vmatpush1.msra.mxu0 0.0
    %5374 = vmatprep.subr.mxu0 0.0
    %5375 = vmatpush1.msra.mxu0 0.0
    %5376 = vmatprep.subr.mxu0 0.0
    %5377 = vmatpush1.msra.mxu0 0.0
    %5378 = vmatprep.subr.mxu0 0.0
    %5379 = vmatpush1.msra.mxu0 0.0
    %5380 = vmatprep.subr.mxu0 0.0
    %5381 = vmatpush1.msra.mxu0 0.0
    %5382 = vmatprep.subr.mxu0 0.0
    %5383 = vmatpush1.msra.mxu0 0.0
    %5384 = vmatprep.subr.mxu0 0.0
    %5385 = vmatpush1.msra.mxu0 %v66
    %5386 = vmatprep.subr.mxu0 0.0
    %5387 = vmatpush1.msra.mxu0 %v65
    %5388 = vmatprep.subr.mxu0 0.0
    %5389 = vmatpush1.msra.mxu0 %v64
    %5390 = vmatprep.subr.mxu0 0.0
    %5391 = vmatpush1.msra.mxu0 %v63
    %5392 = vmatprep.subr.mxu0 0.0
    %5393 = vmatpush2.msra.mxu0 0.0
    %5394 = vmatprep.subr.mxu0 0.0
    %5395 = vmatpush2.msra.mxu0 0.0
    %5396 = vmatprep.subr.mxu0 0.0
    %5397 = vmatpush2.msra.mxu0 0.0
    %5398 = vmatprep.subr.mxu0 0.0
    %5399 = vmatpush2.msra.mxu0 0.0
    %5400 = vmatprep.subr.mxu0 0.0
    %5401 = vmatpush2.msra.mxu0 0.0
    %5402 = vmatprep.subr.mxu0 0.0
    %5403 = vmatpush2.msra.mxu0 0.0
    %5404 = vmatprep.subr.mxu0 0.0
    %5405 = vmatpush2.msra.mxu0 0.0
    %5406 = vmatprep.subr.mxu0 0.0
    %5407 = vmatpush2.msra.mxu0 0.0
    %5408 = vmatprep.subr.mxu0 0.0
    %5409 = vmatpush2.msra.mxu0 0.0
    %5410 = vmatprep.subr.mxu0 0.0
    %5411 = vmatpush2.msra.mxu0 0.0
    %5412 = vmatprep.subr.mxu0 0.0
    %5413 = vmatpush2.msra.mxu0 0.0
    %5414 = vmatprep.subr.mxu0 0.0
    %5415 = vmatpush2.msra.mxu0 0.0
    %5416 = vmatprep.subr.mxu0 0.0
    %5417 = vmatpush2.msra.mxu0 0.0
    %5418 = vmatprep.subr.mxu0 0.0
    %5419 = vmatpush2.msra.mxu0 0.0
    %5420 = vmatprep.subr.mxu0 0.0
    %5421 = vmatpush2.msra.mxu0 0.0
    %5422 = vmatprep.subr.mxu0 0.0
    %5423 = vmatpush2.msra.mxu0 0.0
    %5424 = vmatprep.mubr.f32.mxu0 0.0
    %5425 = vmatmul.mubr.f32.gmra.mxu0 %v5355
    %v5426 = vpop.f32.mrf.mxu0
    %v5427 = vadd.f32 %v545, %v5426
    %v5428 = vpop.f32.mrf.mxu0
    %5429 = vmatprep.mubr.f32.mxu0 0.0
    %5430 = vmatmul.mubr.f32.gmra.mxu0 %v5358
    %v5431 = vpop.f32.mrf.mxu0
    %v5432 = vadd.f32 %v545, %v5431
    %v5433 = vpop.f32.mrf.mxu0
    %5434 = vdwg.mxu0
    %v5435 = vmax.f32 %v5427, 0.0
    %v5436 = vmax.f32 %v5432, 0.0
    %v5438 = vsel %vm547, %v5435, 0
    %v5441 = vsel %vm547, %v5436, 0
    %5443 = vmatprep.subr.mxu0 0.0
    %5444 = vmatpush1.msra.mxu0 0.0
    %5445 = vmatprep.subr.mxu0 0.0
    %5446 = vmatpush1.msra.mxu0 0.0
    %5447 = vmatprep.subr.mxu0 0.0
    %5448 = vmatpush1.msra.mxu0 0.0
    %5449 = vmatprep.subr.mxu0 0.0
    %5450 = vmatpush1.msra.mxu0 0.0
    %5451 = vmatprep.subr.mxu0 0.0
    %5452 = vmatpush1.msra.mxu0 0.0
    %5453 = vmatprep.subr.mxu0 0.0
    %5454 = vmatpush1.msra.mxu0 0.0
    %5455 = vmatprep.subr.mxu0 0.0
    %5456 = vmatpush1.msra.mxu0 0.0
    %5457 = vmatprep.subr.mxu0 0.0
    %5458 = vmatpush1.msra.mxu0 0.0
    %5459 = vmatprep.subr.mxu0 0.0
    %5460 = vmatpush1.msra.mxu0 0.0
    %5461 = vmatprep.subr.mxu0 0.0
    %5462 = vmatpush1.msra.mxu0 0.0
    %5463 = vmatprep.subr.mxu0 0.0
    %5464 = vmatpush1.msra.mxu0 0.0
    %5465 = vmatprep.subr.mxu0 0.0
    %5466 = vmatpush1.msra.mxu0 0.0
    %5467 = vmatprep.subr.mxu0 0.0
    %5468 = vmatpush1.msra.mxu0 %v71
    %5469 = vmatprep.subr.mxu0 0.0
    %5470 = vmatpush1.msra.mxu0 %v70
    %5471 = vmatprep.subr.mxu0 0.0
    %5472 = vmatpush1.msra.mxu0 %v69
    %5473 = vmatprep.subr.mxu0 0.0
    %5474 = vmatpush1.msra.mxu0 %v68
    %5475 = vmatprep.subr.mxu0 0.0
    %5476 = vmatpush2.msra.mxu0 0.0
    %5477 = vmatprep.subr.mxu0 0.0
    %5478 = vmatpush2.msra.mxu0 0.0
    %5479 = vmatprep.subr.mxu0 0.0
    %5480 = vmatpush2.msra.mxu0 0.0
    %5481 = vmatprep.subr.mxu0 0.0
    %5482 = vmatpush2.msra.mxu0 0.0
    %5483 = vmatprep.subr.mxu0 0.0
    %5484 = vmatpush2.msra.mxu0 0.0
    %5485 = vmatprep.subr.mxu0 0.0
    %5486 = vmatpush2.msra.mxu0 0.0
    %5487 = vmatprep.subr.mxu0 0.0
    %5488 = vmatpush2.msra.mxu0 0.0
    %5489 = vmatprep.subr.mxu0 0.0
    %5490 = vmatpush2.msra.mxu0 0.0
    %5491 = vmatprep.subr.mxu0 0.0
    %5492 = vmatpush2.msra.mxu0 0.0
    %5493 = vmatprep.subr.mxu0 0.0
    %5494 = vmatpush2.msra.mxu0 0.0
    %5495 = vmatprep.subr.mxu0 0.0
    %5496 = vmatpush2.msra.mxu0 0.0
    %5497 = vmatprep.subr.mxu0 0.0
    %5498 = vmatpush2.msra.mxu0 0.0
    %5499 = vmatprep.subr.mxu0 0.0
    %5500 = vmatpush2.msra.mxu0 0.0
    %5501 = vmatprep.subr.mxu0 0.0
    %5502 = vmatpush2.msra.mxu0 0.0
    %5503 = vmatprep.subr.mxu0 0.0
    %5504 = vmatpush2.msra.mxu0 0.0
    %5505 = vmatprep.subr.mxu0 0.0
    %5506 = vmatpush2.msra.mxu0 0.0
    %5507 = vmatprep.mubr.f32.mxu0 0.0
    %5508 = vmatmul.mubr.f32.gmra.mxu0 %v5438
    %v5509 = vpop.f32.mrf.mxu0
    %v5510 = vadd.f32 %v635, %v5509
    %v5511 = vpop.f32.mrf.mxu0
    %5512 = vmatprep.mubr.f32.mxu0 0.0
    %5513 = vmatmul.mubr.f32.gmra.mxu0 %v5441
    %v5514 = vpop.f32.mrf.mxu0
    %v5515 = vadd.f32 %v635, %v5514
    %v5516 = vpop.f32.mrf.mxu0
    %5517 = vdwg.mxu0
    %v5518 = vtanh.pop %v5510
    %v5519 = vtanh.pop %v5515
    %v5520 = vmul.f32 %v5518, %v533
    %v5521 = vmul.f32 %v5519, %v538
    %5524 = vrot.lane.b32.xlu0 %v5520, 96
    %v5525 = vpop.permute.xlu0 %5524
    %5526 = vrot.lane.b32.xlu0 %v5521, 96
    %v5527 = vpop.permute.xlu0 %5526
    %v5530 = vadd.f32 %v5520, %v5525
    %v5531 = vadd.f32 %v5521, %v5527
    %5532 = vrot.lane.b32.xlu0 %v5520, 64
    %v5533 = vpop.permute.xlu0 %5532
    %5534 = vrot.lane.b32.xlu0 %v5521, 64
    %v5535 = vpop.permute.xlu0 %5534
    %v5538 = vadd.f32 %v5530, %v5533
    %v5539 = vadd.f32 %v5531, %v5535
    %5540 = vrot.lane.b32.xlu0 %v5520, 32
    %v5541 = vpop.permute.xlu0 %5540
    %5542 = vrot.lane.b32.xlu0 %v5521, 32
    %v5543 = vpop.permute.xlu0 %5542
    %v5546 = vadd.f32 %v5538, %v5541
    %v5547 = vadd.f32 %v5539, %v5543
    %v5548 = vmul.f32 %v5546, 0.5
    %v5549 = vmul.f32 %v5547, 0.5
    %v5550 = vadd.f32 %v5352, %v5548
    %v5551 = vadd.f32 %v5353, %v5549
    %v5553 = vsel %vm547, %v5550, 0
    %v5556 = vsel %vm547, %v5551, 0
    %5558 = vmatprep.subr.mxu0 0.0
    %5559 = vmatpush1.msra.mxu0 0.0
    %5560 = vmatprep.subr.mxu0 0.0
    %5561 = vmatpush1.msra.mxu0 0.0
    %5562 = vmatprep.subr.mxu0 0.0
    %5563 = vmatpush1.msra.mxu0 0.0
    %5564 = vmatprep.subr.mxu0 0.0
    %5565 = vmatpush1.msra.mxu0 0.0
    %5566 = vmatprep.subr.mxu0 0.0
    %5567 = vmatpush1.msra.mxu0 0.0
    %5568 = vmatprep.subr.mxu0 0.0
    %5569 = vmatpush1.msra.mxu0 0.0
    %5570 = vmatprep.subr.mxu0 0.0
    %5571 = vmatpush1.msra.mxu0 0.0
    %5572 = vmatprep.subr.mxu0 0.0
    %5573 = vmatpush1.msra.mxu0 0.0
    %5574 = vmatprep.subr.mxu0 0.0
    %5575 = vmatpush1.msra.mxu0 0.0
    %5576 = vmatprep.subr.mxu0 0.0
    %5577 = vmatpush1.msra.mxu0 0.0
    %5578 = vmatprep.subr.mxu0 0.0
    %5579 = vmatpush1.msra.mxu0 0.0
    %5580 = vmatprep.subr.mxu0 0.0
    %5581 = vmatpush1.msra.mxu0 0.0
    %5582 = vmatprep.subr.mxu0 0.0
    %5583 = vmatpush1.msra.mxu0 %v66
    %5584 = vmatprep.subr.mxu0 0.0
    %5585 = vmatpush1.msra.mxu0 %v65
    %5586 = vmatprep.subr.mxu0 0.0
    %5587 = vmatpush1.msra.mxu0 %v64
    %5588 = vmatprep.subr.mxu0 0.0
    %5589 = vmatpush1.msra.mxu0 %v63
    %5590 = vmatprep.subr.mxu0 0.0
    %5591 = vmatpush2.msra.mxu0 0.0
    %5592 = vmatprep.subr.mxu0 0.0
    %5593 = vmatpush2.msra.mxu0 0.0
    %5594 = vmatprep.subr.mxu0 0.0
    %5595 = vmatpush2.msra.mxu0 0.0
    %5596 = vmatprep.subr.mxu0 0.0
    %5597 = vmatpush2.msra.mxu0 0.0
    %5598 = vmatprep.subr.mxu0 0.0
    %5599 = vmatpush2.msra.mxu0 0.0
    %5600 = vmatprep.subr.mxu0 0.0
    %5601 = vmatpush2.msra.mxu0 0.0
    %5602 = vmatprep.subr.mxu0 0.0
    %5603 = vmatpush2.msra.mxu0 0.0
    %5604 = vmatprep.subr.mxu0 0.0
    %5605 = vmatpush2.msra.mxu0 0.0
    %5606 = vmatprep.subr.mxu0 0.0
    %5607 = vmatpush2.msra.mxu0 0.0
    %5608 = vmatprep.subr.mxu0 0.0
    %5609 = vmatpush2.msra.mxu0 0.0
    %5610 = vmatprep.subr.mxu0 0.0
    %5611 = vmatpush2.msra.mxu0 0.0
    %5612 = vmatprep.subr.mxu0 0.0
    %5613 = vmatpush2.msra.mxu0 0.0
    %5614 = vmatprep.subr.mxu0 0.0
    %5615 = vmatpush2.msra.mxu0 0.0
    %5616 = vmatprep.subr.mxu0 0.0
    %5617 = vmatpush2.msra.mxu0 0.0
    %5618 = vmatprep.subr.mxu0 0.0
    %5619 = vmatpush2.msra.mxu0 0.0
    %5620 = vmatprep.subr.mxu0 0.0
    %5621 = vmatpush2.msra.mxu0 0.0
    %5622 = vmatprep.mubr.f32.mxu0 0.0
    %5623 = vmatmul.mubr.f32.gmra.mxu0 %v5553
    %v5624 = vpop.f32.mrf.mxu0
    %v5625 = vadd.f32 %v545, %v5624
    %v5626 = vpop.f32.mrf.mxu0
    %5627 = vmatprep.mubr.f32.mxu0 0.0
    %5628 = vmatmul.mubr.f32.gmra.mxu0 %v5556
    %v5629 = vpop.f32.mrf.mxu0
    %v5630 = vadd.f32 %v545, %v5629
    %v5631 = vpop.f32.mrf.mxu0
    %5632 = vdwg.mxu0
    %v5633 = vmax.f32 %v5625, 0.0
    %v5634 = vmax.f32 %v5630, 0.0
    %v5636 = vsel %vm547, %v5633, 0
    %v5639 = vsel %vm547, %v5634, 0
    %5641 = vmatprep.subr.mxu0 0.0
    %5642 = vmatpush1.msra.mxu0 0.0
    %5643 = vmatprep.subr.mxu0 0.0
    %5644 = vmatpush1.msra.mxu0 0.0
    %5645 = vmatprep.subr.mxu0 0.0
    %5646 = vmatpush1.msra.mxu0 0.0
    %5647 = vmatprep.subr.mxu0 0.0
    %5648 = vmatpush1.msra.mxu0 0.0
    %5649 = vmatprep.subr.mxu0 0.0
    %5650 = vmatpush1.msra.mxu0 0.0
    %5651 = vmatprep.subr.mxu0 0.0
    %5652 = vmatpush1.msra.mxu0 0.0
    %5653 = vmatprep.subr.mxu0 0.0
    %5654 = vmatpush1.msra.mxu0 0.0
    %5655 = vmatprep.subr.mxu0 0.0
    %5656 = vmatpush1.msra.mxu0 0.0
    %5657 = vmatprep.subr.mxu0 0.0
    %5658 = vmatpush1.msra.mxu0 0.0
    %5659 = vmatprep.subr.mxu0 0.0
    %5660 = vmatpush1.msra.mxu0 0.0
    %5661 = vmatprep.subr.mxu0 0.0
    %5662 = vmatpush1.msra.mxu0 0.0
    %5663 = vmatprep.subr.mxu0 0.0
    %5664 = vmatpush1.msra.mxu0 0.0
    %5665 = vmatprep.subr.mxu0 0.0
    %5666 = vmatpush1.msra.mxu0 %v71
    %5667 = vmatprep.subr.mxu0 0.0
    %5668 = vmatpush1.msra.mxu0 %v70
    %5669 = vmatprep.subr.mxu0 0.0
    %5670 = vmatpush1.msra.mxu0 %v69
    %5671 = vmatprep.subr.mxu0 0.0
    %5672 = vmatpush1.msra.mxu0 %v68
    %5673 = vmatprep.subr.mxu0 0.0
    %5674 = vmatpush2.msra.mxu0 0.0
    %5675 = vmatprep.subr.mxu0 0.0
    %5676 = vmatpush2.msra.mxu0 0.0
    %5677 = vmatprep.subr.mxu0 0.0
    %5678 = vmatpush2.msra.mxu0 0.0
    %5679 = vmatprep.subr.mxu0 0.0
    %5680 = vmatpush2.msra.mxu0 0.0
    %5681 = vmatprep.subr.mxu0 0.0
    %5682 = vmatpush2.msra.mxu0 0.0
    %5683 = vmatprep.subr.mxu0 0.0
    %5684 = vmatpush2.msra.mxu0 0.0
    %5685 = vmatprep.subr.mxu0 0.0
    %5686 = vmatpush2.msra.mxu0 0.0
    %5687 = vmatprep.subr.mxu0 0.0
    %5688 = vmatpush2.msra.mxu0 0.0
    %5689 = vmatprep.subr.mxu0 0.0
    %5690 = vmatpush2.msra.mxu0 0.0
    %5691 = vmatprep.subr.mxu0 0.0
    %5692 = vmatpush2.msra.mxu0 0.0
    %5693 = vmatprep.subr.mxu0 0.0
    %5694 = vmatpush2.msra.mxu0 0.0
    %5695 = vmatprep.subr.mxu0 0.0
    %5696 = vmatpush2.msra.mxu0 0.0
    %5697 = vmatprep.subr.mxu0 0.0
    %5698 = vmatpush2.msra.mxu0 0.0
    %5699 = vmatprep.subr.mxu0 0.0
    %5700 = vmatpush2.msra.mxu0 0.0
    %5701 = vmatprep.subr.mxu0 0.0
    %5702 = vmatpush2.msra.mxu0 0.0
    %5703 = vmatprep.subr.mxu0 0.0
    %5704 = vmatpush2.msra.mxu0 0.0
    %5705 = vmatprep.mubr.f32.mxu0 0.0
    %5706 = vmatmul.mubr.f32.gmra.mxu0 %v5636
    %v5707 = vpop.f32.mrf.mxu0
    %v5708 = vadd.f32 %v635, %v5707
    %v5709 = vpop.f32.mrf.mxu0
    %5710 = vmatprep.mubr.f32.mxu0 0.0
    %5711 = vmatmul.mubr.f32.gmra.mxu0 %v5639
    %v5712 = vpop.f32.mrf.mxu0
    %v5713 = vadd.f32 %v635, %v5712
    %v5714 = vpop.f32.mrf.mxu0
    %5715 = vdwg.mxu0
    %v5716 = vtanh.pop %v5708
    %v5717 = vtanh.pop %v5713
    %v5718 = vmul.f32 %v5716, %v533
    %v5719 = vmul.f32 %v5717, %v538
    %5722 = vrot.lane.b32.xlu0 %v5718, 96
    %v5723 = vpop.permute.xlu0 %5722
    %5724 = vrot.lane.b32.xlu0 %v5719, 96
    %v5725 = vpop.permute.xlu0 %5724
    %v5728 = vadd.f32 %v5718, %v5723
    %v5729 = vadd.f32 %v5719, %v5725
    %5730 = vrot.lane.b32.xlu0 %v5718, 64
    %v5731 = vpop.permute.xlu0 %5730
    %5732 = vrot.lane.b32.xlu0 %v5719, 64
    %v5733 = vpop.permute.xlu0 %5732
    %v5736 = vadd.f32 %v5728, %v5731
    %v5737 = vadd.f32 %v5729, %v5733
    %5738 = vrot.lane.b32.xlu0 %v5718, 32
    %v5739 = vpop.permute.xlu0 %5738
    %5740 = vrot.lane.b32.xlu0 %v5719, 32
    %v5741 = vpop.permute.xlu0 %5740
    %v5744 = vadd.f32 %v5736, %v5739
    %v5745 = vadd.f32 %v5737, %v5741
    %v5746 = vmul.f32 %v5744, 0.5
    %v5747 = vmul.f32 %v5745, 0.5
    %v5748 = vadd.f32 %v5352, %v5746
    %v5749 = vadd.f32 %v5353, %v5747
    %v5751 = vsel %vm547, %v5748, 0
    %v5754 = vsel %vm547, %v5749, 0
    %5756 = vmatprep.subr.mxu0 0.0
    %5757 = vmatpush1.msra.mxu0 0.0
    %5758 = vmatprep.subr.mxu0 0.0
    %5759 = vmatpush1.msra.mxu0 0.0
    %5760 = vmatprep.subr.mxu0 0.0
    %5761 = vmatpush1.msra.mxu0 0.0
    %5762 = vmatprep.subr.mxu0 0.0
    %5763 = vmatpush1.msra.mxu0 0.0
    %5764 = vmatprep.subr.mxu0 0.0
    %5765 = vmatpush1.msra.mxu0 0.0
    %5766 = vmatprep.subr.mxu0 0.0
    %5767 = vmatpush1.msra.mxu0 0.0
    %5768 = vmatprep.subr.mxu0 0.0
    %5769 = vmatpush1.msra.mxu0 0.0
    %5770 = vmatprep.subr.mxu0 0.0
    %5771 = vmatpush1.msra.mxu0 0.0
    %5772 = vmatprep.subr.mxu0 0.0
    %5773 = vmatpush1.msra.mxu0 0.0
    %5774 = vmatprep.subr.mxu0 0.0
    %5775 = vmatpush1.msra.mxu0 0.0
    %5776 = vmatprep.subr.mxu0 0.0
    %5777 = vmatpush1.msra.mxu0 0.0
    %5778 = vmatprep.subr.mxu0 0.0
    %5779 = vmatpush1.msra.mxu0 0.0
    %5780 = vmatprep.subr.mxu0 0.0
    %5781 = vmatpush1.msra.mxu0 %v66
    %5782 = vmatprep.subr.mxu0 0.0
    %5783 = vmatpush1.msra.mxu0 %v65
    %5784 = vmatprep.subr.mxu0 0.0
    %5785 = vmatpush1.msra.mxu0 %v64
    %5786 = vmatprep.subr.mxu0 0.0
    %5787 = vmatpush1.msra.mxu0 %v63
    %5788 = vmatprep.subr.mxu0 0.0
    %5789 = vmatpush2.msra.mxu0 0.0
    %5790 = vmatprep.subr.mxu0 0.0
    %5791 = vmatpush2.msra.mxu0 0.0
    %5792 = vmatprep.subr.mxu0 0.0
    %5793 = vmatpush2.msra.mxu0 0.0
    %5794 = vmatprep.subr.mxu0 0.0
    %5795 = vmatpush2.msra.mxu0 0.0
    %5796 = vmatprep.subr.mxu0 0.0
    %5797 = vmatpush2.msra.mxu0 0.0
    %5798 = vmatprep.subr.mxu0 0.0
    %5799 = vmatpush2.msra.mxu0 0.0
    %5800 = vmatprep.subr.mxu0 0.0
    %5801 = vmatpush2.msra.mxu0 0.0
    %5802 = vmatprep.subr.mxu0 0.0
    %5803 = vmatpush2.msra.mxu0 0.0
    %5804 = vmatprep.subr.mxu0 0.0
    %5805 = vmatpush2.msra.mxu0 0.0
    %5806 = vmatprep.subr.mxu0 0.0
    %5807 = vmatpush2.msra.mxu0 0.0
    %5808 = vmatprep.subr.mxu0 0.0
    %5809 = vmatpush2.msra.mxu0 0.0
    %5810 = vmatprep.subr.mxu0 0.0
    %5811 = vmatpush2.msra.mxu0 0.0
    %5812 = vmatprep.subr.mxu0 0.0
    %5813 = vmatpush2.msra.mxu0 0.0
    %5814 = vmatprep.subr.mxu0 0.0
    %5815 = vmatpush2.msra.mxu0 0.0
    %5816 = vmatprep.subr.mxu0 0.0
    %5817 = vmatpush2.msra.mxu0 0.0
    %5818 = vmatprep.subr.mxu0 0.0
    %5819 = vmatpush2.msra.mxu0 0.0
    %5820 = vmatprep.mubr.f32.mxu0 0.0
    %5821 = vmatmul.mubr.f32.gmra.mxu0 %v5751
    %v5822 = vpop.f32.mrf.mxu0
    %v5823 = vadd.f32 %v545, %v5822
    %v5824 = vpop.f32.mrf.mxu0
    %5825 = vmatprep.mubr.f32.mxu0 0.0
    %5826 = vmatmul.mubr.f32.gmra.mxu0 %v5754
    %v5827 = vpop.f32.mrf.mxu0
    %v5828 = vadd.f32 %v545, %v5827
    %v5829 = vpop.f32.mrf.mxu0
    %5830 = vdwg.mxu0
    %v5831 = vmax.f32 %v5823, 0.0
    %v5832 = vmax.f32 %v5828, 0.0
    %v5834 = vsel %vm547, %v5831, 0
    %v5837 = vsel %vm547, %v5832, 0
    %5839 = vmatprep.subr.mxu0 0.0
    %5840 = vmatpush1.msra.mxu0 0.0
    %5841 = vmatprep.subr.mxu0 0.0
    %5842 = vmatpush1.msra.mxu0 0.0
    %5843 = vmatprep.subr.mxu0 0.0
    %5844 = vmatpush1.msra.mxu0 0.0
    %5845 = vmatprep.subr.mxu0 0.0
    %5846 = vmatpush1.msra.mxu0 0.0
    %5847 = vmatprep.subr.mxu0 0.0
    %5848 = vmatpush1.msra.mxu0 0.0
    %5849 = vmatprep.subr.mxu0 0.0
    %5850 = vmatpush1.msra.mxu0 0.0
    %5851 = vmatprep.subr.mxu0 0.0
    %5852 = vmatpush1.msra.mxu0 0.0
    %5853 = vmatprep.subr.mxu0 0.0
    %5854 = vmatpush1.msra.mxu0 0.0
    %5855 = vmatprep.subr.mxu0 0.0
    %5856 = vmatpush1.msra.mxu0 0.0
    %5857 = vmatprep.subr.mxu0 0.0
    %5858 = vmatpush1.msra.mxu0 0.0
    %5859 = vmatprep.subr.mxu0 0.0
    %5860 = vmatpush1.msra.mxu0 0.0
    %5861 = vmatprep.subr.mxu0 0.0
    %5862 = vmatpush1.msra.mxu0 0.0
    %5863 = vmatprep.subr.mxu0 0.0
    %5864 = vmatpush1.msra.mxu0 %v71
    %5865 = vmatprep.subr.mxu0 0.0
    %5866 = vmatpush1.msra.mxu0 %v70
    %5867 = vmatprep.subr.mxu0 0.0
    %5868 = vmatpush1.msra.mxu0 %v69
    %5869 = vmatprep.subr.mxu0 0.0
    %5870 = vmatpush1.msra.mxu0 %v68
    %5871 = vmatprep.subr.mxu0 0.0
    %5872 = vmatpush2.msra.mxu0 0.0
    %5873 = vmatprep.subr.mxu0 0.0
    %5874 = vmatpush2.msra.mxu0 0.0
    %5875 = vmatprep.subr.mxu0 0.0
    %5876 = vmatpush2.msra.mxu0 0.0
    %5877 = vmatprep.subr.mxu0 0.0
    %5878 = vmatpush2.msra.mxu0 0.0
    %5879 = vmatprep.subr.mxu0 0.0
    %5880 = vmatpush2.msra.mxu0 0.0
    %5881 = vmatprep.subr.mxu0 0.0
    %5882 = vmatpush2.msra.mxu0 0.0
    %5883 = vmatprep.subr.mxu0 0.0
    %5884 = vmatpush2.msra.mxu0 0.0
    %5885 = vmatprep.subr.mxu0 0.0
    %5886 = vmatpush2.msra.mxu0 0.0
    %5887 = vmatprep.subr.mxu0 0.0
    %5888 = vmatpush2.msra.mxu0 0.0
    %5889 = vmatprep.subr.mxu0 0.0
    %5890 = vmatpush2.msra.mxu0 0.0
    %5891 = vmatprep.subr.mxu0 0.0
    %5892 = vmatpush2.msra.mxu0 0.0
    %5893 = vmatprep.subr.mxu0 0.0
    %5894 = vmatpush2.msra.mxu0 0.0
    %5895 = vmatprep.subr.mxu0 0.0
    %5896 = vmatpush2.msra.mxu0 0.0
    %5897 = vmatprep.subr.mxu0 0.0
    %5898 = vmatpush2.msra.mxu0 0.0
    %5899 = vmatprep.subr.mxu0 0.0
    %5900 = vmatpush2.msra.mxu0 0.0
    %5901 = vmatprep.subr.mxu0 0.0
    %5902 = vmatpush2.msra.mxu0 0.0
    %5903 = vmatprep.mubr.f32.mxu0 0.0
    %5904 = vmatmul.mubr.f32.gmra.mxu0 %v5834
    %v5905 = vpop.f32.mrf.mxu0
    %v5906 = vadd.f32 %v635, %v5905
    %v5907 = vpop.f32.mrf.mxu0
    %5908 = vmatprep.mubr.f32.mxu0 0.0
    %5909 = vmatmul.mubr.f32.gmra.mxu0 %v5837
    %v5910 = vpop.f32.mrf.mxu0
    %v5911 = vadd.f32 %v635, %v5910
    %v5912 = vpop.f32.mrf.mxu0
    %5913 = vdwg.mxu0
    %v5914 = vtanh.pop %v5906
    %v5915 = vtanh.pop %v5911
    %v5916 = vmul.f32 %v5914, %v533
    %v5917 = vmul.f32 %v5915, %v538
    %5920 = vrot.lane.b32.xlu0 %v5916, 96
    %v5921 = vpop.permute.xlu0 %5920
    %5922 = vrot.lane.b32.xlu0 %v5917, 96
    %v5923 = vpop.permute.xlu0 %5922
    %v5926 = vadd.f32 %v5916, %v5921
    %v5927 = vadd.f32 %v5917, %v5923
    %5928 = vrot.lane.b32.xlu0 %v5916, 64
    %v5929 = vpop.permute.xlu0 %5928
    %5930 = vrot.lane.b32.xlu0 %v5917, 64
    %v5931 = vpop.permute.xlu0 %5930
    %v5934 = vadd.f32 %v5926, %v5929
    %v5935 = vadd.f32 %v5927, %v5931
    %5936 = vrot.lane.b32.xlu0 %v5916, 32
    %v5937 = vpop.permute.xlu0 %5936
    %5938 = vrot.lane.b32.xlu0 %v5917, 32
    %v5939 = vpop.permute.xlu0 %5938
    %v5942 = vadd.f32 %v5934, %v5937
    %v5943 = vadd.f32 %v5935, %v5939
    %v5944 = vadd.f32 %v5352, %v5942
    %v5945 = vadd.f32 %v5353, %v5943
    %v5947 = vsel %vm547, %v5944, 0
    %v5950 = vsel %vm547, %v5945, 0
    %5952 = vmatprep.subr.mxu0 0.0
    %5953 = vmatpush1.msra.mxu0 0.0
    %5954 = vmatprep.subr.mxu0 0.0
    %5955 = vmatpush1.msra.mxu0 0.0
    %5956 = vmatprep.subr.mxu0 0.0
    %5957 = vmatpush1.msra.mxu0 0.0
    %5958 = vmatprep.subr.mxu0 0.0
    %5959 = vmatpush1.msra.mxu0 0.0
    %5960 = vmatprep.subr.mxu0 0.0
    %5961 = vmatpush1.msra.mxu0 0.0
    %5962 = vmatprep.subr.mxu0 0.0
    %5963 = vmatpush1.msra.mxu0 0.0
    %5964 = vmatprep.subr.mxu0 0.0
    %5965 = vmatpush1.msra.mxu0 0.0
    %5966 = vmatprep.subr.mxu0 0.0
    %5967 = vmatpush1.msra.mxu0 0.0
    %5968 = vmatprep.subr.mxu0 0.0
    %5969 = vmatpush1.msra.mxu0 0.0
    %5970 = vmatprep.subr.mxu0 0.0
    %5971 = vmatpush1.msra.mxu0 0.0
    %5972 = vmatprep.subr.mxu0 0.0
    %5973 = vmatpush1.msra.mxu0 0.0
    %5974 = vmatprep.subr.mxu0 0.0
    %5975 = vmatpush1.msra.mxu0 0.0
    %5976 = vmatprep.subr.mxu0 0.0
    %5977 = vmatpush1.msra.mxu0 %v66
    %5978 = vmatprep.subr.mxu0 0.0
    %5979 = vmatpush1.msra.mxu0 %v65
    %5980 = vmatprep.subr.mxu0 0.0
    %5981 = vmatpush1.msra.mxu0 %v64
    %5982 = vmatprep.subr.mxu0 0.0
    %5983 = vmatpush1.msra.mxu0 %v63
    %5984 = vmatprep.subr.mxu0 0.0
    %5985 = vmatpush2.msra.mxu0 0.0
    %5986 = vmatprep.subr.mxu0 0.0
    %5987 = vmatpush2.msra.mxu0 0.0
    %5988 = vmatprep.subr.mxu0 0.0
    %5989 = vmatpush2.msra.mxu0 0.0
    %5990 = vmatprep.subr.mxu0 0.0
    %5991 = vmatpush2.msra.mxu0 0.0
    %5992 = vmatprep.subr.mxu0 0.0
    %5993 = vmatpush2.msra.mxu0 0.0
    %5994 = vmatprep.subr.mxu0 0.0
    %5995 = vmatpush2.msra.mxu0 0.0
    %5996 = vmatprep.subr.mxu0 0.0
    %5997 = vmatpush2.msra.mxu0 0.0
    %5998 = vmatprep.subr.mxu0 0.0
    %5999 = vmatpush2.msra.mxu0 0.0
    %6000 = vmatprep.subr.mxu0 0.0
    %6001 = vmatpush2.msra.mxu0 0.0
    %6002 = vmatprep.subr.mxu0 0.0
    %6003 = vmatpush2.msra.mxu0 0.0
    %6004 = vmatprep.subr.mxu0 0.0
    %6005 = vmatpush2.msra.mxu0 0.0
    %6006 = vmatprep.subr.mxu0 0.0
    %6007 = vmatpush2.msra.mxu0 0.0
    %6008 = vmatprep.subr.mxu0 0.0
    %6009 = vmatpush2.msra.mxu0 0.0
    %6010 = vmatprep.subr.mxu0 0.0
    %6011 = vmatpush2.msra.mxu0 0.0
    %6012 = vmatprep.subr.mxu0 0.0
    %6013 = vmatpush2.msra.mxu0 0.0
    %6014 = vmatprep.subr.mxu0 0.0
    %6015 = vmatpush2.msra.mxu0 0.0
    %6016 = vmatprep.mubr.f32.mxu0 0.0
    %6017 = vmatmul.mubr.f32.gmra.mxu0 %v5947
    %v6018 = vpop.f32.mrf.mxu0
    %v6019 = vadd.f32 %v545, %v6018
    %v6020 = vpop.f32.mrf.mxu0
    %6021 = vmatprep.mubr.f32.mxu0 0.0
    %6022 = vmatmul.mubr.f32.gmra.mxu0 %v5950
    %v6023 = vpop.f32.mrf.mxu0
    %v6024 = vadd.f32 %v545, %v6023
    %v6025 = vpop.f32.mrf.mxu0
    %6026 = vdwg.mxu0
    %v6027 = vmax.f32 %v6019, 0.0
    %v6028 = vmax.f32 %v6024, 0.0
    %v6030 = vsel %vm547, %v6027, 0
    %v6033 = vsel %vm547, %v6028, 0
    %6035 = vmatprep.subr.mxu0 0.0
    %6036 = vmatpush1.msra.mxu0 0.0
    %6037 = vmatprep.subr.mxu0 0.0
    %6038 = vmatpush1.msra.mxu0 0.0
    %6039 = vmatprep.subr.mxu0 0.0
    %6040 = vmatpush1.msra.mxu0 0.0
    %6041 = vmatprep.subr.mxu0 0.0
    %6042 = vmatpush1.msra.mxu0 0.0
    %6043 = vmatprep.subr.mxu0 0.0
    %6044 = vmatpush1.msra.mxu0 0.0
    %6045 = vmatprep.subr.mxu0 0.0
    %6046 = vmatpush1.msra.mxu0 0.0
    %6047 = vmatprep.subr.mxu0 0.0
    %6048 = vmatpush1.msra.mxu0 0.0
    %6049 = vmatprep.subr.mxu0 0.0
    %6050 = vmatpush1.msra.mxu0 0.0
    %6051 = vmatprep.subr.mxu0 0.0
    %6052 = vmatpush1.msra.mxu0 0.0
    %6053 = vmatprep.subr.mxu0 0.0
    %6054 = vmatpush1.msra.mxu0 0.0
    %6055 = vmatprep.subr.mxu0 0.0
    %6056 = vmatpush1.msra.mxu0 0.0
    %6057 = vmatprep.subr.mxu0 0.0
    %6058 = vmatpush1.msra.mxu0 0.0
    %6059 = vmatprep.subr.mxu0 0.0
    %6060 = vmatpush1.msra.mxu0 %v71
    %6061 = vmatprep.subr.mxu0 0.0
    %6062 = vmatpush1.msra.mxu0 %v70
    %6063 = vmatprep.subr.mxu0 0.0
    %6064 = vmatpush1.msra.mxu0 %v69
    %6065 = vmatprep.subr.mxu0 0.0
    %6066 = vmatpush1.msra.mxu0 %v68
    %6067 = vmatprep.subr.mxu0 0.0
    %6068 = vmatpush2.msra.mxu0 0.0
    %6069 = vmatprep.subr.mxu0 0.0
    %6070 = vmatpush2.msra.mxu0 0.0
    %6071 = vmatprep.subr.mxu0 0.0
    %6072 = vmatpush2.msra.mxu0 0.0
    %6073 = vmatprep.subr.mxu0 0.0
    %6074 = vmatpush2.msra.mxu0 0.0
    %6075 = vmatprep.subr.mxu0 0.0
    %6076 = vmatpush2.msra.mxu0 0.0
    %6077 = vmatprep.subr.mxu0 0.0
    %6078 = vmatpush2.msra.mxu0 0.0
    %6079 = vmatprep.subr.mxu0 0.0
    %6080 = vmatpush2.msra.mxu0 0.0
    %6081 = vmatprep.subr.mxu0 0.0
    %6082 = vmatpush2.msra.mxu0 0.0
    %6083 = vmatprep.subr.mxu0 0.0
    %6084 = vmatpush2.msra.mxu0 0.0
    %6085 = vmatprep.subr.mxu0 0.0
    %6086 = vmatpush2.msra.mxu0 0.0
    %6087 = vmatprep.subr.mxu0 0.0
    %6088 = vmatpush2.msra.mxu0 0.0
    %6089 = vmatprep.subr.mxu0 0.0
    %6090 = vmatpush2.msra.mxu0 0.0
    %6091 = vmatprep.subr.mxu0 0.0
    %6092 = vmatpush2.msra.mxu0 0.0
    %6093 = vmatprep.subr.mxu0 0.0
    %6094 = vmatpush2.msra.mxu0 0.0
    %6095 = vmatprep.subr.mxu0 0.0
    %6096 = vmatpush2.msra.mxu0 0.0
    %6097 = vmatprep.subr.mxu0 0.0
    %6098 = vmatpush2.msra.mxu0 0.0
    %6099 = vmatprep.mubr.f32.mxu0 0.0
    %6100 = vmatmul.mubr.f32.gmra.mxu0 %v6030
    %v6101 = vpop.f32.mrf.mxu0
    %v6102 = vadd.f32 %v635, %v6101
    %v6103 = vpop.f32.mrf.mxu0
    %6104 = vmatprep.mubr.f32.mxu0 0.0
    %6105 = vmatmul.mubr.f32.gmra.mxu0 %v6033
    %v6106 = vpop.f32.mrf.mxu0
    %v6107 = vadd.f32 %v635, %v6106
    %v6108 = vpop.f32.mrf.mxu0
    %6109 = vdwg.mxu0
    %v6110 = vtanh.pop %v6102
    %v6111 = vtanh.pop %v6107
    %v6112 = vmul.f32 %v6110, %v533
    %v6113 = vmul.f32 %v6111, %v538
    %6116 = vrot.lane.b32.xlu0 %v6112, 96
    %v6117 = vpop.permute.xlu0 %6116
    %6118 = vrot.lane.b32.xlu0 %v6113, 96
    %v6119 = vpop.permute.xlu0 %6118
    %v6122 = vadd.f32 %v6112, %v6117
    %v6123 = vadd.f32 %v6113, %v6119
    %6124 = vrot.lane.b32.xlu0 %v6112, 64
    %v6125 = vpop.permute.xlu0 %6124
    %6126 = vrot.lane.b32.xlu0 %v6113, 64
    %v6127 = vpop.permute.xlu0 %6126
    %v6130 = vadd.f32 %v6122, %v6125
    %v6131 = vadd.f32 %v6123, %v6127
    %6132 = vrot.lane.b32.xlu0 %v6112, 32
    %v6133 = vpop.permute.xlu0 %6132
    %6134 = vrot.lane.b32.xlu0 %v6113, 32
    %v6135 = vpop.permute.xlu0 %6134
    %v6138 = vadd.f32 %v6130, %v6133
    %v6139 = vadd.f32 %v6131, %v6135
    %v6140 = vmul.f32 %v5744, 2.0
    %v6141 = vmul.f32 %v5745, 2.0
    %v6142 = vadd.f32 %v5546, %v6140
    %v6143 = vadd.f32 %v5547, %v6141
    %v6144 = vmul.f32 %v5942, 2.0
    %v6145 = vmul.f32 %v5943, 2.0
    %v6146 = vadd.f32 %v6142, %v6144
    %v6147 = vadd.f32 %v6143, %v6145
    %v6148 = vadd.f32 %v6146, %v6138
    %v6149 = vadd.f32 %v6147, %v6139
    %v6150 = vmul.f32 %v6148, 0.16666667
    %v6151 = vmul.f32 %v6149, 0.16666667
    %v6152 = vadd.f32 %v5352, %v6150
    %v6153 = vadd.f32 %v5353, %v6151
    %v6154 = vld [vmem:[%s8] sm:$0xff]
    %v6155 = vld [vmem:[%s8 + $0x8] sm:$0xff]
    %v6156 = vld [vmem:[%s8 + $0x10] sm:$0xff]
    %v6157 = vld [vmem:[%s8 + $0x18] sm:$0xff]
    %v6158 = vmul.f32 %v6152, %v6152
    %v6159 = vmul.f32 %v6153, %v6153
    %v6161 = vsel %vm547, %v6158, 0
    %v6164 = vsel %vm547, %v6159, 0
    %6166 = vmatprep.subr.mxu0 0.0
    %6167 = vmatpush1.msra.mxu0 0.0
    %6168 = vmatprep.subr.mxu0 0.0
    %6169 = vmatpush1.msra.mxu0 0.0
    %6170 = vmatprep.subr.mxu0 0.0
    %6171 = vmatpush1.msra.mxu0 0.0
    %6172 = vmatprep.subr.mxu0 0.0
    %6173 = vmatpush1.msra.mxu0 0.0
    %6174 = vmatprep.subr.mxu0 0.0
    %6175 = vmatpush1.msra.mxu0 0.0
    %6176 = vmatprep.subr.mxu0 0.0
    %6177 = vmatpush1.msra.mxu0 0.0
    %6178 = vmatprep.subr.mxu0 0.0
    %6179 = vmatpush1.msra.mxu0 0.0
    %6180 = vmatprep.subr.mxu0 0.0
    %6181 = vmatpush1.msra.mxu0 0.0
    %6182 = vmatprep.subr.mxu0 0.0
    %6183 = vmatpush1.msra.mxu0 0.0
    %6184 = vmatprep.subr.mxu0 0.0
    %6185 = vmatpush1.msra.mxu0 0.0
    %6186 = vmatprep.subr.mxu0 0.0
    %6187 = vmatpush1.msra.mxu0 0.0
    %6188 = vmatprep.subr.mxu0 0.0
    %6189 = vmatpush1.msra.mxu0 0.0
    %6190 = vmatprep.subr.mxu0 0.0
    %6191 = vmatpush1.msra.mxu0 %v6157
    %6192 = vmatprep.subr.mxu0 0.0
    %6193 = vmatpush1.msra.mxu0 %v6156
    %6194 = vmatprep.subr.mxu0 0.0
    %6195 = vmatpush1.msra.mxu0 %v6155
    %6196 = vmatprep.subr.mxu0 0.0
    %6197 = vmatpush1.msra.mxu0 %v6154
    %6198 = vmatprep.subr.mxu0 0.0
    %6199 = vmatpush2.msra.mxu0 0.0
    %6200 = vmatprep.subr.mxu0 0.0
    %6201 = vmatpush2.msra.mxu0 0.0
    %6202 = vmatprep.subr.mxu0 0.0
    %6203 = vmatpush2.msra.mxu0 0.0
    %6204 = vmatprep.subr.mxu0 0.0
    %6205 = vmatpush2.msra.mxu0 0.0
    %6206 = vmatprep.subr.mxu0 0.0
    %6207 = vmatpush2.msra.mxu0 0.0
    %6208 = vmatprep.subr.mxu0 0.0
    %6209 = vmatpush2.msra.mxu0 0.0
    %6210 = vmatprep.subr.mxu0 0.0
    %6211 = vmatpush2.msra.mxu0 0.0
    %6212 = vmatprep.subr.mxu0 0.0
    %6213 = vmatpush2.msra.mxu0 0.0
    %6214 = vmatprep.subr.mxu0 0.0
    %6215 = vmatpush2.msra.mxu0 0.0
    %6216 = vmatprep.subr.mxu0 0.0
    %6217 = vmatpush2.msra.mxu0 0.0
    %6218 = vmatprep.subr.mxu0 0.0
    %6219 = vmatpush2.msra.mxu0 0.0
    %6220 = vmatprep.subr.mxu0 0.0
    %6221 = vmatpush2.msra.mxu0 0.0
    %6222 = vmatprep.subr.mxu0 0.0
    %6223 = vmatpush2.msra.mxu0 0.0
    %6224 = vmatprep.subr.mxu0 0.0
    %6225 = vmatpush2.msra.mxu0 0.0
    %6226 = vmatprep.subr.mxu0 0.0
    %6227 = vmatpush2.msra.mxu0 0.0
    %6228 = vmatprep.subr.mxu0 0.0
    %6229 = vmatpush2.msra.mxu0 0.0
    %6230 = vmatprep.mubr.f32.mxu0 0.0
    %6231 = vmatmul.mubr.f32.gmra.mxu0 %v6161
    %v6232 = vpop.f32.mrf.mxu0
    %v6233 = vadd.f32 0.0, %v6232
    %v6234 = vpop.f32.mrf.mxu0
    %6235 = vmatprep.mubr.f32.mxu0 0.0
    %6236 = vmatmul.mubr.f32.gmra.mxu0 %v6164
    %v6237 = vpop.f32.mrf.mxu0
    %v6238 = vadd.f32 0.0, %v6237
    %v6239 = vpop.f32.mrf.mxu0
    %6240 = vdwg.mxu0
    %vm6241 = vcmask 130048
    %v6242 = vsel %vm6241, %v6233, -inf
    %6243 = vmax.xlane.f32.xlu0 %v6242
    %v6244 = vpop.xlane.xlu0 %6243
    %v6245 = vsel %vm6241, %v6238, -inf
    %6246 = vmax.xlane.f32.xlu0 %v6245
    %v6247 = vpop.xlane.xlu0 %6246
    %v6248 = vsub.f32 %v6233, %v6244
    %v6249 = vsub.f32 %v6238, %v6247
    %v6250 = vmul.f32 %v6248, 1.442695
    %v6251 = vpow.pop %v6250
    %v6252 = vmul.f32 %v6249, 1.442695
    %v6253 = vpow.pop %v6252
    %v6254 = vsel %vm6241, %v6251, 0.0
    %6255 = vadd.xlane.f32.xlu0 %v6254
    %v6256 = vpop.xlane.xlu0 %6255
    %v6257 = vsel %vm6241, %v6253, 0.0
    %6258 = vadd.xlane.f32.xlu0 %v6257
    %v6259 = vpop.xlane.xlu0 %6258
    %v6260 = vrcp.pop %v6256
    %v6261 = vmul.f32 %v6251, %v6260
    %v6262 = vrcp.pop %v6259
    %v6263 = vmul.f32 %v6253, %v6262
    %6264 = vst.msk [vmem:[#allocation7] sm:$0xff] %vm6241, %v6261
    %6265 = vst.msk [vmem:[#allocation7 + $0x8] sm:$0xff] %vm6241, %v6263
    // Predicated region
    $region46: #{tpu_custom_call.1} parent=1 // pred_check
      _
    $region47: #{tpu_custom_call.1} parent=1 // pred_check_branch
      %6267 = sbr.rel (0) target = $region49
    $region48: #{tpu_custom_call.1} parent=1 // pred_region
      %s6269 = ssub.s32 256, 256
      %6270 = vsyncadd [#allocation4], %s6269
      %s6271 = sshll.u32 [#allocation7], 4
      %s6272 = int_to_ptr.vmem [resolvable:$true] %s6271
      %6277 = dma.vmem_to_hbm [thread:$0]  %s6272, 256, %s9, [#allocation4], 128, 128, 8
    $region49: #{tpu_custom_call.1} parent=1 // pred_fallthru
      _
    // Predicated region
    $region50: #{tpu_custom_call.1} parent=1 // pred_check
      _
    $region51: #{tpu_custom_call.1} parent=1 // pred_check_branch
      %6279 = sbr.rel (0) target = $region53
    $region52: #{tpu_custom_call.1} parent=1 // pred_region
      %6280 = dma.done [#allocation4], 256
    $region53: #{tpu_custom_call.1} parent=1 // pred_fallthru
      _
    %6281 = vsyncpa [#allocation3], 1
    %6282 = vsyncpa [#allocation6], 1
    %6283 = vsyncpa [#allocation4], 1

</llo_original>
